<compile_context>
chip_gen: v5e
topology: v5e:2x2
jax: 0.10.0
libtpu: 0.0.40
codegen_flags: <defaults>
</compile_context>

<pallas_src>
import functools

import jax
import jax.numpy as jnp
from jax.experimental import pallas as pl
from jax.experimental.pallas import tpu as pltpu


# ------------------------------ dimensions --------------------------------

_IN_DIM = 400 * 167  # 66800
# encoder: 66800 -> 400 -> 128 -> 64 -> 12 -> 5
# decoder: 5 -> 12 -> 64 -> 128 -> 400 -> 66800 -> Sigmoid
_LAYER_DIMS = [_IN_DIM, 400, 128, 64, 12, 5, 12, 64, 128, 400, _IN_DIM]

_TM = 8        # row tile (batch is tiny; padded once to 8)
_TK1 = 2048    # K tile for layer 1  (66800 -> 67584 padded K, 1.2% waste)
_TN10 = 2048   # N tile for layer 10 (66800 -> 67584 padded N, 1.2% waste)

# padded middle-layer chain: keep the 400-wide interfaces (so the big weights
# need no padding along their small dim), round every inner dim up to 128.
_MID_DIMS_TRUE = _LAYER_DIMS[1:-1]            # [400,128,64,12,5,12,64,128,400]
_MID_DIMS_PAD = [400] + [128] * 7 + [400]


def _round_up(x, m):
    return ((x + m - 1) // m) * m


# ------------------------ big-layer tiled matmul ---------------------------

def _linear_kernel(x_ref, w_ref, b_ref, o_ref, *, apply_sigmoid):
    """One (tm, tn) output tile; grid axis 2 reduces over K.

    The f32 output block is used directly as the accumulator (its block index
    is constant across the K axis, so it stays resident in VMEM)."""
    k = pl.program_id(2)

    @pl.when(k == 0)
    def _():
        o_ref[...] = jnp.zeros_like(o_ref)

    o_ref[...] += jnp.dot(x_ref[...], w_ref[...],
                          preferred_element_type=jnp.float32)

    @pl.when(k == pl.num_programs(2) - 1)
    def _():
        out = o_ref[...] + b_ref[...]
        if apply_sigmoid:
            out = jax.nn.sigmoid(out)
        o_ref[...] = out


def linear_pallas(x, w, b, *, tm, tn, tk, apply_sigmoid=False):
    """y = x @ w + b (optionally sigmoid).

    x: (M, K) f32.  w: (Kp, Np) f32 pre-padded so Kp % tk == 0 and Np % tn == 0.
    b: (1, Np) f32 pre-padded.  Only the activation x is padded here (cheap);
    weights must already be padded outside jit.  Returns (Mp, Np)."""
    m, k_dim = x.shape
    kp, np_ = w.shape
    assert b.shape == (1, np_)
    assert kp % tk == 0 and np_ % tn == 0, (kp, tk, np_, tn)
    assert k_dim <= kp

    mp = _round_up(m, tm)
    if (mp, kp) != (m, k_dim):
        x = jnp.pad(x, ((0, mp - m), (0, kp - k_dim)))

    grid = (mp // tm, np_ // tn, kp // tk)
    kernel = functools.partial(_linear_kernel, apply_sigmoid=apply_sigmoid)

    return pl.pallas_call(
        kernel,
        out_shape=jax.ShapeDtypeStruct((mp, np_), jnp.float32),
        grid_spec=pltpu.PrefetchScalarGridSpec(
            num_scalar_prefetch=0,
            grid=grid,
            in_specs=[
                pl.BlockSpec((tm, tk), lambda i, j, k: (i, k)),
                pl.BlockSpec((tk, tn), lambda i, j, k: (k, j)),
                pl.BlockSpec((1, tn), lambda i, j, k: (0, j)),
            ],
            out_specs=pl.BlockSpec((tm, tn), lambda i, j, k: (i, j)),
        ),
        compiler_params=pltpu.CompilerParams(
            dimension_semantics=("parallel", "parallel", "arbitrary"),
            vmem_limit_bytes=32 * 1024 * 1024,
        ),
    )(x, w, b)


# ---------------------- fused tiny middle layers ---------------------------

def _mlp_middle_kernel(*refs):
    """All eight middle linears in one kernel; everything resident in VMEM."""
    h_ref, *wb_refs, o_ref = refs
    h = h_ref[...]
    for i in range(0, len(wb_refs), 2):
        w = wb_refs[i][...]
        bias = wb_refs[i + 1][...]
        h = jnp.dot(h, w, preferred_element_type=jnp.float32) + bias
    o_ref[...] = h


def fused_middle_pallas(h, ws, bs):
    m = h.shape[0]
    out_dim = ws[-1].shape[1]
    flat = []
    for w, b in zip(ws, bs):
        flat.extend((w, b))
    vmem_spec = pl.BlockSpec(memory_space=pltpu.MemorySpace.VMEM)
    return pl.pallas_call(
        _mlp_middle_kernel,
        out_shape=jax.ShapeDtypeStruct((m, out_dim), jnp.float32),
        in_specs=[vmem_spec] * (1 + len(flat)),
        out_specs=vmem_spec,
    )(h, *flat)


# ------------------------------- params ------------------------------------

def init_params(key):
    """Raw params mirroring torch.nn.Linear default init, stored (in, out)."""
    params = []
    for fan_in, fan_out in zip(_LAYER_DIMS[:-1], _LAYER_DIMS[1:]):
        key, kw, kb = jax.random.split(key, 3)
        bound = 1.0 / (fan_in ** 0.5)
        w = jax.random.uniform(kw, (fan_in, fan_out), jnp.float32,
                               minval=-bound, maxval=bound)
        b = jax.random.uniform(kb, (fan_out,), jnp.float32,
                               minval=-bound, maxval=bound)
        params.append((w, b))
    return params


def prepare_params(raw_params):
    """One-time (outside-jit) padding / layout of the weights for the kernels."""
    (w1, b1) = raw_params[0]
    mids = raw_params[1:-1]
    (w10, b10) = raw_params[-1]

    # layer 1: pad K (rows) to a multiple of the K tile; N (=400) needs no pad.
    kp1 = _round_up(w1.shape[0], _TK1)
    w1p = jnp.pad(w1, ((0, kp1 - w1.shape[0]), (0, 0)))
    b1p = b1.reshape(1, -1)

    # middle layers: pad inner dims to 128; zero padding propagates exactly.
    mid_ws, mid_bs = [], []
    for (w, b), din_p, dout_p in zip(mids, _MID_DIMS_PAD[:-1], _MID_DIMS_PAD[1:]):
        wp = jnp.pad(w, ((0, din_p - w.shape[0]), (0, dout_p - w.shape[1])))
        bp = jnp.pad(b.reshape(1, -1), ((0, 0), (0, dout_p - b.shape[0])))
        mid_ws.append(wp)
        mid_bs.append(bp)

    # layer 10: pad N (cols) to a multiple of the N tile; K (=400) needs no pad.
    np10 = _round_up(w10.shape[1], _TN10)
    w10p = jnp.pad(w10, ((0, 0), (0, np10 - w10.shape[1])))
    b10p = jnp.pad(b10.reshape(1, -1), ((0, 0), (0, np10 - b10.shape[0])))

    return {"w1": w1p, "b1": b1p,
            "mid_ws": mid_ws, "mid_bs": mid_bs,
            "w10": w10p, "b10": b10p}


# ------------------------------- forward ------------------------------------

def ate_forward(params, x):
    """Full forward pass: encoder + decoder, sigmoid fused into the last layer."""
    m = x.shape[0]
    h = linear_pallas(x, params["w1"], params["b1"],
                      tm=_TM, tn=400, tk=_TK1)                      # (8, 400)
    h = fused_middle_pallas(h, params["mid_ws"], params["mid_bs"])  # (8, 400)
    y = linear_pallas(h, params["w10"], params["b10"],
                      tm=_TM, tn=_TN10, tk=400, apply_sigmoid=True)  # (8, 67584)
    return y[:m, :_IN_DIM]


# --------------------------------- main -------------------------------------

if __name__ == "__main__":
    key = jax.random.PRNGKey(0)
    key, kx = jax.random.split(key)

    batch = 2  # feature dim is fixed by the module (400*167)
    x = jax.random.normal(kx, (batch, _IN_DIM), dtype=jnp.float32)

    raw_params = init_params(key)
    params = prepare_params(raw_params)   # one-time padding, outside jit

    fwd = jax.jit(ate_forward)
    y = jax.block_until_ready(fwd(params, x))

    # Sanity checks: shape, finiteness, sigmoid output range.
    assert y.shape == (batch, _IN_DIM), y.shape
    assert bool(jnp.all(jnp.isfinite(y)))
    assert bool(jnp.all((y >= 0.0) & (y <= 1.0)))

    # Cross-check against a plain-JAX reference of the original module.
    def reference(rp, xx):
        h = xx
        for w, b in rp:
            h = jnp.dot(h, w, precision=jax.lax.Precision.HIGHEST) + b
        return jax.nn.sigmoid(h)

    y_ref = jax.block_until_ready(jax.jit(reference)(raw_params, x))
    max_err = float(jnp.max(jnp.abs(y - y_ref)))
    assert max_err < 5e-3, f"max abs err {max_err}"

    print("KERNEL_OK")
</pallas_src>

<mosaic_0001>
module attributes {stable_mosaic.version = 11 : i64} {
  func.func @_linear_kernel(%arg0: i32, %arg1: i32, %arg2: i32, %arg3: memref<8x2048xf32, #tpu.memory_space<vmem>>, %arg4: memref<2048x400xf32, #tpu.memory_space<vmem>>, %arg5: memref<1x400xf32, #tpu.memory_space<vmem>>, %arg6: memref<8x400xf32, #tpu.memory_space<vmem>>) attributes {dimension_semantics = [#tpu.dimension_semantics<parallel>, #tpu.dimension_semantics<parallel>, #tpu.dimension_semantics<arbitrary>], iteration_bounds = array<i64: 1, 1, 33>, scalar_prefetch = 0 : i64, scratch_operands = 0 : i64, tpu.core_type = #tpu.core_type<tc>, window_params = [{transform_indices = @transform_0, window_bounds = array<i64: 8, 2048>}, {transform_indices = @transform_1, window_bounds = array<i64: 2048, 400>}, {transform_indices = @transform_2, window_bounds = array<i64: 1, 400>}, {transform_indices = @transform_3, window_bounds = array<i64: 8, 400>}]} {
    %c0_i32 = arith.constant 0 : i32
    %0 = arith.cmpi eq, %arg2, %c0_i32 : i32
    %1 = arith.extui %0 : i1 to i32
    %c0_i32_0 = arith.constant 0 : i32
    %2 = arith.cmpi ne, %1, %c0_i32_0 : i32
    scf.if %2 {
      %cst_9 = arith.constant 0.000000e+00 : f32
      %12 = vector.broadcast %cst_9 : f32 to vector<8x400xf32>
      %c0_10 = arith.constant 0 : index
      %c0_11 = arith.constant 0 : index
      %13 = vector.load %arg6[%c0_10, %c0_11] : memref<8x400xf32, #tpu.memory_space<vmem>>, vector<8x400xf32>
      tpu.vector_store %arg6[%c0_10, %c0_11], %12 {strides = array<i32>} : memref<8x400xf32, #tpu.memory_space<vmem>>, vector<8x400xf32>,
    } else {
    }
    %c0 = arith.constant 0 : index
    %c0_1 = arith.constant 0 : index
    %3 = vector.load %arg6[%c0, %c0_1] : memref<8x400xf32, #tpu.memory_space<vmem>>, vector<8x400xf32>
    %c0_2 = arith.constant 0 : index
    %c0_3 = arith.constant 0 : index
    %4 = vector.load %arg3[%c0_2, %c0_3] : memref<8x2048xf32, #tpu.memory_space<vmem>>, vector<8x2048xf32>
    %c0_4 = arith.constant 0 : index
    %c0_5 = arith.constant 0 : index
    %5 = vector.load %arg4[%c0_4, %c0_5] : memref<2048x400xf32, #tpu.memory_space<vmem>>, vector<2048x400xf32>
    %cst = arith.constant dense<0.000000e+00> : vector<8x400xf32>
    %6 = tpu.matmul %4, %5, %cst {dimension_numbers = #tpu.dot_dimension_numbers<[1], [0], [0], [1], [0, 0, 1, 1], [], []>} : vector<8x2048xf32>, vector<2048x400xf32>, vector<8x400xf32> -> vector<8x400xf32>
    %7 = arith.addf %3, %6 : vector<8x400xf32>
    %c0_6 = arith.constant 0 : index
    %c0_7 = arith.constant 0 : index
    %8 = vector.load %arg6[%c0_6, %c0_7] : memref<8x400xf32, #tpu.memory_space<vmem>>, vector<8x400xf32>
    tpu.vector_store %arg6[%c0_6, %c0_7], %7 {strides = array<i32>} : memref<8x400xf32, #tpu.memory_space<vmem>>, vector<8x400xf32>,
    %c32_i32 = arith.constant 32 : i32
    %9 = arith.cmpi eq, %arg2, %c32_i32 : i32
    %10 = arith.extui %9 : i1 to i32
    %c0_i32_8 = arith.constant 0 : i32
    %11 = arith.cmpi ne, %10, %c0_i32_8 : i32
    scf.if %11 {
      %c0_9 = arith.constant 0 : index
      %c0_10 = arith.constant 0 : index
      %12 = vector.load %arg6[%c0_9, %c0_10] : memref<8x400xf32, #tpu.memory_space<vmem>>, vector<8x400xf32>
      %c0_11 = arith.constant 0 : index
      %c0_12 = arith.constant 0 : index
      %13 = vector.load %arg5[%c0_11, %c0_12] : memref<1x400xf32, #tpu.memory_space<vmem>>, vector<1x400xf32>
      %14 = vector.broadcast %13 : vector<1x400xf32> to vector<8x400xf32>
      %15 = arith.addf %12, %14 : vector<8x400xf32>
      %c0_13 = arith.constant 0 : index
      %c0_14 = arith.constant 0 : index
      %16 = vector.load %arg6[%c0_13, %c0_14] : memref<8x400xf32, #tpu.memory_space<vmem>>, vector<8x400xf32>
      tpu.vector_store %arg6[%c0_13, %c0_14], %15 {strides = array<i32>} : memref<8x400xf32, #tpu.memory_space<vmem>>, vector<8x400xf32>,
    } else {
    }
    return
  }
  func.func @transform_0(%arg0: i32, %arg1: i32, %arg2: i32) -> (i32, i32) {
    %c0_i32 = arith.constant 0 : i32
    return %arg0, %arg2 : i32, i32
  }
  func.func @transform_1(%arg0: i32, %arg1: i32, %arg2: i32) -> (i32, i32) {
    %c0_i32 = arith.constant 0 : i32
    return %arg2, %arg1 : i32, i32
  }
  func.func @transform_2(%arg0: i32, %arg1: i32, %arg2: i32) -> (i32, i32) {
    %c0_i32 = arith.constant 0 : i32
    %c0_i32_0 = arith.constant 0 : i32
    return %c0_i32, %arg1 : i32, i32
  }
  func.func @transform_3(%arg0: i32, %arg1: i32, %arg2: i32) -> (i32, i32) {
    %c0_i32 = arith.constant 0 : i32
    return %arg0, %arg1 : i32, i32
  }
}

module attributes {stable_mosaic.version = 11 : i64} {
  func.func @_mlp_middle_kernel(%arg0: memref<8x400xf32, #tpu.memory_space<vmem>>, %arg1: memref<400x128xf32, #tpu.memory_space<vmem>>, %arg2: memref<1x128xf32, #tpu.memory_space<vmem>>, %arg3: memref<128x128xf32, #tpu.memory_space<vmem>>, %arg4: memref<1x128xf32, #tpu.memory_space<vmem>>, %arg5: memref<128x128xf32, #tpu.memory_space<vmem>>, %arg6: memref<1x128xf32, #tpu.memory_space<vmem>>, %arg7: memref<128x128xf32, #tpu.memory_space<vmem>>, %arg8: memref<1x128xf32, #tpu.memory_space<vmem>>, %arg9: memref<128x128xf32, #tpu.memory_space<vmem>>, %arg10: memref<1x128xf32, #tpu.memory_space<vmem>>, %arg11: memref<128x128xf32, #tpu.memory_space<vmem>>, %arg12: memref<1x128xf32, #tpu.memory_space<vmem>>, %arg13: memref<128x128xf32, #tpu.memory_space<vmem>>, %arg14: memref<1x128xf32, #tpu.memory_space<vmem>>, %arg15: memref<128x400xf32, #tpu.memory_space<vmem>>, %arg16: memref<1x400xf32, #tpu.memory_space<vmem>>, %arg17: memref<8x400xf32, #tpu.memory_space<vmem>>) attributes {dimension_semantics = [], scalar_prefetch = 0 : i64, scratch_operands = 0 : i64, tpu.core_type = #tpu.core_type<tc>} {
    %c0 = arith.constant 0 : index
    %c0_0 = arith.constant 0 : index
    %0 = vector.load %arg0[%c0, %c0_0] : memref<8x400xf32, #tpu.memory_space<vmem>>, vector<8x400xf32>
    %c0_1 = arith.constant 0 : index
    %c0_2 = arith.constant 0 : index
    %1 = vector.load %arg1[%c0_1, %c0_2] : memref<400x128xf32, #tpu.memory_space<vmem>>, vector<400x128xf32>
    %c0_3 = arith.constant 0 : index
    %c0_4 = arith.constant 0 : index
    %2 = vector.load %arg2[%c0_3, %c0_4] : memref<1x128xf32, #tpu.memory_space<vmem>>, vector<1x128xf32>
    %cst = arith.constant dense<0.000000e+00> : vector<8x128xf32>
    %3 = tpu.matmul %0, %1, %cst {dimension_numbers = #tpu.dot_dimension_numbers<[1], [0], [0], [1], [0, 0, 1, 1], [], []>} : vector<8x400xf32>, vector<400x128xf32>, vector<8x128xf32> -> vector<8x128xf32>
    %4 = vector.broadcast %2 : vector<1x128xf32> to vector<8x128xf32>
    %5 = arith.addf %3, %4 : vector<8x128xf32>
    %c0_5 = arith.constant 0 : index
    %c0_6 = arith.constant 0 : index
    %6 = vector.load %arg3[%c0_5, %c0_6] : memref<128x128xf32, #tpu.memory_space<vmem>>, vector<128x128xf32>
    %c0_7 = arith.constant 0 : index
    %c0_8 = arith.constant 0 : index
    %7 = vector.load %arg4[%c0_7, %c0_8] : memref<1x128xf32, #tpu.memory_space<vmem>>, vector<1x128xf32>
    %cst_9 = arith.constant dense<0.000000e+00> : vector<8x128xf32>
    %8 = tpu.matmul %5, %6, %cst_9 {dimension_numbers = #tpu.dot_dimension_numbers<[1], [0], [0], [1], [0, 0, 1, 1], [], []>} : vector<8x128xf32>, vector<128x128xf32>, vector<8x128xf32> -> vector<8x128xf32>
    %9 = vector.broadcast %7 : vector<1x128xf32> to vector<8x128xf32>
    %10 = arith.addf %8, %9 : vector<8x128xf32>
    %c0_10 = arith.constant 0 : index
    %c0_11 = arith.constant 0 : index
    %11 = vector.load %arg5[%c0_10, %c0_11] : memref<128x128xf32, #tpu.memory_space<vmem>>, vector<128x128xf32>
    %c0_12 = arith.constant 0 : index
    %c0_13 = arith.constant 0 : index
    %12 = vector.load %arg6[%c0_12, %c0_13] : memref<1x128xf32, #tpu.memory_space<vmem>>, vector<1x128xf32>
    %cst_14 = arith.constant dense<0.000000e+00> : vector<8x128xf32>
    %13 = tpu.matmul %10, %11, %cst_14 {dimension_numbers = #tpu.dot_dimension_numbers<[1], [0], [0], [1], [0, 0, 1, 1], [], []>} : vector<8x128xf32>, vector<128x128xf32>, vector<8x128xf32> -> vector<8x128xf32>
    %14 = vector.broadcast %12 : vector<1x128xf32> to vector<8x128xf32>
    %15 = arith.addf %13, %14 : vector<8x128xf32>
    %c0_15 = arith.constant 0 : index
    %c0_16 = arith.constant 0 : index
    %16 = vector.load %arg7[%c0_15, %c0_16] : memref<128x128xf32, #tpu.memory_space<vmem>>, vector<128x128xf32>
    %c0_17 = arith.constant 0 : index
    %c0_18 = arith.constant 0 : index
    %17 = vector.load %arg8[%c0_17, %c0_18] : memref<1x128xf32, #tpu.memory_space<vmem>>, vector<1x128xf32>
    %cst_19 = arith.constant dense<0.000000e+00> : vector<8x128xf32>
    %18 = tpu.matmul %15, %16, %cst_19 {dimension_numbers = #tpu.dot_dimension_numbers<[1], [0], [0], [1], [0, 0, 1, 1], [], []>} : vector<8x128xf32>, vector<128x128xf32>, vector<8x128xf32> -> vector<8x128xf32>
    %19 = vector.broadcast %17 : vector<1x128xf32> to vector<8x128xf32>
    %20 = arith.addf %18, %19 : vector<8x128xf32>
    %c0_20 = arith.constant 0 : index
    %c0_21 = arith.constant 0 : index
    %21 = vector.load %arg9[%c0_20, %c0_21] : memref<128x128xf32, #tpu.memory_space<vmem>>, vector<128x128xf32>
    %c0_22 = arith.constant 0 : index
    %c0_23 = arith.constant 0 : index
    %22 = vector.load %arg10[%c0_22, %c0_23] : memref<1x128xf32, #tpu.memory_space<vmem>>, vector<1x128xf32>
    %cst_24 = arith.constant dense<0.000000e+00> : vector<8x128xf32>
    %23 = tpu.matmul %20, %21, %cst_24 {dimension_numbers = #tpu.dot_dimension_numbers<[1], [0], [0], [1], [0, 0, 1, 1], [], []>} : vector<8x128xf32>, vector<128x128xf32>, vector<8x128xf32> -> vector<8x128xf32>
    %24 = vector.broadcast %22 : vector<1x128xf32> to vector<8x128xf32>
    %25 = arith.addf %23, %24 : vector<8x128xf32>
    %c0_25 = arith.constant 0 : index
    %c0_26 = arith.constant 0 : index
    %26 = vector.load %arg11[%c0_25, %c0_26] : memref<128x128xf32, #tpu.memory_space<vmem>>, vector<128x128xf32>
    %c0_27 = arith.constant 0 : index
    %c0_28 = arith.constant 0 : index
    %27 = vector.load %arg12[%c0_27, %c0_28] : memref<1x128xf32, #tpu.memory_space<vmem>>, vector<1x128xf32>
    %cst_29 = arith.constant dense<0.000000e+00> : vector<8x128xf32>
    %28 = tpu.matmul %25, %26, %cst_29 {dimension_numbers = #tpu.dot_dimension_numbers<[1], [0], [0], [1], [0, 0, 1, 1], [], []>} : vector<8x128xf32>, vector<128x128xf32>, vector<8x128xf32> -> vector<8x128xf32>
    %29 = vector.broadcast %27 : vector<1x128xf32> to vector<8x128xf32>
    %30 = arith.addf %28, %29 : vector<8x128xf32>
    %c0_30 = arith.constant 0 : index
    %c0_31 = arith.constant 0 : index
    %31 = vector.load %arg13[%c0_30, %c0_31] : memref<128x128xf32, #tpu.memory_space<vmem>>, vector<128x128xf32>
    %c0_32 = arith.constant 0 : index
    %c0_33 = arith.constant 0 : index
    %32 = vector.load %arg14[%c0_32, %c0_33] : memref<1x128xf32, #tpu.memory_space<vmem>>, vector<1x128xf32>
    %cst_34 = arith.constant dense<0.000000e+00> : vector<8x128xf32>
    %33 = tpu.matmul %30, %31, %cst_34 {dimension_numbers = #tpu.dot_dimension_numbers<[1], [0], [0], [1], [0, 0, 1, 1], [], []>} : vector<8x128xf32>, vector<128x128xf32>, vector<8x128xf32> -> vector<8x128xf32>
    %34 = vector.broadcast %32 : vector<1x128xf32> to vector<8x128xf32>
    %35 = arith.addf %33, %34 : vector<8x128xf32>
    %c0_35 = arith.constant 0 : index
    %c0_36 = arith.constant 0 : index
    %36 = vector.load %arg15[%c0_35, %c0_36] : memref<128x400xf32, #tpu.memory_space<vmem>>, vector<128x400xf32>
    %c0_37 = arith.constant 0 : index
    %c0_38 = arith.constant 0 : index
    %37 = vector.load %arg16[%c0_37, %c0_38] : memref<1x400xf32, #tpu.memory_space<vmem>>, vector<1x400xf32>
    %cst_39 = arith.constant dense<0.000000e+00> : vector<8x400xf32>
    %38 = tpu.matmul %35, %36, %cst_39 {dimension_numbers = #tpu.dot_dimension_numbers<[1], [0], [0], [1], [0, 0, 1, 1], [], []>} : vector<8x128xf32>, vector<128x400xf32>, vector<8x400xf32> -> vector<8x400xf32>
    %39 = vector.broadcast %37 : vector<1x400xf32> to vector<8x400xf32>
    %40 = arith.addf %38, %39 : vector<8x400xf32>
    %c0_40 = arith.constant 0 : index
    %c0_41 = arith.constant 0 : index
    %41 = vector.load %arg17[%c0_40, %c0_41] : memref<8x400xf32, #tpu.memory_space<vmem>>, vector<8x400xf32>
    tpu.vector_store %arg17[%c0_40, %c0_41], %40 {strides = array<i32>} : memref<8x400xf32, #tpu.memory_space<vmem>>, vector<8x400xf32>,
    return
  }
}

module attributes {stable_mosaic.version = 11 : i64} {
  func.func @_linear_kernel(%arg0: i32, %arg1: i32, %arg2: i32, %arg3: memref<8x400xf32, #tpu.memory_space<vmem>>, %arg4: memref<400x2048xf32, #tpu.memory_space<vmem>>, %arg5: memref<1x2048xf32, #tpu.memory_space<vmem>>, %arg6: memref<8x2048xf32, #tpu.memory_space<vmem>>) attributes {dimension_semantics = [#tpu.dimension_semantics<parallel>, #tpu.dimension_semantics<parallel>, #tpu.dimension_semantics<arbitrary>], iteration_bounds = array<i64: 1, 33, 1>, scalar_prefetch = 0 : i64, scratch_operands = 0 : i64, tpu.core_type = #tpu.core_type<tc>, window_params = [{transform_indices = @transform_0, window_bounds = array<i64: 8, 400>}, {transform_indices = @transform_1, window_bounds = array<i64: 400, 2048>}, {transform_indices = @transform_2, window_bounds = array<i64: 1, 2048>}, {transform_indices = @transform_3, window_bounds = array<i64: 8, 2048>}]} {
    %c0_i32 = arith.constant 0 : i32
    %0 = arith.cmpi eq, %arg2, %c0_i32 : i32
    %1 = arith.extui %0 : i1 to i32
    %c0_i32_0 = arith.constant 0 : i32
    %2 = arith.cmpi ne, %1, %c0_i32_0 : i32
    scf.if %2 {
      %cst_10 = arith.constant 0.000000e+00 : f32
      %12 = vector.broadcast %cst_10 : f32 to vector<8x2048xf32>
      %c0_11 = arith.constant 0 : index
      %c0_12 = arith.constant 0 : index
      %13 = vector.load %arg6[%c0_11, %c0_12] : memref<8x2048xf32, #tpu.memory_space<vmem>>, vector<8x2048xf32>
      tpu.vector_store %arg6[%c0_11, %c0_12], %12 {strides = array<i32>} : memref<8x2048xf32, #tpu.memory_space<vmem>>, vector<8x2048xf32>,
    } else {
    }
    %c0 = arith.constant 0 : index
    %c0_1 = arith.constant 0 : index
    %3 = vector.load %arg6[%c0, %c0_1] : memref<8x2048xf32, #tpu.memory_space<vmem>>, vector<8x2048xf32>
    %c0_2 = arith.constant 0 : index
    %c0_3 = arith.constant 0 : index
    %4 = vector.load %arg3[%c0_2, %c0_3] : memref<8x400xf32, #tpu.memory_space<vmem>>, vector<8x400xf32>
    %c0_4 = arith.constant 0 : index
    %c0_5 = arith.constant 0 : index
    %5 = vector.load %arg4[%c0_4, %c0_5] : memref<400x2048xf32, #tpu.memory_space<vmem>>, vector<400x2048xf32>
    %cst = arith.constant dense<0.000000e+00> : vector<8x2048xf32>
    %6 = tpu.matmul %4, %5, %cst {dimension_numbers = #tpu.dot_dimension_numbers<[1], [0], [0], [1], [0, 0, 1, 1], [], []>} : vector<8x400xf32>, vector<400x2048xf32>, vector<8x2048xf32> -> vector<8x2048xf32>
    %7 = arith.addf %3, %6 : vector<8x2048xf32>
    %c0_6 = arith.constant 0 : index
    %c0_7 = arith.constant 0 : index
    %8 = vector.load %arg6[%c0_6, %c0_7] : memref<8x2048xf32, #tpu.memory_space<vmem>>, vector<8x2048xf32>
    tpu.vector_store %arg6[%c0_6, %c0_7], %7 {strides = array<i32>} : memref<8x2048xf32, #tpu.memory_space<vmem>>, vector<8x2048xf32>,
    %c0_i32_8 = arith.constant 0 : i32
    %9 = arith.cmpi eq, %arg2, %c0_i32_8 : i32
    %10 = arith.extui %9 : i1 to i32
    %c0_i32_9 = arith.constant 0 : i32
    %11 = arith.cmpi ne, %10, %c0_i32_9 : i32
    scf.if %11 {
      %c0_10 = arith.constant 0 : index
      %c0_11 = arith.constant 0 : index
      %12 = vector.load %arg6[%c0_10, %c0_11] : memref<8x2048xf32, #tpu.memory_space<vmem>>, vector<8x2048xf32>
      %c0_12 = arith.constant 0 : index
      %c0_13 = arith.constant 0 : index
      %13 = vector.load %arg5[%c0_12, %c0_13] : memref<1x2048xf32, #tpu.memory_space<vmem>>, vector<1x2048xf32>
      %14 = vector.broadcast %13 : vector<1x2048xf32> to vector<8x2048xf32>
      %15 = arith.addf %12, %14 : vector<8x2048xf32>
      %16 = arith.negf %15 : vector<8x2048xf32>
      %17 = math.exp %16 : vector<8x2048xf32>
      %cst_14 = arith.constant 1.000000e+00 : f32
      %18 = vector.broadcast %cst_14 : f32 to vector<8x2048xf32>
      %19 = arith.addf %18, %17 : vector<8x2048xf32>
      %20 = arith.divf %18, %19 : vector<8x2048xf32>
      %c0_15 = arith.constant 0 : index
      %c0_16 = arith.constant 0 : index
      %21 = vector.load %arg6[%c0_15, %c0_16] : memref<8x2048xf32, #tpu.memory_space<vmem>>, vector<8x2048xf32>
      tpu.vector_store %arg6[%c0_15, %c0_16], %20 {strides = array<i32>} : memref<8x2048xf32, #tpu.memory_space<vmem>>, vector<8x2048xf32>,
    } else {
    }
    return
  }
  func.func @transform_0(%arg0: i32, %arg1: i32, %arg2: i32) -> (i32, i32) {
    %c0_i32 = arith.constant 0 : i32
    return %arg0, %arg2 : i32, i32
  }
  func.func @transform_1(%arg0: i32, %arg1: i32, %arg2: i32) -> (i32, i32) {
    %c0_i32 = arith.constant 0 : i32
    return %arg2, %arg1 : i32, i32
  }
  func.func @transform_2(%arg0: i32, %arg1: i32, %arg2: i32) -> (i32, i32) {
    %c0_i32 = arith.constant 0 : i32
    %c0_i32_0 = arith.constant 0 : i32
    return %c0_i32, %arg1 : i32, i32
  }
  func.func @transform_3(%arg0: i32, %arg1: i32, %arg2: i32) -> (i32, i32) {
    %c0_i32 = arith.constant 0 : i32
    return %arg0, %arg1 : i32, i32
  }
}

</mosaic_0001>

<llo_original>
// kernel: ate_forward.4
$region0: #{ate_forward.4}
  #allocation0 [shape = 'u32[]', space=smem, size = 0x4, offset = 0x4, fixed_abs, tag = 'smem constant byte address 0x4 - core index']
  #allocation1 [shape = 'u32[72,128]{1,0:T(1,128)}', space=vmem, size = 0x9000, scoped, tag = 'internal scratch']
  %s0 = inlined_call_operand.vmem [shape: f32[8,400], index: 0, kind: input, shape index: {}]
  %s1 = inlined_call_operand.vmem [shape: f32[400,128], index: 1, kind: input, shape index: {}]
  %s2 = inlined_call_operand.vmem [shape: f32[1,128], index: 2, kind: input, shape index: {}]
  %s3 = inlined_call_operand.vmem [shape: f32[128,128], index: 3, kind: input, shape index: {}]
  %s4 = inlined_call_operand.vmem [shape: f32[1,128], index: 4, kind: input, shape index: {}]
  %s5 = inlined_call_operand.vmem [shape: f32[128,128], index: 5, kind: input, shape index: {}]
  %s6 = inlined_call_operand.vmem [shape: f32[1,128], index: 6, kind: input, shape index: {}]
  %s7 = inlined_call_operand.vmem [shape: f32[128,128], index: 7, kind: input, shape index: {}]
  %s8 = inlined_call_operand.vmem [shape: f32[1,128], index: 8, kind: input, shape index: {}]
  %s9 = inlined_call_operand.vmem [shape: f32[128,128], index: 9, kind: input, shape index: {}]
  %s10 = inlined_call_operand.vmem [shape: f32[1,128], index: 10, kind: input, shape index: {}]
  %s11 = inlined_call_operand.vmem [shape: f32[128,128], index: 11, kind: input, shape index: {}]
  %s12 = inlined_call_operand.vmem [shape: f32[1,128], index: 12, kind: input, shape index: {}]
  %s13 = inlined_call_operand.vmem [shape: f32[128,128], index: 13, kind: input, shape index: {}]
  %s14 = inlined_call_operand.vmem [shape: f32[1,128], index: 14, kind: input, shape index: {}]
  %s15 = inlined_call_operand.vmem [shape: f32[128,400], index: 15, kind: input, shape index: {}]
  %s16 = inlined_call_operand.vmem [shape: f32[1,400], index: 16, kind: input, shape index: {}]
  %s17 = inlined_call_operand.vmem [shape: f32[8,400], index: 17, kind: output, shape index: {}]
  %s18 = sld [smem:[#allocation0]]
  $region78: #{ate_forward.4} parent=0
    _
  %s20 = ssub.s32 1, %s18
  %s21 = scalar_select 0, %s20, %s18
  // Predicated region
  $region2: #{ate_forward.4} parent=0 // pred_check
    _
  $region3: #{ate_forward.4} parent=0 // pred_check_branch
    %23 = sbr.rel (0) target = $region5
  $region4: #{ate_forward.4} parent=0 // pred_region
    _
  $region5: #{ate_forward.4} parent=0 // pred_fallthru
    _
  // Predicated region
  $region6: #{ate_forward.4} parent=0 // pred_check
    _
  $region7: #{ate_forward.4} parent=0 // pred_check_branch
    %25 = sbr.rel (0) target = $region9
  $region8: #{ate_forward.4} parent=0 // pred_region
    _
  $region9: #{ate_forward.4} parent=0 // pred_fallthru
    _
  // Predicated region
  $region10: #{ate_forward.4} parent=0 // pred_check
    _
  $region11: #{ate_forward.4} parent=0 // pred_check_branch
    %27 = sbr.rel (0) target = $region13
  $region12: #{ate_forward.4} parent=0 // pred_region
    _
  $region13: #{ate_forward.4} parent=0 // pred_fallthru
    _
  // Predicated region
  $region14: #{ate_forward.4} parent=0 // pred_check
    _
  $region15: #{ate_forward.4} parent=0 // pred_check_branch
    %29 = sbr.rel (0) target = $region17
  $region16: #{ate_forward.4} parent=0 // pred_region
    _
  $region17: #{ate_forward.4} parent=0 // pred_fallthru
    _
  // Predicated region
  $region18: #{ate_forward.4} parent=0 // pred_check
    _
  $region19: #{ate_forward.4} parent=0 // pred_check_branch
    %31 = sbr.rel (0) target = $region21
  $region20: #{ate_forward.4} parent=0 // pred_region
    _
  $region21: #{ate_forward.4} parent=0 // pred_fallthru
    _
  // Predicated region
  $region22: #{ate_forward.4} parent=0 // pred_check
    _
  $region23: #{ate_forward.4} parent=0 // pred_check_branch
    %33 = sbr.rel (0) target = $region25
  $region24: #{ate_forward.4} parent=0 // pred_region
    _
  $region25: #{ate_forward.4} parent=0 // pred_fallthru
    _
  // Predicated region
  $region26: #{ate_forward.4} parent=0 // pred_check
    _
  $region27: #{ate_forward.4} parent=0 // pred_check_branch
    %35 = sbr.rel (0) target = $region29
  $region28: #{ate_forward.4} parent=0 // pred_region
    _
  $region29: #{ate_forward.4} parent=0 // pred_fallthru
    _
  // Predicated region
  $region30: #{ate_forward.4} parent=0 // pred_check
    _
  $region31: #{ate_forward.4} parent=0 // pred_check_branch
    %37 = sbr.rel (0) target = $region33
  $region32: #{ate_forward.4} parent=0 // pred_region
    _
  $region33: #{ate_forward.4} parent=0 // pred_fallthru
    _
  // Predicated region
  $region34: #{ate_forward.4} parent=0 // pred_check
    _
  $region35: #{ate_forward.4} parent=0 // pred_check_branch
    %39 = sbr.rel (0) target = $region37
  $region36: #{ate_forward.4} parent=0 // pred_region
    _
  $region37: #{ate_forward.4} parent=0 // pred_fallthru
    _
  // Predicated region
  $region38: #{ate_forward.4} parent=0 // pred_check
    _
  $region39: #{ate_forward.4} parent=0 // pred_check_branch
    %41 = sbr.rel (0) target = $region41
  $region40: #{ate_forward.4} parent=0 // pred_region
    _
  $region41: #{ate_forward.4} parent=0 // pred_fallthru
    _
  // Predicated region
  $region42: #{ate_forward.4} parent=0 // pred_check
    _
  $region43: #{ate_forward.4} parent=0 // pred_check_branch
    %43 = sbr.rel (0) target = $region45
  $region44: #{ate_forward.4} parent=0 // pred_region
    _
  $region45: #{ate_forward.4} parent=0 // pred_fallthru
    _
  // Predicated region
  $region46: #{ate_forward.4} parent=0 // pred_check
    _
  $region47: #{ate_forward.4} parent=0 // pred_check_branch
    %45 = sbr.rel (0) target = $region49
  $region48: #{ate_forward.4} parent=0 // pred_region
    _
  $region49: #{ate_forward.4} parent=0 // pred_fallthru
    _
  // Predicated region
  $region50: #{ate_forward.4} parent=0 // pred_check
    _
  $region51: #{ate_forward.4} parent=0 // pred_check_branch
    %47 = sbr.rel (0) target = $region53
  $region52: #{ate_forward.4} parent=0 // pred_region
    _
  $region53: #{ate_forward.4} parent=0 // pred_fallthru
    _
  // Predicated region
  $region54: #{ate_forward.4} parent=0 // pred_check
    _
  $region55: #{ate_forward.4} parent=0 // pred_check_branch
    %49 = sbr.rel (0) target = $region57
  $region56: #{ate_forward.4} parent=0 // pred_region
    _
  $region57: #{ate_forward.4} parent=0 // pred_fallthru
    _
  // Predicated region
  $region58: #{ate_forward.4} parent=0 // pred_check
    _
  $region59: #{ate_forward.4} parent=0 // pred_check_branch
    %51 = sbr.rel (0) target = $region61
  $region60: #{ate_forward.4} parent=0 // pred_region
    _
  $region61: #{ate_forward.4} parent=0 // pred_fallthru
    _
  // Predicated region
  $region62: #{ate_forward.4} parent=0 // pred_check
    _
  $region63: #{ate_forward.4} parent=0 // pred_check_branch
    %53 = sbr.rel (0) target = $region65
  $region64: #{ate_forward.4} parent=0 // pred_region
    _
  $region65: #{ate_forward.4} parent=0 // pred_fallthru
    _
  // Predicated region
  $region66: #{ate_forward.4} parent=0 // pred_check
    _
  $region67: #{ate_forward.4} parent=0 // pred_check_branch
    %55 = sbr.rel (0) target = $region69
  $region68: #{ate_forward.4} parent=0 // pred_region
    _
  $region69: #{ate_forward.4} parent=0 // pred_fallthru
    _
  %v56 = vld [vmem:[%s0] sm:$0xff]
  %v57 = vld [vmem:[%s0 + $0x8] sm:$0xff]
  %v58 = vld [vmem:[%s0 + $0x10] sm:$0xff]
  %v59 = vld [vmem:[%s0 + $0x18] sm:$0xff]
  %v60 = vld [vmem:[%s1] sm:$0xff]
  %v61 = vld [vmem:[%s1 + $0x8] sm:$0xff]
  %v62 = vld [vmem:[%s1 + $0x10] sm:$0xff]
  %v63 = vld [vmem:[%s1 + $0x18] sm:$0xff]
  %v64 = vld [vmem:[%s1 + $0x20] sm:$0xff]
  %v65 = vld [vmem:[%s1 + $0x28] sm:$0xff]
  %v66 = vld [vmem:[%s1 + $0x30] sm:$0xff]
  %v67 = vld [vmem:[%s1 + $0x38] sm:$0xff]
  %v68 = vld [vmem:[%s1 + $0x40] sm:$0xff]
  %v69 = vld [vmem:[%s1 + $0x48] sm:$0xff]
  %v70 = vld [vmem:[%s1 + $0x50] sm:$0xff]
  %v71 = vld [vmem:[%s1 + $0x58] sm:$0xff]
  %v72 = vld [vmem:[%s1 + $0x60] sm:$0xff]
  %v73 = vld [vmem:[%s1 + $0x68] sm:$0xff]
  %v74 = vld [vmem:[%s1 + $0x70] sm:$0xff]
  %v75 = vld [vmem:[%s1 + $0x78] sm:$0xff]
  %v76 = vld [vmem:[%s1 + $0x80] sm:$0xff]
  %v77 = vld [vmem:[%s1 + $0x88] sm:$0xff]
  %v78 = vld [vmem:[%s1 + $0x90] sm:$0xff]
  %v79 = vld [vmem:[%s1 + $0x98] sm:$0xff]
  %v80 = vld [vmem:[%s1 + $0xa0] sm:$0xff]
  %v81 = vld [vmem:[%s1 + $0xa8] sm:$0xff]
  %v82 = vld [vmem:[%s1 + $0xb0] sm:$0xff]
  %v83 = vld [vmem:[%s1 + $0xb8] sm:$0xff]
  %v84 = vld [vmem:[%s1 + $0xc0] sm:$0xff]
  %v85 = vld [vmem:[%s1 + $0xc8] sm:$0xff]
  %v86 = vld [vmem:[%s1 + $0xd0] sm:$0xff]
  %v87 = vld [vmem:[%s1 + $0xd8] sm:$0xff]
  %v88 = vld [vmem:[%s1 + $0xe0] sm:$0xff]
  %v89 = vld [vmem:[%s1 + $0xe8] sm:$0xff]
  %v90 = vld [vmem:[%s1 + $0xf0] sm:$0xff]
  %v91 = vld [vmem:[%s1 + $0xf8] sm:$0xff]
  %v92 = vld [vmem:[%s1 + $0x100] sm:$0xff]
  %v93 = vld [vmem:[%s1 + $0x108] sm:$0xff]
  %v94 = vld [vmem:[%s1 + $0x110] sm:$0xff]
  %v95 = vld [vmem:[%s1 + $0x118] sm:$0xff]
  %v96 = vld [vmem:[%s1 + $0x120] sm:$0xff]
  %v97 = vld [vmem:[%s1 + $0x128] sm:$0xff]
  %v98 = vld [vmem:[%s1 + $0x130] sm:$0xff]
  %v99 = vld [vmem:[%s1 + $0x138] sm:$0xff]
  %v100 = vld [vmem:[%s1 + $0x140] sm:$0xff]
  %v101 = vld [vmem:[%s1 + $0x148] sm:$0xff]
  %v102 = vld [vmem:[%s1 + $0x150] sm:$0xff]
  %v103 = vld [vmem:[%s1 + $0x158] sm:$0xff]
  %v104 = vld [vmem:[%s1 + $0x160] sm:$0xff]
  %v105 = vld [vmem:[%s1 + $0x168] sm:$0xff]
  %v106 = vld [vmem:[%s1 + $0x170] sm:$0xff]
  %v107 = vld [vmem:[%s1 + $0x178] sm:$0xff]
  %v108 = vld [vmem:[%s1 + $0x180] sm:$0xff]
  %v109 = vld [vmem:[%s1 + $0x188] sm:$0xff]
  %v110 = vld [vmem:[%s2] sm:$0x1]
  %v112 = vperm.slane %v110, 0
  %vm114 = vcmask 130048
  %v116 = vsel %vm114, %v59, 0
  %118 = vmatpush.msra.mxu0 %v75
  %119 = vmatpush.msra.mxu0 %v74
  %120 = vmatpush.msra.mxu0 %v73
  %121 = vmatpush.msra.mxu0 %v72
  %122 = vmatpush.msra.mxu0 %v71
  %123 = vmatpush.msra.mxu0 %v70
  %124 = vmatpush.msra.mxu0 %v69
  %125 = vmatpush.msra.mxu0 %v68
  %126 = vmatpush.msra.mxu0 %v67
  %127 = vmatpush.msra.mxu0 %v66
  %128 = vmatpush.msra.mxu0 %v65
  %129 = vmatpush.msra.mxu0 %v64
  %130 = vmatpush.msra.mxu0 %v63
  %131 = vmatpush.msra.mxu0 %v62
  %132 = vmatpush.msra.mxu0 %v61
  %133 = vmatpush.msra.mxu0 %v60
  %134 = vmatmul.f32.gmra.mxu0 %v56
  %v135 = vpop.f32.mrf.mxu0
  %v136 = vadd.f32 %v112, %v135
  %137 = vdwg.mxu0
  %138 = vmatpush.msra.mxu0 %v91
  %139 = vmatpush.msra.mxu0 %v90
  %140 = vmatpush.msra.mxu0 %v89
  %141 = vmatpush.msra.mxu0 %v88
  %142 = vmatpush.msra.mxu0 %v87
  %143 = vmatpush.msra.mxu0 %v86
  %144 = vmatpush.msra.mxu0 %v85
  %145 = vmatpush.msra.mxu0 %v84
  %146 = vmatpush.msra.mxu0 %v83
  %147 = vmatpush.msra.mxu0 %v82
  %148 = vmatpush.msra.mxu0 %v81
  %149 = vmatpush.msra.mxu0 %v80
  %150 = vmatpush.msra.mxu0 %v79
  %151 = vmatpush.msra.mxu0 %v78
  %152 = vmatpush.msra.mxu0 %v77
  %153 = vmatpush.msra.mxu0 %v76
  %154 = vmatmul.f32.gmra.mxu0 %v57
  %v155 = vpop.f32.mrf.mxu0
  %v156 = vadd.f32 %v136, %v155
  %157 = vdwg.mxu0
  %158 = vmatpush.msra.mxu0 %v107
  %159 = vmatpush.msra.mxu0 %v106
  %160 = vmatpush.msra.mxu0 %v105
  %161 = vmatpush.msra.mxu0 %v104
  %162 = vmatpush.msra.mxu0 %v103
  %163 = vmatpush.msra.mxu0 %v102
  %164 = vmatpush.msra.mxu0 %v101
  %165 = vmatpush.msra.mxu0 %v100
  %166 = vmatpush.msra.mxu0 %v99
  %167 = vmatpush.msra.mxu0 %v98
  %168 = vmatpush.msra.mxu0 %v97
  %169 = vmatpush.msra.mxu0 %v96
  %170 = vmatpush.msra.mxu0 %v95
  %171 = vmatpush.msra.mxu0 %v94
  %172 = vmatpush.msra.mxu0 %v93
  %173 = vmatpush.msra.mxu0 %v92
  %174 = vmatmul.f32.gmra.mxu0 %v58
  %v175 = vpop.f32.mrf.mxu0
  %v176 = vadd.f32 %v156, %v175
  %177 = vdwg.mxu0
  %178 = vmatpush.msra.mxu0 0.0
  %179 = vmatpush.msra.mxu0 0.0
  %180 = vmatpush.msra.mxu0 0.0
  %181 = vmatpush.msra.mxu0 0.0
  %182 = vmatpush.msra.mxu0 0.0
  %183 = vmatpush.msra.mxu0 0.0
  %184 = vmatpush.msra.mxu0 0.0
  %185 = vmatpush.msra.mxu0 0.0
  %186 = vmatpush.msra.mxu0 0.0
  %187 = vmatpush.msra.mxu0 0.0
  %188 = vmatpush.msra.mxu0 0.0
  %189 = vmatpush.msra.mxu0 0.0
  %190 = vmatpush.msra.mxu0 0.0
  %191 = vmatpush.msra.mxu0 0.0
  %192 = vmatpush.msra.mxu0 %v109
  %193 = vmatpush.msra.mxu0 %v108
  %194 = vmatmul.f32.gmra.mxu0 %v116
  %v195 = vpop.f32.mrf.mxu0
  %v196 = vadd.f32 %v176, %v195
  %197 = vdwg.mxu0
  %v198 = vld [vmem:[%s3] sm:$0xff]
  %v199 = vld [vmem:[%s3 + $0x8] sm:$0xff]
  %v200 = vld [vmem:[%s3 + $0x10] sm:$0xff]
  %v201 = vld [vmem:[%s3 + $0x18] sm:$0xff]
  %v202 = vld [vmem:[%s3 + $0x20] sm:$0xff]
  %v203 = vld [vmem:[%s3 + $0x28] sm:$0xff]
  %v204 = vld [vmem:[%s3 + $0x30] sm:$0xff]
  %v205 = vld [vmem:[%s3 + $0x38] sm:$0xff]
  %v206 = vld [vmem:[%s3 + $0x40] sm:$0xff]
  %v207 = vld [vmem:[%s3 + $0x48] sm:$0xff]
  %v208 = vld [vmem:[%s3 + $0x50] sm:$0xff]
  %v209 = vld [vmem:[%s3 + $0x58] sm:$0xff]
  %v210 = vld [vmem:[%s3 + $0x60] sm:$0xff]
  %v211 = vld [vmem:[%s3 + $0x68] sm:$0xff]
  %v212 = vld [vmem:[%s3 + $0x70] sm:$0xff]
  %v213 = vld [vmem:[%s3 + $0x78] sm:$0xff]
  %v214 = vld [vmem:[%s4] sm:$0x1]
  %v216 = vperm.slane %v214, 0
  %218 = vmatpush.msra.mxu0 %v213
  %219 = vmatpush.msra.mxu0 %v212
  %220 = vmatpush.msra.mxu0 %v211
  %221 = vmatpush.msra.mxu0 %v210
  %222 = vmatpush.msra.mxu0 %v209
  %223 = vmatpush.msra.mxu0 %v208
  %224 = vmatpush.msra.mxu0 %v207
  %225 = vmatpush.msra.mxu0 %v206
  %226 = vmatpush.msra.mxu0 %v205
  %227 = vmatpush.msra.mxu0 %v204
  %228 = vmatpush.msra.mxu0 %v203
  %229 = vmatpush.msra.mxu0 %v202
  %230 = vmatpush.msra.mxu0 %v201
  %231 = vmatpush.msra.mxu0 %v200
  %232 = vmatpush.msra.mxu0 %v199
  %233 = vmatpush.msra.mxu0 %v198
  %234 = vmatmul.f32.gmra.mxu0 %v196
  %v235 = vpop.f32.mrf.mxu0
  %v236 = vadd.f32 %v216, %v235
  %237 = vdwg.mxu0
  %v238 = vld [vmem:[%s5] sm:$0xff]
  %v239 = vld [vmem:[%s5 + $0x8] sm:$0xff]
  %v240 = vld [vmem:[%s5 + $0x10] sm:$0xff]
  %v241 = vld [vmem:[%s5 + $0x18] sm:$0xff]
  %v242 = vld [vmem:[%s5 + $0x20] sm:$0xff]
  %v243 = vld [vmem:[%s5 + $0x28] sm:$0xff]
  %v244 = vld [vmem:[%s5 + $0x30] sm:$0xff]
  %v245 = vld [vmem:[%s5 + $0x38] sm:$0xff]
  %v246 = vld [vmem:[%s5 + $0x40] sm:$0xff]
  %v247 = vld [vmem:[%s5 + $0x48] sm:$0xff]
  %v248 = vld [vmem:[%s5 + $0x50] sm:$0xff]
  %v249 = vld [vmem:[%s5 + $0x58] sm:$0xff]
  %v250 = vld [vmem:[%s5 + $0x60] sm:$0xff]
  %v251 = vld [vmem:[%s5 + $0x68] sm:$0xff]
  %v252 = vld [vmem:[%s5 + $0x70] sm:$0xff]
  %v253 = vld [vmem:[%s5 + $0x78] sm:$0xff]
  %v254 = vld [vmem:[%s6] sm:$0x1]
  %v256 = vperm.slane %v254, 0
  %258 = vmatpush.msra.mxu0 %v253
  %259 = vmatpush.msra.mxu0 %v252
  %260 = vmatpush.msra.mxu0 %v251
  %261 = vmatpush.msra.mxu0 %v250
  %262 = vmatpush.msra.mxu0 %v249
  %263 = vmatpush.msra.mxu0 %v248
  %264 = vmatpush.msra.mxu0 %v247
  %265 = vmatpush.msra.mxu0 %v246
  %266 = vmatpush.msra.mxu0 %v245
  %267 = vmatpush.msra.mxu0 %v244
  %268 = vmatpush.msra.mxu0 %v243
  %269 = vmatpush.msra.mxu0 %v242
  %270 = vmatpush.msra.mxu0 %v241
  %271 = vmatpush.msra.mxu0 %v240
  %272 = vmatpush.msra.mxu0 %v239
  %273 = vmatpush.msra.mxu0 %v238
  %274 = vmatmul.f32.gmra.mxu0 %v236
  %v275 = vpop.f32.mrf.mxu0
  %v276 = vadd.f32 %v256, %v275
  %277 = vdwg.mxu0
  %v278 = vld [vmem:[%s7] sm:$0xff]
  %v279 = vld [vmem:[%s7 + $0x8] sm:$0xff]
  %v280 = vld [vmem:[%s7 + $0x10] sm:$0xff]
  %v281 = vld [vmem:[%s7 + $0x18] sm:$0xff]
  %v282 = vld [vmem:[%s7 + $0x20] sm:$0xff]
  %v283 = vld [vmem:[%s7 + $0x28] sm:$0xff]
  %v284 = vld [vmem:[%s7 + $0x30] sm:$0xff]
  %v285 = vld [vmem:[%s7 + $0x38] sm:$0xff]
  %v286 = vld [vmem:[%s7 + $0x40] sm:$0xff]
  %v287 = vld [vmem:[%s7 + $0x48] sm:$0xff]
  %v288 = vld [vmem:[%s7 + $0x50] sm:$0xff]
  %v289 = vld [vmem:[%s7 + $0x58] sm:$0xff]
  %v290 = vld [vmem:[%s7 + $0x60] sm:$0xff]
  %v291 = vld [vmem:[%s7 + $0x68] sm:$0xff]
  %v292 = vld [vmem:[%s7 + $0x70] sm:$0xff]
  %v293 = vld [vmem:[%s7 + $0x78] sm:$0xff]
  %v294 = vld [vmem:[%s8] sm:$0x1]
  %v296 = vperm.slane %v294, 0
  %298 = vmatpush.msra.mxu0 %v293
  %299 = vmatpush.msra.mxu0 %v292
  %300 = vmatpush.msra.mxu0 %v291
  %301 = vmatpush.msra.mxu0 %v290
  %302 = vmatpush.msra.mxu0 %v289
  %303 = vmatpush.msra.mxu0 %v288
  %304 = vmatpush.msra.mxu0 %v287
  %305 = vmatpush.msra.mxu0 %v286
  %306 = vmatpush.msra.mxu0 %v285
  %307 = vmatpush.msra.mxu0 %v284
  %308 = vmatpush.msra.mxu0 %v283
  %309 = vmatpush.msra.mxu0 %v282
  %310 = vmatpush.msra.mxu0 %v281
  %311 = vmatpush.msra.mxu0 %v280
  %312 = vmatpush.msra.mxu0 %v279
  %313 = vmatpush.msra.mxu0 %v278
  %314 = vmatmul.f32.gmra.mxu0 %v276
  %v315 = vpop.f32.mrf.mxu0
  %v316 = vadd.f32 %v296, %v315
  %317 = vdwg.mxu0
  %v318 = vld [vmem:[%s9] sm:$0xff]
  %v319 = vld [vmem:[%s9 + $0x8] sm:$0xff]
  %v320 = vld [vmem:[%s9 + $0x10] sm:$0xff]
  %v321 = vld [vmem:[%s9 + $0x18] sm:$0xff]
  %v322 = vld [vmem:[%s9 + $0x20] sm:$0xff]
  %v323 = vld [vmem:[%s9 + $0x28] sm:$0xff]
  %v324 = vld [vmem:[%s9 + $0x30] sm:$0xff]
  %v325 = vld [vmem:[%s9 + $0x38] sm:$0xff]
  %v326 = vld [vmem:[%s9 + $0x40] sm:$0xff]
  %v327 = vld [vmem:[%s9 + $0x48] sm:$0xff]
  %v328 = vld [vmem:[%s9 + $0x50] sm:$0xff]
  %v329 = vld [vmem:[%s9 + $0x58] sm:$0xff]
  %v330 = vld [vmem:[%s9 + $0x60] sm:$0xff]
  %v331 = vld [vmem:[%s9 + $0x68] sm:$0xff]
  %v332 = vld [vmem:[%s9 + $0x70] sm:$0xff]
  %v333 = vld [vmem:[%s9 + $0x78] sm:$0xff]
  %v334 = vld [vmem:[%s10] sm:$0x1]
  %v336 = vperm.slane %v334, 0
  %338 = vmatpush.msra.mxu0 %v333
  %339 = vmatpush.msra.mxu0 %v332
  %340 = vmatpush.msra.mxu0 %v331
  %341 = vmatpush.msra.mxu0 %v330
  %342 = vmatpush.msra.mxu0 %v329
  %343 = vmatpush.msra.mxu0 %v328
  %344 = vmatpush.msra.mxu0 %v327
  %345 = vmatpush.msra.mxu0 %v326
  %346 = vmatpush.msra.mxu0 %v325
  %347 = vmatpush.msra.mxu0 %v324
  %348 = vmatpush.msra.mxu0 %v323
  %349 = vmatpush.msra.mxu0 %v322
  %350 = vmatpush.msra.mxu0 %v321
  %351 = vmatpush.msra.mxu0 %v320
  %352 = vmatpush.msra.mxu0 %v319
  %353 = vmatpush.msra.mxu0 %v318
  %354 = vmatmul.f32.gmra.mxu0 %v316
  %v355 = vpop.f32.mrf.mxu0
  %v356 = vadd.f32 %v336, %v355
  %357 = vdwg.mxu0
  %v358 = vld [vmem:[%s11] sm:$0xff]
  %v359 = vld [vmem:[%s11 + $0x8] sm:$0xff]
  %v360 = vld [vmem:[%s11 + $0x10] sm:$0xff]
  %v361 = vld [vmem:[%s11 + $0x18] sm:$0xff]
  %v362 = vld [vmem:[%s11 + $0x20] sm:$0xff]
  %v363 = vld [vmem:[%s11 + $0x28] sm:$0xff]
  %v364 = vld [vmem:[%s11 + $0x30] sm:$0xff]
  %v365 = vld [vmem:[%s11 + $0x38] sm:$0xff]
  %v366 = vld [vmem:[%s11 + $0x40] sm:$0xff]
  %v367 = vld [vmem:[%s11 + $0x48] sm:$0xff]
  %v368 = vld [vmem:[%s11 + $0x50] sm:$0xff]
  %v369 = vld [vmem:[%s11 + $0x58] sm:$0xff]
  %v370 = vld [vmem:[%s11 + $0x60] sm:$0xff]
  %v371 = vld [vmem:[%s11 + $0x68] sm:$0xff]
  %v372 = vld [vmem:[%s11 + $0x70] sm:$0xff]
  %v373 = vld [vmem:[%s11 + $0x78] sm:$0xff]
  %v374 = vld [vmem:[%s12] sm:$0x1]
  %v376 = vperm.slane %v374, 0
  %378 = vmatpush.msra.mxu0 %v373
  %379 = vmatpush.msra.mxu0 %v372
  %380 = vmatpush.msra.mxu0 %v371
  %381 = vmatpush.msra.mxu0 %v370
  %382 = vmatpush.msra.mxu0 %v369
  %383 = vmatpush.msra.mxu0 %v368
  %384 = vmatpush.msra.mxu0 %v367
  %385 = vmatpush.msra.mxu0 %v366
  %386 = vmatpush.msra.mxu0 %v365
  %387 = vmatpush.msra.mxu0 %v364
  %388 = vmatpush.msra.mxu0 %v363
  %389 = vmatpush.msra.mxu0 %v362
  %390 = vmatpush.msra.mxu0 %v361
  %391 = vmatpush.msra.mxu0 %v360
  %392 = vmatpush.msra.mxu0 %v359
  %393 = vmatpush.msra.mxu0 %v358
  %394 = vmatmul.f32.gmra.mxu0 %v356
  %v395 = vpop.f32.mrf.mxu0
  %v396 = vadd.f32 %v376, %v395
  %397 = vdwg.mxu0
  %v398 = vld [vmem:[%s13] sm:$0xff]
  %v399 = vld [vmem:[%s13 + $0x8] sm:$0xff]
  %v400 = vld [vmem:[%s13 + $0x10] sm:$0xff]
  %v401 = vld [vmem:[%s13 + $0x18] sm:$0xff]
  %v402 = vld [vmem:[%s13 + $0x20] sm:$0xff]
  %v403 = vld [vmem:[%s13 + $0x28] sm:$0xff]
  %v404 = vld [vmem:[%s13 + $0x30] sm:$0xff]
  %v405 = vld [vmem:[%s13 + $0x38] sm:$0xff]
  %v406 = vld [vmem:[%s13 + $0x40] sm:$0xff]
  %v407 = vld [vmem:[%s13 + $0x48] sm:$0xff]
  %v408 = vld [vmem:[%s13 + $0x50] sm:$0xff]
  %v409 = vld [vmem:[%s13 + $0x58] sm:$0xff]
  %v410 = vld [vmem:[%s13 + $0x60] sm:$0xff]
  %v411 = vld [vmem:[%s13 + $0x68] sm:$0xff]
  %v412 = vld [vmem:[%s13 + $0x70] sm:$0xff]
  %v413 = vld [vmem:[%s13 + $0x78] sm:$0xff]
  %v414 = vld [vmem:[%s14] sm:$0x1]
  %v416 = vperm.slane %v414, 0
  %418 = vmatpush.msra.mxu0 %v413
  %419 = vmatpush.msra.mxu0 %v412
  %420 = vmatpush.msra.mxu0 %v411
  %421 = vmatpush.msra.mxu0 %v410
  %422 = vmatpush.msra.mxu0 %v409
  %423 = vmatpush.msra.mxu0 %v408
  %424 = vmatpush.msra.mxu0 %v407
  %425 = vmatpush.msra.mxu0 %v406
  %426 = vmatpush.msra.mxu0 %v405
  %427 = vmatpush.msra.mxu0 %v404
  %428 = vmatpush.msra.mxu0 %v403
  %429 = vmatpush.msra.mxu0 %v402
  %430 = vmatpush.msra.mxu0 %v401
  %431 = vmatpush.msra.mxu0 %v400
  %432 = vmatpush.msra.mxu0 %v399
  %433 = vmatpush.msra.mxu0 %v398
  %434 = vmatmul.f32.gmra.mxu0 %v396
  %v435 = vpop.f32.mrf.mxu0
  %v436 = vadd.f32 %v416, %v435
  %437 = vdwg.mxu0
  %v438 = vld [vmem:[%s15] sm:$0xff]
  %v439 = vld [vmem:[%s15 + $0x8] sm:$0xff]
  %v440 = vld [vmem:[%s15 + $0x10] sm:$0xff]
  %v441 = vld [vmem:[%s15 + $0x18] sm:$0xff]
  %v442 = vld [vmem:[%s15 + $0x20] sm:$0xff]
  %v443 = vld [vmem:[%s15 + $0x28] sm:$0xff]
  %v444 = vld [vmem:[%s15 + $0x30] sm:$0xff]
  %v445 = vld [vmem:[%s15 + $0x38] sm:$0xff]
  %v446 = vld [vmem:[%s15 + $0x40] sm:$0xff]
  %v447 = vld [vmem:[%s15 + $0x48] sm:$0xff]
  %v448 = vld [vmem:[%s15 + $0x50] sm:$0xff]
  %v449 = vld [vmem:[%s15 + $0x58] sm:$0xff]
  %v450 = vld [vmem:[%s15 + $0x60] sm:$0xff]
  %v451 = vld [vmem:[%s15 + $0x68] sm:$0xff]
  %v452 = vld [vmem:[%s15 + $0x70] sm:$0xff]
  %v453 = vld [vmem:[%s15 + $0x78] sm:$0xff]
  %v454 = vld [vmem:[%s15 + $0x80] sm:$0xff]
  %v455 = vld [vmem:[%s15 + $0x88] sm:$0xff]
  %v456 = vld [vmem:[%s15 + $0x90] sm:$0xff]
  %v457 = vld [vmem:[%s15 + $0x98] sm:$0xff]
  %v458 = vld [vmem:[%s15 + $0xa0] sm:$0xff]
  %v459 = vld [vmem:[%s15 + $0xa8] sm:$0xff]
  %v460 = vld [vmem:[%s15 + $0xb0] sm:$0xff]
  %v461 = vld [vmem:[%s15 + $0xb8] sm:$0xff]
  %v462 = vld [vmem:[%s15 + $0xc0] sm:$0xff]
  %v463 = vld [vmem:[%s15 + $0xc8] sm:$0xff]
  %v464 = vld [vmem:[%s15 + $0xd0] sm:$0xff]
  %v465 = vld [vmem:[%s15 + $0xd8] sm:$0xff]
  %v466 = vld [vmem:[%s15 + $0xe0] sm:$0xff]
  %v467 = vld [vmem:[%s15 + $0xe8] sm:$0xff]
  %v468 = vld [vmem:[%s15 + $0xf0] sm:$0xff]
  %v469 = vld [vmem:[%s15 + $0xf8] sm:$0xff]
  %v470 = vld [vmem:[%s15 + $0x100] sm:$0xff]
  %v471 = vld [vmem:[%s15 + $0x108] sm:$0xff]
  %v472 = vld [vmem:[%s15 + $0x110] sm:$0xff]
  %v473 = vld [vmem:[%s15 + $0x118] sm:$0xff]
  %v474 = vld [vmem:[%s15 + $0x120] sm:$0xff]
  %v475 = vld [vmem:[%s15 + $0x128] sm:$0xff]
  %v476 = vld [vmem:[%s15 + $0x130] sm:$0xff]
  %v477 = vld [vmem:[%s15 + $0x138] sm:$0xff]
  %v478 = vld [vmem:[%s15 + $0x140] sm:$0xff]
  %v479 = vld [vmem:[%s15 + $0x148] sm:$0xff]
  %v480 = vld [vmem:[%s15 + $0x150] sm:$0xff]
  %v481 = vld [vmem:[%s15 + $0x158] sm:$0xff]
  %v482 = vld [vmem:[%s15 + $0x160] sm:$0xff]
  %v483 = vld [vmem:[%s15 + $0x168] sm:$0xff]
  %v484 = vld [vmem:[%s15 + $0x170] sm:$0xff]
  %v485 = vld [vmem:[%s15 + $0x178] sm:$0xff]
  %v486 = vld [vmem:[%s15 + $0x180] sm:$0xff]
  %v487 = vld [vmem:[%s15 + $0x188] sm:$0xff]
  %v488 = vld [vmem:[%s15 + $0x190] sm:$0xff]
  %v489 = vld [vmem:[%s15 + $0x198] sm:$0xff]
  %v490 = vld [vmem:[%s15 + $0x1a0] sm:$0xff]
  %v491 = vld [vmem:[%s15 + $0x1a8] sm:$0xff]
  %v492 = vld [vmem:[%s15 + $0x1b0] sm:$0xff]
  %v493 = vld [vmem:[%s15 + $0x1b8] sm:$0xff]
  %v494 = vld [vmem:[%s15 + $0x1c0] sm:$0xff]
  %v495 = vld [vmem:[%s15 + $0x1c8] sm:$0xff]
  %v496 = vld [vmem:[%s15 + $0x1d0] sm:$0xff]
  %v497 = vld [vmem:[%s15 + $0x1d8] sm:$0xff]
  %v498 = vld [vmem:[%s15 + $0x1e0] sm:$0xff]
  %v499 = vld [vmem:[%s15 + $0x1e8] sm:$0xff]
  %v500 = vld [vmem:[%s15 + $0x1f0] sm:$0xff]
  %v501 = vld [vmem:[%s15 + $0x1f8] sm:$0xff]
  %v502 = vld [vmem:[%s16] sm:$0xf]
  %v504 = vperm.slane %v502, 0
  %v505 = vperm.slane %v502, 1
  %v506 = vperm.slane %v502, 2
  %v507 = vperm.slane %v502, 3
  %512 = vmatpush.msra.mxu0 %v498
  %513 = vmatpush.msra.mxu0 %v494
  %514 = vmatpush.msra.mxu0 %v490
  %515 = vmatpush.msra.mxu0 %v486
  %516 = vmatpush.msra.mxu0 %v482
  %517 = vmatpush.msra.mxu0 %v478
  %518 = vmatpush.msra.mxu0 %v474
  %519 = vmatpush.msra.mxu0 %v470
  %520 = vmatpush.msra.mxu0 %v466
  %521 = vmatpush.msra.mxu0 %v462
  %522 = vmatpush.msra.mxu0 %v458
  %523 = vmatpush.msra.mxu0 %v454
  %524 = vmatpush.msra.mxu0 %v450
  %525 = vmatpush.msra.mxu0 %v446
  %526 = vmatpush.msra.mxu0 %v442
  %527 = vmatpush.msra.mxu0 %v438
  %528 = vmatmul.f32.gmra.mxu0 %v436
  %v529 = vpop.f32.mrf.mxu0
  %v530 = vadd.f32 %v504, %v529
  %531 = vdwg.mxu0
  %532 = vmatpush.msra.mxu0 %v499
  %533 = vmatpush.msra.mxu0 %v495
  %534 = vmatpush.msra.mxu0 %v491
  %535 = vmatpush.msra.mxu0 %v487
  %536 = vmatpush.msra.mxu0 %v483
  %537 = vmatpush.msra.mxu0 %v479
  %538 = vmatpush.msra.mxu0 %v475
  %539 = vmatpush.msra.mxu0 %v471
  %540 = vmatpush.msra.mxu0 %v467
  %541 = vmatpush.msra.mxu0 %v463
  %542 = vmatpush.msra.mxu0 %v459
  %543 = vmatpush.msra.mxu0 %v455
  %544 = vmatpush.msra.mxu0 %v451
  %545 = vmatpush.msra.mxu0 %v447
  %546 = vmatpush.msra.mxu0 %v443
  %547 = vmatpush.msra.mxu0 %v439
  %548 = vmatmul.f32.gmra.mxu0 %v436
  %v549 = vpop.f32.mrf.mxu0
  %v550 = vadd.f32 %v505, %v549
  %551 = vdwg.mxu0
  %552 = vmatpush.msra.mxu0 %v500
  %553 = vmatpush.msra.mxu0 %v496
  %554 = vmatpush.msra.mxu0 %v492
  %555 = vmatpush.msra.mxu0 %v488
  %556 = vmatpush.msra.mxu0 %v484
  %557 = vmatpush.msra.mxu0 %v480
  %558 = vmatpush.msra.mxu0 %v476
  %559 = vmatpush.msra.mxu0 %v472
  %560 = vmatpush.msra.mxu0 %v468
  %561 = vmatpush.msra.mxu0 %v464
  %562 = vmatpush.msra.mxu0 %v460
  %563 = vmatpush.msra.mxu0 %v456
  %564 = vmatpush.msra.mxu0 %v452
  %565 = vmatpush.msra.mxu0 %v448
  %566 = vmatpush.msra.mxu0 %v444
  %567 = vmatpush.msra.mxu0 %v440
  %568 = vmatmul.f32.gmra.mxu0 %v436
  %v569 = vpop.f32.mrf.mxu0
  %v570 = vadd.f32 %v506, %v569
  %571 = vdwg.mxu0
  %572 = vmatpush.msra.mxu0 %v501
  %573 = vmatpush.msra.mxu0 %v497
  %574 = vmatpush.msra.mxu0 %v493
  %575 = vmatpush.msra.mxu0 %v489
  %576 = vmatpush.msra.mxu0 %v485
  %577 = vmatpush.msra.mxu0 %v481
  %578 = vmatpush.msra.mxu0 %v477
  %579 = vmatpush.msra.mxu0 %v473
  %580 = vmatpush.msra.mxu0 %v469
  %581 = vmatpush.msra.mxu0 %v465
  %582 = vmatpush.msra.mxu0 %v461
  %583 = vmatpush.msra.mxu0 %v457
  %584 = vmatpush.msra.mxu0 %v453
  %585 = vmatpush.msra.mxu0 %v449
  %586 = vmatpush.msra.mxu0 %v445
  %587 = vmatpush.msra.mxu0 %v441
  %588 = vmatmul.f32.gmra.mxu0 %v436
  %v589 = vpop.f32.mrf.mxu0
  %v590 = vadd.f32 %v507, %v589
  %591 = vdwg.mxu0
  %592 = vst [vmem:[%s17] sm:$0xff] %v530
  %593 = vst [vmem:[%s17 + $0x8] sm:$0xff] %v550
  %594 = vst [vmem:[%s17 + $0x10] sm:$0xff] %v570
  %595 = vst.msk [vmem:[%s17 + $0x18] sm:$0xff] %vm114, %v590
  // Predicated region
  $region70: #{ate_forward.4} parent=0 // pred_check
    _
  $region71: #{ate_forward.4} parent=0 // pred_check_branch
    %597 = sbr.rel (0) target = $region73
  $region72: #{ate_forward.4} parent=0 // pred_region
    _
  $region73: #{ate_forward.4} parent=0 // pred_fallthru
    _
  // Predicated region
  $region74: #{ate_forward.4} parent=0 // pred_check
    _
  $region75: #{ate_forward.4} parent=0 // pred_check_branch
    %599 = sbr.rel (0) target = $region77
  $region76: #{ate_forward.4} parent=0 // pred_region
    _
  $region77: #{ate_forward.4} parent=0 // pred_fallthru
    _

// kernel: ate_forward.5
$region0: #{ate_forward.5}
  #allocation0 [shape = 'u32[]', space=smem, size = 0x4, offset = 0x4, fixed_abs, tag = 'smem constant byte address 0x4 - core index']
  #allocation1 [shape = 'u32[72,128]{1,0:T(1,128)}', space=vmem, size = 0x9000, scoped, tag = 'internal scratch']
  %s0 = inlined_call_operand.vmem [shape: f32[8,400], index: 0, kind: input, shape index: {}]
  %s1 = inlined_call_operand.hbm [shape: f32[400,67584], index: 1, kind: input, shape index: {}]
  %s2 = inlined_call_operand.vmem [shape: f32[1,67584], index: 2, kind: input, shape index: {}]
  %s3 = inlined_call_operand.vmem [shape: f32[8,67584], index: 3, kind: output, shape index: {}]
  %s4 = sld [smem:[#allocation0]]
  $region57: #{ate_forward.5} parent=0
    _
  %s6 = ssub.s32 1, %s4
  %s7 = scalar_select 0, %s6, %s4
  $region1: #{ate_forward.5} parent=0
    #allocation2 [shape = 'u8[6553600]{0}', space=vmem, size = 0x640000, scoped, tag = 'input window, operand 1']
    #allocation3 [shape = 's32[2]{0}', space=sflag, size = 0x8, scoped, tag = 'scoped memory for ate_forward.5']
    %8 = vsyncpa [#allocation3], 0
    %s9 = scalar_lea.sflag [#allocation3], 1
    %10 = vsyncpa %s9, 0
    loop: start=0, step=1, limit=35
    $region2: #{ate_forward.5} parent=1 // loop_pre_header
      _
    $region3: #{ate_forward.5} parent=1 // loop_header
      %s12 = sphi 0, %s16
      %p13 = scmp.ge.s32.totalorder %s12, 35
      %s19 = sphi 0, %s38
      %s20 = sphi 0, %s34
      %s21 = sphi 0, %s30
      %s22 = sphi 0, %s19
      %s23 = sphi 0, %s20
      %s24 = sphi 0, %s21
      %s25 = sphi 0, %s22
      %s26 = sphi 0, %s23
      %s27 = sphi 0, %s24
      %s43 = sphi 0, %s45
      %s46 = sphi 0, %s43
      %s47 = sphi 0, %s46
      %s63 = sphi 0, %s47
      %s71 = sphi 0, %s73
      %s74 = sphi 0, %s71
      %s75 = sphi 0, %s74
      %s91 = sphi 0, %s75
      %s97 = sphi 0, %s99
      %s100 = sphi 0, %s97
      %s101 = sphi 0, %s100
      %s117 = sphi 0, %s101
      %s125 = sphi 0, %s127
      %s128 = sphi 0, %s125
      %s129 = sphi 0, %s128
      %s145 = sphi 0, %s129
    $region4: #{ate_forward.5} parent=1 // loop_header_branch
      %15 = sbr.rel (%p13) target = $region8
    $region5: #{ate_forward.5} parent=1 // loop_body
      %s17 = ssub.s32 %s12, 1
      %s18 = ssub.s32 %s12, 2
      %s28 = sadd.s32 1, %s21
      %p29 = scmp.ge.s32.totalorder %s28, 1
      %s30 = scalar_select %p29, 0, %s28
      %s31 = sadd.s32 1, %s20
      %s32 = scalar_select %p29, %s31, %s20
      %p33 = scmp.ge.s32.totalorder %s32, 33
      %s34 = scalar_select %p33, 0, %s32
      %s35 = sadd.s32 1, %s19
      %s36 = scalar_select %p33, %s35, %s19
      %p37 = scmp.ge.s32.totalorder %s36, 1
      %s38 = scalar_select %p37, 0, %s36
      %s39 = ssub.s32 %s19, %s38
      %s40 = ssub.s32 %s21, %s30
      %s41 = sor.u32 %s39, %s40
      %p42 = scmp.eq.s32.totalorder %s41, 0
      %s44 = sadd.s32 %s43, 1
      %s45 = scalar_select %p42, %s43, %s44
      %p48 = pneg %p42
      %p49 = scmp.eq.s32.totalorder %s12, 32
      %p50 = por %p48, %p49
      %p51 = scmp.ne.s32.totalorder %s43, %s46
      %p52 = scmp.eq.s32.totalorder %s12, 0
      %p53 = por %p51, %p52
      %p54 = scmp.ne.s32.totalorder %s43, %s46
      %p55 = scmp.eq.s32.totalorder %s17, 32
      %p56 = por %p54, %p55
      %p57 = scmp.ne.s32.totalorder %s46, %s47
      %p58 = scmp.eq.s32.totalorder %s17, 0
      %p59 = por %p57, %p58
      %p60 = scmp.ne.s32.totalorder %s46, %s47
      %p61 = scmp.eq.s32.totalorder %s18, 32
      %p62 = por %p60, %p61
      %p64 = scmp.ne.s32.totalorder %s47, %s63
      %p65 = scmp.eq.s32.totalorder %s18, 0
      %p66 = por %p64, %p65
      %s67 = ssub.s32 %s21, %s30
      %s68 = ssub.s32 %s20, %s34
      %s69 = sor.u32 %s67, %s68
      %p70 = scmp.eq.s32.totalorder %s69, 0
      %s72 = sadd.s32 %s71, 1
      %s73 = scalar_select %p70, %s71, %s72
      %p76 = pneg %p70
      %p77 = scmp.eq.s32.totalorder %s12, 32
      %p78 = por %p76, %p77
      %p79 = scmp.ne.s32.totalorder %s71, %s74
      %p80 = scmp.eq.s32.totalorder %s12, 0
      %p81 = por %p79, %p80
      %p82 = scmp.ne.s32.totalorder %s71, %s74
      %p83 = scmp.eq.s32.totalorder %s17, 32
      %p84 = por %p82, %p83
      %p85 = scmp.ne.s32.totalorder %s74, %s75
      %p86 = scmp.eq.s32.totalorder %s17, 0
      %p87 = por %p85, %p86
      %p88 = scmp.ne.s32.totalorder %s74, %s75
      %p89 = scmp.eq.s32.totalorder %s18, 32
      %p90 = por %p88, %p89
      %p92 = scmp.ne.s32.totalorder %s75, %s91
      %p93 = scmp.eq.s32.totalorder %s18, 0
      %p94 = por %p92, %p93
      %s95 = ssub.s32 %s20, %s34
      %p96 = scmp.eq.s32.totalorder %s95, 0
      %s98 = sadd.s32 %s97, 1
      %s99 = scalar_select %p96, %s97, %s98
      %p102 = pneg %p96
      %p103 = scmp.eq.s32.totalorder %s12, 32
      %p104 = por %p102, %p103
      %p105 = scmp.ne.s32.totalorder %s97, %s100
      %p106 = scmp.eq.s32.totalorder %s12, 0
      %p107 = por %p105, %p106
      %p108 = scmp.ne.s32.totalorder %s97, %s100
      %p109 = scmp.eq.s32.totalorder %s17, 32
      %p110 = por %p108, %p109
      %p111 = scmp.ne.s32.totalorder %s100, %s101
      %p112 = scmp.eq.s32.totalorder %s17, 0
      %p113 = por %p111, %p112
      %p114 = scmp.ne.s32.totalorder %s100, %s101
      %p115 = scmp.eq.s32.totalorder %s18, 32
      %p116 = por %p114, %p115
      %p118 = scmp.ne.s32.totalorder %s101, %s117
      %p119 = scmp.eq.s32.totalorder %s18, 0
      %p120 = por %p118, %p119
      %s121 = ssub.s32 %s19, %s38
      %s122 = ssub.s32 %s20, %s34
      %s123 = sor.u32 %s121, %s122
      %p124 = scmp.eq.s32.totalorder %s123, 0
      %s126 = sadd.s32 %s125, 1
      %s127 = scalar_select %p124, %s125, %s126
      %p130 = pneg %p124
      %p131 = scmp.eq.s32.totalorder %s12, 32
      %p132 = por %p130, %p131
      %p133 = scmp.ne.s32.totalorder %s125, %s128
      %p134 = scmp.eq.s32.totalorder %s12, 0
      %p135 = por %p133, %p134
      %p136 = scmp.ne.s32.totalorder %s125, %s128
      %p137 = scmp.eq.s32.totalorder %s17, 32
      %p138 = por %p136, %p137
      %p139 = scmp.ne.s32.totalorder %s128, %s129
      %p140 = scmp.eq.s32.totalorder %s17, 0
      %p141 = por %p139, %p140
      %p142 = scmp.ne.s32.totalorder %s128, %s129
      %p143 = scmp.eq.s32.totalorder %s18, 32
      %p144 = por %p142, %p143
      %p146 = scmp.ne.s32.totalorder %s129, %s145
      %p147 = scmp.eq.s32.totalorder %s18, 0
      %p148 = por %p146, %p147
      %p149 = scmp.le.s32.totalorder 1, %s12
      %p150 = scmp.lt.s32.totalorder %s12, 34
      %p151 = pnand %p149, %p150
      %p152 = pneg %p151
      // Predicated region
      $region9: #{ate_forward.5} parent=5 // pred_check
        _
      $region10: #{ate_forward.5} parent=5 // pred_check_branch
        %154 = sbr.rel (%p151) target = $region12
      $region11: #{ate_forward.5} parent=5 // pred_region
        %s155 = ssub.s32 %s12, 1
        // Predicated region
        $region13: #{ate_forward.5} parent=11 // pred_check
          %p156 = pneg %p59
        $region14: #{ate_forward.5} parent=11 // pred_check_branch
          %158 = sbr.rel (%p156) target = $region16
        $region15: #{ate_forward.5} parent=11 // pred_region
          %s159 = smul.u32 4, %s24
          %p160 = scmp.lt.s32.totalorder %s22, 0
          %s161 = scalar_select %p160, %s22, 0
          %p162 = scmp.lt.s32.totalorder %s159, 3
          %s163 = scalar_select %p162, %s159, 3
          %s164 = smul.addr %s161, 4
          %s165 = sadd.s32 %s163, %s164
          %s166 = smul.addr %s165, 8
          %s167 = scalar_lea.vmem %s0, %s166
          %s168 = smul.u32 4, %s24
        $region16: #{ate_forward.5} parent=11 // pred_fallthru
          _
      $region12: #{ate_forward.5} parent=5 // pred_fallthru
        _
      %p169 = scmp.lt.s32.totalorder %s12, 33
      // Predicated region
      $region17: #{ate_forward.5} parent=5 // pred_check
        %p170 = pneg %p169
      $region18: #{ate_forward.5} parent=5 // pred_check_branch
        %172 = sbr.rel (%p170) target = $region20
      $region19: #{ate_forward.5} parent=5 // pred_region
        // Predicated region
        $region21: #{ate_forward.5} parent=19 // pred_check
          %p173 = pneg %p81
        $region22: #{ate_forward.5} parent=19 // pred_check_branch
          %175 = sbr.rel (%p173) target = $region24
        $region23: #{ate_forward.5} parent=19 // pred_region
          %s176 = sand.u32 %s71, 1
          %s177 = scalar_lea.sflag [#allocation3], %s176
          %s178 = sand.u32 %s71, 1
          %s179 = smul.addr %s178, 6400
          %s180 = scalar_lea.vmem [#allocation2], %s179
          %s181 = smul.u32 50, %s21
          %s182 = smul.u32 16, %s20
          %184 = vsyncadd %s177, 0
          %s185 = smul.addr %s181, 528
          %s186 = sadd.s32 %s182, %s185
          %s187 = smul.addr %s186, 8
          %s188 = scalar_lea.hbm %s1, %s187
          %s189 = sshll.u32 %s188, 4
          %s190 = int_to_ptr.hbm [resolvable:$true] %s189
          %s191 = sshll.u32 %s180, 4
          %s192 = int_to_ptr.vmem [resolvable:$true] %s191
          %197 = dma.hbm_to_vmem [thread:$0]  %s190, 102400, %s192, %s177, 67584, 2048, 128
        $region24: #{ate_forward.5} parent=19 // pred_fallthru
          _
        // Predicated region
        $region25: #{ate_forward.5} parent=19 // pred_check
          %p198 = pneg %p107
        $region26: #{ate_forward.5} parent=19 // pred_check_branch
          %200 = sbr.rel (%p198) target = $region28
        $region27: #{ate_forward.5} parent=19 // pred_region
          %s201 = smul.u32 16, %s20
          %p202 = scmp.lt.s32.totalorder %s201, 527
          %s203 = scalar_select %p202, %s201, 527
          %s204 = scalar_lea.vmem %s2, %s203
          %s205 = smul.u32 16, %s20
        $region28: #{ate_forward.5} parent=19 // pred_fallthru
          _
      $region20: #{ate_forward.5} parent=5 // pred_fallthru
        _
      %p206 = scmp.le.s32.totalorder 1, %s12
      %p207 = scmp.lt.s32.totalorder %s12, 34
      %p208 = pnand %p206, %p207
      %p209 = pneg %p208
      // Predicated region
      $region29: #{ate_forward.5} parent=5 // pred_check
        _
      $region30: #{ate_forward.5} parent=5 // pred_check_branch
        %211 = sbr.rel (%p208) target = $region32
      $region31: #{ate_forward.5} parent=5 // pred_region
        %s212 = ssub.s32 %s12, 1
        %s213 = sand.u32 %s74, 1
        %s214 = scalar_lea.sflag [#allocation3], %s213
        %s215 = sand.u32 %s74, 1
        %s216 = smul.addr %s215, 6400
        %s217 = scalar_lea.vmem [#allocation2], %s216
        // Predicated region
        $region33: #{ate_forward.5} parent=31 // pred_check
          %p218 = pneg %p87
        $region34: #{ate_forward.5} parent=31 // pred_check_branch
          %220 = sbr.rel (%p218) target = $region36
        $region35: #{ate_forward.5} parent=31 // pred_region
          %222 = dma.done %s214, 102400
        $region36: #{ate_forward.5} parent=31 // pred_fallthru
          _
        %s223 = smul.u32 4, %s24
        %p224 = scmp.lt.s32.totalorder %s22, 0
        %s225 = scalar_select %p224, %s22, 0
        %p226 = scmp.lt.s32.totalorder %s223, 3
        %s227 = scalar_select %p226, %s223, 3
        %s228 = smul.addr %s225, 4
        %s229 = sadd.s32 %s227, %s228
        %s230 = smul.addr %s229, 8
        %s231 = scalar_lea.vmem %s0, %s230
        %p232 = pneg %p59
        %p233 = pneg %p56
        %s234 = sand.u32 %s74, 1
        %s235 = scalar_lea.sflag [#allocation3], %s234
        %s236 = sand.u32 %s74, 1
        %s237 = smul.addr %s236, 6400
        %s238 = scalar_lea.vmem [#allocation2], %s237
        %p239 = pneg %p87
        %p240 = pneg %p84
        %s241 = smul.u32 16, %s23
        %p242 = scmp.lt.s32.totalorder %s241, 527
        %s243 = scalar_select %p242, %s241, 527
        %s244 = scalar_lea.vmem %s2, %s243
        %p245 = pneg %p113
        %p246 = pneg %p110
        %p247 = pneg %p141
        %p248 = pneg %p138
        %s249 = smul.u32 16, %s23
        %p250 = scmp.lt.s32.totalorder %s22, 0
        %s251 = scalar_select %p250, %s22, 0
        %p252 = scmp.lt.s32.totalorder %s249, 527
        %s253 = scalar_select %p252, %s249, 527
        %s254 = smul.addr %s251, 528
        %s255 = sadd.s32 %s253, %s254
        %s256 = smul.addr %s255, 8
        %s257 = scalar_lea.vmem %s3, %s256
        %s258 = smul.u32 4, %s24
        %p259 = scmp.lt.s32.totalorder %s22, 0
        %s260 = scalar_select %p259, %s22, 0
        %p261 = scmp.lt.s32.totalorder %s258, 3
        %s262 = scalar_select %p261, %s258, 3
        %s263 = smul.addr %s260, 4
        %s264 = sadd.s32 %s262, %s263
        %s265 = smul.addr %s264, 8
        %s266 = scalar_lea.vmem %s0, %s265
        %s267 = smul.u32 4, %s24
        %s268 = smul.u32 50, %s24
        %s269 = smul.u32 16, %s23
        %s270 = smul.u32 16, %s23
        %p271 = scmp.lt.s32.totalorder %s270, 527
        %s272 = scalar_select %p271, %s270, 527
        %s273 = scalar_lea.vmem %s2, %s272
        %s274 = smul.u32 16, %s23
        %s275 = smul.u32 16, %s23
        %p276 = scmp.lt.s32.totalorder %s22, 0
        %s277 = scalar_select %p276, %s22, 0
        %p278 = scmp.lt.s32.totalorder %s275, 527
        %s279 = scalar_select %p278, %s275, 527
        %s280 = smul.addr %s277, 528
        %s281 = sadd.s32 %s279, %s280
        %s282 = smul.addr %s281, 8
        %s283 = scalar_lea.vmem %s3, %s282
        %s284 = smul.u32 16, %s23
        %p285 = scmp.eq.s32.totalorder %s24, 0
        // Predicated region
        $region37: #{ate_forward.5} parent=31 // pred_check
          %p286 = pneg %p285
        $region38: #{ate_forward.5} parent=31 // pred_check_branch
          %288 = sbr.rel (%p286) target = $region40
        $region39: #{ate_forward.5} parent=31 // pred_region
          %289 = vst [vmem:[%s283] sm:$0xff] 0.0
          %290 = vst [vmem:[%s283 + $0x8] sm:$0xff] 0.0
          %291 = vst [vmem:[%s283 + $0x10] sm:$0xff] 0.0
          %292 = vst [vmem:[%s283 + $0x18] sm:$0xff] 0.0
          %293 = vst [vmem:[%s283 + $0x20] sm:$0xff] 0.0
          %294 = vst [vmem:[%s283 + $0x28] sm:$0xff] 0.0
          %295 = vst [vmem:[%s283 + $0x30] sm:$0xff] 0.0
          %296 = vst [vmem:[%s283 + $0x38] sm:$0xff] 0.0
          %297 = vst [vmem:[%s283 + $0x40] sm:$0xff] 0.0
          %298 = vst [vmem:[%s283 + $0x48] sm:$0xff] 0.0
          %299 = vst [vmem:[%s283 + $0x50] sm:$0xff] 0.0
          %300 = vst [vmem:[%s283 + $0x58] sm:$0xff] 0.0
          %301 = vst [vmem:[%s283 + $0x60] sm:$0xff] 0.0
          %302 = vst [vmem:[%s283 + $0x68] sm:$0xff] 0.0
          %303 = vst [vmem:[%s283 + $0x70] sm:$0xff] 0.0
          %304 = vst [vmem:[%s283 + $0x78] sm:$0xff] 0.0
        $region40: #{ate_forward.5} parent=31 // pred_fallthru
          _
        %v305 = vld [vmem:[%s283] sm:$0xff]
        %v306 = vld [vmem:[%s283 + $0x8] sm:$0xff]
        %v307 = vld [vmem:[%s283 + $0x10] sm:$0xff]
        %v308 = vld [vmem:[%s283 + $0x18] sm:$0xff]
        %v309 = vld [vmem:[%s283 + $0x20] sm:$0xff]
        %v310 = vld [vmem:[%s283 + $0x28] sm:$0xff]
        %v311 = vld [vmem:[%s283 + $0x30] sm:$0xff]
        %v312 = vld [vmem:[%s283 + $0x38] sm:$0xff]
        %v313 = vld [vmem:[%s283 + $0x40] sm:$0xff]
        %v314 = vld [vmem:[%s283 + $0x48] sm:$0xff]
        %v315 = vld [vmem:[%s283 + $0x50] sm:$0xff]
        %v316 = vld [vmem:[%s283 + $0x58] sm:$0xff]
        %v317 = vld [vmem:[%s283 + $0x60] sm:$0xff]
        %v318 = vld [vmem:[%s283 + $0x68] sm:$0xff]
        %v319 = vld [vmem:[%s283 + $0x70] sm:$0xff]
        %v320 = vld [vmem:[%s283 + $0x78] sm:$0xff]
        %v321 = vld [vmem:[%s266] sm:$0xff]
        %v322 = vld [vmem:[%s266 + $0x8] sm:$0xff]
        %v323 = vld [vmem:[%s266 + $0x10] sm:$0xff]
        %v324 = vld [vmem:[%s266 + $0x18] sm:$0xff]
        %v325 = vld [vmem:[%s217] sm:$0xff]
        %v326 = vld [vmem:[%s217 + $0x8] sm:$0xff]
        %v327 = vld [vmem:[%s217 + $0x10] sm:$0xff]
        %v328 = vld [vmem:[%s217 + $0x18] sm:$0xff]
        %v329 = vld [vmem:[%s217 + $0x20] sm:$0xff]
        %v330 = vld [vmem:[%s217 + $0x28] sm:$0xff]
        %v331 = vld [vmem:[%s217 + $0x30] sm:$0xff]
        %v332 = vld [vmem:[%s217 + $0x38] sm:$0xff]
        %v333 = vld [vmem:[%s217 + $0x40] sm:$0xff]
        %v334 = vld [vmem:[%s217 + $0x48] sm:$0xff]
        %v335 = vld [vmem:[%s217 + $0x50] sm:$0xff]
        %v336 = vld [vmem:[%s217 + $0x58] sm:$0xff]
        %v337 = vld [vmem:[%s217 + $0x60] sm:$0xff]
        %v338 = vld [vmem:[%s217 + $0x68] sm:$0xff]
        %v339 = vld [vmem:[%s217 + $0x70] sm:$0xff]
        %v340 = vld [vmem:[%s217 + $0x78] sm:$0xff]
        %v341 = vld [vmem:[%s217 + $0x80] sm:$0xff]
        %v342 = vld [vmem:[%s217 + $0x88] sm:$0xff]
        %v343 = vld [vmem:[%s217 + $0x90] sm:$0xff]
        %v344 = vld [vmem:[%s217 + $0x98] sm:$0xff]
        %v345 = vld [vmem:[%s217 + $0xa0] sm:$0xff]
        %v346 = vld [vmem:[%s217 + $0xa8] sm:$0xff]
        %v347 = vld [vmem:[%s217 + $0xb0] sm:$0xff]
        %v348 = vld [vmem:[%s217 + $0xb8] sm:$0xff]
        %v349 = vld [vmem:[%s217 + $0xc0] sm:$0xff]
        %v350 = vld [vmem:[%s217 + $0xc8] sm:$0xff]
        %v351 = vld [vmem:[%s217 + $0xd0] sm:$0xff]
        %v352 = vld [vmem:[%s217 + $0xd8] sm:$0xff]
        %v353 = vld [vmem:[%s217 + $0xe0] sm:$0xff]
        %v354 = vld [vmem:[%s217 + $0xe8] sm:$0xff]
        %v355 = vld [vmem:[%s217 + $0xf0] sm:$0xff]
        %v356 = vld [vmem:[%s217 + $0xf8] sm:$0xff]
        %v357 = vld [vmem:[%s217 + $0x100] sm:$0xff]
        %v358 = vld [vmem:[%s217 + $0x108] sm:$0xff]
        %v359 = vld [vmem:[%s217 + $0x110] sm:$0xff]
        %v360 = vld [vmem:[%s217 + $0x118] sm:$0xff]
        %v361 = vld [vmem:[%s217 + $0x120] sm:$0xff]
        %v362 = vld [vmem:[%s217 + $0x128] sm:$0xff]
        %v363 = vld [vmem:[%s217 + $0x130] sm:$0xff]
        %v364 = vld [vmem:[%s217 + $0x138] sm:$0xff]
        %v365 = vld [vmem:[%s217 + $0x140] sm:$0xff]
        %v366 = vld [vmem:[%s217 + $0x148] sm:$0xff]
        %v367 = vld [vmem:[%s217 + $0x150] sm:$0xff]
        %v368 = vld [vmem:[%s217 + $0x158] sm:$0xff]
        %v369 = vld [vmem:[%s217 + $0x160] sm:$0xff]
        %v370 = vld [vmem:[%s217 + $0x168] sm:$0xff]
        %v371 = vld [vmem:[%s217 + $0x170] sm:$0xff]
        %v372 = vld [vmem:[%s217 + $0x178] sm:$0xff]
        %v373 = vld [vmem:[%s217 + $0x180] sm:$0xff]
        %v374 = vld [vmem:[%s217 + $0x188] sm:$0xff]
        %v375 = vld [vmem:[%s217 + $0x190] sm:$0xff]
        %v376 = vld [vmem:[%s217 + $0x198] sm:$0xff]
        %v377 = vld [vmem:[%s217 + $0x1a0] sm:$0xff]
        %v378 = vld [vmem:[%s217 + $0x1a8] sm:$0xff]
        %v379 = vld [vmem:[%s217 + $0x1b0] sm:$0xff]
        %v380 = vld [vmem:[%s217 + $0x1b8] sm:$0xff]
        %v381 = vld [vmem:[%s217 + $0x1c0] sm:$0xff]
        %v382 = vld [vmem:[%s217 + $0x1c8] sm:$0xff]
        %v383 = vld [vmem:[%s217 + $0x1d0] sm:$0xff]
        %v384 = vld [vmem:[%s217 + $0x1d8] sm:$0xff]
        %v385 = vld [vmem:[%s217 + $0x1e0] sm:$0xff]
        %v386 = vld [vmem:[%s217 + $0x1e8] sm:$0xff]
        %v387 = vld [vmem:[%s217 + $0x1f0] sm:$0xff]
        %v388 = vld [vmem:[%s217 + $0x1f8] sm:$0xff]
        %v389 = vld [vmem:[%s217 + $0x200] sm:$0xff]
        %v390 = vld [vmem:[%s217 + $0x208] sm:$0xff]
        %v391 = vld [vmem:[%s217 + $0x210] sm:$0xff]
        %v392 = vld [vmem:[%s217 + $0x218] sm:$0xff]
        %v393 = vld [vmem:[%s217 + $0x220] sm:$0xff]
        %v394 = vld [vmem:[%s217 + $0x228] sm:$0xff]
        %v395 = vld [vmem:[%s217 + $0x230] sm:$0xff]
        %v396 = vld [vmem:[%s217 + $0x238] sm:$0xff]
        %v397 = vld [vmem:[%s217 + $0x240] sm:$0xff]
        %v398 = vld [vmem:[%s217 + $0x248] sm:$0xff]
        %v399 = vld [vmem:[%s217 + $0x250] sm:$0xff]
        %v400 = vld [vmem:[%s217 + $0x258] sm:$0xff]
        %v401 = vld [vmem:[%s217 + $0x260] sm:$0xff]
        %v402 = vld [vmem:[%s217 + $0x268] sm:$0xff]
        %v403 = vld [vmem:[%s217 + $0x270] sm:$0xff]
        %v404 = vld [vmem:[%s217 + $0x278] sm:$0xff]
        %v405 = vld [vmem:[%s217 + $0x280] sm:$0xff]
        %v406 = vld [vmem:[%s217 + $0x288] sm:$0xff]
        %v407 = vld [vmem:[%s217 + $0x290] sm:$0xff]
        %v408 = vld [vmem:[%s217 + $0x298] sm:$0xff]
        %v409 = vld [vmem:[%s217 + $0x2a0] sm:$0xff]
        %v410 = vld [vmem:[%s217 + $0x2a8] sm:$0xff]
        %v411 = vld [vmem:[%s217 + $0x2b0] sm:$0xff]
        %v412 = vld [vmem:[%s217 + $0x2b8] sm:$0xff]
        %v413 = vld [vmem:[%s217 + $0x2c0] sm:$0xff]
        %v414 = vld [vmem:[%s217 + $0x2c8] sm:$0xff]
        %v415 = vld [vmem:[%s217 + $0x2d0] sm:$0xff]
        %v416 = vld [vmem:[%s217 + $0x2d8] sm:$0xff]
        %v417 = vld [vmem:[%s217 + $0x2e0] sm:$0xff]
        %v418 = vld [vmem:[%s217 + $0x2e8] sm:$0xff]
        %v419 = vld [vmem:[%s217 + $0x2f0] sm:$0xff]
        %v420 = vld [vmem:[%s217 + $0x2f8] sm:$0xff]
        %v421 = vld [vmem:[%s217 + $0x300] sm:$0xff]
        %v422 = vld [vmem:[%s217 + $0x308] sm:$0xff]
        %v423 = vld [vmem:[%s217 + $0x310] sm:$0xff]
        %v424 = vld [vmem:[%s217 + $0x318] sm:$0xff]
        %v425 = vld [vmem:[%s217 + $0x320] sm:$0xff]
        %v426 = vld [vmem:[%s217 + $0x328] sm:$0xff]
        %v427 = vld [vmem:[%s217 + $0x330] sm:$0xff]
        %v428 = vld [vmem:[%s217 + $0x338] sm:$0xff]
        %v429 = vld [vmem:[%s217 + $0x340] sm:$0xff]
        %v430 = vld [vmem:[%s217 + $0x348] sm:$0xff]
        %v431 = vld [vmem:[%s217 + $0x350] sm:$0xff]
        %v432 = vld [vmem:[%s217 + $0x358] sm:$0xff]
        %v433 = vld [vmem:[%s217 + $0x360] sm:$0xff]
        %v434 = vld [vmem:[%s217 + $0x368] sm:$0xff]
        %v435 = vld [vmem:[%s217 + $0x370] sm:$0xff]
        %v436 = vld [vmem:[%s217 + $0x378] sm:$0xff]
        %v437 = vld [vmem:[%s217 + $0x380] sm:$0xff]
        %v438 = vld [vmem:[%s217 + $0x388] sm:$0xff]
        %v439 = vld [vmem:[%s217 + $0x390] sm:$0xff]
        %v440 = vld [vmem:[%s217 + $0x398] sm:$0xff]
        %v441 = vld [vmem:[%s217 + $0x3a0] sm:$0xff]
        %v442 = vld [vmem:[%s217 + $0x3a8] sm:$0xff]
        %v443 = vld [vmem:[%s217 + $0x3b0] sm:$0xff]
        %v444 = vld [vmem:[%s217 + $0x3b8] sm:$0xff]
        %v445 = vld [vmem:[%s217 + $0x3c0] sm:$0xff]
        %v446 = vld [vmem:[%s217 + $0x3c8] sm:$0xff]
        %v447 = vld [vmem:[%s217 + $0x3d0] sm:$0xff]
        %v448 = vld [vmem:[%s217 + $0x3d8] sm:$0xff]
        %v449 = vld [vmem:[%s217 + $0x3e0] sm:$0xff]
        %v450 = vld [vmem:[%s217 + $0x3e8] sm:$0xff]
        %v451 = vld [vmem:[%s217 + $0x3f0] sm:$0xff]
        %v452 = vld [vmem:[%s217 + $0x3f8] sm:$0xff]
        %v453 = vld [vmem:[%s217 + $0x400] sm:$0xff]
        %v454 = vld [vmem:[%s217 + $0x408] sm:$0xff]
        %v455 = vld [vmem:[%s217 + $0x410] sm:$0xff]
        %v456 = vld [vmem:[%s217 + $0x418] sm:$0xff]
        %v457 = vld [vmem:[%s217 + $0x420] sm:$0xff]
        %v458 = vld [vmem:[%s217 + $0x428] sm:$0xff]
        %v459 = vld [vmem:[%s217 + $0x430] sm:$0xff]
        %v460 = vld [vmem:[%s217 + $0x438] sm:$0xff]
        %v461 = vld [vmem:[%s217 + $0x440] sm:$0xff]
        %v462 = vld [vmem:[%s217 + $0x448] sm:$0xff]
        %v463 = vld [vmem:[%s217 + $0x450] sm:$0xff]
        %v464 = vld [vmem:[%s217 + $0x458] sm:$0xff]
        %v465 = vld [vmem:[%s217 + $0x460] sm:$0xff]
        %v466 = vld [vmem:[%s217 + $0x468] sm:$0xff]
        %v467 = vld [vmem:[%s217 + $0x470] sm:$0xff]
        %v468 = vld [vmem:[%s217 + $0x478] sm:$0xff]
        %v469 = vld [vmem:[%s217 + $0x480] sm:$0xff]
        %v470 = vld [vmem:[%s217 + $0x488] sm:$0xff]
        %v471 = vld [vmem:[%s217 + $0x490] sm:$0xff]
        %v472 = vld [vmem:[%s217 + $0x498] sm:$0xff]
        %v473 = vld [vmem:[%s217 + $0x4a0] sm:$0xff]
        %v474 = vld [vmem:[%s217 + $0x4a8] sm:$0xff]
        %v475 = vld [vmem:[%s217 + $0x4b0] sm:$0xff]
        %v476 = vld [vmem:[%s217 + $0x4b8] sm:$0xff]
        %v477 = vld [vmem:[%s217 + $0x4c0] sm:$0xff]
        %v478 = vld [vmem:[%s217 + $0x4c8] sm:$0xff]
        %v479 = vld [vmem:[%s217 + $0x4d0] sm:$0xff]
        %v480 = vld [vmem:[%s217 + $0x4d8] sm:$0xff]
        %v481 = vld [vmem:[%s217 + $0x4e0] sm:$0xff]
        %v482 = vld [vmem:[%s217 + $0x4e8] sm:$0xff]
        %v483 = vld [vmem:[%s217 + $0x4f0] sm:$0xff]
        %v484 = vld [vmem:[%s217 + $0x4f8] sm:$0xff]
        %v485 = vld [vmem:[%s217 + $0x500] sm:$0xff]
        %v486 = vld [vmem:[%s217 + $0x508] sm:$0xff]
        %v487 = vld [vmem:[%s217 + $0x510] sm:$0xff]
        %v488 = vld [vmem:[%s217 + $0x518] sm:$0xff]
        %v489 = vld [vmem:[%s217 + $0x520] sm:$0xff]
        %v490 = vld [vmem:[%s217 + $0x528] sm:$0xff]
        %v491 = vld [vmem:[%s217 + $0x530] sm:$0xff]
        %v492 = vld [vmem:[%s217 + $0x538] sm:$0xff]
        %v493 = vld [vmem:[%s217 + $0x540] sm:$0xff]
        %v494 = vld [vmem:[%s217 + $0x548] sm:$0xff]
        %v495 = vld [vmem:[%s217 + $0x550] sm:$0xff]
        %v496 = vld [vmem:[%s217 + $0x558] sm:$0xff]
        %v497 = vld [vmem:[%s217 + $0x560] sm:$0xff]
        %v498 = vld [vmem:[%s217 + $0x568] sm:$0xff]
        %v499 = vld [vmem:[%s217 + $0x570] sm:$0xff]
        %v500 = vld [vmem:[%s217 + $0x578] sm:$0xff]
        %v501 = vld [vmem:[%s217 + $0x580] sm:$0xff]
        %v502 = vld [vmem:[%s217 + $0x588] sm:$0xff]
        %v503 = vld [vmem:[%s217 + $0x590] sm:$0xff]
        %v504 = vld [vmem:[%s217 + $0x598] sm:$0xff]
        %v505 = vld [vmem:[%s217 + $0x5a0] sm:$0xff]
        %v506 = vld [vmem:[%s217 + $0x5a8] sm:$0xff]
        %v507 = vld [vmem:[%s217 + $0x5b0] sm:$0xff]
        %v508 = vld [vmem:[%s217 + $0x5b8] sm:$0xff]
        %v509 = vld [vmem:[%s217 + $0x5c0] sm:$0xff]
        %v510 = vld [vmem:[%s217 + $0x5c8] sm:$0xff]
        %v511 = vld [vmem:[%s217 + $0x5d0] sm:$0xff]
        %v512 = vld [vmem:[%s217 + $0x5d8] sm:$0xff]
        %v513 = vld [vmem:[%s217 + $0x5e0] sm:$0xff]
        %v514 = vld [vmem:[%s217 + $0x5e8] sm:$0xff]
        %v515 = vld [vmem:[%s217 + $0x5f0] sm:$0xff]
        %v516 = vld [vmem:[%s217 + $0x5f8] sm:$0xff]
        %v517 = vld [vmem:[%s217 + $0x600] sm:$0xff]
        %v518 = vld [vmem:[%s217 + $0x608] sm:$0xff]
        %v519 = vld [vmem:[%s217 + $0x610] sm:$0xff]
        %v520 = vld [vmem:[%s217 + $0x618] sm:$0xff]
        %v521 = vld [vmem:[%s217 + $0x620] sm:$0xff]
        %v522 = vld [vmem:[%s217 + $0x628] sm:$0xff]
        %v523 = vld [vmem:[%s217 + $0x630] sm:$0xff]
        %v524 = vld [vmem:[%s217 + $0x638] sm:$0xff]
        %v525 = vld [vmem:[%s217 + $0x640] sm:$0xff]
        %v526 = vld [vmem:[%s217 + $0x648] sm:$0xff]
        %v527 = vld [vmem:[%s217 + $0x650] sm:$0xff]
        %v528 = vld [vmem:[%s217 + $0x658] sm:$0xff]
        %v529 = vld [vmem:[%s217 + $0x660] sm:$0xff]
        %v530 = vld [vmem:[%s217 + $0x668] sm:$0xff]
        %v531 = vld [vmem:[%s217 + $0x670] sm:$0xff]
        %v532 = vld [vmem:[%s217 + $0x678] sm:$0xff]
        %v533 = vld [vmem:[%s217 + $0x680] sm:$0xff]
        %v534 = vld [vmem:[%s217 + $0x688] sm:$0xff]
        %v535 = vld [vmem:[%s217 + $0x690] sm:$0xff]
        %v536 = vld [vmem:[%s217 + $0x698] sm:$0xff]
        %v537 = vld [vmem:[%s217 + $0x6a0] sm:$0xff]
        %v538 = vld [vmem:[%s217 + $0x6a8] sm:$0xff]
        %v539 = vld [vmem:[%s217 + $0x6b0] sm:$0xff]
        %v540 = vld [vmem:[%s217 + $0x6b8] sm:$0xff]
        %v541 = vld [vmem:[%s217 + $0x6c0] sm:$0xff]
        %v542 = vld [vmem:[%s217 + $0x6c8] sm:$0xff]
        %v543 = vld [vmem:[%s217 + $0x6d0] sm:$0xff]
        %v544 = vld [vmem:[%s217 + $0x6d8] sm:$0xff]
        %v545 = vld [vmem:[%s217 + $0x6e0] sm:$0xff]
        %v546 = vld [vmem:[%s217 + $0x6e8] sm:$0xff]
        %v547 = vld [vmem:[%s217 + $0x6f0] sm:$0xff]
        %v548 = vld [vmem:[%s217 + $0x6f8] sm:$0xff]
        %v549 = vld [vmem:[%s217 + $0x700] sm:$0xff]
        %v550 = vld [vmem:[%s217 + $0x708] sm:$0xff]
        %v551 = vld [vmem:[%s217 + $0x710] sm:$0xff]
        %v552 = vld [vmem:[%s217 + $0x718] sm:$0xff]
        %v553 = vld [vmem:[%s217 + $0x720] sm:$0xff]
        %v554 = vld [vmem:[%s217 + $0x728] sm:$0xff]
        %v555 = vld [vmem:[%s217 + $0x730] sm:$0xff]
        %v556 = vld [vmem:[%s217 + $0x738] sm:$0xff]
        %v557 = vld [vmem:[%s217 + $0x740] sm:$0xff]
        %v558 = vld [vmem:[%s217 + $0x748] sm:$0xff]
        %v559 = vld [vmem:[%s217 + $0x750] sm:$0xff]
        %v560 = vld [vmem:[%s217 + $0x758] sm:$0xff]
        %v561 = vld [vmem:[%s217 + $0x760] sm:$0xff]
        %v562 = vld [vmem:[%s217 + $0x768] sm:$0xff]
        %v563 = vld [vmem:[%s217 + $0x770] sm:$0xff]
        %v564 = vld [vmem:[%s217 + $0x778] sm:$0xff]
        %v565 = vld [vmem:[%s217 + $0x780] sm:$0xff]
        %v566 = vld [vmem:[%s217 + $0x788] sm:$0xff]
        %v567 = vld [vmem:[%s217 + $0x790] sm:$0xff]
        %v568 = vld [vmem:[%s217 + $0x798] sm:$0xff]
        %v569 = vld [vmem:[%s217 + $0x7a0] sm:$0xff]
        %v570 = vld [vmem:[%s217 + $0x7a8] sm:$0xff]
        %v571 = vld [vmem:[%s217 + $0x7b0] sm:$0xff]
        %v572 = vld [vmem:[%s217 + $0x7b8] sm:$0xff]
        %v573 = vld [vmem:[%s217 + $0x7c0] sm:$0xff]
        %v574 = vld [vmem:[%s217 + $0x7c8] sm:$0xff]
        %v575 = vld [vmem:[%s217 + $0x7d0] sm:$0xff]
        %v576 = vld [vmem:[%s217 + $0x7d8] sm:$0xff]
        %v577 = vld [vmem:[%s217 + $0x7e0] sm:$0xff]
        %v578 = vld [vmem:[%s217 + $0x7e8] sm:$0xff]
        %v579 = vld [vmem:[%s217 + $0x7f0] sm:$0xff]
        %v580 = vld [vmem:[%s217 + $0x7f8] sm:$0xff]
        %v581 = vld [vmem:[%s217 + $0x800] sm:$0xff]
        %v582 = vld [vmem:[%s217 + $0x808] sm:$0xff]
        %v583 = vld [vmem:[%s217 + $0x810] sm:$0xff]
        %v584 = vld [vmem:[%s217 + $0x818] sm:$0xff]
        %v585 = vld [vmem:[%s217 + $0x820] sm:$0xff]
        %v586 = vld [vmem:[%s217 + $0x828] sm:$0xff]
        %v587 = vld [vmem:[%s217 + $0x830] sm:$0xff]
        %v588 = vld [vmem:[%s217 + $0x838] sm:$0xff]
        %v589 = vld [vmem:[%s217 + $0x840] sm:$0xff]
        %v590 = vld [vmem:[%s217 + $0x848] sm:$0xff]
        %v591 = vld [vmem:[%s217 + $0x850] sm:$0xff]
        %v592 = vld [vmem:[%s217 + $0x858] sm:$0xff]
        %v593 = vld [vmem:[%s217 + $0x860] sm:$0xff]
        %v594 = vld [vmem:[%s217 + $0x868] sm:$0xff]
        %v595 = vld [vmem:[%s217 + $0x870] sm:$0xff]
        %v596 = vld [vmem:[%s217 + $0x878] sm:$0xff]
        %v597 = vld [vmem:[%s217 + $0x880] sm:$0xff]
        %v598 = vld [vmem:[%s217 + $0x888] sm:$0xff]
        %v599 = vld [vmem:[%s217 + $0x890] sm:$0xff]
        %v600 = vld [vmem:[%s217 + $0x898] sm:$0xff]
        %v601 = vld [vmem:[%s217 + $0x8a0] sm:$0xff]
        %v602 = vld [vmem:[%s217 + $0x8a8] sm:$0xff]
        %v603 = vld [vmem:[%s217 + $0x8b0] sm:$0xff]
        %v604 = vld [vmem:[%s217 + $0x8b8] sm:$0xff]
        %v605 = vld [vmem:[%s217 + $0x8c0] sm:$0xff]
        %v606 = vld [vmem:[%s217 + $0x8c8] sm:$0xff]
        %v607 = vld [vmem:[%s217 + $0x8d0] sm:$0xff]
        %v608 = vld [vmem:[%s217 + $0x8d8] sm:$0xff]
        %v609 = vld [vmem:[%s217 + $0x8e0] sm:$0xff]
        %v610 = vld [vmem:[%s217 + $0x8e8] sm:$0xff]
        %v611 = vld [vmem:[%s217 + $0x8f0] sm:$0xff]
        %v612 = vld [vmem:[%s217 + $0x8f8] sm:$0xff]
        %v613 = vld [vmem:[%s217 + $0x900] sm:$0xff]
        %v614 = vld [vmem:[%s217 + $0x908] sm:$0xff]
        %v615 = vld [vmem:[%s217 + $0x910] sm:$0xff]
        %v616 = vld [vmem:[%s217 + $0x918] sm:$0xff]
        %v617 = vld [vmem:[%s217 + $0x920] sm:$0xff]
        %v618 = vld [vmem:[%s217 + $0x928] sm:$0xff]
        %v619 = vld [vmem:[%s217 + $0x930] sm:$0xff]
        %v620 = vld [vmem:[%s217 + $0x938] sm:$0xff]
        %v621 = vld [vmem:[%s217 + $0x940] sm:$0xff]
        %v622 = vld [vmem:[%s217 + $0x948] sm:$0xff]
        %v623 = vld [vmem:[%s217 + $0x950] sm:$0xff]
        %v624 = vld [vmem:[%s217 + $0x958] sm:$0xff]
        %v625 = vld [vmem:[%s217 + $0x960] sm:$0xff]
        %v626 = vld [vmem:[%s217 + $0x968] sm:$0xff]
        %v627 = vld [vmem:[%s217 + $0x970] sm:$0xff]
        %v628 = vld [vmem:[%s217 + $0x978] sm:$0xff]
        %v629 = vld [vmem:[%s217 + $0x980] sm:$0xff]
        %v630 = vld [vmem:[%s217 + $0x988] sm:$0xff]
        %v631 = vld [vmem:[%s217 + $0x990] sm:$0xff]
        %v632 = vld [vmem:[%s217 + $0x998] sm:$0xff]
        %v633 = vld [vmem:[%s217 + $0x9a0] sm:$0xff]
        %v634 = vld [vmem:[%s217 + $0x9a8] sm:$0xff]
        %v635 = vld [vmem:[%s217 + $0x9b0] sm:$0xff]
        %v636 = vld [vmem:[%s217 + $0x9b8] sm:$0xff]
        %v637 = vld [vmem:[%s217 + $0x9c0] sm:$0xff]
        %v638 = vld [vmem:[%s217 + $0x9c8] sm:$0xff]
        %v639 = vld [vmem:[%s217 + $0x9d0] sm:$0xff]
        %v640 = vld [vmem:[%s217 + $0x9d8] sm:$0xff]
        %v641 = vld [vmem:[%s217 + $0x9e0] sm:$0xff]
        %v642 = vld [vmem:[%s217 + $0x9e8] sm:$0xff]
        %v643 = vld [vmem:[%s217 + $0x9f0] sm:$0xff]
        %v644 = vld [vmem:[%s217 + $0x9f8] sm:$0xff]
        %v645 = vld [vmem:[%s217 + $0xa00] sm:$0xff]
        %v646 = vld [vmem:[%s217 + $0xa08] sm:$0xff]
        %v647 = vld [vmem:[%s217 + $0xa10] sm:$0xff]
        %v648 = vld [vmem:[%s217 + $0xa18] sm:$0xff]
        %v649 = vld [vmem:[%s217 + $0xa20] sm:$0xff]
        %v650 = vld [vmem:[%s217 + $0xa28] sm:$0xff]
        %v651 = vld [vmem:[%s217 + $0xa30] sm:$0xff]
        %v652 = vld [vmem:[%s217 + $0xa38] sm:$0xff]
        %v653 = vld [vmem:[%s217 + $0xa40] sm:$0xff]
        %v654 = vld [vmem:[%s217 + $0xa48] sm:$0xff]
        %v655 = vld [vmem:[%s217 + $0xa50] sm:$0xff]
        %v656 = vld [vmem:[%s217 + $0xa58] sm:$0xff]
        %v657 = vld [vmem:[%s217 + $0xa60] sm:$0xff]
        %v658 = vld [vmem:[%s217 + $0xa68] sm:$0xff]
        %v659 = vld [vmem:[%s217 + $0xa70] sm:$0xff]
        %v660 = vld [vmem:[%s217 + $0xa78] sm:$0xff]
        %v661 = vld [vmem:[%s217 + $0xa80] sm:$0xff]
        %v662 = vld [vmem:[%s217 + $0xa88] sm:$0xff]
        %v663 = vld [vmem:[%s217 + $0xa90] sm:$0xff]
        %v664 = vld [vmem:[%s217 + $0xa98] sm:$0xff]
        %v665 = vld [vmem:[%s217 + $0xaa0] sm:$0xff]
        %v666 = vld [vmem:[%s217 + $0xaa8] sm:$0xff]
        %v667 = vld [vmem:[%s217 + $0xab0] sm:$0xff]
        %v668 = vld [vmem:[%s217 + $0xab8] sm:$0xff]
        %v669 = vld [vmem:[%s217 + $0xac0] sm:$0xff]
        %v670 = vld [vmem:[%s217 + $0xac8] sm:$0xff]
        %v671 = vld [vmem:[%s217 + $0xad0] sm:$0xff]
        %v672 = vld [vmem:[%s217 + $0xad8] sm:$0xff]
        %v673 = vld [vmem:[%s217 + $0xae0] sm:$0xff]
        %v674 = vld [vmem:[%s217 + $0xae8] sm:$0xff]
        %v675 = vld [vmem:[%s217 + $0xaf0] sm:$0xff]
        %v676 = vld [vmem:[%s217 + $0xaf8] sm:$0xff]
        %v677 = vld [vmem:[%s217 + $0xb00] sm:$0xff]
        %v678 = vld [vmem:[%s217 + $0xb08] sm:$0xff]
        %v679 = vld [vmem:[%s217 + $0xb10] sm:$0xff]
        %v680 = vld [vmem:[%s217 + $0xb18] sm:$0xff]
        %v681 = vld [vmem:[%s217 + $0xb20] sm:$0xff]
        %v682 = vld [vmem:[%s217 + $0xb28] sm:$0xff]
        %v683 = vld [vmem:[%s217 + $0xb30] sm:$0xff]
        %v684 = vld [vmem:[%s217 + $0xb38] sm:$0xff]
        %v685 = vld [vmem:[%s217 + $0xb40] sm:$0xff]
        %v686 = vld [vmem:[%s217 + $0xb48] sm:$0xff]
        %v687 = vld [vmem:[%s217 + $0xb50] sm:$0xff]
        %v688 = vld [vmem:[%s217 + $0xb58] sm:$0xff]
        %v689 = vld [vmem:[%s217 + $0xb60] sm:$0xff]
        %v690 = vld [vmem:[%s217 + $0xb68] sm:$0xff]
        %v691 = vld [vmem:[%s217 + $0xb70] sm:$0xff]
        %v692 = vld [vmem:[%s217 + $0xb78] sm:$0xff]
        %v693 = vld [vmem:[%s217 + $0xb80] sm:$0xff]
        %v694 = vld [vmem:[%s217 + $0xb88] sm:$0xff]
        %v695 = vld [vmem:[%s217 + $0xb90] sm:$0xff]
        %v696 = vld [vmem:[%s217 + $0xb98] sm:$0xff]
        %v697 = vld [vmem:[%s217 + $0xba0] sm:$0xff]
        %v698 = vld [vmem:[%s217 + $0xba8] sm:$0xff]
        %v699 = vld [vmem:[%s217 + $0xbb0] sm:$0xff]
        %v700 = vld [vmem:[%s217 + $0xbb8] sm:$0xff]
        %v701 = vld [vmem:[%s217 + $0xbc0] sm:$0xff]
        %v702 = vld [vmem:[%s217 + $0xbc8] sm:$0xff]
        %v703 = vld [vmem:[%s217 + $0xbd0] sm:$0xff]
        %v704 = vld [vmem:[%s217 + $0xbd8] sm:$0xff]
        %v705 = vld [vmem:[%s217 + $0xbe0] sm:$0xff]
        %v706 = vld [vmem:[%s217 + $0xbe8] sm:$0xff]
        %v707 = vld [vmem:[%s217 + $0xbf0] sm:$0xff]
        %v708 = vld [vmem:[%s217 + $0xbf8] sm:$0xff]
        %v709 = vld [vmem:[%s217 + $0xc00] sm:$0xff]
        %v710 = vld [vmem:[%s217 + $0xc08] sm:$0xff]
        %v711 = vld [vmem:[%s217 + $0xc10] sm:$0xff]
        %v712 = vld [vmem:[%s217 + $0xc18] sm:$0xff]
        %v713 = vld [vmem:[%s217 + $0xc20] sm:$0xff]
        %v714 = vld [vmem:[%s217 + $0xc28] sm:$0xff]
        %v715 = vld [vmem:[%s217 + $0xc30] sm:$0xff]
        %v716 = vld [vmem:[%s217 + $0xc38] sm:$0xff]
        %v717 = vld [vmem:[%s217 + $0xc40] sm:$0xff]
        %v718 = vld [vmem:[%s217 + $0xc48] sm:$0xff]
        %v719 = vld [vmem:[%s217 + $0xc50] sm:$0xff]
        %v720 = vld [vmem:[%s217 + $0xc58] sm:$0xff]
        %v721 = vld [vmem:[%s217 + $0xc60] sm:$0xff]
        %v722 = vld [vmem:[%s217 + $0xc68] sm:$0xff]
        %v723 = vld [vmem:[%s217 + $0xc70] sm:$0xff]
        %v724 = vld [vmem:[%s217 + $0xc78] sm:$0xff]
        %v725 = vld [vmem:[%s217 + $0xc80] sm:$0xff]
        %v726 = vld [vmem:[%s217 + $0xc88] sm:$0xff]
        %v727 = vld [vmem:[%s217 + $0xc90] sm:$0xff]
        %v728 = vld [vmem:[%s217 + $0xc98] sm:$0xff]
        %v729 = vld [vmem:[%s217 + $0xca0] sm:$0xff]
        %v730 = vld [vmem:[%s217 + $0xca8] sm:$0xff]
        %v731 = vld [vmem:[%s217 + $0xcb0] sm:$0xff]
        %v732 = vld [vmem:[%s217 + $0xcb8] sm:$0xff]
        %v733 = vld [vmem:[%s217 + $0xcc0] sm:$0xff]
        %v734 = vld [vmem:[%s217 + $0xcc8] sm:$0xff]
        %v735 = vld [vmem:[%s217 + $0xcd0] sm:$0xff]
        %v736 = vld [vmem:[%s217 + $0xcd8] sm:$0xff]
        %v737 = vld [vmem:[%s217 + $0xce0] sm:$0xff]
        %v738 = vld [vmem:[%s217 + $0xce8] sm:$0xff]
        %v739 = vld [vmem:[%s217 + $0xcf0] sm:$0xff]
        %v740 = vld [vmem:[%s217 + $0xcf8] sm:$0xff]
        %v741 = vld [vmem:[%s217 + $0xd00] sm:$0xff]
        %v742 = vld [vmem:[%s217 + $0xd08] sm:$0xff]
        %v743 = vld [vmem:[%s217 + $0xd10] sm:$0xff]
        %v744 = vld [vmem:[%s217 + $0xd18] sm:$0xff]
        %v745 = vld [vmem:[%s217 + $0xd20] sm:$0xff]
        %v746 = vld [vmem:[%s217 + $0xd28] sm:$0xff]
        %v747 = vld [vmem:[%s217 + $0xd30] sm:$0xff]
        %v748 = vld [vmem:[%s217 + $0xd38] sm:$0xff]
        %v749 = vld [vmem:[%s217 + $0xd40] sm:$0xff]
        %v750 = vld [vmem:[%s217 + $0xd48] sm:$0xff]
        %v751 = vld [vmem:[%s217 + $0xd50] sm:$0xff]
        %v752 = vld [vmem:[%s217 + $0xd58] sm:$0xff]
        %v753 = vld [vmem:[%s217 + $0xd60] sm:$0xff]
        %v754 = vld [vmem:[%s217 + $0xd68] sm:$0xff]
        %v755 = vld [vmem:[%s217 + $0xd70] sm:$0xff]
        %v756 = vld [vmem:[%s217 + $0xd78] sm:$0xff]
        %v757 = vld [vmem:[%s217 + $0xd80] sm:$0xff]
        %v758 = vld [vmem:[%s217 + $0xd88] sm:$0xff]
        %v759 = vld [vmem:[%s217 + $0xd90] sm:$0xff]
        %v760 = vld [vmem:[%s217 + $0xd98] sm:$0xff]
        %v761 = vld [vmem:[%s217 + $0xda0] sm:$0xff]
        %v762 = vld [vmem:[%s217 + $0xda8] sm:$0xff]
        %v763 = vld [vmem:[%s217 + $0xdb0] sm:$0xff]
        %v764 = vld [vmem:[%s217 + $0xdb8] sm:$0xff]
        %v765 = vld [vmem:[%s217 + $0xdc0] sm:$0xff]
        %v766 = vld [vmem:[%s217 + $0xdc8] sm:$0xff]
        %v767 = vld [vmem:[%s217 + $0xdd0] sm:$0xff]
        %v768 = vld [vmem:[%s217 + $0xdd8] sm:$0xff]
        %v769 = vld [vmem:[%s217 + $0xde0] sm:$0xff]
        %v770 = vld [vmem:[%s217 + $0xde8] sm:$0xff]
        %v771 = vld [vmem:[%s217 + $0xdf0] sm:$0xff]
        %v772 = vld [vmem:[%s217 + $0xdf8] sm:$0xff]
        %v773 = vld [vmem:[%s217 + $0xe00] sm:$0xff]
        %v774 = vld [vmem:[%s217 + $0xe08] sm:$0xff]
        %v775 = vld [vmem:[%s217 + $0xe10] sm:$0xff]
        %v776 = vld [vmem:[%s217 + $0xe18] sm:$0xff]
        %v777 = vld [vmem:[%s217 + $0xe20] sm:$0xff]
        %v778 = vld [vmem:[%s217 + $0xe28] sm:$0xff]
        %v779 = vld [vmem:[%s217 + $0xe30] sm:$0xff]
        %v780 = vld [vmem:[%s217 + $0xe38] sm:$0xff]
        %v781 = vld [vmem:[%s217 + $0xe40] sm:$0xff]
        %v782 = vld [vmem:[%s217 + $0xe48] sm:$0xff]
        %v783 = vld [vmem:[%s217 + $0xe50] sm:$0xff]
        %v784 = vld [vmem:[%s217 + $0xe58] sm:$0xff]
        %v785 = vld [vmem:[%s217 + $0xe60] sm:$0xff]
        %v786 = vld [vmem:[%s217 + $0xe68] sm:$0xff]
        %v787 = vld [vmem:[%s217 + $0xe70] sm:$0xff]
        %v788 = vld [vmem:[%s217 + $0xe78] sm:$0xff]
        %v789 = vld [vmem:[%s217 + $0xe80] sm:$0xff]
        %v790 = vld [vmem:[%s217 + $0xe88] sm:$0xff]
        %v791 = vld [vmem:[%s217 + $0xe90] sm:$0xff]
        %v792 = vld [vmem:[%s217 + $0xe98] sm:$0xff]
        %v793 = vld [vmem:[%s217 + $0xea0] sm:$0xff]
        %v794 = vld [vmem:[%s217 + $0xea8] sm:$0xff]
        %v795 = vld [vmem:[%s217 + $0xeb0] sm:$0xff]
        %v796 = vld [vmem:[%s217 + $0xeb8] sm:$0xff]
        %v797 = vld [vmem:[%s217 + $0xec0] sm:$0xff]
        %v798 = vld [vmem:[%s217 + $0xec8] sm:$0xff]
        %v799 = vld [vmem:[%s217 + $0xed0] sm:$0xff]
        %v800 = vld [vmem:[%s217 + $0xed8] sm:$0xff]
        %v801 = vld [vmem:[%s217 + $0xee0] sm:$0xff]
        %v802 = vld [vmem:[%s217 + $0xee8] sm:$0xff]
        %v803 = vld [vmem:[%s217 + $0xef0] sm:$0xff]
        %v804 = vld [vmem:[%s217 + $0xef8] sm:$0xff]
        %v805 = vld [vmem:[%s217 + $0xf00] sm:$0xff]
        %v806 = vld [vmem:[%s217 + $0xf08] sm:$0xff]
        %v807 = vld [vmem:[%s217 + $0xf10] sm:$0xff]
        %v808 = vld [vmem:[%s217 + $0xf18] sm:$0xff]
        %v809 = vld [vmem:[%s217 + $0xf20] sm:$0xff]
        %v810 = vld [vmem:[%s217 + $0xf28] sm:$0xff]
        %v811 = vld [vmem:[%s217 + $0xf30] sm:$0xff]
        %v812 = vld [vmem:[%s217 + $0xf38] sm:$0xff]
        %v813 = vld [vmem:[%s217 + $0xf40] sm:$0xff]
        %v814 = vld [vmem:[%s217 + $0xf48] sm:$0xff]
        %v815 = vld [vmem:[%s217 + $0xf50] sm:$0xff]
        %v816 = vld [vmem:[%s217 + $0xf58] sm:$0xff]
        %v817 = vld [vmem:[%s217 + $0xf60] sm:$0xff]
        %v818 = vld [vmem:[%s217 + $0xf68] sm:$0xff]
        %v819 = vld [vmem:[%s217 + $0xf70] sm:$0xff]
        %v820 = vld [vmem:[%s217 + $0xf78] sm:$0xff]
        %v821 = vld [vmem:[%s217 + $0xf80] sm:$0xff]
        %v822 = vld [vmem:[%s217 + $0xf88] sm:$0xff]
        %v823 = vld [vmem:[%s217 + $0xf90] sm:$0xff]
        %v824 = vld [vmem:[%s217 + $0xf98] sm:$0xff]
        %v825 = vld [vmem:[%s217 + $0xfa0] sm:$0xff]
        %v826 = vld [vmem:[%s217 + $0xfa8] sm:$0xff]
        %v827 = vld [vmem:[%s217 + $0xfb0] sm:$0xff]
        %v828 = vld [vmem:[%s217 + $0xfb8] sm:$0xff]
        %v829 = vld [vmem:[%s217 + $0xfc0] sm:$0xff]
        %v830 = vld [vmem:[%s217 + $0xfc8] sm:$0xff]
        %v831 = vld [vmem:[%s217 + $0xfd0] sm:$0xff]
        %v832 = vld [vmem:[%s217 + $0xfd8] sm:$0xff]
        %v833 = vld [vmem:[%s217 + $0xfe0] sm:$0xff]
        %v834 = vld [vmem:[%s217 + $0xfe8] sm:$0xff]
        %v835 = vld [vmem:[%s217 + $0xff0] sm:$0xff]
        %v836 = vld [vmem:[%s217 + $0xff8] sm:$0xff]
        %v837 = vld [vmem:[%s217 + $0x1000] sm:$0xff]
        %v838 = vld [vmem:[%s217 + $0x1008] sm:$0xff]
        %v839 = vld [vmem:[%s217 + $0x1010] sm:$0xff]
        %v840 = vld [vmem:[%s217 + $0x1018] sm:$0xff]
        %v841 = vld [vmem:[%s217 + $0x1020] sm:$0xff]
        %v842 = vld [vmem:[%s217 + $0x1028] sm:$0xff]
        %v843 = vld [vmem:[%s217 + $0x1030] sm:$0xff]
        %v844 = vld [vmem:[%s217 + $0x1038] sm:$0xff]
        %v845 = vld [vmem:[%s217 + $0x1040] sm:$0xff]
        %v846 = vld [vmem:[%s217 + $0x1048] sm:$0xff]
        %v847 = vld [vmem:[%s217 + $0x1050] sm:$0xff]
        %v848 = vld [vmem:[%s217 + $0x1058] sm:$0xff]
        %v849 = vld [vmem:[%s217 + $0x1060] sm:$0xff]
        %v850 = vld [vmem:[%s217 + $0x1068] sm:$0xff]
        %v851 = vld [vmem:[%s217 + $0x1070] sm:$0xff]
        %v852 = vld [vmem:[%s217 + $0x1078] sm:$0xff]
        %v853 = vld [vmem:[%s217 + $0x1080] sm:$0xff]
        %v854 = vld [vmem:[%s217 + $0x1088] sm:$0xff]
        %v855 = vld [vmem:[%s217 + $0x1090] sm:$0xff]
        %v856 = vld [vmem:[%s217 + $0x1098] sm:$0xff]
        %v857 = vld [vmem:[%s217 + $0x10a0] sm:$0xff]
        %v858 = vld [vmem:[%s217 + $0x10a8] sm:$0xff]
        %v859 = vld [vmem:[%s217 + $0x10b0] sm:$0xff]
        %v860 = vld [vmem:[%s217 + $0x10b8] sm:$0xff]
        %v861 = vld [vmem:[%s217 + $0x10c0] sm:$0xff]
        %v862 = vld [vmem:[%s217 + $0x10c8] sm:$0xff]
        %v863 = vld [vmem:[%s217 + $0x10d0] sm:$0xff]
        %v864 = vld [vmem:[%s217 + $0x10d8] sm:$0xff]
        %v865 = vld [vmem:[%s217 + $0x10e0] sm:$0xff]
        %v866 = vld [vmem:[%s217 + $0x10e8] sm:$0xff]
        %v867 = vld [vmem:[%s217 + $0x10f0] sm:$0xff]
        %v868 = vld [vmem:[%s217 + $0x10f8] sm:$0xff]
        %v869 = vld [vmem:[%s217 + $0x1100] sm:$0xff]
        %v870 = vld [vmem:[%s217 + $0x1108] sm:$0xff]
        %v871 = vld [vmem:[%s217 + $0x1110] sm:$0xff]
        %v872 = vld [vmem:[%s217 + $0x1118] sm:$0xff]
        %v873 = vld [vmem:[%s217 + $0x1120] sm:$0xff]
        %v874 = vld [vmem:[%s217 + $0x1128] sm:$0xff]
        %v875 = vld [vmem:[%s217 + $0x1130] sm:$0xff]
        %v876 = vld [vmem:[%s217 + $0x1138] sm:$0xff]
        %v877 = vld [vmem:[%s217 + $0x1140] sm:$0xff]
        %v878 = vld [vmem:[%s217 + $0x1148] sm:$0xff]
        %v879 = vld [vmem:[%s217 + $0x1150] sm:$0xff]
        %v880 = vld [vmem:[%s217 + $0x1158] sm:$0xff]
        %v881 = vld [vmem:[%s217 + $0x1160] sm:$0xff]
        %v882 = vld [vmem:[%s217 + $0x1168] sm:$0xff]
        %v883 = vld [vmem:[%s217 + $0x1170] sm:$0xff]
        %v884 = vld [vmem:[%s217 + $0x1178] sm:$0xff]
        %v885 = vld [vmem:[%s217 + $0x1180] sm:$0xff]
        %v886 = vld [vmem:[%s217 + $0x1188] sm:$0xff]
        %v887 = vld [vmem:[%s217 + $0x1190] sm:$0xff]
        %v888 = vld [vmem:[%s217 + $0x1198] sm:$0xff]
        %v889 = vld [vmem:[%s217 + $0x11a0] sm:$0xff]
        %v890 = vld [vmem:[%s217 + $0x11a8] sm:$0xff]
        %v891 = vld [vmem:[%s217 + $0x11b0] sm:$0xff]
        %v892 = vld [vmem:[%s217 + $0x11b8] sm:$0xff]
        %v893 = vld [vmem:[%s217 + $0x11c0] sm:$0xff]
        %v894 = vld [vmem:[%s217 + $0x11c8] sm:$0xff]
        %v895 = vld [vmem:[%s217 + $0x11d0] sm:$0xff]
        %v896 = vld [vmem:[%s217 + $0x11d8] sm:$0xff]
        %v897 = vld [vmem:[%s217 + $0x11e0] sm:$0xff]
        %v898 = vld [vmem:[%s217 + $0x11e8] sm:$0xff]
        %v899 = vld [vmem:[%s217 + $0x11f0] sm:$0xff]
        %v900 = vld [vmem:[%s217 + $0x11f8] sm:$0xff]
        %v901 = vld [vmem:[%s217 + $0x1200] sm:$0xff]
        %v902 = vld [vmem:[%s217 + $0x1208] sm:$0xff]
        %v903 = vld [vmem:[%s217 + $0x1210] sm:$0xff]
        %v904 = vld [vmem:[%s217 + $0x1218] sm:$0xff]
        %v905 = vld [vmem:[%s217 + $0x1220] sm:$0xff]
        %v906 = vld [vmem:[%s217 + $0x1228] sm:$0xff]
        %v907 = vld [vmem:[%s217 + $0x1230] sm:$0xff]
        %v908 = vld [vmem:[%s217 + $0x1238] sm:$0xff]
        %v909 = vld [vmem:[%s217 + $0x1240] sm:$0xff]
        %v910 = vld [vmem:[%s217 + $0x1248] sm:$0xff]
        %v911 = vld [vmem:[%s217 + $0x1250] sm:$0xff]
        %v912 = vld [vmem:[%s217 + $0x1258] sm:$0xff]
        %v913 = vld [vmem:[%s217 + $0x1260] sm:$0xff]
        %v914 = vld [vmem:[%s217 + $0x1268] sm:$0xff]
        %v915 = vld [vmem:[%s217 + $0x1270] sm:$0xff]
        %v916 = vld [vmem:[%s217 + $0x1278] sm:$0xff]
        %v917 = vld [vmem:[%s217 + $0x1280] sm:$0xff]
        %v918 = vld [vmem:[%s217 + $0x1288] sm:$0xff]
        %v919 = vld [vmem:[%s217 + $0x1290] sm:$0xff]
        %v920 = vld [vmem:[%s217 + $0x1298] sm:$0xff]
        %v921 = vld [vmem:[%s217 + $0x12a0] sm:$0xff]
        %v922 = vld [vmem:[%s217 + $0x12a8] sm:$0xff]
        %v923 = vld [vmem:[%s217 + $0x12b0] sm:$0xff]
        %v924 = vld [vmem:[%s217 + $0x12b8] sm:$0xff]
        %v925 = vld [vmem:[%s217 + $0x12c0] sm:$0xff]
        %v926 = vld [vmem:[%s217 + $0x12c8] sm:$0xff]
        %v927 = vld [vmem:[%s217 + $0x12d0] sm:$0xff]
        %v928 = vld [vmem:[%s217 + $0x12d8] sm:$0xff]
        %v929 = vld [vmem:[%s217 + $0x12e0] sm:$0xff]
        %v930 = vld [vmem:[%s217 + $0x12e8] sm:$0xff]
        %v931 = vld [vmem:[%s217 + $0x12f0] sm:$0xff]
        %v932 = vld [vmem:[%s217 + $0x12f8] sm:$0xff]
        %v933 = vld [vmem:[%s217 + $0x1300] sm:$0xff]
        %v934 = vld [vmem:[%s217 + $0x1308] sm:$0xff]
        %v935 = vld [vmem:[%s217 + $0x1310] sm:$0xff]
        %v936 = vld [vmem:[%s217 + $0x1318] sm:$0xff]
        %v937 = vld [vmem:[%s217 + $0x1320] sm:$0xff]
        %v938 = vld [vmem:[%s217 + $0x1328] sm:$0xff]
        %v939 = vld [vmem:[%s217 + $0x1330] sm:$0xff]
        %v940 = vld [vmem:[%s217 + $0x1338] sm:$0xff]
        %v941 = vld [vmem:[%s217 + $0x1340] sm:$0xff]
        %v942 = vld [vmem:[%s217 + $0x1348] sm:$0xff]
        %v943 = vld [vmem:[%s217 + $0x1350] sm:$0xff]
        %v944 = vld [vmem:[%s217 + $0x1358] sm:$0xff]
        %v945 = vld [vmem:[%s217 + $0x1360] sm:$0xff]
        %v946 = vld [vmem:[%s217 + $0x1368] sm:$0xff]
        %v947 = vld [vmem:[%s217 + $0x1370] sm:$0xff]
        %v948 = vld [vmem:[%s217 + $0x1378] sm:$0xff]
        %v949 = vld [vmem:[%s217 + $0x1380] sm:$0xff]
        %v950 = vld [vmem:[%s217 + $0x1388] sm:$0xff]
        %v951 = vld [vmem:[%s217 + $0x1390] sm:$0xff]
        %v952 = vld [vmem:[%s217 + $0x1398] sm:$0xff]
        %v953 = vld [vmem:[%s217 + $0x13a0] sm:$0xff]
        %v954 = vld [vmem:[%s217 + $0x13a8] sm:$0xff]
        %v955 = vld [vmem:[%s217 + $0x13b0] sm:$0xff]
        %v956 = vld [vmem:[%s217 + $0x13b8] sm:$0xff]
        %v957 = vld [vmem:[%s217 + $0x13c0] sm:$0xff]
        %v958 = vld [vmem:[%s217 + $0x13c8] sm:$0xff]
        %v959 = vld [vmem:[%s217 + $0x13d0] sm:$0xff]
        %v960 = vld [vmem:[%s217 + $0x13d8] sm:$0xff]
        %v961 = vld [vmem:[%s217 + $0x13e0] sm:$0xff]
        %v962 = vld [vmem:[%s217 + $0x13e8] sm:$0xff]
        %v963 = vld [vmem:[%s217 + $0x13f0] sm:$0xff]
        %v964 = vld [vmem:[%s217 + $0x13f8] sm:$0xff]
        %v965 = vld [vmem:[%s217 + $0x1400] sm:$0xff]
        %v966 = vld [vmem:[%s217 + $0x1408] sm:$0xff]
        %v967 = vld [vmem:[%s217 + $0x1410] sm:$0xff]
        %v968 = vld [vmem:[%s217 + $0x1418] sm:$0xff]
        %v969 = vld [vmem:[%s217 + $0x1420] sm:$0xff]
        %v970 = vld [vmem:[%s217 + $0x1428] sm:$0xff]
        %v971 = vld [vmem:[%s217 + $0x1430] sm:$0xff]
        %v972 = vld [vmem:[%s217 + $0x1438] sm:$0xff]
        %v973 = vld [vmem:[%s217 + $0x1440] sm:$0xff]
        %v974 = vld [vmem:[%s217 + $0x1448] sm:$0xff]
        %v975 = vld [vmem:[%s217 + $0x1450] sm:$0xff]
        %v976 = vld [vmem:[%s217 + $0x1458] sm:$0xff]
        %v977 = vld [vmem:[%s217 + $0x1460] sm:$0xff]
        %v978 = vld [vmem:[%s217 + $0x1468] sm:$0xff]
        %v979 = vld [vmem:[%s217 + $0x1470] sm:$0xff]
        %v980 = vld [vmem:[%s217 + $0x1478] sm:$0xff]
        %v981 = vld [vmem:[%s217 + $0x1480] sm:$0xff]
        %v982 = vld [vmem:[%s217 + $0x1488] sm:$0xff]
        %v983 = vld [vmem:[%s217 + $0x1490] sm:$0xff]
        %v984 = vld [vmem:[%s217 + $0x1498] sm:$0xff]
        %v985 = vld [vmem:[%s217 + $0x14a0] sm:$0xff]
        %v986 = vld [vmem:[%s217 + $0x14a8] sm:$0xff]
        %v987 = vld [vmem:[%s217 + $0x14b0] sm:$0xff]
        %v988 = vld [vmem:[%s217 + $0x14b8] sm:$0xff]
        %v989 = vld [vmem:[%s217 + $0x14c0] sm:$0xff]
        %v990 = vld [vmem:[%s217 + $0x14c8] sm:$0xff]
        %v991 = vld [vmem:[%s217 + $0x14d0] sm:$0xff]
        %v992 = vld [vmem:[%s217 + $0x14d8] sm:$0xff]
        %v993 = vld [vmem:[%s217 + $0x14e0] sm:$0xff]
        %v994 = vld [vmem:[%s217 + $0x14e8] sm:$0xff]
        %v995 = vld [vmem:[%s217 + $0x14f0] sm:$0xff]
        %v996 = vld [vmem:[%s217 + $0x14f8] sm:$0xff]
        %v997 = vld [vmem:[%s217 + $0x1500] sm:$0xff]
        %v998 = vld [vmem:[%s217 + $0x1508] sm:$0xff]
        %v999 = vld [vmem:[%s217 + $0x1510] sm:$0xff]
        %v1000 = vld [vmem:[%s217 + $0x1518] sm:$0xff]
        %v1001 = vld [vmem:[%s217 + $0x1520] sm:$0xff]
        %v1002 = vld [vmem:[%s217 + $0x1528] sm:$0xff]
        %v1003 = vld [vmem:[%s217 + $0x1530] sm:$0xff]
        %v1004 = vld [vmem:[%s217 + $0x1538] sm:$0xff]
        %v1005 = vld [vmem:[%s217 + $0x1540] sm:$0xff]
        %v1006 = vld [vmem:[%s217 + $0x1548] sm:$0xff]
        %v1007 = vld [vmem:[%s217 + $0x1550] sm:$0xff]
        %v1008 = vld [vmem:[%s217 + $0x1558] sm:$0xff]
        %v1009 = vld [vmem:[%s217 + $0x1560] sm:$0xff]
        %v1010 = vld [vmem:[%s217 + $0x1568] sm:$0xff]
        %v1011 = vld [vmem:[%s217 + $0x1570] sm:$0xff]
        %v1012 = vld [vmem:[%s217 + $0x1578] sm:$0xff]
        %v1013 = vld [vmem:[%s217 + $0x1580] sm:$0xff]
        %v1014 = vld [vmem:[%s217 + $0x1588] sm:$0xff]
        %v1015 = vld [vmem:[%s217 + $0x1590] sm:$0xff]
        %v1016 = vld [vmem:[%s217 + $0x1598] sm:$0xff]
        %v1017 = vld [vmem:[%s217 + $0x15a0] sm:$0xff]
        %v1018 = vld [vmem:[%s217 + $0x15a8] sm:$0xff]
        %v1019 = vld [vmem:[%s217 + $0x15b0] sm:$0xff]
        %v1020 = vld [vmem:[%s217 + $0x15b8] sm:$0xff]
        %v1021 = vld [vmem:[%s217 + $0x15c0] sm:$0xff]
        %v1022 = vld [vmem:[%s217 + $0x15c8] sm:$0xff]
        %v1023 = vld [vmem:[%s217 + $0x15d0] sm:$0xff]
        %v1024 = vld [vmem:[%s217 + $0x15d8] sm:$0xff]
        %v1025 = vld [vmem:[%s217 + $0x15e0] sm:$0xff]
        %v1026 = vld [vmem:[%s217 + $0x15e8] sm:$0xff]
        %v1027 = vld [vmem:[%s217 + $0x15f0] sm:$0xff]
        %v1028 = vld [vmem:[%s217 + $0x15f8] sm:$0xff]
        %v1029 = vld [vmem:[%s217 + $0x1600] sm:$0xff]
        %v1030 = vld [vmem:[%s217 + $0x1608] sm:$0xff]
        %v1031 = vld [vmem:[%s217 + $0x1610] sm:$0xff]
        %v1032 = vld [vmem:[%s217 + $0x1618] sm:$0xff]
        %v1033 = vld [vmem:[%s217 + $0x1620] sm:$0xff]
        %v1034 = vld [vmem:[%s217 + $0x1628] sm:$0xff]
        %v1035 = vld [vmem:[%s217 + $0x1630] sm:$0xff]
        %v1036 = vld [vmem:[%s217 + $0x1638] sm:$0xff]
        %v1037 = vld [vmem:[%s217 + $0x1640] sm:$0xff]
        %v1038 = vld [vmem:[%s217 + $0x1648] sm:$0xff]
        %v1039 = vld [vmem:[%s217 + $0x1650] sm:$0xff]
        %v1040 = vld [vmem:[%s217 + $0x1658] sm:$0xff]
        %v1041 = vld [vmem:[%s217 + $0x1660] sm:$0xff]
        %v1042 = vld [vmem:[%s217 + $0x1668] sm:$0xff]
        %v1043 = vld [vmem:[%s217 + $0x1670] sm:$0xff]
        %v1044 = vld [vmem:[%s217 + $0x1678] sm:$0xff]
        %v1045 = vld [vmem:[%s217 + $0x1680] sm:$0xff]
        %v1046 = vld [vmem:[%s217 + $0x1688] sm:$0xff]
        %v1047 = vld [vmem:[%s217 + $0x1690] sm:$0xff]
        %v1048 = vld [vmem:[%s217 + $0x1698] sm:$0xff]
        %v1049 = vld [vmem:[%s217 + $0x16a0] sm:$0xff]
        %v1050 = vld [vmem:[%s217 + $0x16a8] sm:$0xff]
        %v1051 = vld [vmem:[%s217 + $0x16b0] sm:$0xff]
        %v1052 = vld [vmem:[%s217 + $0x16b8] sm:$0xff]
        %v1053 = vld [vmem:[%s217 + $0x16c0] sm:$0xff]
        %v1054 = vld [vmem:[%s217 + $0x16c8] sm:$0xff]
        %v1055 = vld [vmem:[%s217 + $0x16d0] sm:$0xff]
        %v1056 = vld [vmem:[%s217 + $0x16d8] sm:$0xff]
        %v1057 = vld [vmem:[%s217 + $0x16e0] sm:$0xff]
        %v1058 = vld [vmem:[%s217 + $0x16e8] sm:$0xff]
        %v1059 = vld [vmem:[%s217 + $0x16f0] sm:$0xff]
        %v1060 = vld [vmem:[%s217 + $0x16f8] sm:$0xff]
        %v1061 = vld [vmem:[%s217 + $0x1700] sm:$0xff]
        %v1062 = vld [vmem:[%s217 + $0x1708] sm:$0xff]
        %v1063 = vld [vmem:[%s217 + $0x1710] sm:$0xff]
        %v1064 = vld [vmem:[%s217 + $0x1718] sm:$0xff]
        %v1065 = vld [vmem:[%s217 + $0x1720] sm:$0xff]
        %v1066 = vld [vmem:[%s217 + $0x1728] sm:$0xff]
        %v1067 = vld [vmem:[%s217 + $0x1730] sm:$0xff]
        %v1068 = vld [vmem:[%s217 + $0x1738] sm:$0xff]
        %v1069 = vld [vmem:[%s217 + $0x1740] sm:$0xff]
        %v1070 = vld [vmem:[%s217 + $0x1748] sm:$0xff]
        %v1071 = vld [vmem:[%s217 + $0x1750] sm:$0xff]
        %v1072 = vld [vmem:[%s217 + $0x1758] sm:$0xff]
        %v1073 = vld [vmem:[%s217 + $0x1760] sm:$0xff]
        %v1074 = vld [vmem:[%s217 + $0x1768] sm:$0xff]
        %v1075 = vld [vmem:[%s217 + $0x1770] sm:$0xff]
        %v1076 = vld [vmem:[%s217 + $0x1778] sm:$0xff]
        %v1077 = vld [vmem:[%s217 + $0x1780] sm:$0xff]
        %v1078 = vld [vmem:[%s217 + $0x1788] sm:$0xff]
        %v1079 = vld [vmem:[%s217 + $0x1790] sm:$0xff]
        %v1080 = vld [vmem:[%s217 + $0x1798] sm:$0xff]
        %v1081 = vld [vmem:[%s217 + $0x17a0] sm:$0xff]
        %v1082 = vld [vmem:[%s217 + $0x17a8] sm:$0xff]
        %v1083 = vld [vmem:[%s217 + $0x17b0] sm:$0xff]
        %v1084 = vld [vmem:[%s217 + $0x17b8] sm:$0xff]
        %v1085 = vld [vmem:[%s217 + $0x17c0] sm:$0xff]
        %v1086 = vld [vmem:[%s217 + $0x17c8] sm:$0xff]
        %v1087 = vld [vmem:[%s217 + $0x17d0] sm:$0xff]
        %v1088 = vld [vmem:[%s217 + $0x17d8] sm:$0xff]
        %v1089 = vld [vmem:[%s217 + $0x17e0] sm:$0xff]
        %v1090 = vld [vmem:[%s217 + $0x17e8] sm:$0xff]
        %v1091 = vld [vmem:[%s217 + $0x17f0] sm:$0xff]
        %v1092 = vld [vmem:[%s217 + $0x17f8] sm:$0xff]
        %v1093 = vld [vmem:[%s217 + $0x1800] sm:$0xff]
        %v1094 = vld [vmem:[%s217 + $0x1808] sm:$0xff]
        %v1095 = vld [vmem:[%s217 + $0x1810] sm:$0xff]
        %v1096 = vld [vmem:[%s217 + $0x1818] sm:$0xff]
        %v1097 = vld [vmem:[%s217 + $0x1820] sm:$0xff]
        %v1098 = vld [vmem:[%s217 + $0x1828] sm:$0xff]
        %v1099 = vld [vmem:[%s217 + $0x1830] sm:$0xff]
        %v1100 = vld [vmem:[%s217 + $0x1838] sm:$0xff]
        %v1101 = vld [vmem:[%s217 + $0x1840] sm:$0xff]
        %v1102 = vld [vmem:[%s217 + $0x1848] sm:$0xff]
        %v1103 = vld [vmem:[%s217 + $0x1850] sm:$0xff]
        %v1104 = vld [vmem:[%s217 + $0x1858] sm:$0xff]
        %v1105 = vld [vmem:[%s217 + $0x1860] sm:$0xff]
        %v1106 = vld [vmem:[%s217 + $0x1868] sm:$0xff]
        %v1107 = vld [vmem:[%s217 + $0x1870] sm:$0xff]
        %v1108 = vld [vmem:[%s217 + $0x1878] sm:$0xff]
        %v1109 = vld [vmem:[%s217 + $0x1880] sm:$0xff]
        %v1110 = vld [vmem:[%s217 + $0x1888] sm:$0xff]
        %v1111 = vld [vmem:[%s217 + $0x1890] sm:$0xff]
        %v1112 = vld [vmem:[%s217 + $0x1898] sm:$0xff]
        %v1113 = vld [vmem:[%s217 + $0x18a0] sm:$0xff]
        %v1114 = vld [vmem:[%s217 + $0x18a8] sm:$0xff]
        %v1115 = vld [vmem:[%s217 + $0x18b0] sm:$0xff]
        %v1116 = vld [vmem:[%s217 + $0x18b8] sm:$0xff]
        %v1117 = vld [vmem:[%s217 + $0x18c0] sm:$0xff]
        %v1118 = vld [vmem:[%s217 + $0x18c8] sm:$0xff]
        %v1119 = vld [vmem:[%s217 + $0x18d0] sm:$0xff]
        %v1120 = vld [vmem:[%s217 + $0x18d8] sm:$0xff]
        %v1121 = vld [vmem:[%s217 + $0x18e0] sm:$0xff]
        %v1122 = vld [vmem:[%s217 + $0x18e8] sm:$0xff]
        %v1123 = vld [vmem:[%s217 + $0x18f0] sm:$0xff]
        %v1124 = vld [vmem:[%s217 + $0x18f8] sm:$0xff]
        %vm1125 = vcmask 130048
        %v1127 = vsel %vm1125, %v324, 0
        %1129 = vmatpush.msra.mxu0 %v565
        %1130 = vmatpush.msra.mxu0 %v549
        %1131 = vmatpush.msra.mxu0 %v533
        %1132 = vmatpush.msra.mxu0 %v517
        %1133 = vmatpush.msra.mxu0 %v501
        %1134 = vmatpush.msra.mxu0 %v485
        %1135 = vmatpush.msra.mxu0 %v469
        %1136 = vmatpush.msra.mxu0 %v453
        %1137 = vmatpush.msra.mxu0 %v437
        %1138 = vmatpush.msra.mxu0 %v421
        %1139 = vmatpush.msra.mxu0 %v405
        %1140 = vmatpush.msra.mxu0 %v389
        %1141 = vmatpush.msra.mxu0 %v373
        %1142 = vmatpush.msra.mxu0 %v357
        %1143 = vmatpush.msra.mxu0 %v341
        %1144 = vmatpush.msra.mxu0 %v325
        %1145 = vmatmul.f32.gmra.mxu0 %v321
        %v1146 = vpop.f32.mrf.mxu0
        %v1147 = vadd.f32 0.0, %v1146
        %1148 = vdwg.mxu0
        %1149 = vmatpush.msra.mxu0 %v821
        %1150 = vmatpush.msra.mxu0 %v805
        %1151 = vmatpush.msra.mxu0 %v789
        %1152 = vmatpush.msra.mxu0 %v773
        %1153 = vmatpush.msra.mxu0 %v757
        %1154 = vmatpush.msra.mxu0 %v741
        %1155 = vmatpush.msra.mxu0 %v725
        %1156 = vmatpush.msra.mxu0 %v709
        %1157 = vmatpush.msra.mxu0 %v693
        %1158 = vmatpush.msra.mxu0 %v677
        %1159 = vmatpush.msra.mxu0 %v661
        %1160 = vmatpush.msra.mxu0 %v645
        %1161 = vmatpush.msra.mxu0 %v629
        %1162 = vmatpush.msra.mxu0 %v613
        %1163 = vmatpush.msra.mxu0 %v597
        %1164 = vmatpush.msra.mxu0 %v581
        %1165 = vmatmul.f32.gmra.mxu0 %v322
        %v1166 = vpop.f32.mrf.mxu0
        %v1167 = vadd.f32 %v1147, %v1166
        %1168 = vdwg.mxu0
        %1169 = vmatpush.msra.mxu0 %v1077
        %1170 = vmatpush.msra.mxu0 %v1061
        %1171 = vmatpush.msra.mxu0 %v1045
        %1172 = vmatpush.msra.mxu0 %v1029
        %1173 = vmatpush.msra.mxu0 %v1013
        %1174 = vmatpush.msra.mxu0 %v997
        %1175 = vmatpush.msra.mxu0 %v981
        %1176 = vmatpush.msra.mxu0 %v965
        %1177 = vmatpush.msra.mxu0 %v949
        %1178 = vmatpush.msra.mxu0 %v933
        %1179 = vmatpush.msra.mxu0 %v917
        %1180 = vmatpush.msra.mxu0 %v901
        %1181 = vmatpush.msra.mxu0 %v885
        %1182 = vmatpush.msra.mxu0 %v869
        %1183 = vmatpush.msra.mxu0 %v853
        %1184 = vmatpush.msra.mxu0 %v837
        %1185 = vmatmul.f32.gmra.mxu0 %v323
        %v1186 = vpop.f32.mrf.mxu0
        %v1187 = vadd.f32 %v1167, %v1186
        %1188 = vdwg.mxu0
        %1189 = vmatpush.msra.mxu0 0.0
        %1190 = vmatpush.msra.mxu0 0.0
        %1191 = vmatpush.msra.mxu0 0.0
        %1192 = vmatpush.msra.mxu0 0.0
        %1193 = vmatpush.msra.mxu0 0.0
        %1194 = vmatpush.msra.mxu0 0.0
        %1195 = vmatpush.msra.mxu0 0.0
        %1196 = vmatpush.msra.mxu0 0.0
        %1197 = vmatpush.msra.mxu0 0.0
        %1198 = vmatpush.msra.mxu0 0.0
        %1199 = vmatpush.msra.mxu0 0.0
        %1200 = vmatpush.msra.mxu0 0.0
        %1201 = vmatpush.msra.mxu0 0.0
        %1202 = vmatpush.msra.mxu0 0.0
        %1203 = vmatpush.msra.mxu0 %v1109
        %1204 = vmatpush.msra.mxu0 %v1093
        %1205 = vmatmul.f32.gmra.mxu0 %v1127
        %v1206 = vpop.f32.mrf.mxu0
        %v1207 = vadd.f32 %v1187, %v1206
        %1208 = vdwg.mxu0
        %1209 = vmatpush.msra.mxu0 %v566
        %1210 = vmatpush.msra.mxu0 %v550
        %1211 = vmatpush.msra.mxu0 %v534
        %1212 = vmatpush.msra.mxu0 %v518
        %1213 = vmatpush.msra.mxu0 %v502
        %1214 = vmatpush.msra.mxu0 %v486
        %1215 = vmatpush.msra.mxu0 %v470
        %1216 = vmatpush.msra.mxu0 %v454
        %1217 = vmatpush.msra.mxu0 %v438
        %1218 = vmatpush.msra.mxu0 %v422
        %1219 = vmatpush.msra.mxu0 %v406
        %1220 = vmatpush.msra.mxu0 %v390
        %1221 = vmatpush.msra.mxu0 %v374
        %1222 = vmatpush.msra.mxu0 %v358
        %1223 = vmatpush.msra.mxu0 %v342
        %1224 = vmatpush.msra.mxu0 %v326
        %1225 = vmatmul.f32.gmra.mxu0 %v321
        %v1226 = vpop.f32.mrf.mxu0
        %v1227 = vadd.f32 0.0, %v1226
        %1228 = vdwg.mxu0
        %1229 = vmatpush.msra.mxu0 %v822
        %1230 = vmatpush.msra.mxu0 %v806
        %1231 = vmatpush.msra.mxu0 %v790
        %1232 = vmatpush.msra.mxu0 %v774
        %1233 = vmatpush.msra.mxu0 %v758
        %1234 = vmatpush.msra.mxu0 %v742
        %1235 = vmatpush.msra.mxu0 %v726
        %1236 = vmatpush.msra.mxu0 %v710
        %1237 = vmatpush.msra.mxu0 %v694
        %1238 = vmatpush.msra.mxu0 %v678
        %1239 = vmatpush.msra.mxu0 %v662
        %1240 = vmatpush.msra.mxu0 %v646
        %1241 = vmatpush.msra.mxu0 %v630
        %1242 = vmatpush.msra.mxu0 %v614
        %1243 = vmatpush.msra.mxu0 %v598
        %1244 = vmatpush.msra.mxu0 %v582
        %1245 = vmatmul.f32.gmra.mxu0 %v322
        %v1246 = vpop.f32.mrf.mxu0
        %v1247 = vadd.f32 %v1227, %v1246
        %1248 = vdwg.mxu0
        %1249 = vmatpush.msra.mxu0 %v1078
        %1250 = vmatpush.msra.mxu0 %v1062
        %1251 = vmatpush.msra.mxu0 %v1046
        %1252 = vmatpush.msra.mxu0 %v1030
        %1253 = vmatpush.msra.mxu0 %v1014
        %1254 = vmatpush.msra.mxu0 %v998
        %1255 = vmatpush.msra.mxu0 %v982
        %1256 = vmatpush.msra.mxu0 %v966
        %1257 = vmatpush.msra.mxu0 %v950
        %1258 = vmatpush.msra.mxu0 %v934
        %1259 = vmatpush.msra.mxu0 %v918
        %1260 = vmatpush.msra.mxu0 %v902
        %1261 = vmatpush.msra.mxu0 %v886
        %1262 = vmatpush.msra.mxu0 %v870
        %1263 = vmatpush.msra.mxu0 %v854
        %1264 = vmatpush.msra.mxu0 %v838
        %1265 = vmatmul.f32.gmra.mxu0 %v323
        %v1266 = vpop.f32.mrf.mxu0
        %v1267 = vadd.f32 %v1247, %v1266
        %1268 = vdwg.mxu0
        %1269 = vmatpush.msra.mxu0 0.0
        %1270 = vmatpush.msra.mxu0 0.0
        %1271 = vmatpush.msra.mxu0 0.0
        %1272 = vmatpush.msra.mxu0 0.0
        %1273 = vmatpush.msra.mxu0 0.0
        %1274 = vmatpush.msra.mxu0 0.0
        %1275 = vmatpush.msra.mxu0 0.0
        %1276 = vmatpush.msra.mxu0 0.0
        %1277 = vmatpush.msra.mxu0 0.0
        %1278 = vmatpush.msra.mxu0 0.0
        %1279 = vmatpush.msra.mxu0 0.0
        %1280 = vmatpush.msra.mxu0 0.0
        %1281 = vmatpush.msra.mxu0 0.0
        %1282 = vmatpush.msra.mxu0 0.0
        %1283 = vmatpush.msra.mxu0 %v1110
        %1284 = vmatpush.msra.mxu0 %v1094
        %1285 = vmatmul.f32.gmra.mxu0 %v1127
        %v1286 = vpop.f32.mrf.mxu0
        %v1287 = vadd.f32 %v1267, %v1286
        %1288 = vdwg.mxu0
        %1289 = vmatpush.msra.mxu0 %v567
        %1290 = vmatpush.msra.mxu0 %v551
        %1291 = vmatpush.msra.mxu0 %v535
        %1292 = vmatpush.msra.mxu0 %v519
        %1293 = vmatpush.msra.mxu0 %v503
        %1294 = vmatpush.msra.mxu0 %v487
        %1295 = vmatpush.msra.mxu0 %v471
        %1296 = vmatpush.msra.mxu0 %v455
        %1297 = vmatpush.msra.mxu0 %v439
        %1298 = vmatpush.msra.mxu0 %v423
        %1299 = vmatpush.msra.mxu0 %v407
        %1300 = vmatpush.msra.mxu0 %v391
        %1301 = vmatpush.msra.mxu0 %v375
        %1302 = vmatpush.msra.mxu0 %v359
        %1303 = vmatpush.msra.mxu0 %v343
        %1304 = vmatpush.msra.mxu0 %v327
        %1305 = vmatmul.f32.gmra.mxu0 %v321
        %v1306 = vpop.f32.mrf.mxu0
        %v1307 = vadd.f32 0.0, %v1306
        %1308 = vdwg.mxu0
        %1309 = vmatpush.msra.mxu0 %v823
        %1310 = vmatpush.msra.mxu0 %v807
        %1311 = vmatpush.msra.mxu0 %v791
        %1312 = vmatpush.msra.mxu0 %v775
        %1313 = vmatpush.msra.mxu0 %v759
        %1314 = vmatpush.msra.mxu0 %v743
        %1315 = vmatpush.msra.mxu0 %v727
        %1316 = vmatpush.msra.mxu0 %v711
        %1317 = vmatpush.msra.mxu0 %v695
        %1318 = vmatpush.msra.mxu0 %v679
        %1319 = vmatpush.msra.mxu0 %v663
        %1320 = vmatpush.msra.mxu0 %v647
        %1321 = vmatpush.msra.mxu0 %v631
        %1322 = vmatpush.msra.mxu0 %v615
        %1323 = vmatpush.msra.mxu0 %v599
        %1324 = vmatpush.msra.mxu0 %v583
        %1325 = vmatmul.f32.gmra.mxu0 %v322
        %v1326 = vpop.f32.mrf.mxu0
        %v1327 = vadd.f32 %v1307, %v1326
        %1328 = vdwg.mxu0
        %1329 = vmatpush.msra.mxu0 %v1079
        %1330 = vmatpush.msra.mxu0 %v1063
        %1331 = vmatpush.msra.mxu0 %v1047
        %1332 = vmatpush.msra.mxu0 %v1031
        %1333 = vmatpush.msra.mxu0 %v1015
        %1334 = vmatpush.msra.mxu0 %v999
        %1335 = vmatpush.msra.mxu0 %v983
        %1336 = vmatpush.msra.mxu0 %v967
        %1337 = vmatpush.msra.mxu0 %v951
        %1338 = vmatpush.msra.mxu0 %v935
        %1339 = vmatpush.msra.mxu0 %v919
        %1340 = vmatpush.msra.mxu0 %v903
        %1341 = vmatpush.msra.mxu0 %v887
        %1342 = vmatpush.msra.mxu0 %v871
        %1343 = vmatpush.msra.mxu0 %v855
        %1344 = vmatpush.msra.mxu0 %v839
        %1345 = vmatmul.f32.gmra.mxu0 %v323
        %v1346 = vpop.f32.mrf.mxu0
        %v1347 = vadd.f32 %v1327, %v1346
        %1348 = vdwg.mxu0
        %1349 = vmatpush.msra.mxu0 0.0
        %1350 = vmatpush.msra.mxu0 0.0
        %1351 = vmatpush.msra.mxu0 0.0
        %1352 = vmatpush.msra.mxu0 0.0
        %1353 = vmatpush.msra.mxu0 0.0
        %1354 = vmatpush.msra.mxu0 0.0
        %1355 = vmatpush.msra.mxu0 0.0
        %1356 = vmatpush.msra.mxu0 0.0
        %1357 = vmatpush.msra.mxu0 0.0
        %1358 = vmatpush.msra.mxu0 0.0
        %1359 = vmatpush.msra.mxu0 0.0
        %1360 = vmatpush.msra.mxu0 0.0
        %1361 = vmatpush.msra.mxu0 0.0
        %1362 = vmatpush.msra.mxu0 0.0
        %1363 = vmatpush.msra.mxu0 %v1111
        %1364 = vmatpush.msra.mxu0 %v1095
        %1365 = vmatmul.f32.gmra.mxu0 %v1127
        %v1366 = vpop.f32.mrf.mxu0
        %v1367 = vadd.f32 %v1347, %v1366
        %1368 = vdwg.mxu0
        %1369 = vmatpush.msra.mxu0 %v568
        %1370 = vmatpush.msra.mxu0 %v552
        %1371 = vmatpush.msra.mxu0 %v536
        %1372 = vmatpush.msra.mxu0 %v520
        %1373 = vmatpush.msra.mxu0 %v504
        %1374 = vmatpush.msra.mxu0 %v488
        %1375 = vmatpush.msra.mxu0 %v472
        %1376 = vmatpush.msra.mxu0 %v456
        %1377 = vmatpush.msra.mxu0 %v440
        %1378 = vmatpush.msra.mxu0 %v424
        %1379 = vmatpush.msra.mxu0 %v408
        %1380 = vmatpush.msra.mxu0 %v392
        %1381 = vmatpush.msra.mxu0 %v376
        %1382 = vmatpush.msra.mxu0 %v360
        %1383 = vmatpush.msra.mxu0 %v344
        %1384 = vmatpush.msra.mxu0 %v328
        %1385 = vmatmul.f32.gmra.mxu0 %v321
        %v1386 = vpop.f32.mrf.mxu0
        %v1387 = vadd.f32 0.0, %v1386
        %1388 = vdwg.mxu0
        %1389 = vmatpush.msra.mxu0 %v824
        %1390 = vmatpush.msra.mxu0 %v808
        %1391 = vmatpush.msra.mxu0 %v792
        %1392 = vmatpush.msra.mxu0 %v776
        %1393 = vmatpush.msra.mxu0 %v760
        %1394 = vmatpush.msra.mxu0 %v744
        %1395 = vmatpush.msra.mxu0 %v728
        %1396 = vmatpush.msra.mxu0 %v712
        %1397 = vmatpush.msra.mxu0 %v696
        %1398 = vmatpush.msra.mxu0 %v680
        %1399 = vmatpush.msra.mxu0 %v664
        %1400 = vmatpush.msra.mxu0 %v648
        %1401 = vmatpush.msra.mxu0 %v632
        %1402 = vmatpush.msra.mxu0 %v616
        %1403 = vmatpush.msra.mxu0 %v600
        %1404 = vmatpush.msra.mxu0 %v584
        %1405 = vmatmul.f32.gmra.mxu0 %v322
        %v1406 = vpop.f32.mrf.mxu0
        %v1407 = vadd.f32 %v1387, %v1406
        %1408 = vdwg.mxu0
        %1409 = vmatpush.msra.mxu0 %v1080
        %1410 = vmatpush.msra.mxu0 %v1064
        %1411 = vmatpush.msra.mxu0 %v1048
        %1412 = vmatpush.msra.mxu0 %v1032
        %1413 = vmatpush.msra.mxu0 %v1016
        %1414 = vmatpush.msra.mxu0 %v1000
        %1415 = vmatpush.msra.mxu0 %v984
        %1416 = vmatpush.msra.mxu0 %v968
        %1417 = vmatpush.msra.mxu0 %v952
        %1418 = vmatpush.msra.mxu0 %v936
        %1419 = vmatpush.msra.mxu0 %v920
        %1420 = vmatpush.msra.mxu0 %v904
        %1421 = vmatpush.msra.mxu0 %v888
        %1422 = vmatpush.msra.mxu0 %v872
        %1423 = vmatpush.msra.mxu0 %v856
        %1424 = vmatpush.msra.mxu0 %v840
        %1425 = vmatmul.f32.gmra.mxu0 %v323
        %v1426 = vpop.f32.mrf.mxu0
        %v1427 = vadd.f32 %v1407, %v1426
        %1428 = vdwg.mxu0
        %1429 = vmatpush.msra.mxu0 0.0
        %1430 = vmatpush.msra.mxu0 0.0
        %1431 = vmatpush.msra.mxu0 0.0
        %1432 = vmatpush.msra.mxu0 0.0
        %1433 = vmatpush.msra.mxu0 0.0
        %1434 = vmatpush.msra.mxu0 0.0
        %1435 = vmatpush.msra.mxu0 0.0
        %1436 = vmatpush.msra.mxu0 0.0
        %1437 = vmatpush.msra.mxu0 0.0
        %1438 = vmatpush.msra.mxu0 0.0
        %1439 = vmatpush.msra.mxu0 0.0
        %1440 = vmatpush.msra.mxu0 0.0
        %1441 = vmatpush.msra.mxu0 0.0
        %1442 = vmatpush.msra.mxu0 0.0
        %1443 = vmatpush.msra.mxu0 %v1112
        %1444 = vmatpush.msra.mxu0 %v1096
        %1445 = vmatmul.f32.gmra.mxu0 %v1127
        %v1446 = vpop.f32.mrf.mxu0
        %v1447 = vadd.f32 %v1427, %v1446
        %1448 = vdwg.mxu0
        %1449 = vmatpush.msra.mxu0 %v569
        %1450 = vmatpush.msra.mxu0 %v553
        %1451 = vmatpush.msra.mxu0 %v537
        %1452 = vmatpush.msra.mxu0 %v521
        %1453 = vmatpush.msra.mxu0 %v505
        %1454 = vmatpush.msra.mxu0 %v489
        %1455 = vmatpush.msra.mxu0 %v473
        %1456 = vmatpush.msra.mxu0 %v457
        %1457 = vmatpush.msra.mxu0 %v441
        %1458 = vmatpush.msra.mxu0 %v425
        %1459 = vmatpush.msra.mxu0 %v409
        %1460 = vmatpush.msra.mxu0 %v393
        %1461 = vmatpush.msra.mxu0 %v377
        %1462 = vmatpush.msra.mxu0 %v361
        %1463 = vmatpush.msra.mxu0 %v345
        %1464 = vmatpush.msra.mxu0 %v329
        %1465 = vmatmul.f32.gmra.mxu0 %v321
        %v1466 = vpop.f32.mrf.mxu0
        %v1467 = vadd.f32 0.0, %v1466
        %1468 = vdwg.mxu0
        %1469 = vmatpush.msra.mxu0 %v825
        %1470 = vmatpush.msra.mxu0 %v809
        %1471 = vmatpush.msra.mxu0 %v793
        %1472 = vmatpush.msra.mxu0 %v777
        %1473 = vmatpush.msra.mxu0 %v761
        %1474 = vmatpush.msra.mxu0 %v745
        %1475 = vmatpush.msra.mxu0 %v729
        %1476 = vmatpush.msra.mxu0 %v713
        %1477 = vmatpush.msra.mxu0 %v697
        %1478 = vmatpush.msra.mxu0 %v681
        %1479 = vmatpush.msra.mxu0 %v665
        %1480 = vmatpush.msra.mxu0 %v649
        %1481 = vmatpush.msra.mxu0 %v633
        %1482 = vmatpush.msra.mxu0 %v617
        %1483 = vmatpush.msra.mxu0 %v601
        %1484 = vmatpush.msra.mxu0 %v585
        %1485 = vmatmul.f32.gmra.mxu0 %v322
        %v1486 = vpop.f32.mrf.mxu0
        %v1487 = vadd.f32 %v1467, %v1486
        %1488 = vdwg.mxu0
        %1489 = vmatpush.msra.mxu0 %v1081
        %1490 = vmatpush.msra.mxu0 %v1065
        %1491 = vmatpush.msra.mxu0 %v1049
        %1492 = vmatpush.msra.mxu0 %v1033
        %1493 = vmatpush.msra.mxu0 %v1017
        %1494 = vmatpush.msra.mxu0 %v1001
        %1495 = vmatpush.msra.mxu0 %v985
        %1496 = vmatpush.msra.mxu0 %v969
        %1497 = vmatpush.msra.mxu0 %v953
        %1498 = vmatpush.msra.mxu0 %v937
        %1499 = vmatpush.msra.mxu0 %v921
        %1500 = vmatpush.msra.mxu0 %v905
        %1501 = vmatpush.msra.mxu0 %v889
        %1502 = vmatpush.msra.mxu0 %v873
        %1503 = vmatpush.msra.mxu0 %v857
        %1504 = vmatpush.msra.mxu0 %v841
        %1505 = vmatmul.f32.gmra.mxu0 %v323
        %v1506 = vpop.f32.mrf.mxu0
        %v1507 = vadd.f32 %v1487, %v1506
        %1508 = vdwg.mxu0
        %1509 = vmatpush.msra.mxu0 0.0
        %1510 = vmatpush.msra.mxu0 0.0
        %1511 = vmatpush.msra.mxu0 0.0
        %1512 = vmatpush.msra.mxu0 0.0
        %1513 = vmatpush.msra.mxu0 0.0
        %1514 = vmatpush.msra.mxu0 0.0
        %1515 = vmatpush.msra.mxu0 0.0
        %1516 = vmatpush.msra.mxu0 0.0
        %1517 = vmatpush.msra.mxu0 0.0
        %1518 = vmatpush.msra.mxu0 0.0
        %1519 = vmatpush.msra.mxu0 0.0
        %1520 = vmatpush.msra.mxu0 0.0
        %1521 = vmatpush.msra.mxu0 0.0
        %1522 = vmatpush.msra.mxu0 0.0
        %1523 = vmatpush.msra.mxu0 %v1113
        %1524 = vmatpush.msra.mxu0 %v1097
        %1525 = vmatmul.f32.gmra.mxu0 %v1127
        %v1526 = vpop.f32.mrf.mxu0
        %v1527 = vadd.f32 %v1507, %v1526
        %1528 = vdwg.mxu0
        %1529 = vmatpush.msra.mxu0 %v570
        %1530 = vmatpush.msra.mxu0 %v554
        %1531 = vmatpush.msra.mxu0 %v538
        %1532 = vmatpush.msra.mxu0 %v522
        %1533 = vmatpush.msra.mxu0 %v506
        %1534 = vmatpush.msra.mxu0 %v490
        %1535 = vmatpush.msra.mxu0 %v474
        %1536 = vmatpush.msra.mxu0 %v458
        %1537 = vmatpush.msra.mxu0 %v442
        %1538 = vmatpush.msra.mxu0 %v426
        %1539 = vmatpush.msra.mxu0 %v410
        %1540 = vmatpush.msra.mxu0 %v394
        %1541 = vmatpush.msra.mxu0 %v378
        %1542 = vmatpush.msra.mxu0 %v362
        %1543 = vmatpush.msra.mxu0 %v346
        %1544 = vmatpush.msra.mxu0 %v330
        %1545 = vmatmul.f32.gmra.mxu0 %v321
        %v1546 = vpop.f32.mrf.mxu0
        %v1547 = vadd.f32 0.0, %v1546
        %1548 = vdwg.mxu0
        %1549 = vmatpush.msra.mxu0 %v826
        %1550 = vmatpush.msra.mxu0 %v810
        %1551 = vmatpush.msra.mxu0 %v794
        %1552 = vmatpush.msra.mxu0 %v778
        %1553 = vmatpush.msra.mxu0 %v762
        %1554 = vmatpush.msra.mxu0 %v746
        %1555 = vmatpush.msra.mxu0 %v730
        %1556 = vmatpush.msra.mxu0 %v714
        %1557 = vmatpush.msra.mxu0 %v698
        %1558 = vmatpush.msra.mxu0 %v682
        %1559 = vmatpush.msra.mxu0 %v666
        %1560 = vmatpush.msra.mxu0 %v650
        %1561 = vmatpush.msra.mxu0 %v634
        %1562 = vmatpush.msra.mxu0 %v618
        %1563 = vmatpush.msra.mxu0 %v602
        %1564 = vmatpush.msra.mxu0 %v586
        %1565 = vmatmul.f32.gmra.mxu0 %v322
        %v1566 = vpop.f32.mrf.mxu0
        %v1567 = vadd.f32 %v1547, %v1566
        %1568 = vdwg.mxu0
        %1569 = vmatpush.msra.mxu0 %v1082
        %1570 = vmatpush.msra.mxu0 %v1066
        %1571 = vmatpush.msra.mxu0 %v1050
        %1572 = vmatpush.msra.mxu0 %v1034
        %1573 = vmatpush.msra.mxu0 %v1018
        %1574 = vmatpush.msra.mxu0 %v1002
        %1575 = vmatpush.msra.mxu0 %v986
        %1576 = vmatpush.msra.mxu0 %v970
        %1577 = vmatpush.msra.mxu0 %v954
        %1578 = vmatpush.msra.mxu0 %v938
        %1579 = vmatpush.msra.mxu0 %v922
        %1580 = vmatpush.msra.mxu0 %v906
        %1581 = vmatpush.msra.mxu0 %v890
        %1582 = vmatpush.msra.mxu0 %v874
        %1583 = vmatpush.msra.mxu0 %v858
        %1584 = vmatpush.msra.mxu0 %v842
        %1585 = vmatmul.f32.gmra.mxu0 %v323
        %v1586 = vpop.f32.mrf.mxu0
        %v1587 = vadd.f32 %v1567, %v1586
        %1588 = vdwg.mxu0
        %1589 = vmatpush.msra.mxu0 0.0
        %1590 = vmatpush.msra.mxu0 0.0
        %1591 = vmatpush.msra.mxu0 0.0
        %1592 = vmatpush.msra.mxu0 0.0
        %1593 = vmatpush.msra.mxu0 0.0
        %1594 = vmatpush.msra.mxu0 0.0
        %1595 = vmatpush.msra.mxu0 0.0
        %1596 = vmatpush.msra.mxu0 0.0
        %1597 = vmatpush.msra.mxu0 0.0
        %1598 = vmatpush.msra.mxu0 0.0
        %1599 = vmatpush.msra.mxu0 0.0
        %1600 = vmatpush.msra.mxu0 0.0
        %1601 = vmatpush.msra.mxu0 0.0
        %1602 = vmatpush.msra.mxu0 0.0
        %1603 = vmatpush.msra.mxu0 %v1114
        %1604 = vmatpush.msra.mxu0 %v1098
        %1605 = vmatmul.f32.gmra.mxu0 %v1127
        %v1606 = vpop.f32.mrf.mxu0
        %v1607 = vadd.f32 %v1587, %v1606
        %1608 = vdwg.mxu0
        %1609 = vmatpush.msra.mxu0 %v571
        %1610 = vmatpush.msra.mxu0 %v555
        %1611 = vmatpush.msra.mxu0 %v539
        %1612 = vmatpush.msra.mxu0 %v523
        %1613 = vmatpush.msra.mxu0 %v507
        %1614 = vmatpush.msra.mxu0 %v491
        %1615 = vmatpush.msra.mxu0 %v475
        %1616 = vmatpush.msra.mxu0 %v459
        %1617 = vmatpush.msra.mxu0 %v443
        %1618 = vmatpush.msra.mxu0 %v427
        %1619 = vmatpush.msra.mxu0 %v411
        %1620 = vmatpush.msra.mxu0 %v395
        %1621 = vmatpush.msra.mxu0 %v379
        %1622 = vmatpush.msra.mxu0 %v363
        %1623 = vmatpush.msra.mxu0 %v347
        %1624 = vmatpush.msra.mxu0 %v331
        %1625 = vmatmul.f32.gmra.mxu0 %v321
        %v1626 = vpop.f32.mrf.mxu0
        %v1627 = vadd.f32 0.0, %v1626
        %1628 = vdwg.mxu0
        %1629 = vmatpush.msra.mxu0 %v827
        %1630 = vmatpush.msra.mxu0 %v811
        %1631 = vmatpush.msra.mxu0 %v795
        %1632 = vmatpush.msra.mxu0 %v779
        %1633 = vmatpush.msra.mxu0 %v763
        %1634 = vmatpush.msra.mxu0 %v747
        %1635 = vmatpush.msra.mxu0 %v731
        %1636 = vmatpush.msra.mxu0 %v715
        %1637 = vmatpush.msra.mxu0 %v699
        %1638 = vmatpush.msra.mxu0 %v683
        %1639 = vmatpush.msra.mxu0 %v667
        %1640 = vmatpush.msra.mxu0 %v651
        %1641 = vmatpush.msra.mxu0 %v635
        %1642 = vmatpush.msra.mxu0 %v619
        %1643 = vmatpush.msra.mxu0 %v603
        %1644 = vmatpush.msra.mxu0 %v587
        %1645 = vmatmul.f32.gmra.mxu0 %v322
        %v1646 = vpop.f32.mrf.mxu0
        %v1647 = vadd.f32 %v1627, %v1646
        %1648 = vdwg.mxu0
        %1649 = vmatpush.msra.mxu0 %v1083
        %1650 = vmatpush.msra.mxu0 %v1067
        %1651 = vmatpush.msra.mxu0 %v1051
        %1652 = vmatpush.msra.mxu0 %v1035
        %1653 = vmatpush.msra.mxu0 %v1019
        %1654 = vmatpush.msra.mxu0 %v1003
        %1655 = vmatpush.msra.mxu0 %v987
        %1656 = vmatpush.msra.mxu0 %v971
        %1657 = vmatpush.msra.mxu0 %v955
        %1658 = vmatpush.msra.mxu0 %v939
        %1659 = vmatpush.msra.mxu0 %v923
        %1660 = vmatpush.msra.mxu0 %v907
        %1661 = vmatpush.msra.mxu0 %v891
        %1662 = vmatpush.msra.mxu0 %v875
        %1663 = vmatpush.msra.mxu0 %v859
        %1664 = vmatpush.msra.mxu0 %v843
        %1665 = vmatmul.f32.gmra.mxu0 %v323
        %v1666 = vpop.f32.mrf.mxu0
        %v1667 = vadd.f32 %v1647, %v1666
        %1668 = vdwg.mxu0
        %1669 = vmatpush.msra.mxu0 0.0
        %1670 = vmatpush.msra.mxu0 0.0
        %1671 = vmatpush.msra.mxu0 0.0
        %1672 = vmatpush.msra.mxu0 0.0
        %1673 = vmatpush.msra.mxu0 0.0
        %1674 = vmatpush.msra.mxu0 0.0
        %1675 = vmatpush.msra.mxu0 0.0
        %1676 = vmatpush.msra.mxu0 0.0
        %1677 = vmatpush.msra.mxu0 0.0
        %1678 = vmatpush.msra.mxu0 0.0
        %1679 = vmatpush.msra.mxu0 0.0
        %1680 = vmatpush.msra.mxu0 0.0
        %1681 = vmatpush.msra.mxu0 0.0
        %1682 = vmatpush.msra.mxu0 0.0
        %1683 = vmatpush.msra.mxu0 %v1115
        %1684 = vmatpush.msra.mxu0 %v1099
        %1685 = vmatmul.f32.gmra.mxu0 %v1127
        %v1686 = vpop.f32.mrf.mxu0
        %v1687 = vadd.f32 %v1667, %v1686
        %1688 = vdwg.mxu0
        %1689 = vmatpush.msra.mxu0 %v572
        %1690 = vmatpush.msra.mxu0 %v556
        %1691 = vmatpush.msra.mxu0 %v540
        %1692 = vmatpush.msra.mxu0 %v524
        %1693 = vmatpush.msra.mxu0 %v508
        %1694 = vmatpush.msra.mxu0 %v492
        %1695 = vmatpush.msra.mxu0 %v476
        %1696 = vmatpush.msra.mxu0 %v460
        %1697 = vmatpush.msra.mxu0 %v444
        %1698 = vmatpush.msra.mxu0 %v428
        %1699 = vmatpush.msra.mxu0 %v412
        %1700 = vmatpush.msra.mxu0 %v396
        %1701 = vmatpush.msra.mxu0 %v380
        %1702 = vmatpush.msra.mxu0 %v364
        %1703 = vmatpush.msra.mxu0 %v348
        %1704 = vmatpush.msra.mxu0 %v332
        %1705 = vmatmul.f32.gmra.mxu0 %v321
        %v1706 = vpop.f32.mrf.mxu0
        %v1707 = vadd.f32 0.0, %v1706
        %1708 = vdwg.mxu0
        %1709 = vmatpush.msra.mxu0 %v828
        %1710 = vmatpush.msra.mxu0 %v812
        %1711 = vmatpush.msra.mxu0 %v796
        %1712 = vmatpush.msra.mxu0 %v780
        %1713 = vmatpush.msra.mxu0 %v764
        %1714 = vmatpush.msra.mxu0 %v748
        %1715 = vmatpush.msra.mxu0 %v732
        %1716 = vmatpush.msra.mxu0 %v716
        %1717 = vmatpush.msra.mxu0 %v700
        %1718 = vmatpush.msra.mxu0 %v684
        %1719 = vmatpush.msra.mxu0 %v668
        %1720 = vmatpush.msra.mxu0 %v652
        %1721 = vmatpush.msra.mxu0 %v636
        %1722 = vmatpush.msra.mxu0 %v620
        %1723 = vmatpush.msra.mxu0 %v604
        %1724 = vmatpush.msra.mxu0 %v588
        %1725 = vmatmul.f32.gmra.mxu0 %v322
        %v1726 = vpop.f32.mrf.mxu0
        %v1727 = vadd.f32 %v1707, %v1726
        %1728 = vdwg.mxu0
        %1729 = vmatpush.msra.mxu0 %v1084
        %1730 = vmatpush.msra.mxu0 %v1068
        %1731 = vmatpush.msra.mxu0 %v1052
        %1732 = vmatpush.msra.mxu0 %v1036
        %1733 = vmatpush.msra.mxu0 %v1020
        %1734 = vmatpush.msra.mxu0 %v1004
        %1735 = vmatpush.msra.mxu0 %v988
        %1736 = vmatpush.msra.mxu0 %v972
        %1737 = vmatpush.msra.mxu0 %v956
        %1738 = vmatpush.msra.mxu0 %v940
        %1739 = vmatpush.msra.mxu0 %v924
        %1740 = vmatpush.msra.mxu0 %v908
        %1741 = vmatpush.msra.mxu0 %v892
        %1742 = vmatpush.msra.mxu0 %v876
        %1743 = vmatpush.msra.mxu0 %v860
        %1744 = vmatpush.msra.mxu0 %v844
        %1745 = vmatmul.f32.gmra.mxu0 %v323
        %v1746 = vpop.f32.mrf.mxu0
        %v1747 = vadd.f32 %v1727, %v1746
        %1748 = vdwg.mxu0
        %1749 = vmatpush.msra.mxu0 0.0
        %1750 = vmatpush.msra.mxu0 0.0
        %1751 = vmatpush.msra.mxu0 0.0
        %1752 = vmatpush.msra.mxu0 0.0
        %1753 = vmatpush.msra.mxu0 0.0
        %1754 = vmatpush.msra.mxu0 0.0
        %1755 = vmatpush.msra.mxu0 0.0
        %1756 = vmatpush.msra.mxu0 0.0
        %1757 = vmatpush.msra.mxu0 0.0
        %1758 = vmatpush.msra.mxu0 0.0
        %1759 = vmatpush.msra.mxu0 0.0
        %1760 = vmatpush.msra.mxu0 0.0
        %1761 = vmatpush.msra.mxu0 0.0
        %1762 = vmatpush.msra.mxu0 0.0
        %1763 = vmatpush.msra.mxu0 %v1116
        %1764 = vmatpush.msra.mxu0 %v1100
        %1765 = vmatmul.f32.gmra.mxu0 %v1127
        %v1766 = vpop.f32.mrf.mxu0
        %v1767 = vadd.f32 %v1747, %v1766
        %1768 = vdwg.mxu0
        %1769 = vmatpush.msra.mxu0 %v573
        %1770 = vmatpush.msra.mxu0 %v557
        %1771 = vmatpush.msra.mxu0 %v541
        %1772 = vmatpush.msra.mxu0 %v525
        %1773 = vmatpush.msra.mxu0 %v509
        %1774 = vmatpush.msra.mxu0 %v493
        %1775 = vmatpush.msra.mxu0 %v477
        %1776 = vmatpush.msra.mxu0 %v461
        %1777 = vmatpush.msra.mxu0 %v445
        %1778 = vmatpush.msra.mxu0 %v429
        %1779 = vmatpush.msra.mxu0 %v413
        %1780 = vmatpush.msra.mxu0 %v397
        %1781 = vmatpush.msra.mxu0 %v381
        %1782 = vmatpush.msra.mxu0 %v365
        %1783 = vmatpush.msra.mxu0 %v349
        %1784 = vmatpush.msra.mxu0 %v333
        %1785 = vmatmul.f32.gmra.mxu0 %v321
        %v1786 = vpop.f32.mrf.mxu0
        %v1787 = vadd.f32 0.0, %v1786
        %1788 = vdwg.mxu0
        %1789 = vmatpush.msra.mxu0 %v829
        %1790 = vmatpush.msra.mxu0 %v813
        %1791 = vmatpush.msra.mxu0 %v797
        %1792 = vmatpush.msra.mxu0 %v781
        %1793 = vmatpush.msra.mxu0 %v765
        %1794 = vmatpush.msra.mxu0 %v749
        %1795 = vmatpush.msra.mxu0 %v733
        %1796 = vmatpush.msra.mxu0 %v717
        %1797 = vmatpush.msra.mxu0 %v701
        %1798 = vmatpush.msra.mxu0 %v685
        %1799 = vmatpush.msra.mxu0 %v669
        %1800 = vmatpush.msra.mxu0 %v653
        %1801 = vmatpush.msra.mxu0 %v637
        %1802 = vmatpush.msra.mxu0 %v621
        %1803 = vmatpush.msra.mxu0 %v605
        %1804 = vmatpush.msra.mxu0 %v589
        %1805 = vmatmul.f32.gmra.mxu0 %v322
        %v1806 = vpop.f32.mrf.mxu0
        %v1807 = vadd.f32 %v1787, %v1806
        %1808 = vdwg.mxu0
        %1809 = vmatpush.msra.mxu0 %v1085
        %1810 = vmatpush.msra.mxu0 %v1069
        %1811 = vmatpush.msra.mxu0 %v1053
        %1812 = vmatpush.msra.mxu0 %v1037
        %1813 = vmatpush.msra.mxu0 %v1021
        %1814 = vmatpush.msra.mxu0 %v1005
        %1815 = vmatpush.msra.mxu0 %v989
        %1816 = vmatpush.msra.mxu0 %v973
        %1817 = vmatpush.msra.mxu0 %v957
        %1818 = vmatpush.msra.mxu0 %v941
        %1819 = vmatpush.msra.mxu0 %v925
        %1820 = vmatpush.msra.mxu0 %v909
        %1821 = vmatpush.msra.mxu0 %v893
        %1822 = vmatpush.msra.mxu0 %v877
        %1823 = vmatpush.msra.mxu0 %v861
        %1824 = vmatpush.msra.mxu0 %v845
        %1825 = vmatmul.f32.gmra.mxu0 %v323
        %v1826 = vpop.f32.mrf.mxu0
        %v1827 = vadd.f32 %v1807, %v1826
        %1828 = vdwg.mxu0
        %1829 = vmatpush.msra.mxu0 0.0
        %1830 = vmatpush.msra.mxu0 0.0
        %1831 = vmatpush.msra.mxu0 0.0
        %1832 = vmatpush.msra.mxu0 0.0
        %1833 = vmatpush.msra.mxu0 0.0
        %1834 = vmatpush.msra.mxu0 0.0
        %1835 = vmatpush.msra.mxu0 0.0
        %1836 = vmatpush.msra.mxu0 0.0
        %1837 = vmatpush.msra.mxu0 0.0
        %1838 = vmatpush.msra.mxu0 0.0
        %1839 = vmatpush.msra.mxu0 0.0
        %1840 = vmatpush.msra.mxu0 0.0
        %1841 = vmatpush.msra.mxu0 0.0
        %1842 = vmatpush.msra.mxu0 0.0
        %1843 = vmatpush.msra.mxu0 %v1117
        %1844 = vmatpush.msra.mxu0 %v1101
        %1845 = vmatmul.f32.gmra.mxu0 %v1127
        %v1846 = vpop.f32.mrf.mxu0
        %v1847 = vadd.f32 %v1827, %v1846
        %1848 = vdwg.mxu0
        %1849 = vmatpush.msra.mxu0 %v574
        %1850 = vmatpush.msra.mxu0 %v558
        %1851 = vmatpush.msra.mxu0 %v542
        %1852 = vmatpush.msra.mxu0 %v526
        %1853 = vmatpush.msra.mxu0 %v510
        %1854 = vmatpush.msra.mxu0 %v494
        %1855 = vmatpush.msra.mxu0 %v478
        %1856 = vmatpush.msra.mxu0 %v462
        %1857 = vmatpush.msra.mxu0 %v446
        %1858 = vmatpush.msra.mxu0 %v430
        %1859 = vmatpush.msra.mxu0 %v414
        %1860 = vmatpush.msra.mxu0 %v398
        %1861 = vmatpush.msra.mxu0 %v382
        %1862 = vmatpush.msra.mxu0 %v366
        %1863 = vmatpush.msra.mxu0 %v350
        %1864 = vmatpush.msra.mxu0 %v334
        %1865 = vmatmul.f32.gmra.mxu0 %v321
        %v1866 = vpop.f32.mrf.mxu0
        %v1867 = vadd.f32 0.0, %v1866
        %1868 = vdwg.mxu0
        %1869 = vmatpush.msra.mxu0 %v830
        %1870 = vmatpush.msra.mxu0 %v814
        %1871 = vmatpush.msra.mxu0 %v798
        %1872 = vmatpush.msra.mxu0 %v782
        %1873 = vmatpush.msra.mxu0 %v766
        %1874 = vmatpush.msra.mxu0 %v750
        %1875 = vmatpush.msra.mxu0 %v734
        %1876 = vmatpush.msra.mxu0 %v718
        %1877 = vmatpush.msra.mxu0 %v702
        %1878 = vmatpush.msra.mxu0 %v686
        %1879 = vmatpush.msra.mxu0 %v670
        %1880 = vmatpush.msra.mxu0 %v654
        %1881 = vmatpush.msra.mxu0 %v638
        %1882 = vmatpush.msra.mxu0 %v622
        %1883 = vmatpush.msra.mxu0 %v606
        %1884 = vmatpush.msra.mxu0 %v590
        %1885 = vmatmul.f32.gmra.mxu0 %v322
        %v1886 = vpop.f32.mrf.mxu0
        %v1887 = vadd.f32 %v1867, %v1886
        %1888 = vdwg.mxu0
        %1889 = vmatpush.msra.mxu0 %v1086
        %1890 = vmatpush.msra.mxu0 %v1070
        %1891 = vmatpush.msra.mxu0 %v1054
        %1892 = vmatpush.msra.mxu0 %v1038
        %1893 = vmatpush.msra.mxu0 %v1022
        %1894 = vmatpush.msra.mxu0 %v1006
        %1895 = vmatpush.msra.mxu0 %v990
        %1896 = vmatpush.msra.mxu0 %v974
        %1897 = vmatpush.msra.mxu0 %v958
        %1898 = vmatpush.msra.mxu0 %v942
        %1899 = vmatpush.msra.mxu0 %v926
        %1900 = vmatpush.msra.mxu0 %v910
        %1901 = vmatpush.msra.mxu0 %v894
        %1902 = vmatpush.msra.mxu0 %v878
        %1903 = vmatpush.msra.mxu0 %v862
        %1904 = vmatpush.msra.mxu0 %v846
        %1905 = vmatmul.f32.gmra.mxu0 %v323
        %v1906 = vpop.f32.mrf.mxu0
        %v1907 = vadd.f32 %v1887, %v1906
        %1908 = vdwg.mxu0
        %1909 = vmatpush.msra.mxu0 0.0
        %1910 = vmatpush.msra.mxu0 0.0
        %1911 = vmatpush.msra.mxu0 0.0
        %1912 = vmatpush.msra.mxu0 0.0
        %1913 = vmatpush.msra.mxu0 0.0
        %1914 = vmatpush.msra.mxu0 0.0
        %1915 = vmatpush.msra.mxu0 0.0
        %1916 = vmatpush.msra.mxu0 0.0
        %1917 = vmatpush.msra.mxu0 0.0
        %1918 = vmatpush.msra.mxu0 0.0
        %1919 = vmatpush.msra.mxu0 0.0
        %1920 = vmatpush.msra.mxu0 0.0
        %1921 = vmatpush.msra.mxu0 0.0
        %1922 = vmatpush.msra.mxu0 0.0
        %1923 = vmatpush.msra.mxu0 %v1118
        %1924 = vmatpush.msra.mxu0 %v1102
        %1925 = vmatmul.f32.gmra.mxu0 %v1127
        %v1926 = vpop.f32.mrf.mxu0
        %v1927 = vadd.f32 %v1907, %v1926
        %1928 = vdwg.mxu0
        %1929 = vmatpush.msra.mxu0 %v575
        %1930 = vmatpush.msra.mxu0 %v559
        %1931 = vmatpush.msra.mxu0 %v543
        %1932 = vmatpush.msra.mxu0 %v527
        %1933 = vmatpush.msra.mxu0 %v511
        %1934 = vmatpush.msra.mxu0 %v495
        %1935 = vmatpush.msra.mxu0 %v479
        %1936 = vmatpush.msra.mxu0 %v463
        %1937 = vmatpush.msra.mxu0 %v447
        %1938 = vmatpush.msra.mxu0 %v431
        %1939 = vmatpush.msra.mxu0 %v415
        %1940 = vmatpush.msra.mxu0 %v399
        %1941 = vmatpush.msra.mxu0 %v383
        %1942 = vmatpush.msra.mxu0 %v367
        %1943 = vmatpush.msra.mxu0 %v351
        %1944 = vmatpush.msra.mxu0 %v335
        %1945 = vmatmul.f32.gmra.mxu0 %v321
        %v1946 = vpop.f32.mrf.mxu0
        %v1947 = vadd.f32 0.0, %v1946
        %1948 = vdwg.mxu0
        %1949 = vmatpush.msra.mxu0 %v831
        %1950 = vmatpush.msra.mxu0 %v815
        %1951 = vmatpush.msra.mxu0 %v799
        %1952 = vmatpush.msra.mxu0 %v783
        %1953 = vmatpush.msra.mxu0 %v767
        %1954 = vmatpush.msra.mxu0 %v751
        %1955 = vmatpush.msra.mxu0 %v735
        %1956 = vmatpush.msra.mxu0 %v719
        %1957 = vmatpush.msra.mxu0 %v703
        %1958 = vmatpush.msra.mxu0 %v687
        %1959 = vmatpush.msra.mxu0 %v671
        %1960 = vmatpush.msra.mxu0 %v655
        %1961 = vmatpush.msra.mxu0 %v639
        %1962 = vmatpush.msra.mxu0 %v623
        %1963 = vmatpush.msra.mxu0 %v607
        %1964 = vmatpush.msra.mxu0 %v591
        %1965 = vmatmul.f32.gmra.mxu0 %v322
        %v1966 = vpop.f32.mrf.mxu0
        %v1967 = vadd.f32 %v1947, %v1966
        %1968 = vdwg.mxu0
        %1969 = vmatpush.msra.mxu0 %v1087
        %1970 = vmatpush.msra.mxu0 %v1071
        %1971 = vmatpush.msra.mxu0 %v1055
        %1972 = vmatpush.msra.mxu0 %v1039
        %1973 = vmatpush.msra.mxu0 %v1023
        %1974 = vmatpush.msra.mxu0 %v1007
        %1975 = vmatpush.msra.mxu0 %v991
        %1976 = vmatpush.msra.mxu0 %v975
        %1977 = vmatpush.msra.mxu0 %v959
        %1978 = vmatpush.msra.mxu0 %v943
        %1979 = vmatpush.msra.mxu0 %v927
        %1980 = vmatpush.msra.mxu0 %v911
        %1981 = vmatpush.msra.mxu0 %v895
        %1982 = vmatpush.msra.mxu0 %v879
        %1983 = vmatpush.msra.mxu0 %v863
        %1984 = vmatpush.msra.mxu0 %v847
        %1985 = vmatmul.f32.gmra.mxu0 %v323
        %v1986 = vpop.f32.mrf.mxu0
        %v1987 = vadd.f32 %v1967, %v1986
        %1988 = vdwg.mxu0
        %1989 = vmatpush.msra.mxu0 0.0
        %1990 = vmatpush.msra.mxu0 0.0
        %1991 = vmatpush.msra.mxu0 0.0
        %1992 = vmatpush.msra.mxu0 0.0
        %1993 = vmatpush.msra.mxu0 0.0
        %1994 = vmatpush.msra.mxu0 0.0
        %1995 = vmatpush.msra.mxu0 0.0
        %1996 = vmatpush.msra.mxu0 0.0
        %1997 = vmatpush.msra.mxu0 0.0
        %1998 = vmatpush.msra.mxu0 0.0
        %1999 = vmatpush.msra.mxu0 0.0
        %2000 = vmatpush.msra.mxu0 0.0
        %2001 = vmatpush.msra.mxu0 0.0
        %2002 = vmatpush.msra.mxu0 0.0
        %2003 = vmatpush.msra.mxu0 %v1119
        %2004 = vmatpush.msra.mxu0 %v1103
        %2005 = vmatmul.f32.gmra.mxu0 %v1127
        %v2006 = vpop.f32.mrf.mxu0
        %v2007 = vadd.f32 %v1987, %v2006
        %2008 = vdwg.mxu0
        %2009 = vmatpush.msra.mxu0 %v576
        %2010 = vmatpush.msra.mxu0 %v560
        %2011 = vmatpush.msra.mxu0 %v544
        %2012 = vmatpush.msra.mxu0 %v528
        %2013 = vmatpush.msra.mxu0 %v512
        %2014 = vmatpush.msra.mxu0 %v496
        %2015 = vmatpush.msra.mxu0 %v480
        %2016 = vmatpush.msra.mxu0 %v464
        %2017 = vmatpush.msra.mxu0 %v448
        %2018 = vmatpush.msra.mxu0 %v432
        %2019 = vmatpush.msra.mxu0 %v416
        %2020 = vmatpush.msra.mxu0 %v400
        %2021 = vmatpush.msra.mxu0 %v384
        %2022 = vmatpush.msra.mxu0 %v368
        %2023 = vmatpush.msra.mxu0 %v352
        %2024 = vmatpush.msra.mxu0 %v336
        %2025 = vmatmul.f32.gmra.mxu0 %v321
        %v2026 = vpop.f32.mrf.mxu0
        %v2027 = vadd.f32 0.0, %v2026
        %2028 = vdwg.mxu0
        %2029 = vmatpush.msra.mxu0 %v832
        %2030 = vmatpush.msra.mxu0 %v816
        %2031 = vmatpush.msra.mxu0 %v800
        %2032 = vmatpush.msra.mxu0 %v784
        %2033 = vmatpush.msra.mxu0 %v768
        %2034 = vmatpush.msra.mxu0 %v752
        %2035 = vmatpush.msra.mxu0 %v736
        %2036 = vmatpush.msra.mxu0 %v720
        %2037 = vmatpush.msra.mxu0 %v704
        %2038 = vmatpush.msra.mxu0 %v688
        %2039 = vmatpush.msra.mxu0 %v672
        %2040 = vmatpush.msra.mxu0 %v656
        %2041 = vmatpush.msra.mxu0 %v640
        %2042 = vmatpush.msra.mxu0 %v624
        %2043 = vmatpush.msra.mxu0 %v608
        %2044 = vmatpush.msra.mxu0 %v592
        %2045 = vmatmul.f32.gmra.mxu0 %v322
        %v2046 = vpop.f32.mrf.mxu0
        %v2047 = vadd.f32 %v2027, %v2046
        %2048 = vdwg.mxu0
        %2049 = vmatpush.msra.mxu0 %v1088
        %2050 = vmatpush.msra.mxu0 %v1072
        %2051 = vmatpush.msra.mxu0 %v1056
        %2052 = vmatpush.msra.mxu0 %v1040
        %2053 = vmatpush.msra.mxu0 %v1024
        %2054 = vmatpush.msra.mxu0 %v1008
        %2055 = vmatpush.msra.mxu0 %v992
        %2056 = vmatpush.msra.mxu0 %v976
        %2057 = vmatpush.msra.mxu0 %v960
        %2058 = vmatpush.msra.mxu0 %v944
        %2059 = vmatpush.msra.mxu0 %v928
        %2060 = vmatpush.msra.mxu0 %v912
        %2061 = vmatpush.msra.mxu0 %v896
        %2062 = vmatpush.msra.mxu0 %v880
        %2063 = vmatpush.msra.mxu0 %v864
        %2064 = vmatpush.msra.mxu0 %v848
        %2065 = vmatmul.f32.gmra.mxu0 %v323
        %v2066 = vpop.f32.mrf.mxu0
        %v2067 = vadd.f32 %v2047, %v2066
        %2068 = vdwg.mxu0
        %2069 = vmatpush.msra.mxu0 0.0
        %2070 = vmatpush.msra.mxu0 0.0
        %2071 = vmatpush.msra.mxu0 0.0
        %2072 = vmatpush.msra.mxu0 0.0
        %2073 = vmatpush.msra.mxu0 0.0
        %2074 = vmatpush.msra.mxu0 0.0
        %2075 = vmatpush.msra.mxu0 0.0
        %2076 = vmatpush.msra.mxu0 0.0
        %2077 = vmatpush.msra.mxu0 0.0
        %2078 = vmatpush.msra.mxu0 0.0
        %2079 = vmatpush.msra.mxu0 0.0
        %2080 = vmatpush.msra.mxu0 0.0
        %2081 = vmatpush.msra.mxu0 0.0
        %2082 = vmatpush.msra.mxu0 0.0
        %2083 = vmatpush.msra.mxu0 %v1120
        %2084 = vmatpush.msra.mxu0 %v1104
        %2085 = vmatmul.f32.gmra.mxu0 %v1127
        %v2086 = vpop.f32.mrf.mxu0
        %v2087 = vadd.f32 %v2067, %v2086
        %2088 = vdwg.mxu0
        %2089 = vmatpush.msra.mxu0 %v577
        %2090 = vmatpush.msra.mxu0 %v561
        %2091 = vmatpush.msra.mxu0 %v545
        %2092 = vmatpush.msra.mxu0 %v529
        %2093 = vmatpush.msra.mxu0 %v513
        %2094 = vmatpush.msra.mxu0 %v497
        %2095 = vmatpush.msra.mxu0 %v481
        %2096 = vmatpush.msra.mxu0 %v465
        %2097 = vmatpush.msra.mxu0 %v449
        %2098 = vmatpush.msra.mxu0 %v433
        %2099 = vmatpush.msra.mxu0 %v417
        %2100 = vmatpush.msra.mxu0 %v401
        %2101 = vmatpush.msra.mxu0 %v385
        %2102 = vmatpush.msra.mxu0 %v369
        %2103 = vmatpush.msra.mxu0 %v353
        %2104 = vmatpush.msra.mxu0 %v337
        %2105 = vmatmul.f32.gmra.mxu0 %v321
        %v2106 = vpop.f32.mrf.mxu0
        %v2107 = vadd.f32 0.0, %v2106
        %2108 = vdwg.mxu0
        %2109 = vmatpush.msra.mxu0 %v833
        %2110 = vmatpush.msra.mxu0 %v817
        %2111 = vmatpush.msra.mxu0 %v801
        %2112 = vmatpush.msra.mxu0 %v785
        %2113 = vmatpush.msra.mxu0 %v769
        %2114 = vmatpush.msra.mxu0 %v753
        %2115 = vmatpush.msra.mxu0 %v737
        %2116 = vmatpush.msra.mxu0 %v721
        %2117 = vmatpush.msra.mxu0 %v705
        %2118 = vmatpush.msra.mxu0 %v689
        %2119 = vmatpush.msra.mxu0 %v673
        %2120 = vmatpush.msra.mxu0 %v657
        %2121 = vmatpush.msra.mxu0 %v641
        %2122 = vmatpush.msra.mxu0 %v625
        %2123 = vmatpush.msra.mxu0 %v609
        %2124 = vmatpush.msra.mxu0 %v593
        %2125 = vmatmul.f32.gmra.mxu0 %v322
        %v2126 = vpop.f32.mrf.mxu0
        %v2127 = vadd.f32 %v2107, %v2126
        %2128 = vdwg.mxu0
        %2129 = vmatpush.msra.mxu0 %v1089
        %2130 = vmatpush.msra.mxu0 %v1073
        %2131 = vmatpush.msra.mxu0 %v1057
        %2132 = vmatpush.msra.mxu0 %v1041
        %2133 = vmatpush.msra.mxu0 %v1025
        %2134 = vmatpush.msra.mxu0 %v1009
        %2135 = vmatpush.msra.mxu0 %v993
        %2136 = vmatpush.msra.mxu0 %v977
        %2137 = vmatpush.msra.mxu0 %v961
        %2138 = vmatpush.msra.mxu0 %v945
        %2139 = vmatpush.msra.mxu0 %v929
        %2140 = vmatpush.msra.mxu0 %v913
        %2141 = vmatpush.msra.mxu0 %v897
        %2142 = vmatpush.msra.mxu0 %v881
        %2143 = vmatpush.msra.mxu0 %v865
        %2144 = vmatpush.msra.mxu0 %v849
        %2145 = vmatmul.f32.gmra.mxu0 %v323
        %v2146 = vpop.f32.mrf.mxu0
        %v2147 = vadd.f32 %v2127, %v2146
        %2148 = vdwg.mxu0
        %2149 = vmatpush.msra.mxu0 0.0
        %2150 = vmatpush.msra.mxu0 0.0
        %2151 = vmatpush.msra.mxu0 0.0
        %2152 = vmatpush.msra.mxu0 0.0
        %2153 = vmatpush.msra.mxu0 0.0
        %2154 = vmatpush.msra.mxu0 0.0
        %2155 = vmatpush.msra.mxu0 0.0
        %2156 = vmatpush.msra.mxu0 0.0
        %2157 = vmatpush.msra.mxu0 0.0
        %2158 = vmatpush.msra.mxu0 0.0
        %2159 = vmatpush.msra.mxu0 0.0
        %2160 = vmatpush.msra.mxu0 0.0
        %2161 = vmatpush.msra.mxu0 0.0
        %2162 = vmatpush.msra.mxu0 0.0
        %2163 = vmatpush.msra.mxu0 %v1121
        %2164 = vmatpush.msra.mxu0 %v1105
        %2165 = vmatmul.f32.gmra.mxu0 %v1127
        %v2166 = vpop.f32.mrf.mxu0
        %v2167 = vadd.f32 %v2147, %v2166
        %2168 = vdwg.mxu0
        %2169 = vmatpush.msra.mxu0 %v578
        %2170 = vmatpush.msra.mxu0 %v562
        %2171 = vmatpush.msra.mxu0 %v546
        %2172 = vmatpush.msra.mxu0 %v530
        %2173 = vmatpush.msra.mxu0 %v514
        %2174 = vmatpush.msra.mxu0 %v498
        %2175 = vmatpush.msra.mxu0 %v482
        %2176 = vmatpush.msra.mxu0 %v466
        %2177 = vmatpush.msra.mxu0 %v450
        %2178 = vmatpush.msra.mxu0 %v434
        %2179 = vmatpush.msra.mxu0 %v418
        %2180 = vmatpush.msra.mxu0 %v402
        %2181 = vmatpush.msra.mxu0 %v386
        %2182 = vmatpush.msra.mxu0 %v370
        %2183 = vmatpush.msra.mxu0 %v354
        %2184 = vmatpush.msra.mxu0 %v338
        %2185 = vmatmul.f32.gmra.mxu0 %v321
        %v2186 = vpop.f32.mrf.mxu0
        %v2187 = vadd.f32 0.0, %v2186
        %2188 = vdwg.mxu0
        %2189 = vmatpush.msra.mxu0 %v834
        %2190 = vmatpush.msra.mxu0 %v818
        %2191 = vmatpush.msra.mxu0 %v802
        %2192 = vmatpush.msra.mxu0 %v786
        %2193 = vmatpush.msra.mxu0 %v770
        %2194 = vmatpush.msra.mxu0 %v754
        %2195 = vmatpush.msra.mxu0 %v738
        %2196 = vmatpush.msra.mxu0 %v722
        %2197 = vmatpush.msra.mxu0 %v706
        %2198 = vmatpush.msra.mxu0 %v690
        %2199 = vmatpush.msra.mxu0 %v674
        %2200 = vmatpush.msra.mxu0 %v658
        %2201 = vmatpush.msra.mxu0 %v642
        %2202 = vmatpush.msra.mxu0 %v626
        %2203 = vmatpush.msra.mxu0 %v610
        %2204 = vmatpush.msra.mxu0 %v594
        %2205 = vmatmul.f32.gmra.mxu0 %v322
        %v2206 = vpop.f32.mrf.mxu0
        %v2207 = vadd.f32 %v2187, %v2206
        %2208 = vdwg.mxu0
        %2209 = vmatpush.msra.mxu0 %v1090
        %2210 = vmatpush.msra.mxu0 %v1074
        %2211 = vmatpush.msra.mxu0 %v1058
        %2212 = vmatpush.msra.mxu0 %v1042
        %2213 = vmatpush.msra.mxu0 %v1026
        %2214 = vmatpush.msra.mxu0 %v1010
        %2215 = vmatpush.msra.mxu0 %v994
        %2216 = vmatpush.msra.mxu0 %v978
        %2217 = vmatpush.msra.mxu0 %v962
        %2218 = vmatpush.msra.mxu0 %v946
        %2219 = vmatpush.msra.mxu0 %v930
        %2220 = vmatpush.msra.mxu0 %v914
        %2221 = vmatpush.msra.mxu0 %v898
        %2222 = vmatpush.msra.mxu0 %v882
        %2223 = vmatpush.msra.mxu0 %v866
        %2224 = vmatpush.msra.mxu0 %v850
        %2225 = vmatmul.f32.gmra.mxu0 %v323
        %v2226 = vpop.f32.mrf.mxu0
        %v2227 = vadd.f32 %v2207, %v2226
        %2228 = vdwg.mxu0
        %2229 = vmatpush.msra.mxu0 0.0
        %2230 = vmatpush.msra.mxu0 0.0
        %2231 = vmatpush.msra.mxu0 0.0
        %2232 = vmatpush.msra.mxu0 0.0
        %2233 = vmatpush.msra.mxu0 0.0
        %2234 = vmatpush.msra.mxu0 0.0
        %2235 = vmatpush.msra.mxu0 0.0
        %2236 = vmatpush.msra.mxu0 0.0
        %2237 = vmatpush.msra.mxu0 0.0
        %2238 = vmatpush.msra.mxu0 0.0
        %2239 = vmatpush.msra.mxu0 0.0
        %2240 = vmatpush.msra.mxu0 0.0
        %2241 = vmatpush.msra.mxu0 0.0
        %2242 = vmatpush.msra.mxu0 0.0
        %2243 = vmatpush.msra.mxu0 %v1122
        %2244 = vmatpush.msra.mxu0 %v1106
        %2245 = vmatmul.f32.gmra.mxu0 %v1127
        %v2246 = vpop.f32.mrf.mxu0
        %v2247 = vadd.f32 %v2227, %v2246
        %2248 = vdwg.mxu0
        %2249 = vmatpush.msra.mxu0 %v579
        %2250 = vmatpush.msra.mxu0 %v563
        %2251 = vmatpush.msra.mxu0 %v547
        %2252 = vmatpush.msra.mxu0 %v531
        %2253 = vmatpush.msra.mxu0 %v515
        %2254 = vmatpush.msra.mxu0 %v499
        %2255 = vmatpush.msra.mxu0 %v483
        %2256 = vmatpush.msra.mxu0 %v467
        %2257 = vmatpush.msra.mxu0 %v451
        %2258 = vmatpush.msra.mxu0 %v435
        %2259 = vmatpush.msra.mxu0 %v419
        %2260 = vmatpush.msra.mxu0 %v403
        %2261 = vmatpush.msra.mxu0 %v387
        %2262 = vmatpush.msra.mxu0 %v371
        %2263 = vmatpush.msra.mxu0 %v355
        %2264 = vmatpush.msra.mxu0 %v339
        %2265 = vmatmul.f32.gmra.mxu0 %v321
        %v2266 = vpop.f32.mrf.mxu0
        %v2267 = vadd.f32 0.0, %v2266
        %2268 = vdwg.mxu0
        %2269 = vmatpush.msra.mxu0 %v835
        %2270 = vmatpush.msra.mxu0 %v819
        %2271 = vmatpush.msra.mxu0 %v803
        %2272 = vmatpush.msra.mxu0 %v787
        %2273 = vmatpush.msra.mxu0 %v771
        %2274 = vmatpush.msra.mxu0 %v755
        %2275 = vmatpush.msra.mxu0 %v739
        %2276 = vmatpush.msra.mxu0 %v723
        %2277 = vmatpush.msra.mxu0 %v707
        %2278 = vmatpush.msra.mxu0 %v691
        %2279 = vmatpush.msra.mxu0 %v675
        %2280 = vmatpush.msra.mxu0 %v659
        %2281 = vmatpush.msra.mxu0 %v643
        %2282 = vmatpush.msra.mxu0 %v627
        %2283 = vmatpush.msra.mxu0 %v611
        %2284 = vmatpush.msra.mxu0 %v595
        %2285 = vmatmul.f32.gmra.mxu0 %v322
        %v2286 = vpop.f32.mrf.mxu0
        %v2287 = vadd.f32 %v2267, %v2286
        %2288 = vdwg.mxu0
        %2289 = vmatpush.msra.mxu0 %v1091
        %2290 = vmatpush.msra.mxu0 %v1075
        %2291 = vmatpush.msra.mxu0 %v1059
        %2292 = vmatpush.msra.mxu0 %v1043
        %2293 = vmatpush.msra.mxu0 %v1027
        %2294 = vmatpush.msra.mxu0 %v1011
        %2295 = vmatpush.msra.mxu0 %v995
        %2296 = vmatpush.msra.mxu0 %v979
        %2297 = vmatpush.msra.mxu0 %v963
        %2298 = vmatpush.msra.mxu0 %v947
        %2299 = vmatpush.msra.mxu0 %v931
        %2300 = vmatpush.msra.mxu0 %v915
        %2301 = vmatpush.msra.mxu0 %v899
        %2302 = vmatpush.msra.mxu0 %v883
        %2303 = vmatpush.msra.mxu0 %v867
        %2304 = vmatpush.msra.mxu0 %v851
        %2305 = vmatmul.f32.gmra.mxu0 %v323
        %v2306 = vpop.f32.mrf.mxu0
        %v2307 = vadd.f32 %v2287, %v2306
        %2308 = vdwg.mxu0
        %2309 = vmatpush.msra.mxu0 0.0
        %2310 = vmatpush.msra.mxu0 0.0
        %2311 = vmatpush.msra.mxu0 0.0
        %2312 = vmatpush.msra.mxu0 0.0
        %2313 = vmatpush.msra.mxu0 0.0
        %2314 = vmatpush.msra.mxu0 0.0
        %2315 = vmatpush.msra.mxu0 0.0
        %2316 = vmatpush.msra.mxu0 0.0
        %2317 = vmatpush.msra.mxu0 0.0
        %2318 = vmatpush.msra.mxu0 0.0
        %2319 = vmatpush.msra.mxu0 0.0
        %2320 = vmatpush.msra.mxu0 0.0
        %2321 = vmatpush.msra.mxu0 0.0
        %2322 = vmatpush.msra.mxu0 0.0
        %2323 = vmatpush.msra.mxu0 %v1123
        %2324 = vmatpush.msra.mxu0 %v1107
        %2325 = vmatmul.f32.gmra.mxu0 %v1127
        %v2326 = vpop.f32.mrf.mxu0
        %v2327 = vadd.f32 %v2307, %v2326
        %2328 = vdwg.mxu0
        %2329 = vmatpush.msra.mxu0 %v580
        %2330 = vmatpush.msra.mxu0 %v564
        %2331 = vmatpush.msra.mxu0 %v548
        %2332 = vmatpush.msra.mxu0 %v532
        %2333 = vmatpush.msra.mxu0 %v516
        %2334 = vmatpush.msra.mxu0 %v500
        %2335 = vmatpush.msra.mxu0 %v484
        %2336 = vmatpush.msra.mxu0 %v468
        %2337 = vmatpush.msra.mxu0 %v452
        %2338 = vmatpush.msra.mxu0 %v436
        %2339 = vmatpush.msra.mxu0 %v420
        %2340 = vmatpush.msra.mxu0 %v404
        %2341 = vmatpush.msra.mxu0 %v388
        %2342 = vmatpush.msra.mxu0 %v372
        %2343 = vmatpush.msra.mxu0 %v356
        %2344 = vmatpush.msra.mxu0 %v340
        %2345 = vmatmul.f32.gmra.mxu0 %v321
        %v2346 = vpop.f32.mrf.mxu0
        %v2347 = vadd.f32 0.0, %v2346
        %2348 = vdwg.mxu0
        %2349 = vmatpush.msra.mxu0 %v836
        %2350 = vmatpush.msra.mxu0 %v820
        %2351 = vmatpush.msra.mxu0 %v804
        %2352 = vmatpush.msra.mxu0 %v788
        %2353 = vmatpush.msra.mxu0 %v772
        %2354 = vmatpush.msra.mxu0 %v756
        %2355 = vmatpush.msra.mxu0 %v740
        %2356 = vmatpush.msra.mxu0 %v724
        %2357 = vmatpush.msra.mxu0 %v708
        %2358 = vmatpush.msra.mxu0 %v692
        %2359 = vmatpush.msra.mxu0 %v676
        %2360 = vmatpush.msra.mxu0 %v660
        %2361 = vmatpush.msra.mxu0 %v644
        %2362 = vmatpush.msra.mxu0 %v628
        %2363 = vmatpush.msra.mxu0 %v612
        %2364 = vmatpush.msra.mxu0 %v596
        %2365 = vmatmul.f32.gmra.mxu0 %v322
        %v2366 = vpop.f32.mrf.mxu0
        %v2367 = vadd.f32 %v2347, %v2366
        %2368 = vdwg.mxu0
        %2369 = vmatpush.msra.mxu0 %v1092
        %2370 = vmatpush.msra.mxu0 %v1076
        %2371 = vmatpush.msra.mxu0 %v1060
        %2372 = vmatpush.msra.mxu0 %v1044
        %2373 = vmatpush.msra.mxu0 %v1028
        %2374 = vmatpush.msra.mxu0 %v1012
        %2375 = vmatpush.msra.mxu0 %v996
        %2376 = vmatpush.msra.mxu0 %v980
        %2377 = vmatpush.msra.mxu0 %v964
        %2378 = vmatpush.msra.mxu0 %v948
        %2379 = vmatpush.msra.mxu0 %v932
        %2380 = vmatpush.msra.mxu0 %v916
        %2381 = vmatpush.msra.mxu0 %v900
        %2382 = vmatpush.msra.mxu0 %v884
        %2383 = vmatpush.msra.mxu0 %v868
        %2384 = vmatpush.msra.mxu0 %v852
        %2385 = vmatmul.f32.gmra.mxu0 %v323
        %v2386 = vpop.f32.mrf.mxu0
        %v2387 = vadd.f32 %v2367, %v2386
        %2388 = vdwg.mxu0
        %2389 = vmatpush.msra.mxu0 0.0
        %2390 = vmatpush.msra.mxu0 0.0
        %2391 = vmatpush.msra.mxu0 0.0
        %2392 = vmatpush.msra.mxu0 0.0
        %2393 = vmatpush.msra.mxu0 0.0
        %2394 = vmatpush.msra.mxu0 0.0
        %2395 = vmatpush.msra.mxu0 0.0
        %2396 = vmatpush.msra.mxu0 0.0
        %2397 = vmatpush.msra.mxu0 0.0
        %2398 = vmatpush.msra.mxu0 0.0
        %2399 = vmatpush.msra.mxu0 0.0
        %2400 = vmatpush.msra.mxu0 0.0
        %2401 = vmatpush.msra.mxu0 0.0
        %2402 = vmatpush.msra.mxu0 0.0
        %2403 = vmatpush.msra.mxu0 %v1124
        %2404 = vmatpush.msra.mxu0 %v1108
        %2405 = vmatmul.f32.gmra.mxu0 %v1127
        %v2406 = vpop.f32.mrf.mxu0
        %v2407 = vadd.f32 %v2387, %v2406
        %2408 = vdwg.mxu0
        %v2409 = vadd.f32 %v305, %v1207
        %v2410 = vadd.f32 %v306, %v1287
        %v2411 = vadd.f32 %v307, %v1367
        %v2412 = vadd.f32 %v308, %v1447
        %v2413 = vadd.f32 %v309, %v1527
        %v2414 = vadd.f32 %v310, %v1607
        %v2415 = vadd.f32 %v311, %v1687
        %v2416 = vadd.f32 %v312, %v1767
        %v2417 = vadd.f32 %v313, %v1847
        %v2418 = vadd.f32 %v314, %v1927
        %v2419 = vadd.f32 %v315, %v2007
        %v2420 = vadd.f32 %v316, %v2087
        %v2421 = vadd.f32 %v317, %v2167
        %v2422 = vadd.f32 %v318, %v2247
        %v2423 = vadd.f32 %v319, %v2327
        %v2424 = vadd.f32 %v320, %v2407
        %2425 = vst [vmem:[%s283] sm:$0xff] %v2409
        %2426 = vst [vmem:[%s283 + $0x8] sm:$0xff] %v2410
        %2427 = vst [vmem:[%s283 + $0x10] sm:$0xff] %v2411
        %2428 = vst [vmem:[%s283 + $0x18] sm:$0xff] %v2412
        %2429 = vst [vmem:[%s283 + $0x20] sm:$0xff] %v2413
        %2430 = vst [vmem:[%s283 + $0x28] sm:$0xff] %v2414
        %2431 = vst [vmem:[%s283 + $0x30] sm:$0xff] %v2415
        %2432 = vst [vmem:[%s283 + $0x38] sm:$0xff] %v2416
        %2433 = vst [vmem:[%s283 + $0x40] sm:$0xff] %v2417
        %2434 = vst [vmem:[%s283 + $0x48] sm:$0xff] %v2418
        %2435 = vst [vmem:[%s283 + $0x50] sm:$0xff] %v2419
        %2436 = vst [vmem:[%s283 + $0x58] sm:$0xff] %v2420
        %2437 = vst [vmem:[%s283 + $0x60] sm:$0xff] %v2421
        %2438 = vst [vmem:[%s283 + $0x68] sm:$0xff] %v2422
        %2439 = vst [vmem:[%s283 + $0x70] sm:$0xff] %v2423
        %2440 = vst [vmem:[%s283 + $0x78] sm:$0xff] %v2424
        // Predicated region
        $region41: #{ate_forward.5} parent=31 // pred_check
          %p2441 = pneg %p285
        $region42: #{ate_forward.5} parent=31 // pred_check_branch
          %2443 = sbr.rel (%p2441) target = $region44
        $region43: #{ate_forward.5} parent=31 // pred_region
          %v2444 = vld [vmem:[%s283] sm:$0xff]
          %v2445 = vld [vmem:[%s283 + $0x8] sm:$0xff]
          %v2446 = vld [vmem:[%s283 + $0x10] sm:$0xff]
          %v2447 = vld [vmem:[%s283 + $0x18] sm:$0xff]
          %v2448 = vld [vmem:[%s283 + $0x20] sm:$0xff]
          %v2449 = vld [vmem:[%s283 + $0x28] sm:$0xff]
          %v2450 = vld [vmem:[%s283 + $0x30] sm:$0xff]
          %v2451 = vld [vmem:[%s283 + $0x38] sm:$0xff]
          %v2452 = vld [vmem:[%s283 + $0x40] sm:$0xff]
          %v2453 = vld [vmem:[%s283 + $0x48] sm:$0xff]
          %v2454 = vld [vmem:[%s283 + $0x50] sm:$0xff]
          %v2455 = vld [vmem:[%s283 + $0x58] sm:$0xff]
          %v2456 = vld [vmem:[%s283 + $0x60] sm:$0xff]
          %v2457 = vld [vmem:[%s283 + $0x68] sm:$0xff]
          %v2458 = vld [vmem:[%s283 + $0x70] sm:$0xff]
          %v2459 = vld [vmem:[%s283 + $0x78] sm:$0xff]
          %v2460 = vld [vmem:[%s273] sm:$0xff]
          %v2461 = vld [vmem:[%s273 + $0x8] sm:$0xff]
          %v2464 = vperm.slane %v2460, 0
          %v2465 = vperm.slane %v2460, 1
          %v2466 = vperm.slane %v2460, 2
          %v2467 = vperm.slane %v2460, 3
          %v2468 = vperm.slane %v2460, 4
          %v2469 = vperm.slane %v2460, 5
          %v2470 = vperm.slane %v2460, 6
          %v2471 = vperm.slane %v2460, 7
          %v2472 = vperm.slane %v2461, 0
          %v2473 = vperm.slane %v2461, 1
          %v2474 = vperm.slane %v2461, 2
          %v2475 = vperm.slane %v2461, 3
          %v2476 = vperm.slane %v2461, 4
          %v2477 = vperm.slane %v2461, 5
          %v2478 = vperm.slane %v2461, 6
          %v2479 = vperm.slane %v2461, 7
          %v2496 = vadd.f32 %v2444, %v2464
          %v2497 = vadd.f32 %v2445, %v2465
          %v2498 = vadd.f32 %v2446, %v2466
          %v2499 = vadd.f32 %v2447, %v2467
          %v2500 = vadd.f32 %v2448, %v2468
          %v2501 = vadd.f32 %v2449, %v2469
          %v2502 = vadd.f32 %v2450, %v2470
          %v2503 = vadd.f32 %v2451, %v2471
          %v2504 = vadd.f32 %v2452, %v2472
          %v2505 = vadd.f32 %v2453, %v2473
          %v2506 = vadd.f32 %v2454, %v2474
          %v2507 = vadd.f32 %v2455, %v2475
          %v2508 = vadd.f32 %v2456, %v2476
          %v2509 = vadd.f32 %v2457, %v2477
          %v2510 = vadd.f32 %v2458, %v2478
          %v2511 = vadd.f32 %v2459, %v2479
          %v2512 = vxor.u32 %v2496, 2147483648
          %v2513 = vxor.u32 %v2497, 2147483648
          %v2514 = vxor.u32 %v2498, 2147483648
          %v2515 = vxor.u32 %v2499, 2147483648
          %v2516 = vxor.u32 %v2500, 2147483648
          %v2517 = vxor.u32 %v2501, 2147483648
          %v2518 = vxor.u32 %v2502, 2147483648
          %v2519 = vxor.u32 %v2503, 2147483648
          %v2520 = vxor.u32 %v2504, 2147483648
          %v2521 = vxor.u32 %v2505, 2147483648
          %v2522 = vxor.u32 %v2506, 2147483648
          %v2523 = vxor.u32 %v2507, 2147483648
          %v2524 = vxor.u32 %v2508, 2147483648
          %v2525 = vxor.u32 %v2509, 2147483648
          %v2526 = vxor.u32 %v2510, 2147483648
          %v2527 = vxor.u32 %v2511, 2147483648
          %v2528 = vmul.f32 %v2512, 1.442695
          %v2529 = vpow.pop %v2528
          %v2530 = vmul.f32 %v2513, 1.442695
          %v2531 = vpow.pop %v2530
          %v2532 = vmul.f32 %v2514, 1.442695
          %v2533 = vpow.pop %v2532
          %v2534 = vmul.f32 %v2515, 1.442695
          %v2535 = vpow.pop %v2534
          %v2536 = vmul.f32 %v2516, 1.442695
          %v2537 = vpow.pop %v2536
          %v2538 = vmul.f32 %v2517, 1.442695
          %v2539 = vpow.pop %v2538
          %v2540 = vmul.f32 %v2518, 1.442695
          %v2541 = vpow.pop %v2540
          %v2542 = vmul.f32 %v2519, 1.442695
          %v2543 = vpow.pop %v2542
          %v2544 = vmul.f32 %v2520, 1.442695
          %v2545 = vpow.pop %v2544
          %v2546 = vmul.f32 %v2521, 1.442695
          %v2547 = vpow.pop %v2546
          %v2548 = vmul.f32 %v2522, 1.442695
          %v2549 = vpow.pop %v2548
          %v2550 = vmul.f32 %v2523, 1.442695
          %v2551 = vpow.pop %v2550
          %v2552 = vmul.f32 %v2524, 1.442695
          %v2553 = vpow.pop %v2552
          %v2554 = vmul.f32 %v2525, 1.442695
          %v2555 = vpow.pop %v2554
          %v2556 = vmul.f32 %v2526, 1.442695
          %v2557 = vpow.pop %v2556
          %v2558 = vmul.f32 %v2527, 1.442695
          %v2559 = vpow.pop %v2558
          %v2560 = vadd.f32 %v2529, 1.0
          %v2561 = vadd.f32 %v2531, 1.0
          %v2562 = vadd.f32 %v2533, 1.0
          %v2563 = vadd.f32 %v2535, 1.0
          %v2564 = vadd.f32 %v2537, 1.0
          %v2565 = vadd.f32 %v2539, 1.0
          %v2566 = vadd.f32 %v2541, 1.0
          %v2567 = vadd.f32 %v2543, 1.0
          %v2568 = vadd.f32 %v2545, 1.0
          %v2569 = vadd.f32 %v2547, 1.0
          %v2570 = vadd.f32 %v2549, 1.0
          %v2571 = vadd.f32 %v2551, 1.0
          %v2572 = vadd.f32 %v2553, 1.0
          %v2573 = vadd.f32 %v2555, 1.0
          %v2574 = vadd.f32 %v2557, 1.0
          %v2575 = vadd.f32 %v2559, 1.0
          %v2576 = vrcp.pop %v2560
          %v2577 = vmul.f32 %v2560, %v2576
          %v2578 = vsub.f32 1.0, %v2577
          %v2579 = vmul.f32 %v2576, %v2578
          %v2580 = vadd.f32 %v2576, %v2579
          %vm2581 = vweird.f32 %v2560
          %vm2582 = vweird.f32 %v2576
          %vm2583 = vmor %vm2581, %vm2582
          %v2584 = vsel %vm2583, %v2576, %v2580
          %v2585 = vand.u32 2147483647, %v2560
          %vm2586 = vcmp.eq.f32.partialorder %v2585, 8.507059e+37
          %v2587 = vand.u32 %v2560, 2147483648
          %v2588 = vor.u32 1.1754944e-38, %v2587
          %v2589 = vsel %vm2586, %v2588, %v2584
          %v2590 = vmul.f32 1.0, %v2589
          %v2591 = vrcp.pop %v2561
          %v2592 = vmul.f32 %v2561, %v2591
          %v2593 = vsub.f32 1.0, %v2592
          %v2594 = vmul.f32 %v2591, %v2593
          %v2595 = vadd.f32 %v2591, %v2594
          %vm2596 = vweird.f32 %v2561
          %vm2597 = vweird.f32 %v2591
          %vm2598 = vmor %vm2596, %vm2597
          %v2599 = vsel %vm2598, %v2591, %v2595
          %v2600 = vand.u32 2147483647, %v2561
          %vm2601 = vcmp.eq.f32.partialorder %v2600, 8.507059e+37
          %v2602 = vand.u32 %v2561, 2147483648
          %v2603 = vor.u32 1.1754944e-38, %v2602
          %v2604 = vsel %vm2601, %v2603, %v2599
          %v2605 = vmul.f32 1.0, %v2604
          %v2606 = vrcp.pop %v2562
          %v2607 = vmul.f32 %v2562, %v2606
          %v2608 = vsub.f32 1.0, %v2607
          %v2609 = vmul.f32 %v2606, %v2608
          %v2610 = vadd.f32 %v2606, %v2609
          %vm2611 = vweird.f32 %v2562
          %vm2612 = vweird.f32 %v2606
          %vm2613 = vmor %vm2611, %vm2612
          %v2614 = vsel %vm2613, %v2606, %v2610
          %v2615 = vand.u32 2147483647, %v2562
          %vm2616 = vcmp.eq.f32.partialorder %v2615, 8.507059e+37
          %v2617 = vand.u32 %v2562, 2147483648
          %v2618 = vor.u32 1.1754944e-38, %v2617
          %v2619 = vsel %vm2616, %v2618, %v2614
          %v2620 = vmul.f32 1.0, %v2619
          %v2621 = vrcp.pop %v2563
          %v2622 = vmul.f32 %v2563, %v2621
          %v2623 = vsub.f32 1.0, %v2622
          %v2624 = vmul.f32 %v2621, %v2623
          %v2625 = vadd.f32 %v2621, %v2624
          %vm2626 = vweird.f32 %v2563
          %vm2627 = vweird.f32 %v2621
          %vm2628 = vmor %vm2626, %vm2627
          %v2629 = vsel %vm2628, %v2621, %v2625
          %v2630 = vand.u32 2147483647, %v2563
          %vm2631 = vcmp.eq.f32.partialorder %v2630, 8.507059e+37
          %v2632 = vand.u32 %v2563, 2147483648
          %v2633 = vor.u32 1.1754944e-38, %v2632
          %v2634 = vsel %vm2631, %v2633, %v2629
          %v2635 = vmul.f32 1.0, %v2634
          %v2636 = vrcp.pop %v2564
          %v2637 = vmul.f32 %v2564, %v2636
          %v2638 = vsub.f32 1.0, %v2637
          %v2639 = vmul.f32 %v2636, %v2638
          %v2640 = vadd.f32 %v2636, %v2639
          %vm2641 = vweird.f32 %v2564
          %vm2642 = vweird.f32 %v2636
          %vm2643 = vmor %vm2641, %vm2642
          %v2644 = vsel %vm2643, %v2636, %v2640
          %v2645 = vand.u32 2147483647, %v2564
          %vm2646 = vcmp.eq.f32.partialorder %v2645, 8.507059e+37
          %v2647 = vand.u32 %v2564, 2147483648
          %v2648 = vor.u32 1.1754944e-38, %v2647
          %v2649 = vsel %vm2646, %v2648, %v2644
          %v2650 = vmul.f32 1.0, %v2649
          %v2651 = vrcp.pop %v2565
          %v2652 = vmul.f32 %v2565, %v2651
          %v2653 = vsub.f32 1.0, %v2652
          %v2654 = vmul.f32 %v2651, %v2653
          %v2655 = vadd.f32 %v2651, %v2654
          %vm2656 = vweird.f32 %v2565
          %vm2657 = vweird.f32 %v2651
          %vm2658 = vmor %vm2656, %vm2657
          %v2659 = vsel %vm2658, %v2651, %v2655
          %v2660 = vand.u32 2147483647, %v2565
          %vm2661 = vcmp.eq.f32.partialorder %v2660, 8.507059e+37
          %v2662 = vand.u32 %v2565, 2147483648
          %v2663 = vor.u32 1.1754944e-38, %v2662
          %v2664 = vsel %vm2661, %v2663, %v2659
          %v2665 = vmul.f32 1.0, %v2664
          %v2666 = vrcp.pop %v2566
          %v2667 = vmul.f32 %v2566, %v2666
          %v2668 = vsub.f32 1.0, %v2667
          %v2669 = vmul.f32 %v2666, %v2668
          %v2670 = vadd.f32 %v2666, %v2669
          %vm2671 = vweird.f32 %v2566
          %vm2672 = vweird.f32 %v2666
          %vm2673 = vmor %vm2671, %vm2672
          %v2674 = vsel %vm2673, %v2666, %v2670
          %v2675 = vand.u32 2147483647, %v2566
          %vm2676 = vcmp.eq.f32.partialorder %v2675, 8.507059e+37
          %v2677 = vand.u32 %v2566, 2147483648
          %v2678 = vor.u32 1.1754944e-38, %v2677
          %v2679 = vsel %vm2676, %v2678, %v2674
          %v2680 = vmul.f32 1.0, %v2679
          %v2681 = vrcp.pop %v2567
          %v2682 = vmul.f32 %v2567, %v2681
          %v2683 = vsub.f32 1.0, %v2682
          %v2684 = vmul.f32 %v2681, %v2683
          %v2685 = vadd.f32 %v2681, %v2684
          %vm2686 = vweird.f32 %v2567
          %vm2687 = vweird.f32 %v2681
          %vm2688 = vmor %vm2686, %vm2687
          %v2689 = vsel %vm2688, %v2681, %v2685
          %v2690 = vand.u32 2147483647, %v2567
          %vm2691 = vcmp.eq.f32.partialorder %v2690, 8.507059e+37
          %v2692 = vand.u32 %v2567, 2147483648
          %v2693 = vor.u32 1.1754944e-38, %v2692
          %v2694 = vsel %vm2691, %v2693, %v2689
          %v2695 = vmul.f32 1.0, %v2694
          %v2696 = vrcp.pop %v2568
          %v2697 = vmul.f32 %v2568, %v2696
          %v2698 = vsub.f32 1.0, %v2697
          %v2699 = vmul.f32 %v2696, %v2698
          %v2700 = vadd.f32 %v2696, %v2699
          %vm2701 = vweird.f32 %v2568
          %vm2702 = vweird.f32 %v2696
          %vm2703 = vmor %vm2701, %vm2702
          %v2704 = vsel %vm2703, %v2696, %v2700
          %v2705 = vand.u32 2147483647, %v2568
          %vm2706 = vcmp.eq.f32.partialorder %v2705, 8.507059e+37
          %v2707 = vand.u32 %v2568, 2147483648
          %v2708 = vor.u32 1.1754944e-38, %v2707
          %v2709 = vsel %vm2706, %v2708, %v2704
          %v2710 = vmul.f32 1.0, %v2709
          %v2711 = vrcp.pop %v2569
          %v2712 = vmul.f32 %v2569, %v2711
          %v2713 = vsub.f32 1.0, %v2712
          %v2714 = vmul.f32 %v2711, %v2713
          %v2715 = vadd.f32 %v2711, %v2714
          %vm2716 = vweird.f32 %v2569
          %vm2717 = vweird.f32 %v2711
          %vm2718 = vmor %vm2716, %vm2717
          %v2719 = vsel %vm2718, %v2711, %v2715
          %v2720 = vand.u32 2147483647, %v2569
          %vm2721 = vcmp.eq.f32.partialorder %v2720, 8.507059e+37
          %v2722 = vand.u32 %v2569, 2147483648
          %v2723 = vor.u32 1.1754944e-38, %v2722
          %v2724 = vsel %vm2721, %v2723, %v2719
          %v2725 = vmul.f32 1.0, %v2724
          %v2726 = vrcp.pop %v2570
          %v2727 = vmul.f32 %v2570, %v2726
          %v2728 = vsub.f32 1.0, %v2727
          %v2729 = vmul.f32 %v2726, %v2728
          %v2730 = vadd.f32 %v2726, %v2729
          %vm2731 = vweird.f32 %v2570
          %vm2732 = vweird.f32 %v2726
          %vm2733 = vmor %vm2731, %vm2732
          %v2734 = vsel %vm2733, %v2726, %v2730
          %v2735 = vand.u32 2147483647, %v2570
          %vm2736 = vcmp.eq.f32.partialorder %v2735, 8.507059e+37
          %v2737 = vand.u32 %v2570, 2147483648
          %v2738 = vor.u32 1.1754944e-38, %v2737
          %v2739 = vsel %vm2736, %v2738, %v2734
          %v2740 = vmul.f32 1.0, %v2739
          %v2741 = vrcp.pop %v2571
          %v2742 = vmul.f32 %v2571, %v2741
          %v2743 = vsub.f32 1.0, %v2742
          %v2744 = vmul.f32 %v2741, %v2743
          %v2745 = vadd.f32 %v2741, %v2744
          %vm2746 = vweird.f32 %v2571
          %vm2747 = vweird.f32 %v2741
          %vm2748 = vmor %vm2746, %vm2747
          %v2749 = vsel %vm2748, %v2741, %v2745
          %v2750 = vand.u32 2147483647, %v2571
          %vm2751 = vcmp.eq.f32.partialorder %v2750, 8.507059e+37
          %v2752 = vand.u32 %v2571, 2147483648
          %v2753 = vor.u32 1.1754944e-38, %v2752
          %v2754 = vsel %vm2751, %v2753, %v2749
          %v2755 = vmul.f32 1.0, %v2754
          %v2756 = vrcp.pop %v2572
          %v2757 = vmul.f32 %v2572, %v2756
          %v2758 = vsub.f32 1.0, %v2757
          %v2759 = vmul.f32 %v2756, %v2758
          %v2760 = vadd.f32 %v2756, %v2759
          %vm2761 = vweird.f32 %v2572
          %vm2762 = vweird.f32 %v2756
          %vm2763 = vmor %vm2761, %vm2762
          %v2764 = vsel %vm2763, %v2756, %v2760
          %v2765 = vand.u32 2147483647, %v2572
          %vm2766 = vcmp.eq.f32.partialorder %v2765, 8.507059e+37
          %v2767 = vand.u32 %v2572, 2147483648
          %v2768 = vor.u32 1.1754944e-38, %v2767
          %v2769 = vsel %vm2766, %v2768, %v2764
          %v2770 = vmul.f32 1.0, %v2769
          %v2771 = vrcp.pop %v2573
          %v2772 = vmul.f32 %v2573, %v2771
          %v2773 = vsub.f32 1.0, %v2772
          %v2774 = vmul.f32 %v2771, %v2773
          %v2775 = vadd.f32 %v2771, %v2774
          %vm2776 = vweird.f32 %v2573
          %vm2777 = vweird.f32 %v2771
          %vm2778 = vmor %vm2776, %vm2777
          %v2779 = vsel %vm2778, %v2771, %v2775
          %v2780 = vand.u32 2147483647, %v2573
          %vm2781 = vcmp.eq.f32.partialorder %v2780, 8.507059e+37
          %v2782 = vand.u32 %v2573, 2147483648
          %v2783 = vor.u32 1.1754944e-38, %v2782
          %v2784 = vsel %vm2781, %v2783, %v2779
          %v2785 = vmul.f32 1.0, %v2784
          %v2786 = vrcp.pop %v2574
          %v2787 = vmul.f32 %v2574, %v2786
          %v2788 = vsub.f32 1.0, %v2787
          %v2789 = vmul.f32 %v2786, %v2788
          %v2790 = vadd.f32 %v2786, %v2789
          %vm2791 = vweird.f32 %v2574
          %vm2792 = vweird.f32 %v2786
          %vm2793 = vmor %vm2791, %vm2792
          %v2794 = vsel %vm2793, %v2786, %v2790
          %v2795 = vand.u32 2147483647, %v2574
          %vm2796 = vcmp.eq.f32.partialorder %v2795, 8.507059e+37
          %v2797 = vand.u32 %v2574, 2147483648
          %v2798 = vor.u32 1.1754944e-38, %v2797
          %v2799 = vsel %vm2796, %v2798, %v2794
          %v2800 = vmul.f32 1.0, %v2799
          %v2801 = vrcp.pop %v2575
          %v2802 = vmul.f32 %v2575, %v2801
          %v2803 = vsub.f32 1.0, %v2802
          %v2804 = vmul.f32 %v2801, %v2803
          %v2805 = vadd.f32 %v2801, %v2804
          %vm2806 = vweird.f32 %v2575
          %vm2807 = vweird.f32 %v2801
          %vm2808 = vmor %vm2806, %vm2807
          %v2809 = vsel %vm2808, %v2801, %v2805
          %v2810 = vand.u32 2147483647, %v2575
          %vm2811 = vcmp.eq.f32.partialorder %v2810, 8.507059e+37
          %v2812 = vand.u32 %v2575, 2147483648
          %v2813 = vor.u32 1.1754944e-38, %v2812
          %v2814 = vsel %vm2811, %v2813, %v2809
          %v2815 = vmul.f32 1.0, %v2814
          %2816 = vst [vmem:[%s283] sm:$0xff] %v2590
          %2817 = vst [vmem:[%s283 + $0x8] sm:$0xff] %v2605
          %2818 = vst [vmem:[%s283 + $0x10] sm:$0xff] %v2620
          %2819 = vst [vmem:[%s283 + $0x18] sm:$0xff] %v2635
          %2820 = vst [vmem:[%s283 + $0x20] sm:$0xff] %v2650
          %2821 = vst [vmem:[%s283 + $0x28] sm:$0xff] %v2665
          %2822 = vst [vmem:[%s283 + $0x30] sm:$0xff] %v2680
          %2823 = vst [vmem:[%s283 + $0x38] sm:$0xff] %v2695
          %2824 = vst [vmem:[%s283 + $0x40] sm:$0xff] %v2710
          %2825 = vst [vmem:[%s283 + $0x48] sm:$0xff] %v2725
          %2826 = vst [vmem:[%s283 + $0x50] sm:$0xff] %v2740
          %2827 = vst [vmem:[%s283 + $0x58] sm:$0xff] %v2755
          %2828 = vst [vmem:[%s283 + $0x60] sm:$0xff] %v2770
          %2829 = vst [vmem:[%s283 + $0x68] sm:$0xff] %v2785
          %2830 = vst [vmem:[%s283 + $0x70] sm:$0xff] %v2800
          %2831 = vst [vmem:[%s283 + $0x78] sm:$0xff] %v2815
        $region44: #{ate_forward.5} parent=31 // pred_fallthru
          _
        %s2832 = smul.u32 16, %s23
        %p2833 = scmp.lt.s32.totalorder %s22, 0
        %s2834 = scalar_select %p2833, %s22, 0
        %p2835 = scmp.lt.s32.totalorder %s2832, 527
        %s2836 = scalar_select %p2835, %s2832, 527
        %s2837 = smul.addr %s2834, 528
        %s2838 = sadd.s32 %s2836, %s2837
        %s2839 = smul.addr %s2838, 8
        %s2840 = scalar_lea.vmem %s3, %s2839
        // Predicated region
        $region45: #{ate_forward.5} parent=31 // pred_check
          %p2841 = pneg %p138
        $region46: #{ate_forward.5} parent=31 // pred_check_branch
          %2843 = sbr.rel (%p2841) target = $region48
        $region47: #{ate_forward.5} parent=31 // pred_region
          %s2844 = smul.u32 16, %s23
        $region48: #{ate_forward.5} parent=31 // pred_fallthru
          _
      $region32: #{ate_forward.5} parent=5 // pred_fallthru
        _
      %p2845 = scmp.le.s32.totalorder 2, %s12
      // Predicated region
      $region49: #{ate_forward.5} parent=5 // pred_check
        %p2846 = pneg %p2845
      $region50: #{ate_forward.5} parent=5 // pred_check_branch
        %2848 = sbr.rel (%p2846) target = $region52
      $region51: #{ate_forward.5} parent=5 // pred_region
        %s2849 = ssub.s32 %s12, 2
        // Predicated region
        $region53: #{ate_forward.5} parent=51 // pred_check
          %p2850 = pneg %p144
        $region54: #{ate_forward.5} parent=51 // pred_check_branch
          %2852 = sbr.rel (%p2850) target = $region56
        $region55: #{ate_forward.5} parent=51 // pred_region
          %s2853 = smul.u32 16, %s26
          %p2854 = scmp.lt.s32.totalorder %s25, 0
          %s2855 = scalar_select %p2854, %s25, 0
          %p2856 = scmp.lt.s32.totalorder %s2853, 527
          %s2857 = scalar_select %p2856, %s2853, 527
          %s2858 = smul.addr %s2855, 528
          %s2859 = sadd.s32 %s2857, %s2858
          %s2860 = smul.addr %s2859, 8
          %s2861 = scalar_lea.vmem %s3, %s2860
        $region56: #{ate_forward.5} parent=51 // pred_fallthru
          _
      $region52: #{ate_forward.5} parent=5 // pred_fallthru
        _
    $region6: #{ate_forward.5} parent=1 // loop_footer
      %s16 = sadd.s32 1, %s12
    $region7: #{ate_forward.5} parent=1 // loop_footer_branch
      %11 = sbr.rel target = $region3
    $region8: #{ate_forward.5} parent=1 // loop_exit
      _
    %2862 = vsyncpa [#allocation3], 1
    %s2863 = scalar_lea.sflag [#allocation3], 1
    %2864 = vsyncpa %s2863, 1

// kernel: ate_forward.3
$region0: #{ate_forward.3}
  #allocation0 [shape = 'u32[]', space=smem, size = 0x4, offset = 0x4, fixed_abs, tag = 'smem constant byte address 0x4 - core index']
  #allocation1 [shape = 'u32[72,128]{1,0:T(1,128)}', space=vmem, size = 0x9000, scoped, tag = 'internal scratch']
  %s0 = inlined_call_operand.vmem [shape: f32[8,67584], index: 0, kind: input, shape index: {}]
  %s1 = inlined_call_operand.hbm [shape: f32[67584,400], index: 1, kind: input, shape index: {}]
  %s2 = inlined_call_operand.vmem [shape: f32[1,400], index: 2, kind: input, shape index: {}]
  %s3 = inlined_call_operand.vmem [shape: f32[8,400], index: 3, kind: output, shape index: {}]
  %s4 = sld [smem:[#allocation0]]
  $region57: #{ate_forward.3} parent=0
    _
  %s6 = ssub.s32 1, %s4
  %s7 = scalar_select 0, %s6, %s4
  $region1: #{ate_forward.3} parent=0
    #allocation2 [shape = 'u8[8388608]{0}', space=vmem, size = 0x800000, scoped, tag = 'input window, operand 1']
    #allocation3 [shape = 's32[2]{0}', space=sflag, size = 0x8, scoped, tag = 'scoped memory for ate_forward.3']
    %8 = vsyncpa [#allocation3], 0
    %s9 = scalar_lea.sflag [#allocation3], 1
    %10 = vsyncpa %s9, 0
    loop: start=0, step=1, limit=35
    $region2: #{ate_forward.3} parent=1 // loop_pre_header
      _
    $region3: #{ate_forward.3} parent=1 // loop_header
      %s12 = sphi 0, %s16
      %p13 = scmp.ge.s32.totalorder %s12, 35
      %s19 = sphi 0, %s38
      %s20 = sphi 0, %s34
      %s21 = sphi 0, %s30
      %s22 = sphi 0, %s19
      %s23 = sphi 0, %s20
      %s24 = sphi 0, %s21
      %s25 = sphi 0, %s22
      %s26 = sphi 0, %s23
      %s27 = sphi 0, %s24
      %s43 = sphi 0, %s45
      %s46 = sphi 0, %s43
      %s47 = sphi 0, %s46
      %s63 = sphi 0, %s47
      %s71 = sphi 0, %s73
      %s74 = sphi 0, %s71
      %s75 = sphi 0, %s74
      %s91 = sphi 0, %s75
      %s97 = sphi 0, %s99
      %s100 = sphi 0, %s97
      %s101 = sphi 0, %s100
      %s117 = sphi 0, %s101
      %s125 = sphi 0, %s127
      %s128 = sphi 0, %s125
      %s129 = sphi 0, %s128
      %s145 = sphi 0, %s129
    $region4: #{ate_forward.3} parent=1 // loop_header_branch
      %15 = sbr.rel (%p13) target = $region8
    $region5: #{ate_forward.3} parent=1 // loop_body
      %s17 = ssub.s32 %s12, 1
      %s18 = ssub.s32 %s12, 2
      %s28 = sadd.s32 1, %s21
      %p29 = scmp.ge.s32.totalorder %s28, 33
      %s30 = scalar_select %p29, 0, %s28
      %s31 = sadd.s32 1, %s20
      %s32 = scalar_select %p29, %s31, %s20
      %p33 = scmp.ge.s32.totalorder %s32, 1
      %s34 = scalar_select %p33, 0, %s32
      %s35 = sadd.s32 1, %s19
      %s36 = scalar_select %p33, %s35, %s19
      %p37 = scmp.ge.s32.totalorder %s36, 1
      %s38 = scalar_select %p37, 0, %s36
      %s39 = ssub.s32 %s19, %s38
      %s40 = ssub.s32 %s21, %s30
      %s41 = sor.u32 %s39, %s40
      %p42 = scmp.eq.s32.totalorder %s41, 0
      %s44 = sadd.s32 %s43, 1
      %s45 = scalar_select %p42, %s43, %s44
      %p48 = pneg %p42
      %p49 = scmp.eq.s32.totalorder %s12, 32
      %p50 = por %p48, %p49
      %p51 = scmp.ne.s32.totalorder %s43, %s46
      %p52 = scmp.eq.s32.totalorder %s12, 0
      %p53 = por %p51, %p52
      %p54 = scmp.ne.s32.totalorder %s43, %s46
      %p55 = scmp.eq.s32.totalorder %s17, 32
      %p56 = por %p54, %p55
      %p57 = scmp.ne.s32.totalorder %s46, %s47
      %p58 = scmp.eq.s32.totalorder %s17, 0
      %p59 = por %p57, %p58
      %p60 = scmp.ne.s32.totalorder %s46, %s47
      %p61 = scmp.eq.s32.totalorder %s18, 32
      %p62 = por %p60, %p61
      %p64 = scmp.ne.s32.totalorder %s47, %s63
      %p65 = scmp.eq.s32.totalorder %s18, 0
      %p66 = por %p64, %p65
      %s67 = ssub.s32 %s21, %s30
      %s68 = ssub.s32 %s20, %s34
      %s69 = sor.u32 %s67, %s68
      %p70 = scmp.eq.s32.totalorder %s69, 0
      %s72 = sadd.s32 %s71, 1
      %s73 = scalar_select %p70, %s71, %s72
      %p76 = pneg %p70
      %p77 = scmp.eq.s32.totalorder %s12, 32
      %p78 = por %p76, %p77
      %p79 = scmp.ne.s32.totalorder %s71, %s74
      %p80 = scmp.eq.s32.totalorder %s12, 0
      %p81 = por %p79, %p80
      %p82 = scmp.ne.s32.totalorder %s71, %s74
      %p83 = scmp.eq.s32.totalorder %s17, 32
      %p84 = por %p82, %p83
      %p85 = scmp.ne.s32.totalorder %s74, %s75
      %p86 = scmp.eq.s32.totalorder %s17, 0
      %p87 = por %p85, %p86
      %p88 = scmp.ne.s32.totalorder %s74, %s75
      %p89 = scmp.eq.s32.totalorder %s18, 32
      %p90 = por %p88, %p89
      %p92 = scmp.ne.s32.totalorder %s75, %s91
      %p93 = scmp.eq.s32.totalorder %s18, 0
      %p94 = por %p92, %p93
      %s95 = ssub.s32 %s20, %s34
      %p96 = scmp.eq.s32.totalorder %s95, 0
      %s98 = sadd.s32 %s97, 1
      %s99 = scalar_select %p96, %s97, %s98
      %p102 = pneg %p96
      %p103 = scmp.eq.s32.totalorder %s12, 32
      %p104 = por %p102, %p103
      %p105 = scmp.ne.s32.totalorder %s97, %s100
      %p106 = scmp.eq.s32.totalorder %s12, 0
      %p107 = por %p105, %p106
      %p108 = scmp.ne.s32.totalorder %s97, %s100
      %p109 = scmp.eq.s32.totalorder %s17, 32
      %p110 = por %p108, %p109
      %p111 = scmp.ne.s32.totalorder %s100, %s101
      %p112 = scmp.eq.s32.totalorder %s17, 0
      %p113 = por %p111, %p112
      %p114 = scmp.ne.s32.totalorder %s100, %s101
      %p115 = scmp.eq.s32.totalorder %s18, 32
      %p116 = por %p114, %p115
      %p118 = scmp.ne.s32.totalorder %s101, %s117
      %p119 = scmp.eq.s32.totalorder %s18, 0
      %p120 = por %p118, %p119
      %s121 = ssub.s32 %s19, %s38
      %s122 = ssub.s32 %s20, %s34
      %s123 = sor.u32 %s121, %s122
      %p124 = scmp.eq.s32.totalorder %s123, 0
      %s126 = sadd.s32 %s125, 1
      %s127 = scalar_select %p124, %s125, %s126
      %p130 = pneg %p124
      %p131 = scmp.eq.s32.totalorder %s12, 32
      %p132 = por %p130, %p131
      %p133 = scmp.ne.s32.totalorder %s125, %s128
      %p134 = scmp.eq.s32.totalorder %s12, 0
      %p135 = por %p133, %p134
      %p136 = scmp.ne.s32.totalorder %s125, %s128
      %p137 = scmp.eq.s32.totalorder %s17, 32
      %p138 = por %p136, %p137
      %p139 = scmp.ne.s32.totalorder %s128, %s129
      %p140 = scmp.eq.s32.totalorder %s17, 0
      %p141 = por %p139, %p140
      %p142 = scmp.ne.s32.totalorder %s128, %s129
      %p143 = scmp.eq.s32.totalorder %s18, 32
      %p144 = por %p142, %p143
      %p146 = scmp.ne.s32.totalorder %s129, %s145
      %p147 = scmp.eq.s32.totalorder %s18, 0
      %p148 = por %p146, %p147
      %p149 = scmp.le.s32.totalorder 1, %s12
      %p150 = scmp.lt.s32.totalorder %s12, 34
      %p151 = pnand %p149, %p150
      %p152 = pneg %p151
      // Predicated region
      $region9: #{ate_forward.3} parent=5 // pred_check
        _
      $region10: #{ate_forward.3} parent=5 // pred_check_branch
        %154 = sbr.rel (%p151) target = $region12
      $region11: #{ate_forward.3} parent=5 // pred_region
        %s155 = ssub.s32 %s12, 1
        // Predicated region
        $region13: #{ate_forward.3} parent=11 // pred_check
          %p156 = pneg %p113
        $region14: #{ate_forward.3} parent=11 // pred_check_branch
          %158 = sbr.rel (%p156) target = $region16
        $region15: #{ate_forward.3} parent=11 // pred_region
          %s159 = smul.u32 4, %s23
          %p160 = scmp.lt.s32.totalorder %s159, 3
          %s161 = scalar_select %p160, %s159, 3
          %s162 = scalar_lea.vmem %s2, %s161
          %s163 = smul.u32 4, %s23
        $region16: #{ate_forward.3} parent=11 // pred_fallthru
          _
      $region12: #{ate_forward.3} parent=5 // pred_fallthru
        _
      %p164 = scmp.lt.s32.totalorder %s12, 33
      // Predicated region
      $region17: #{ate_forward.3} parent=5 // pred_check
        %p165 = pneg %p164
      $region18: #{ate_forward.3} parent=5 // pred_check_branch
        %167 = sbr.rel (%p165) target = $region20
      $region19: #{ate_forward.3} parent=5 // pred_region
        // Predicated region
        $region21: #{ate_forward.3} parent=19 // pred_check
          %p168 = pneg %p53
        $region22: #{ate_forward.3} parent=19 // pred_check_branch
          %170 = sbr.rel (%p168) target = $region24
        $region23: #{ate_forward.3} parent=19 // pred_region
          %s171 = smul.u32 16, %s21
          %p172 = scmp.lt.s32.totalorder %s19, 0
          %s173 = scalar_select %p172, %s19, 0
          %p174 = scmp.lt.s32.totalorder %s171, 527
          %s175 = scalar_select %p174, %s171, 527
          %s176 = smul.addr %s173, 528
          %s177 = sadd.s32 %s175, %s176
          %s178 = smul.addr %s177, 8
          %s179 = scalar_lea.vmem %s0, %s178
          %s180 = smul.u32 16, %s21
        $region24: #{ate_forward.3} parent=19 // pred_fallthru
          _
        // Predicated region
        $region25: #{ate_forward.3} parent=19 // pred_check
          %p181 = pneg %p81
        $region26: #{ate_forward.3} parent=19 // pred_check_branch
          %183 = sbr.rel (%p181) target = $region28
        $region27: #{ate_forward.3} parent=19 // pred_region
          %s184 = sand.u32 %s71, 1
          %s185 = scalar_lea.sflag [#allocation3], %s184
          %s186 = sand.u32 %s71, 1
          %s187 = smul.addr %s186, 8192
          %s188 = scalar_lea.vmem [#allocation2], %s187
          %s189 = smul.u32 256, %s21
          %s190 = smul.u32 4, %s20
          %192 = vsyncadd %s185, 0
          %s193 = smul.addr %s189, 4
          %s194 = sadd.s32 %s190, %s193
          %s195 = smul.addr %s194, 8
          %s196 = scalar_lea.hbm %s1, %s195
          %s197 = sshll.u32 %s196, 4
          %s198 = int_to_ptr.hbm [resolvable:$true] %s197
          %s199 = sshll.u32 %s188, 4
          %s200 = int_to_ptr.vmem [resolvable:$true] %s199
          %205 = dma.hbm_to_vmem [thread:$0]  %s198, 131072, %s200, %s185, 512, 512, 32
        $region28: #{ate_forward.3} parent=19 // pred_fallthru
          _
      $region20: #{ate_forward.3} parent=5 // pred_fallthru
        _
      %p206 = scmp.le.s32.totalorder 1, %s12
      %p207 = scmp.lt.s32.totalorder %s12, 34
      %p208 = pnand %p206, %p207
      %p209 = pneg %p208
      // Predicated region
      $region29: #{ate_forward.3} parent=5 // pred_check
        _
      $region30: #{ate_forward.3} parent=5 // pred_check_branch
        %211 = sbr.rel (%p208) target = $region32
      $region31: #{ate_forward.3} parent=5 // pred_region
        %s212 = ssub.s32 %s12, 1
        %s213 = sand.u32 %s74, 1
        %s214 = scalar_lea.sflag [#allocation3], %s213
        %s215 = sand.u32 %s74, 1
        %s216 = smul.addr %s215, 8192
        %s217 = scalar_lea.vmem [#allocation2], %s216
        // Predicated region
        $region33: #{ate_forward.3} parent=31 // pred_check
          %p218 = pneg %p87
        $region34: #{ate_forward.3} parent=31 // pred_check_branch
          %220 = sbr.rel (%p218) target = $region36
        $region35: #{ate_forward.3} parent=31 // pred_region
          %222 = dma.done %s214, 131072
        $region36: #{ate_forward.3} parent=31 // pred_fallthru
          _
        %s223 = smul.u32 16, %s24
        %p224 = scmp.lt.s32.totalorder %s22, 0
        %s225 = scalar_select %p224, %s22, 0
        %p226 = scmp.lt.s32.totalorder %s223, 527
        %s227 = scalar_select %p226, %s223, 527
        %s228 = smul.addr %s225, 528
        %s229 = sadd.s32 %s227, %s228
        %s230 = smul.addr %s229, 8
        %s231 = scalar_lea.vmem %s0, %s230
        %p232 = pneg %p59
        %p233 = pneg %p56
        %s234 = sand.u32 %s74, 1
        %s235 = scalar_lea.sflag [#allocation3], %s234
        %s236 = sand.u32 %s74, 1
        %s237 = smul.addr %s236, 8192
        %s238 = scalar_lea.vmem [#allocation2], %s237
        %p239 = pneg %p87
        %p240 = pneg %p84
        %s241 = smul.u32 4, %s23
        %p242 = scmp.lt.s32.totalorder %s241, 3
        %s243 = scalar_select %p242, %s241, 3
        %s244 = scalar_lea.vmem %s2, %s243
        %p245 = pneg %p113
        %p246 = pneg %p110
        %p247 = pneg %p141
        %p248 = pneg %p138
        %s249 = smul.u32 4, %s23
        %p250 = scmp.lt.s32.totalorder %s22, 0
        %s251 = scalar_select %p250, %s22, 0
        %p252 = scmp.lt.s32.totalorder %s249, 3
        %s253 = scalar_select %p252, %s249, 3
        %s254 = smul.addr %s251, 4
        %s255 = sadd.s32 %s253, %s254
        %s256 = smul.addr %s255, 8
        %s257 = scalar_lea.vmem %s3, %s256
        %s258 = smul.u32 16, %s24
        %p259 = scmp.lt.s32.totalorder %s22, 0
        %s260 = scalar_select %p259, %s22, 0
        %p261 = scmp.lt.s32.totalorder %s258, 527
        %s262 = scalar_select %p261, %s258, 527
        %s263 = smul.addr %s260, 528
        %s264 = sadd.s32 %s262, %s263
        %s265 = smul.addr %s264, 8
        %s266 = scalar_lea.vmem %s0, %s265
        %s267 = smul.u32 16, %s24
        %s268 = smul.u32 256, %s24
        %s269 = smul.u32 4, %s23
        %s270 = smul.u32 4, %s23
        %p271 = scmp.lt.s32.totalorder %s270, 3
        %s272 = scalar_select %p271, %s270, 3
        %s273 = scalar_lea.vmem %s2, %s272
        %s274 = smul.u32 4, %s23
        %s275 = smul.u32 4, %s23
        %p276 = scmp.lt.s32.totalorder %s22, 0
        %s277 = scalar_select %p276, %s22, 0
        %p278 = scmp.lt.s32.totalorder %s275, 3
        %s279 = scalar_select %p278, %s275, 3
        %s280 = smul.addr %s277, 4
        %s281 = sadd.s32 %s279, %s280
        %s282 = smul.addr %s281, 8
        %s283 = scalar_lea.vmem %s3, %s282
        %s284 = smul.u32 4, %s23
        %p285 = scmp.eq.s32.totalorder %s24, 0
        // Predicated region
        $region37: #{ate_forward.3} parent=31 // pred_check
          %p286 = pneg %p285
        $region38: #{ate_forward.3} parent=31 // pred_check_branch
          %288 = sbr.rel (%p286) target = $region40
        $region39: #{ate_forward.3} parent=31 // pred_region
          %289 = vst [vmem:[%s283] sm:$0xff] 0.0
          %290 = vst [vmem:[%s283 + $0x8] sm:$0xff] 0.0
          %291 = vst [vmem:[%s283 + $0x10] sm:$0xff] 0.0
          %vm292 = vcmask 130048
          %293 = vst.msk [vmem:[%s283 + $0x18] sm:$0xff] %vm292, 0.0
        $region40: #{ate_forward.3} parent=31 // pred_fallthru
          _
        %v294 = vld [vmem:[%s283] sm:$0xff]
        %v295 = vld [vmem:[%s283 + $0x8] sm:$0xff]
        %v296 = vld [vmem:[%s283 + $0x10] sm:$0xff]
        %v297 = vld [vmem:[%s283 + $0x18] sm:$0xff]
        %v298 = vld [vmem:[%s266] sm:$0xff]
        %v299 = vld [vmem:[%s266 + $0x8] sm:$0xff]
        %v300 = vld [vmem:[%s266 + $0x10] sm:$0xff]
        %v301 = vld [vmem:[%s266 + $0x18] sm:$0xff]
        %v302 = vld [vmem:[%s266 + $0x20] sm:$0xff]
        %v303 = vld [vmem:[%s266 + $0x28] sm:$0xff]
        %v304 = vld [vmem:[%s266 + $0x30] sm:$0xff]
        %v305 = vld [vmem:[%s266 + $0x38] sm:$0xff]
        %v306 = vld [vmem:[%s266 + $0x40] sm:$0xff]
        %v307 = vld [vmem:[%s266 + $0x48] sm:$0xff]
        %v308 = vld [vmem:[%s266 + $0x50] sm:$0xff]
        %v309 = vld [vmem:[%s266 + $0x58] sm:$0xff]
        %v310 = vld [vmem:[%s266 + $0x60] sm:$0xff]
        %v311 = vld [vmem:[%s266 + $0x68] sm:$0xff]
        %v312 = vld [vmem:[%s266 + $0x70] sm:$0xff]
        %v313 = vld [vmem:[%s266 + $0x78] sm:$0xff]
        %v314 = vld [vmem:[%s217] sm:$0xff]
        %v315 = vld [vmem:[%s217 + $0x8] sm:$0xff]
        %v316 = vld [vmem:[%s217 + $0x10] sm:$0xff]
        %v317 = vld [vmem:[%s217 + $0x18] sm:$0xff]
        %v318 = vld [vmem:[%s217 + $0x20] sm:$0xff]
        %v319 = vld [vmem:[%s217 + $0x28] sm:$0xff]
        %v320 = vld [vmem:[%s217 + $0x30] sm:$0xff]
        %v321 = vld [vmem:[%s217 + $0x38] sm:$0xff]
        %v322 = vld [vmem:[%s217 + $0x40] sm:$0xff]
        %v323 = vld [vmem:[%s217 + $0x48] sm:$0xff]
        %v324 = vld [vmem:[%s217 + $0x50] sm:$0xff]
        %v325 = vld [vmem:[%s217 + $0x58] sm:$0xff]
        %v326 = vld [vmem:[%s217 + $0x60] sm:$0xff]
        %v327 = vld [vmem:[%s217 + $0x68] sm:$0xff]
        %v328 = vld [vmem:[%s217 + $0x70] sm:$0xff]
        %v329 = vld [vmem:[%s217 + $0x78] sm:$0xff]
        %v330 = vld [vmem:[%s217 + $0x80] sm:$0xff]
        %v331 = vld [vmem:[%s217 + $0x88] sm:$0xff]
        %v332 = vld [vmem:[%s217 + $0x90] sm:$0xff]
        %v333 = vld [vmem:[%s217 + $0x98] sm:$0xff]
        %v334 = vld [vmem:[%s217 + $0xa0] sm:$0xff]
        %v335 = vld [vmem:[%s217 + $0xa8] sm:$0xff]
        %v336 = vld [vmem:[%s217 + $0xb0] sm:$0xff]
        %v337 = vld [vmem:[%s217 + $0xb8] sm:$0xff]
        %v338 = vld [vmem:[%s217 + $0xc0] sm:$0xff]
        %v339 = vld [vmem:[%s217 + $0xc8] sm:$0xff]
        %v340 = vld [vmem:[%s217 + $0xd0] sm:$0xff]
        %v341 = vld [vmem:[%s217 + $0xd8] sm:$0xff]
        %v342 = vld [vmem:[%s217 + $0xe0] sm:$0xff]
        %v343 = vld [vmem:[%s217 + $0xe8] sm:$0xff]
        %v344 = vld [vmem:[%s217 + $0xf0] sm:$0xff]
        %v345 = vld [vmem:[%s217 + $0xf8] sm:$0xff]
        %v346 = vld [vmem:[%s217 + $0x100] sm:$0xff]
        %v347 = vld [vmem:[%s217 + $0x108] sm:$0xff]
        %v348 = vld [vmem:[%s217 + $0x110] sm:$0xff]
        %v349 = vld [vmem:[%s217 + $0x118] sm:$0xff]
        %v350 = vld [vmem:[%s217 + $0x120] sm:$0xff]
        %v351 = vld [vmem:[%s217 + $0x128] sm:$0xff]
        %v352 = vld [vmem:[%s217 + $0x130] sm:$0xff]
        %v353 = vld [vmem:[%s217 + $0x138] sm:$0xff]
        %v354 = vld [vmem:[%s217 + $0x140] sm:$0xff]
        %v355 = vld [vmem:[%s217 + $0x148] sm:$0xff]
        %v356 = vld [vmem:[%s217 + $0x150] sm:$0xff]
        %v357 = vld [vmem:[%s217 + $0x158] sm:$0xff]
        %v358 = vld [vmem:[%s217 + $0x160] sm:$0xff]
        %v359 = vld [vmem:[%s217 + $0x168] sm:$0xff]
        %v360 = vld [vmem:[%s217 + $0x170] sm:$0xff]
        %v361 = vld [vmem:[%s217 + $0x178] sm:$0xff]
        %v362 = vld [vmem:[%s217 + $0x180] sm:$0xff]
        %v363 = vld [vmem:[%s217 + $0x188] sm:$0xff]
        %v364 = vld [vmem:[%s217 + $0x190] sm:$0xff]
        %v365 = vld [vmem:[%s217 + $0x198] sm:$0xff]
        %v366 = vld [vmem:[%s217 + $0x1a0] sm:$0xff]
        %v367 = vld [vmem:[%s217 + $0x1a8] sm:$0xff]
        %v368 = vld [vmem:[%s217 + $0x1b0] sm:$0xff]
        %v369 = vld [vmem:[%s217 + $0x1b8] sm:$0xff]
        %v370 = vld [vmem:[%s217 + $0x1c0] sm:$0xff]
        %v371 = vld [vmem:[%s217 + $0x1c8] sm:$0xff]
        %v372 = vld [vmem:[%s217 + $0x1d0] sm:$0xff]
        %v373 = vld [vmem:[%s217 + $0x1d8] sm:$0xff]
        %v374 = vld [vmem:[%s217 + $0x1e0] sm:$0xff]
        %v375 = vld [vmem:[%s217 + $0x1e8] sm:$0xff]
        %v376 = vld [vmem:[%s217 + $0x1f0] sm:$0xff]
        %v377 = vld [vmem:[%s217 + $0x1f8] sm:$0xff]
        %v378 = vld [vmem:[%s217 + $0x200] sm:$0xff]
        %v379 = vld [vmem:[%s217 + $0x208] sm:$0xff]
        %v380 = vld [vmem:[%s217 + $0x210] sm:$0xff]
        %v381 = vld [vmem:[%s217 + $0x218] sm:$0xff]
        %v382 = vld [vmem:[%s217 + $0x220] sm:$0xff]
        %v383 = vld [vmem:[%s217 + $0x228] sm:$0xff]
        %v384 = vld [vmem:[%s217 + $0x230] sm:$0xff]
        %v385 = vld [vmem:[%s217 + $0x238] sm:$0xff]
        %v386 = vld [vmem:[%s217 + $0x240] sm:$0xff]
        %v387 = vld [vmem:[%s217 + $0x248] sm:$0xff]
        %v388 = vld [vmem:[%s217 + $0x250] sm:$0xff]
        %v389 = vld [vmem:[%s217 + $0x258] sm:$0xff]
        %v390 = vld [vmem:[%s217 + $0x260] sm:$0xff]
        %v391 = vld [vmem:[%s217 + $0x268] sm:$0xff]
        %v392 = vld [vmem:[%s217 + $0x270] sm:$0xff]
        %v393 = vld [vmem:[%s217 + $0x278] sm:$0xff]
        %v394 = vld [vmem:[%s217 + $0x280] sm:$0xff]
        %v395 = vld [vmem:[%s217 + $0x288] sm:$0xff]
        %v396 = vld [vmem:[%s217 + $0x290] sm:$0xff]
        %v397 = vld [vmem:[%s217 + $0x298] sm:$0xff]
        %v398 = vld [vmem:[%s217 + $0x2a0] sm:$0xff]
        %v399 = vld [vmem:[%s217 + $0x2a8] sm:$0xff]
        %v400 = vld [vmem:[%s217 + $0x2b0] sm:$0xff]
        %v401 = vld [vmem:[%s217 + $0x2b8] sm:$0xff]
        %v402 = vld [vmem:[%s217 + $0x2c0] sm:$0xff]
        %v403 = vld [vmem:[%s217 + $0x2c8] sm:$0xff]
        %v404 = vld [vmem:[%s217 + $0x2d0] sm:$0xff]
        %v405 = vld [vmem:[%s217 + $0x2d8] sm:$0xff]
        %v406 = vld [vmem:[%s217 + $0x2e0] sm:$0xff]
        %v407 = vld [vmem:[%s217 + $0x2e8] sm:$0xff]
        %v408 = vld [vmem:[%s217 + $0x2f0] sm:$0xff]
        %v409 = vld [vmem:[%s217 + $0x2f8] sm:$0xff]
        %v410 = vld [vmem:[%s217 + $0x300] sm:$0xff]
        %v411 = vld [vmem:[%s217 + $0x308] sm:$0xff]
        %v412 = vld [vmem:[%s217 + $0x310] sm:$0xff]
        %v413 = vld [vmem:[%s217 + $0x318] sm:$0xff]
        %v414 = vld [vmem:[%s217 + $0x320] sm:$0xff]
        %v415 = vld [vmem:[%s217 + $0x328] sm:$0xff]
        %v416 = vld [vmem:[%s217 + $0x330] sm:$0xff]
        %v417 = vld [vmem:[%s217 + $0x338] sm:$0xff]
        %v418 = vld [vmem:[%s217 + $0x340] sm:$0xff]
        %v419 = vld [vmem:[%s217 + $0x348] sm:$0xff]
        %v420 = vld [vmem:[%s217 + $0x350] sm:$0xff]
        %v421 = vld [vmem:[%s217 + $0x358] sm:$0xff]
        %v422 = vld [vmem:[%s217 + $0x360] sm:$0xff]
        %v423 = vld [vmem:[%s217 + $0x368] sm:$0xff]
        %v424 = vld [vmem:[%s217 + $0x370] sm:$0xff]
        %v425 = vld [vmem:[%s217 + $0x378] sm:$0xff]
        %v426 = vld [vmem:[%s217 + $0x380] sm:$0xff]
        %v427 = vld [vmem:[%s217 + $0x388] sm:$0xff]
        %v428 = vld [vmem:[%s217 + $0x390] sm:$0xff]
        %v429 = vld [vmem:[%s217 + $0x398] sm:$0xff]
        %v430 = vld [vmem:[%s217 + $0x3a0] sm:$0xff]
        %v431 = vld [vmem:[%s217 + $0x3a8] sm:$0xff]
        %v432 = vld [vmem:[%s217 + $0x3b0] sm:$0xff]
        %v433 = vld [vmem:[%s217 + $0x3b8] sm:$0xff]
        %v434 = vld [vmem:[%s217 + $0x3c0] sm:$0xff]
        %v435 = vld [vmem:[%s217 + $0x3c8] sm:$0xff]
        %v436 = vld [vmem:[%s217 + $0x3d0] sm:$0xff]
        %v437 = vld [vmem:[%s217 + $0x3d8] sm:$0xff]
        %v438 = vld [vmem:[%s217 + $0x3e0] sm:$0xff]
        %v439 = vld [vmem:[%s217 + $0x3e8] sm:$0xff]
        %v440 = vld [vmem:[%s217 + $0x3f0] sm:$0xff]
        %v441 = vld [vmem:[%s217 + $0x3f8] sm:$0xff]
        %v442 = vld [vmem:[%s217 + $0x400] sm:$0xff]
        %v443 = vld [vmem:[%s217 + $0x408] sm:$0xff]
        %v444 = vld [vmem:[%s217 + $0x410] sm:$0xff]
        %v445 = vld [vmem:[%s217 + $0x418] sm:$0xff]
        %v446 = vld [vmem:[%s217 + $0x420] sm:$0xff]
        %v447 = vld [vmem:[%s217 + $0x428] sm:$0xff]
        %v448 = vld [vmem:[%s217 + $0x430] sm:$0xff]
        %v449 = vld [vmem:[%s217 + $0x438] sm:$0xff]
        %v450 = vld [vmem:[%s217 + $0x440] sm:$0xff]
        %v451 = vld [vmem:[%s217 + $0x448] sm:$0xff]
        %v452 = vld [vmem:[%s217 + $0x450] sm:$0xff]
        %v453 = vld [vmem:[%s217 + $0x458] sm:$0xff]
        %v454 = vld [vmem:[%s217 + $0x460] sm:$0xff]
        %v455 = vld [vmem:[%s217 + $0x468] sm:$0xff]
        %v456 = vld [vmem:[%s217 + $0x470] sm:$0xff]
        %v457 = vld [vmem:[%s217 + $0x478] sm:$0xff]
        %v458 = vld [vmem:[%s217 + $0x480] sm:$0xff]
        %v459 = vld [vmem:[%s217 + $0x488] sm:$0xff]
        %v460 = vld [vmem:[%s217 + $0x490] sm:$0xff]
        %v461 = vld [vmem:[%s217 + $0x498] sm:$0xff]
        %v462 = vld [vmem:[%s217 + $0x4a0] sm:$0xff]
        %v463 = vld [vmem:[%s217 + $0x4a8] sm:$0xff]
        %v464 = vld [vmem:[%s217 + $0x4b0] sm:$0xff]
        %v465 = vld [vmem:[%s217 + $0x4b8] sm:$0xff]
        %v466 = vld [vmem:[%s217 + $0x4c0] sm:$0xff]
        %v467 = vld [vmem:[%s217 + $0x4c8] sm:$0xff]
        %v468 = vld [vmem:[%s217 + $0x4d0] sm:$0xff]
        %v469 = vld [vmem:[%s217 + $0x4d8] sm:$0xff]
        %v470 = vld [vmem:[%s217 + $0x4e0] sm:$0xff]
        %v471 = vld [vmem:[%s217 + $0x4e8] sm:$0xff]
        %v472 = vld [vmem:[%s217 + $0x4f0] sm:$0xff]
        %v473 = vld [vmem:[%s217 + $0x4f8] sm:$0xff]
        %v474 = vld [vmem:[%s217 + $0x500] sm:$0xff]
        %v475 = vld [vmem:[%s217 + $0x508] sm:$0xff]
        %v476 = vld [vmem:[%s217 + $0x510] sm:$0xff]
        %v477 = vld [vmem:[%s217 + $0x518] sm:$0xff]
        %v478 = vld [vmem:[%s217 + $0x520] sm:$0xff]
        %v479 = vld [vmem:[%s217 + $0x528] sm:$0xff]
        %v480 = vld [vmem:[%s217 + $0x530] sm:$0xff]
        %v481 = vld [vmem:[%s217 + $0x538] sm:$0xff]
        %v482 = vld [vmem:[%s217 + $0x540] sm:$0xff]
        %v483 = vld [vmem:[%s217 + $0x548] sm:$0xff]
        %v484 = vld [vmem:[%s217 + $0x550] sm:$0xff]
        %v485 = vld [vmem:[%s217 + $0x558] sm:$0xff]
        %v486 = vld [vmem:[%s217 + $0x560] sm:$0xff]
        %v487 = vld [vmem:[%s217 + $0x568] sm:$0xff]
        %v488 = vld [vmem:[%s217 + $0x570] sm:$0xff]
        %v489 = vld [vmem:[%s217 + $0x578] sm:$0xff]
        %v490 = vld [vmem:[%s217 + $0x580] sm:$0xff]
        %v491 = vld [vmem:[%s217 + $0x588] sm:$0xff]
        %v492 = vld [vmem:[%s217 + $0x590] sm:$0xff]
        %v493 = vld [vmem:[%s217 + $0x598] sm:$0xff]
        %v494 = vld [vmem:[%s217 + $0x5a0] sm:$0xff]
        %v495 = vld [vmem:[%s217 + $0x5a8] sm:$0xff]
        %v496 = vld [vmem:[%s217 + $0x5b0] sm:$0xff]
        %v497 = vld [vmem:[%s217 + $0x5b8] sm:$0xff]
        %v498 = vld [vmem:[%s217 + $0x5c0] sm:$0xff]
        %v499 = vld [vmem:[%s217 + $0x5c8] sm:$0xff]
        %v500 = vld [vmem:[%s217 + $0x5d0] sm:$0xff]
        %v501 = vld [vmem:[%s217 + $0x5d8] sm:$0xff]
        %v502 = vld [vmem:[%s217 + $0x5e0] sm:$0xff]
        %v503 = vld [vmem:[%s217 + $0x5e8] sm:$0xff]
        %v504 = vld [vmem:[%s217 + $0x5f0] sm:$0xff]
        %v505 = vld [vmem:[%s217 + $0x5f8] sm:$0xff]
        %v506 = vld [vmem:[%s217 + $0x600] sm:$0xff]
        %v507 = vld [vmem:[%s217 + $0x608] sm:$0xff]
        %v508 = vld [vmem:[%s217 + $0x610] sm:$0xff]
        %v509 = vld [vmem:[%s217 + $0x618] sm:$0xff]
        %v510 = vld [vmem:[%s217 + $0x620] sm:$0xff]
        %v511 = vld [vmem:[%s217 + $0x628] sm:$0xff]
        %v512 = vld [vmem:[%s217 + $0x630] sm:$0xff]
        %v513 = vld [vmem:[%s217 + $0x638] sm:$0xff]
        %v514 = vld [vmem:[%s217 + $0x640] sm:$0xff]
        %v515 = vld [vmem:[%s217 + $0x648] sm:$0xff]
        %v516 = vld [vmem:[%s217 + $0x650] sm:$0xff]
        %v517 = vld [vmem:[%s217 + $0x658] sm:$0xff]
        %v518 = vld [vmem:[%s217 + $0x660] sm:$0xff]
        %v519 = vld [vmem:[%s217 + $0x668] sm:$0xff]
        %v520 = vld [vmem:[%s217 + $0x670] sm:$0xff]
        %v521 = vld [vmem:[%s217 + $0x678] sm:$0xff]
        %v522 = vld [vmem:[%s217 + $0x680] sm:$0xff]
        %v523 = vld [vmem:[%s217 + $0x688] sm:$0xff]
        %v524 = vld [vmem:[%s217 + $0x690] sm:$0xff]
        %v525 = vld [vmem:[%s217 + $0x698] sm:$0xff]
        %v526 = vld [vmem:[%s217 + $0x6a0] sm:$0xff]
        %v527 = vld [vmem:[%s217 + $0x6a8] sm:$0xff]
        %v528 = vld [vmem:[%s217 + $0x6b0] sm:$0xff]
        %v529 = vld [vmem:[%s217 + $0x6b8] sm:$0xff]
        %v530 = vld [vmem:[%s217 + $0x6c0] sm:$0xff]
        %v531 = vld [vmem:[%s217 + $0x6c8] sm:$0xff]
        %v532 = vld [vmem:[%s217 + $0x6d0] sm:$0xff]
        %v533 = vld [vmem:[%s217 + $0x6d8] sm:$0xff]
        %v534 = vld [vmem:[%s217 + $0x6e0] sm:$0xff]
        %v535 = vld [vmem:[%s217 + $0x6e8] sm:$0xff]
        %v536 = vld [vmem:[%s217 + $0x6f0] sm:$0xff]
        %v537 = vld [vmem:[%s217 + $0x6f8] sm:$0xff]
        %v538 = vld [vmem:[%s217 + $0x700] sm:$0xff]
        %v539 = vld [vmem:[%s217 + $0x708] sm:$0xff]
        %v540 = vld [vmem:[%s217 + $0x710] sm:$0xff]
        %v541 = vld [vmem:[%s217 + $0x718] sm:$0xff]
        %v542 = vld [vmem:[%s217 + $0x720] sm:$0xff]
        %v543 = vld [vmem:[%s217 + $0x728] sm:$0xff]
        %v544 = vld [vmem:[%s217 + $0x730] sm:$0xff]
        %v545 = vld [vmem:[%s217 + $0x738] sm:$0xff]
        %v546 = vld [vmem:[%s217 + $0x740] sm:$0xff]
        %v547 = vld [vmem:[%s217 + $0x748] sm:$0xff]
        %v548 = vld [vmem:[%s217 + $0x750] sm:$0xff]
        %v549 = vld [vmem:[%s217 + $0x758] sm:$0xff]
        %v550 = vld [vmem:[%s217 + $0x760] sm:$0xff]
        %v551 = vld [vmem:[%s217 + $0x768] sm:$0xff]
        %v552 = vld [vmem:[%s217 + $0x770] sm:$0xff]
        %v553 = vld [vmem:[%s217 + $0x778] sm:$0xff]
        %v554 = vld [vmem:[%s217 + $0x780] sm:$0xff]
        %v555 = vld [vmem:[%s217 + $0x788] sm:$0xff]
        %v556 = vld [vmem:[%s217 + $0x790] sm:$0xff]
        %v557 = vld [vmem:[%s217 + $0x798] sm:$0xff]
        %v558 = vld [vmem:[%s217 + $0x7a0] sm:$0xff]
        %v559 = vld [vmem:[%s217 + $0x7a8] sm:$0xff]
        %v560 = vld [vmem:[%s217 + $0x7b0] sm:$0xff]
        %v561 = vld [vmem:[%s217 + $0x7b8] sm:$0xff]
        %v562 = vld [vmem:[%s217 + $0x7c0] sm:$0xff]
        %v563 = vld [vmem:[%s217 + $0x7c8] sm:$0xff]
        %v564 = vld [vmem:[%s217 + $0x7d0] sm:$0xff]
        %v565 = vld [vmem:[%s217 + $0x7d8] sm:$0xff]
        %v566 = vld [vmem:[%s217 + $0x7e0] sm:$0xff]
        %v567 = vld [vmem:[%s217 + $0x7e8] sm:$0xff]
        %v568 = vld [vmem:[%s217 + $0x7f0] sm:$0xff]
        %v569 = vld [vmem:[%s217 + $0x7f8] sm:$0xff]
        %v570 = vld [vmem:[%s217 + $0x800] sm:$0xff]
        %v571 = vld [vmem:[%s217 + $0x808] sm:$0xff]
        %v572 = vld [vmem:[%s217 + $0x810] sm:$0xff]
        %v573 = vld [vmem:[%s217 + $0x818] sm:$0xff]
        %v574 = vld [vmem:[%s217 + $0x820] sm:$0xff]
        %v575 = vld [vmem:[%s217 + $0x828] sm:$0xff]
        %v576 = vld [vmem:[%s217 + $0x830] sm:$0xff]
        %v577 = vld [vmem:[%s217 + $0x838] sm:$0xff]
        %v578 = vld [vmem:[%s217 + $0x840] sm:$0xff]
        %v579 = vld [vmem:[%s217 + $0x848] sm:$0xff]
        %v580 = vld [vmem:[%s217 + $0x850] sm:$0xff]
        %v581 = vld [vmem:[%s217 + $0x858] sm:$0xff]
        %v582 = vld [vmem:[%s217 + $0x860] sm:$0xff]
        %v583 = vld [vmem:[%s217 + $0x868] sm:$0xff]
        %v584 = vld [vmem:[%s217 + $0x870] sm:$0xff]
        %v585 = vld [vmem:[%s217 + $0x878] sm:$0xff]
        %v586 = vld [vmem:[%s217 + $0x880] sm:$0xff]
        %v587 = vld [vmem:[%s217 + $0x888] sm:$0xff]
        %v588 = vld [vmem:[%s217 + $0x890] sm:$0xff]
        %v589 = vld [vmem:[%s217 + $0x898] sm:$0xff]
        %v590 = vld [vmem:[%s217 + $0x8a0] sm:$0xff]
        %v591 = vld [vmem:[%s217 + $0x8a8] sm:$0xff]
        %v592 = vld [vmem:[%s217 + $0x8b0] sm:$0xff]
        %v593 = vld [vmem:[%s217 + $0x8b8] sm:$0xff]
        %v594 = vld [vmem:[%s217 + $0x8c0] sm:$0xff]
        %v595 = vld [vmem:[%s217 + $0x8c8] sm:$0xff]
        %v596 = vld [vmem:[%s217 + $0x8d0] sm:$0xff]
        %v597 = vld [vmem:[%s217 + $0x8d8] sm:$0xff]
        %v598 = vld [vmem:[%s217 + $0x8e0] sm:$0xff]
        %v599 = vld [vmem:[%s217 + $0x8e8] sm:$0xff]
        %v600 = vld [vmem:[%s217 + $0x8f0] sm:$0xff]
        %v601 = vld [vmem:[%s217 + $0x8f8] sm:$0xff]
        %v602 = vld [vmem:[%s217 + $0x900] sm:$0xff]
        %v603 = vld [vmem:[%s217 + $0x908] sm:$0xff]
        %v604 = vld [vmem:[%s217 + $0x910] sm:$0xff]
        %v605 = vld [vmem:[%s217 + $0x918] sm:$0xff]
        %v606 = vld [vmem:[%s217 + $0x920] sm:$0xff]
        %v607 = vld [vmem:[%s217 + $0x928] sm:$0xff]
        %v608 = vld [vmem:[%s217 + $0x930] sm:$0xff]
        %v609 = vld [vmem:[%s217 + $0x938] sm:$0xff]
        %v610 = vld [vmem:[%s217 + $0x940] sm:$0xff]
        %v611 = vld [vmem:[%s217 + $0x948] sm:$0xff]
        %v612 = vld [vmem:[%s217 + $0x950] sm:$0xff]
        %v613 = vld [vmem:[%s217 + $0x958] sm:$0xff]
        %v614 = vld [vmem:[%s217 + $0x960] sm:$0xff]
        %v615 = vld [vmem:[%s217 + $0x968] sm:$0xff]
        %v616 = vld [vmem:[%s217 + $0x970] sm:$0xff]
        %v617 = vld [vmem:[%s217 + $0x978] sm:$0xff]
        %v618 = vld [vmem:[%s217 + $0x980] sm:$0xff]
        %v619 = vld [vmem:[%s217 + $0x988] sm:$0xff]
        %v620 = vld [vmem:[%s217 + $0x990] sm:$0xff]
        %v621 = vld [vmem:[%s217 + $0x998] sm:$0xff]
        %v622 = vld [vmem:[%s217 + $0x9a0] sm:$0xff]
        %v623 = vld [vmem:[%s217 + $0x9a8] sm:$0xff]
        %v624 = vld [vmem:[%s217 + $0x9b0] sm:$0xff]
        %v625 = vld [vmem:[%s217 + $0x9b8] sm:$0xff]
        %v626 = vld [vmem:[%s217 + $0x9c0] sm:$0xff]
        %v627 = vld [vmem:[%s217 + $0x9c8] sm:$0xff]
        %v628 = vld [vmem:[%s217 + $0x9d0] sm:$0xff]
        %v629 = vld [vmem:[%s217 + $0x9d8] sm:$0xff]
        %v630 = vld [vmem:[%s217 + $0x9e0] sm:$0xff]
        %v631 = vld [vmem:[%s217 + $0x9e8] sm:$0xff]
        %v632 = vld [vmem:[%s217 + $0x9f0] sm:$0xff]
        %v633 = vld [vmem:[%s217 + $0x9f8] sm:$0xff]
        %v634 = vld [vmem:[%s217 + $0xa00] sm:$0xff]
        %v635 = vld [vmem:[%s217 + $0xa08] sm:$0xff]
        %v636 = vld [vmem:[%s217 + $0xa10] sm:$0xff]
        %v637 = vld [vmem:[%s217 + $0xa18] sm:$0xff]
        %v638 = vld [vmem:[%s217 + $0xa20] sm:$0xff]
        %v639 = vld [vmem:[%s217 + $0xa28] sm:$0xff]
        %v640 = vld [vmem:[%s217 + $0xa30] sm:$0xff]
        %v641 = vld [vmem:[%s217 + $0xa38] sm:$0xff]
        %v642 = vld [vmem:[%s217 + $0xa40] sm:$0xff]
        %v643 = vld [vmem:[%s217 + $0xa48] sm:$0xff]
        %v644 = vld [vmem:[%s217 + $0xa50] sm:$0xff]
        %v645 = vld [vmem:[%s217 + $0xa58] sm:$0xff]
        %v646 = vld [vmem:[%s217 + $0xa60] sm:$0xff]
        %v647 = vld [vmem:[%s217 + $0xa68] sm:$0xff]
        %v648 = vld [vmem:[%s217 + $0xa70] sm:$0xff]
        %v649 = vld [vmem:[%s217 + $0xa78] sm:$0xff]
        %v650 = vld [vmem:[%s217 + $0xa80] sm:$0xff]
        %v651 = vld [vmem:[%s217 + $0xa88] sm:$0xff]
        %v652 = vld [vmem:[%s217 + $0xa90] sm:$0xff]
        %v653 = vld [vmem:[%s217 + $0xa98] sm:$0xff]
        %v654 = vld [vmem:[%s217 + $0xaa0] sm:$0xff]
        %v655 = vld [vmem:[%s217 + $0xaa8] sm:$0xff]
        %v656 = vld [vmem:[%s217 + $0xab0] sm:$0xff]
        %v657 = vld [vmem:[%s217 + $0xab8] sm:$0xff]
        %v658 = vld [vmem:[%s217 + $0xac0] sm:$0xff]
        %v659 = vld [vmem:[%s217 + $0xac8] sm:$0xff]
        %v660 = vld [vmem:[%s217 + $0xad0] sm:$0xff]
        %v661 = vld [vmem:[%s217 + $0xad8] sm:$0xff]
        %v662 = vld [vmem:[%s217 + $0xae0] sm:$0xff]
        %v663 = vld [vmem:[%s217 + $0xae8] sm:$0xff]
        %v664 = vld [vmem:[%s217 + $0xaf0] sm:$0xff]
        %v665 = vld [vmem:[%s217 + $0xaf8] sm:$0xff]
        %v666 = vld [vmem:[%s217 + $0xb00] sm:$0xff]
        %v667 = vld [vmem:[%s217 + $0xb08] sm:$0xff]
        %v668 = vld [vmem:[%s217 + $0xb10] sm:$0xff]
        %v669 = vld [vmem:[%s217 + $0xb18] sm:$0xff]
        %v670 = vld [vmem:[%s217 + $0xb20] sm:$0xff]
        %v671 = vld [vmem:[%s217 + $0xb28] sm:$0xff]
        %v672 = vld [vmem:[%s217 + $0xb30] sm:$0xff]
        %v673 = vld [vmem:[%s217 + $0xb38] sm:$0xff]
        %v674 = vld [vmem:[%s217 + $0xb40] sm:$0xff]
        %v675 = vld [vmem:[%s217 + $0xb48] sm:$0xff]
        %v676 = vld [vmem:[%s217 + $0xb50] sm:$0xff]
        %v677 = vld [vmem:[%s217 + $0xb58] sm:$0xff]
        %v678 = vld [vmem:[%s217 + $0xb60] sm:$0xff]
        %v679 = vld [vmem:[%s217 + $0xb68] sm:$0xff]
        %v680 = vld [vmem:[%s217 + $0xb70] sm:$0xff]
        %v681 = vld [vmem:[%s217 + $0xb78] sm:$0xff]
        %v682 = vld [vmem:[%s217 + $0xb80] sm:$0xff]
        %v683 = vld [vmem:[%s217 + $0xb88] sm:$0xff]
        %v684 = vld [vmem:[%s217 + $0xb90] sm:$0xff]
        %v685 = vld [vmem:[%s217 + $0xb98] sm:$0xff]
        %v686 = vld [vmem:[%s217 + $0xba0] sm:$0xff]
        %v687 = vld [vmem:[%s217 + $0xba8] sm:$0xff]
        %v688 = vld [vmem:[%s217 + $0xbb0] sm:$0xff]
        %v689 = vld [vmem:[%s217 + $0xbb8] sm:$0xff]
        %v690 = vld [vmem:[%s217 + $0xbc0] sm:$0xff]
        %v691 = vld [vmem:[%s217 + $0xbc8] sm:$0xff]
        %v692 = vld [vmem:[%s217 + $0xbd0] sm:$0xff]
        %v693 = vld [vmem:[%s217 + $0xbd8] sm:$0xff]
        %v694 = vld [vmem:[%s217 + $0xbe0] sm:$0xff]
        %v695 = vld [vmem:[%s217 + $0xbe8] sm:$0xff]
        %v696 = vld [vmem:[%s217 + $0xbf0] sm:$0xff]
        %v697 = vld [vmem:[%s217 + $0xbf8] sm:$0xff]
        %v698 = vld [vmem:[%s217 + $0xc00] sm:$0xff]
        %v699 = vld [vmem:[%s217 + $0xc08] sm:$0xff]
        %v700 = vld [vmem:[%s217 + $0xc10] sm:$0xff]
        %v701 = vld [vmem:[%s217 + $0xc18] sm:$0xff]
        %v702 = vld [vmem:[%s217 + $0xc20] sm:$0xff]
        %v703 = vld [vmem:[%s217 + $0xc28] sm:$0xff]
        %v704 = vld [vmem:[%s217 + $0xc30] sm:$0xff]
        %v705 = vld [vmem:[%s217 + $0xc38] sm:$0xff]
        %v706 = vld [vmem:[%s217 + $0xc40] sm:$0xff]
        %v707 = vld [vmem:[%s217 + $0xc48] sm:$0xff]
        %v708 = vld [vmem:[%s217 + $0xc50] sm:$0xff]
        %v709 = vld [vmem:[%s217 + $0xc58] sm:$0xff]
        %v710 = vld [vmem:[%s217 + $0xc60] sm:$0xff]
        %v711 = vld [vmem:[%s217 + $0xc68] sm:$0xff]
        %v712 = vld [vmem:[%s217 + $0xc70] sm:$0xff]
        %v713 = vld [vmem:[%s217 + $0xc78] sm:$0xff]
        %v714 = vld [vmem:[%s217 + $0xc80] sm:$0xff]
        %v715 = vld [vmem:[%s217 + $0xc88] sm:$0xff]
        %v716 = vld [vmem:[%s217 + $0xc90] sm:$0xff]
        %v717 = vld [vmem:[%s217 + $0xc98] sm:$0xff]
        %v718 = vld [vmem:[%s217 + $0xca0] sm:$0xff]
        %v719 = vld [vmem:[%s217 + $0xca8] sm:$0xff]
        %v720 = vld [vmem:[%s217 + $0xcb0] sm:$0xff]
        %v721 = vld [vmem:[%s217 + $0xcb8] sm:$0xff]
        %v722 = vld [vmem:[%s217 + $0xcc0] sm:$0xff]
        %v723 = vld [vmem:[%s217 + $0xcc8] sm:$0xff]
        %v724 = vld [vmem:[%s217 + $0xcd0] sm:$0xff]
        %v725 = vld [vmem:[%s217 + $0xcd8] sm:$0xff]
        %v726 = vld [vmem:[%s217 + $0xce0] sm:$0xff]
        %v727 = vld [vmem:[%s217 + $0xce8] sm:$0xff]
        %v728 = vld [vmem:[%s217 + $0xcf0] sm:$0xff]
        %v729 = vld [vmem:[%s217 + $0xcf8] sm:$0xff]
        %v730 = vld [vmem:[%s217 + $0xd00] sm:$0xff]
        %v731 = vld [vmem:[%s217 + $0xd08] sm:$0xff]
        %v732 = vld [vmem:[%s217 + $0xd10] sm:$0xff]
        %v733 = vld [vmem:[%s217 + $0xd18] sm:$0xff]
        %v734 = vld [vmem:[%s217 + $0xd20] sm:$0xff]
        %v735 = vld [vmem:[%s217 + $0xd28] sm:$0xff]
        %v736 = vld [vmem:[%s217 + $0xd30] sm:$0xff]
        %v737 = vld [vmem:[%s217 + $0xd38] sm:$0xff]
        %v738 = vld [vmem:[%s217 + $0xd40] sm:$0xff]
        %v739 = vld [vmem:[%s217 + $0xd48] sm:$0xff]
        %v740 = vld [vmem:[%s217 + $0xd50] sm:$0xff]
        %v741 = vld [vmem:[%s217 + $0xd58] sm:$0xff]
        %v742 = vld [vmem:[%s217 + $0xd60] sm:$0xff]
        %v743 = vld [vmem:[%s217 + $0xd68] sm:$0xff]
        %v744 = vld [vmem:[%s217 + $0xd70] sm:$0xff]
        %v745 = vld [vmem:[%s217 + $0xd78] sm:$0xff]
        %v746 = vld [vmem:[%s217 + $0xd80] sm:$0xff]
        %v747 = vld [vmem:[%s217 + $0xd88] sm:$0xff]
        %v748 = vld [vmem:[%s217 + $0xd90] sm:$0xff]
        %v749 = vld [vmem:[%s217 + $0xd98] sm:$0xff]
        %v750 = vld [vmem:[%s217 + $0xda0] sm:$0xff]
        %v751 = vld [vmem:[%s217 + $0xda8] sm:$0xff]
        %v752 = vld [vmem:[%s217 + $0xdb0] sm:$0xff]
        %v753 = vld [vmem:[%s217 + $0xdb8] sm:$0xff]
        %v754 = vld [vmem:[%s217 + $0xdc0] sm:$0xff]
        %v755 = vld [vmem:[%s217 + $0xdc8] sm:$0xff]
        %v756 = vld [vmem:[%s217 + $0xdd0] sm:$0xff]
        %v757 = vld [vmem:[%s217 + $0xdd8] sm:$0xff]
        %v758 = vld [vmem:[%s217 + $0xde0] sm:$0xff]
        %v759 = vld [vmem:[%s217 + $0xde8] sm:$0xff]
        %v760 = vld [vmem:[%s217 + $0xdf0] sm:$0xff]
        %v761 = vld [vmem:[%s217 + $0xdf8] sm:$0xff]
        %v762 = vld [vmem:[%s217 + $0xe00] sm:$0xff]
        %v763 = vld [vmem:[%s217 + $0xe08] sm:$0xff]
        %v764 = vld [vmem:[%s217 + $0xe10] sm:$0xff]
        %v765 = vld [vmem:[%s217 + $0xe18] sm:$0xff]
        %v766 = vld [vmem:[%s217 + $0xe20] sm:$0xff]
        %v767 = vld [vmem:[%s217 + $0xe28] sm:$0xff]
        %v768 = vld [vmem:[%s217 + $0xe30] sm:$0xff]
        %v769 = vld [vmem:[%s217 + $0xe38] sm:$0xff]
        %v770 = vld [vmem:[%s217 + $0xe40] sm:$0xff]
        %v771 = vld [vmem:[%s217 + $0xe48] sm:$0xff]
        %v772 = vld [vmem:[%s217 + $0xe50] sm:$0xff]
        %v773 = vld [vmem:[%s217 + $0xe58] sm:$0xff]
        %v774 = vld [vmem:[%s217 + $0xe60] sm:$0xff]
        %v775 = vld [vmem:[%s217 + $0xe68] sm:$0xff]
        %v776 = vld [vmem:[%s217 + $0xe70] sm:$0xff]
        %v777 = vld [vmem:[%s217 + $0xe78] sm:$0xff]
        %v778 = vld [vmem:[%s217 + $0xe80] sm:$0xff]
        %v779 = vld [vmem:[%s217 + $0xe88] sm:$0xff]
        %v780 = vld [vmem:[%s217 + $0xe90] sm:$0xff]
        %v781 = vld [vmem:[%s217 + $0xe98] sm:$0xff]
        %v782 = vld [vmem:[%s217 + $0xea0] sm:$0xff]
        %v783 = vld [vmem:[%s217 + $0xea8] sm:$0xff]
        %v784 = vld [vmem:[%s217 + $0xeb0] sm:$0xff]
        %v785 = vld [vmem:[%s217 + $0xeb8] sm:$0xff]
        %v786 = vld [vmem:[%s217 + $0xec0] sm:$0xff]
        %v787 = vld [vmem:[%s217 + $0xec8] sm:$0xff]
        %v788 = vld [vmem:[%s217 + $0xed0] sm:$0xff]
        %v789 = vld [vmem:[%s217 + $0xed8] sm:$0xff]
        %v790 = vld [vmem:[%s217 + $0xee0] sm:$0xff]
        %v791 = vld [vmem:[%s217 + $0xee8] sm:$0xff]
        %v792 = vld [vmem:[%s217 + $0xef0] sm:$0xff]
        %v793 = vld [vmem:[%s217 + $0xef8] sm:$0xff]
        %v794 = vld [vmem:[%s217 + $0xf00] sm:$0xff]
        %v795 = vld [vmem:[%s217 + $0xf08] sm:$0xff]
        %v796 = vld [vmem:[%s217 + $0xf10] sm:$0xff]
        %v797 = vld [vmem:[%s217 + $0xf18] sm:$0xff]
        %v798 = vld [vmem:[%s217 + $0xf20] sm:$0xff]
        %v799 = vld [vmem:[%s217 + $0xf28] sm:$0xff]
        %v800 = vld [vmem:[%s217 + $0xf30] sm:$0xff]
        %v801 = vld [vmem:[%s217 + $0xf38] sm:$0xff]
        %v802 = vld [vmem:[%s217 + $0xf40] sm:$0xff]
        %v803 = vld [vmem:[%s217 + $0xf48] sm:$0xff]
        %v804 = vld [vmem:[%s217 + $0xf50] sm:$0xff]
        %v805 = vld [vmem:[%s217 + $0xf58] sm:$0xff]
        %v806 = vld [vmem:[%s217 + $0xf60] sm:$0xff]
        %v807 = vld [vmem:[%s217 + $0xf68] sm:$0xff]
        %v808 = vld [vmem:[%s217 + $0xf70] sm:$0xff]
        %v809 = vld [vmem:[%s217 + $0xf78] sm:$0xff]
        %v810 = vld [vmem:[%s217 + $0xf80] sm:$0xff]
        %v811 = vld [vmem:[%s217 + $0xf88] sm:$0xff]
        %v812 = vld [vmem:[%s217 + $0xf90] sm:$0xff]
        %v813 = vld [vmem:[%s217 + $0xf98] sm:$0xff]
        %v814 = vld [vmem:[%s217 + $0xfa0] sm:$0xff]
        %v815 = vld [vmem:[%s217 + $0xfa8] sm:$0xff]
        %v816 = vld [vmem:[%s217 + $0xfb0] sm:$0xff]
        %v817 = vld [vmem:[%s217 + $0xfb8] sm:$0xff]
        %v818 = vld [vmem:[%s217 + $0xfc0] sm:$0xff]
        %v819 = vld [vmem:[%s217 + $0xfc8] sm:$0xff]
        %v820 = vld [vmem:[%s217 + $0xfd0] sm:$0xff]
        %v821 = vld [vmem:[%s217 + $0xfd8] sm:$0xff]
        %v822 = vld [vmem:[%s217 + $0xfe0] sm:$0xff]
        %v823 = vld [vmem:[%s217 + $0xfe8] sm:$0xff]
        %v824 = vld [vmem:[%s217 + $0xff0] sm:$0xff]
        %v825 = vld [vmem:[%s217 + $0xff8] sm:$0xff]
        %v826 = vld [vmem:[%s217 + $0x1000] sm:$0xff]
        %v827 = vld [vmem:[%s217 + $0x1008] sm:$0xff]
        %v828 = vld [vmem:[%s217 + $0x1010] sm:$0xff]
        %v829 = vld [vmem:[%s217 + $0x1018] sm:$0xff]
        %v830 = vld [vmem:[%s217 + $0x1020] sm:$0xff]
        %v831 = vld [vmem:[%s217 + $0x1028] sm:$0xff]
        %v832 = vld [vmem:[%s217 + $0x1030] sm:$0xff]
        %v833 = vld [vmem:[%s217 + $0x1038] sm:$0xff]
        %v834 = vld [vmem:[%s217 + $0x1040] sm:$0xff]
        %v835 = vld [vmem:[%s217 + $0x1048] sm:$0xff]
        %v836 = vld [vmem:[%s217 + $0x1050] sm:$0xff]
        %v837 = vld [vmem:[%s217 + $0x1058] sm:$0xff]
        %v838 = vld [vmem:[%s217 + $0x1060] sm:$0xff]
        %v839 = vld [vmem:[%s217 + $0x1068] sm:$0xff]
        %v840 = vld [vmem:[%s217 + $0x1070] sm:$0xff]
        %v841 = vld [vmem:[%s217 + $0x1078] sm:$0xff]
        %v842 = vld [vmem:[%s217 + $0x1080] sm:$0xff]
        %v843 = vld [vmem:[%s217 + $0x1088] sm:$0xff]
        %v844 = vld [vmem:[%s217 + $0x1090] sm:$0xff]
        %v845 = vld [vmem:[%s217 + $0x1098] sm:$0xff]
        %v846 = vld [vmem:[%s217 + $0x10a0] sm:$0xff]
        %v847 = vld [vmem:[%s217 + $0x10a8] sm:$0xff]
        %v848 = vld [vmem:[%s217 + $0x10b0] sm:$0xff]
        %v849 = vld [vmem:[%s217 + $0x10b8] sm:$0xff]
        %v850 = vld [vmem:[%s217 + $0x10c0] sm:$0xff]
        %v851 = vld [vmem:[%s217 + $0x10c8] sm:$0xff]
        %v852 = vld [vmem:[%s217 + $0x10d0] sm:$0xff]
        %v853 = vld [vmem:[%s217 + $0x10d8] sm:$0xff]
        %v854 = vld [vmem:[%s217 + $0x10e0] sm:$0xff]
        %v855 = vld [vmem:[%s217 + $0x10e8] sm:$0xff]
        %v856 = vld [vmem:[%s217 + $0x10f0] sm:$0xff]
        %v857 = vld [vmem:[%s217 + $0x10f8] sm:$0xff]
        %v858 = vld [vmem:[%s217 + $0x1100] sm:$0xff]
        %v859 = vld [vmem:[%s217 + $0x1108] sm:$0xff]
        %v860 = vld [vmem:[%s217 + $0x1110] sm:$0xff]
        %v861 = vld [vmem:[%s217 + $0x1118] sm:$0xff]
        %v862 = vld [vmem:[%s217 + $0x1120] sm:$0xff]
        %v863 = vld [vmem:[%s217 + $0x1128] sm:$0xff]
        %v864 = vld [vmem:[%s217 + $0x1130] sm:$0xff]
        %v865 = vld [vmem:[%s217 + $0x1138] sm:$0xff]
        %v866 = vld [vmem:[%s217 + $0x1140] sm:$0xff]
        %v867 = vld [vmem:[%s217 + $0x1148] sm:$0xff]
        %v868 = vld [vmem:[%s217 + $0x1150] sm:$0xff]
        %v869 = vld [vmem:[%s217 + $0x1158] sm:$0xff]
        %v870 = vld [vmem:[%s217 + $0x1160] sm:$0xff]
        %v871 = vld [vmem:[%s217 + $0x1168] sm:$0xff]
        %v872 = vld [vmem:[%s217 + $0x1170] sm:$0xff]
        %v873 = vld [vmem:[%s217 + $0x1178] sm:$0xff]
        %v874 = vld [vmem:[%s217 + $0x1180] sm:$0xff]
        %v875 = vld [vmem:[%s217 + $0x1188] sm:$0xff]
        %v876 = vld [vmem:[%s217 + $0x1190] sm:$0xff]
        %v877 = vld [vmem:[%s217 + $0x1198] sm:$0xff]
        %v878 = vld [vmem:[%s217 + $0x11a0] sm:$0xff]
        %v879 = vld [vmem:[%s217 + $0x11a8] sm:$0xff]
        %v880 = vld [vmem:[%s217 + $0x11b0] sm:$0xff]
        %v881 = vld [vmem:[%s217 + $0x11b8] sm:$0xff]
        %v882 = vld [vmem:[%s217 + $0x11c0] sm:$0xff]
        %v883 = vld [vmem:[%s217 + $0x11c8] sm:$0xff]
        %v884 = vld [vmem:[%s217 + $0x11d0] sm:$0xff]
        %v885 = vld [vmem:[%s217 + $0x11d8] sm:$0xff]
        %v886 = vld [vmem:[%s217 + $0x11e0] sm:$0xff]
        %v887 = vld [vmem:[%s217 + $0x11e8] sm:$0xff]
        %v888 = vld [vmem:[%s217 + $0x11f0] sm:$0xff]
        %v889 = vld [vmem:[%s217 + $0x11f8] sm:$0xff]
        %v890 = vld [vmem:[%s217 + $0x1200] sm:$0xff]
        %v891 = vld [vmem:[%s217 + $0x1208] sm:$0xff]
        %v892 = vld [vmem:[%s217 + $0x1210] sm:$0xff]
        %v893 = vld [vmem:[%s217 + $0x1218] sm:$0xff]
        %v894 = vld [vmem:[%s217 + $0x1220] sm:$0xff]
        %v895 = vld [vmem:[%s217 + $0x1228] sm:$0xff]
        %v896 = vld [vmem:[%s217 + $0x1230] sm:$0xff]
        %v897 = vld [vmem:[%s217 + $0x1238] sm:$0xff]
        %v898 = vld [vmem:[%s217 + $0x1240] sm:$0xff]
        %v899 = vld [vmem:[%s217 + $0x1248] sm:$0xff]
        %v900 = vld [vmem:[%s217 + $0x1250] sm:$0xff]
        %v901 = vld [vmem:[%s217 + $0x1258] sm:$0xff]
        %v902 = vld [vmem:[%s217 + $0x1260] sm:$0xff]
        %v903 = vld [vmem:[%s217 + $0x1268] sm:$0xff]
        %v904 = vld [vmem:[%s217 + $0x1270] sm:$0xff]
        %v905 = vld [vmem:[%s217 + $0x1278] sm:$0xff]
        %v906 = vld [vmem:[%s217 + $0x1280] sm:$0xff]
        %v907 = vld [vmem:[%s217 + $0x1288] sm:$0xff]
        %v908 = vld [vmem:[%s217 + $0x1290] sm:$0xff]
        %v909 = vld [vmem:[%s217 + $0x1298] sm:$0xff]
        %v910 = vld [vmem:[%s217 + $0x12a0] sm:$0xff]
        %v911 = vld [vmem:[%s217 + $0x12a8] sm:$0xff]
        %v912 = vld [vmem:[%s217 + $0x12b0] sm:$0xff]
        %v913 = vld [vmem:[%s217 + $0x12b8] sm:$0xff]
        %v914 = vld [vmem:[%s217 + $0x12c0] sm:$0xff]
        %v915 = vld [vmem:[%s217 + $0x12c8] sm:$0xff]
        %v916 = vld [vmem:[%s217 + $0x12d0] sm:$0xff]
        %v917 = vld [vmem:[%s217 + $0x12d8] sm:$0xff]
        %v918 = vld [vmem:[%s217 + $0x12e0] sm:$0xff]
        %v919 = vld [vmem:[%s217 + $0x12e8] sm:$0xff]
        %v920 = vld [vmem:[%s217 + $0x12f0] sm:$0xff]
        %v921 = vld [vmem:[%s217 + $0x12f8] sm:$0xff]
        %v922 = vld [vmem:[%s217 + $0x1300] sm:$0xff]
        %v923 = vld [vmem:[%s217 + $0x1308] sm:$0xff]
        %v924 = vld [vmem:[%s217 + $0x1310] sm:$0xff]
        %v925 = vld [vmem:[%s217 + $0x1318] sm:$0xff]
        %v926 = vld [vmem:[%s217 + $0x1320] sm:$0xff]
        %v927 = vld [vmem:[%s217 + $0x1328] sm:$0xff]
        %v928 = vld [vmem:[%s217 + $0x1330] sm:$0xff]
        %v929 = vld [vmem:[%s217 + $0x1338] sm:$0xff]
        %v930 = vld [vmem:[%s217 + $0x1340] sm:$0xff]
        %v931 = vld [vmem:[%s217 + $0x1348] sm:$0xff]
        %v932 = vld [vmem:[%s217 + $0x1350] sm:$0xff]
        %v933 = vld [vmem:[%s217 + $0x1358] sm:$0xff]
        %v934 = vld [vmem:[%s217 + $0x1360] sm:$0xff]
        %v935 = vld [vmem:[%s217 + $0x1368] sm:$0xff]
        %v936 = vld [vmem:[%s217 + $0x1370] sm:$0xff]
        %v937 = vld [vmem:[%s217 + $0x1378] sm:$0xff]
        %v938 = vld [vmem:[%s217 + $0x1380] sm:$0xff]
        %v939 = vld [vmem:[%s217 + $0x1388] sm:$0xff]
        %v940 = vld [vmem:[%s217 + $0x1390] sm:$0xff]
        %v941 = vld [vmem:[%s217 + $0x1398] sm:$0xff]
        %v942 = vld [vmem:[%s217 + $0x13a0] sm:$0xff]
        %v943 = vld [vmem:[%s217 + $0x13a8] sm:$0xff]
        %v944 = vld [vmem:[%s217 + $0x13b0] sm:$0xff]
        %v945 = vld [vmem:[%s217 + $0x13b8] sm:$0xff]
        %v946 = vld [vmem:[%s217 + $0x13c0] sm:$0xff]
        %v947 = vld [vmem:[%s217 + $0x13c8] sm:$0xff]
        %v948 = vld [vmem:[%s217 + $0x13d0] sm:$0xff]
        %v949 = vld [vmem:[%s217 + $0x13d8] sm:$0xff]
        %v950 = vld [vmem:[%s217 + $0x13e0] sm:$0xff]
        %v951 = vld [vmem:[%s217 + $0x13e8] sm:$0xff]
        %v952 = vld [vmem:[%s217 + $0x13f0] sm:$0xff]
        %v953 = vld [vmem:[%s217 + $0x13f8] sm:$0xff]
        %v954 = vld [vmem:[%s217 + $0x1400] sm:$0xff]
        %v955 = vld [vmem:[%s217 + $0x1408] sm:$0xff]
        %v956 = vld [vmem:[%s217 + $0x1410] sm:$0xff]
        %v957 = vld [vmem:[%s217 + $0x1418] sm:$0xff]
        %v958 = vld [vmem:[%s217 + $0x1420] sm:$0xff]
        %v959 = vld [vmem:[%s217 + $0x1428] sm:$0xff]
        %v960 = vld [vmem:[%s217 + $0x1430] sm:$0xff]
        %v961 = vld [vmem:[%s217 + $0x1438] sm:$0xff]
        %v962 = vld [vmem:[%s217 + $0x1440] sm:$0xff]
        %v963 = vld [vmem:[%s217 + $0x1448] sm:$0xff]
        %v964 = vld [vmem:[%s217 + $0x1450] sm:$0xff]
        %v965 = vld [vmem:[%s217 + $0x1458] sm:$0xff]
        %v966 = vld [vmem:[%s217 + $0x1460] sm:$0xff]
        %v967 = vld [vmem:[%s217 + $0x1468] sm:$0xff]
        %v968 = vld [vmem:[%s217 + $0x1470] sm:$0xff]
        %v969 = vld [vmem:[%s217 + $0x1478] sm:$0xff]
        %v970 = vld [vmem:[%s217 + $0x1480] sm:$0xff]
        %v971 = vld [vmem:[%s217 + $0x1488] sm:$0xff]
        %v972 = vld [vmem:[%s217 + $0x1490] sm:$0xff]
        %v973 = vld [vmem:[%s217 + $0x1498] sm:$0xff]
        %v974 = vld [vmem:[%s217 + $0x14a0] sm:$0xff]
        %v975 = vld [vmem:[%s217 + $0x14a8] sm:$0xff]
        %v976 = vld [vmem:[%s217 + $0x14b0] sm:$0xff]
        %v977 = vld [vmem:[%s217 + $0x14b8] sm:$0xff]
        %v978 = vld [vmem:[%s217 + $0x14c0] sm:$0xff]
        %v979 = vld [vmem:[%s217 + $0x14c8] sm:$0xff]
        %v980 = vld [vmem:[%s217 + $0x14d0] sm:$0xff]
        %v981 = vld [vmem:[%s217 + $0x14d8] sm:$0xff]
        %v982 = vld [vmem:[%s217 + $0x14e0] sm:$0xff]
        %v983 = vld [vmem:[%s217 + $0x14e8] sm:$0xff]
        %v984 = vld [vmem:[%s217 + $0x14f0] sm:$0xff]
        %v985 = vld [vmem:[%s217 + $0x14f8] sm:$0xff]
        %v986 = vld [vmem:[%s217 + $0x1500] sm:$0xff]
        %v987 = vld [vmem:[%s217 + $0x1508] sm:$0xff]
        %v988 = vld [vmem:[%s217 + $0x1510] sm:$0xff]
        %v989 = vld [vmem:[%s217 + $0x1518] sm:$0xff]
        %v990 = vld [vmem:[%s217 + $0x1520] sm:$0xff]
        %v991 = vld [vmem:[%s217 + $0x1528] sm:$0xff]
        %v992 = vld [vmem:[%s217 + $0x1530] sm:$0xff]
        %v993 = vld [vmem:[%s217 + $0x1538] sm:$0xff]
        %v994 = vld [vmem:[%s217 + $0x1540] sm:$0xff]
        %v995 = vld [vmem:[%s217 + $0x1548] sm:$0xff]
        %v996 = vld [vmem:[%s217 + $0x1550] sm:$0xff]
        %v997 = vld [vmem:[%s217 + $0x1558] sm:$0xff]
        %v998 = vld [vmem:[%s217 + $0x1560] sm:$0xff]
        %v999 = vld [vmem:[%s217 + $0x1568] sm:$0xff]
        %v1000 = vld [vmem:[%s217 + $0x1570] sm:$0xff]
        %v1001 = vld [vmem:[%s217 + $0x1578] sm:$0xff]
        %v1002 = vld [vmem:[%s217 + $0x1580] sm:$0xff]
        %v1003 = vld [vmem:[%s217 + $0x1588] sm:$0xff]
        %v1004 = vld [vmem:[%s217 + $0x1590] sm:$0xff]
        %v1005 = vld [vmem:[%s217 + $0x1598] sm:$0xff]
        %v1006 = vld [vmem:[%s217 + $0x15a0] sm:$0xff]
        %v1007 = vld [vmem:[%s217 + $0x15a8] sm:$0xff]
        %v1008 = vld [vmem:[%s217 + $0x15b0] sm:$0xff]
        %v1009 = vld [vmem:[%s217 + $0x15b8] sm:$0xff]
        %v1010 = vld [vmem:[%s217 + $0x15c0] sm:$0xff]
        %v1011 = vld [vmem:[%s217 + $0x15c8] sm:$0xff]
        %v1012 = vld [vmem:[%s217 + $0x15d0] sm:$0xff]
        %v1013 = vld [vmem:[%s217 + $0x15d8] sm:$0xff]
        %v1014 = vld [vmem:[%s217 + $0x15e0] sm:$0xff]
        %v1015 = vld [vmem:[%s217 + $0x15e8] sm:$0xff]
        %v1016 = vld [vmem:[%s217 + $0x15f0] sm:$0xff]
        %v1017 = vld [vmem:[%s217 + $0x15f8] sm:$0xff]
        %v1018 = vld [vmem:[%s217 + $0x1600] sm:$0xff]
        %v1019 = vld [vmem:[%s217 + $0x1608] sm:$0xff]
        %v1020 = vld [vmem:[%s217 + $0x1610] sm:$0xff]
        %v1021 = vld [vmem:[%s217 + $0x1618] sm:$0xff]
        %v1022 = vld [vmem:[%s217 + $0x1620] sm:$0xff]
        %v1023 = vld [vmem:[%s217 + $0x1628] sm:$0xff]
        %v1024 = vld [vmem:[%s217 + $0x1630] sm:$0xff]
        %v1025 = vld [vmem:[%s217 + $0x1638] sm:$0xff]
        %v1026 = vld [vmem:[%s217 + $0x1640] sm:$0xff]
        %v1027 = vld [vmem:[%s217 + $0x1648] sm:$0xff]
        %v1028 = vld [vmem:[%s217 + $0x1650] sm:$0xff]
        %v1029 = vld [vmem:[%s217 + $0x1658] sm:$0xff]
        %v1030 = vld [vmem:[%s217 + $0x1660] sm:$0xff]
        %v1031 = vld [vmem:[%s217 + $0x1668] sm:$0xff]
        %v1032 = vld [vmem:[%s217 + $0x1670] sm:$0xff]
        %v1033 = vld [vmem:[%s217 + $0x1678] sm:$0xff]
        %v1034 = vld [vmem:[%s217 + $0x1680] sm:$0xff]
        %v1035 = vld [vmem:[%s217 + $0x1688] sm:$0xff]
        %v1036 = vld [vmem:[%s217 + $0x1690] sm:$0xff]
        %v1037 = vld [vmem:[%s217 + $0x1698] sm:$0xff]
        %v1038 = vld [vmem:[%s217 + $0x16a0] sm:$0xff]
        %v1039 = vld [vmem:[%s217 + $0x16a8] sm:$0xff]
        %v1040 = vld [vmem:[%s217 + $0x16b0] sm:$0xff]
        %v1041 = vld [vmem:[%s217 + $0x16b8] sm:$0xff]
        %v1042 = vld [vmem:[%s217 + $0x16c0] sm:$0xff]
        %v1043 = vld [vmem:[%s217 + $0x16c8] sm:$0xff]
        %v1044 = vld [vmem:[%s217 + $0x16d0] sm:$0xff]
        %v1045 = vld [vmem:[%s217 + $0x16d8] sm:$0xff]
        %v1046 = vld [vmem:[%s217 + $0x16e0] sm:$0xff]
        %v1047 = vld [vmem:[%s217 + $0x16e8] sm:$0xff]
        %v1048 = vld [vmem:[%s217 + $0x16f0] sm:$0xff]
        %v1049 = vld [vmem:[%s217 + $0x16f8] sm:$0xff]
        %v1050 = vld [vmem:[%s217 + $0x1700] sm:$0xff]
        %v1051 = vld [vmem:[%s217 + $0x1708] sm:$0xff]
        %v1052 = vld [vmem:[%s217 + $0x1710] sm:$0xff]
        %v1053 = vld [vmem:[%s217 + $0x1718] sm:$0xff]
        %v1054 = vld [vmem:[%s217 + $0x1720] sm:$0xff]
        %v1055 = vld [vmem:[%s217 + $0x1728] sm:$0xff]
        %v1056 = vld [vmem:[%s217 + $0x1730] sm:$0xff]
        %v1057 = vld [vmem:[%s217 + $0x1738] sm:$0xff]
        %v1058 = vld [vmem:[%s217 + $0x1740] sm:$0xff]
        %v1059 = vld [vmem:[%s217 + $0x1748] sm:$0xff]
        %v1060 = vld [vmem:[%s217 + $0x1750] sm:$0xff]
        %v1061 = vld [vmem:[%s217 + $0x1758] sm:$0xff]
        %v1062 = vld [vmem:[%s217 + $0x1760] sm:$0xff]
        %v1063 = vld [vmem:[%s217 + $0x1768] sm:$0xff]
        %v1064 = vld [vmem:[%s217 + $0x1770] sm:$0xff]
        %v1065 = vld [vmem:[%s217 + $0x1778] sm:$0xff]
        %v1066 = vld [vmem:[%s217 + $0x1780] sm:$0xff]
        %v1067 = vld [vmem:[%s217 + $0x1788] sm:$0xff]
        %v1068 = vld [vmem:[%s217 + $0x1790] sm:$0xff]
        %v1069 = vld [vmem:[%s217 + $0x1798] sm:$0xff]
        %v1070 = vld [vmem:[%s217 + $0x17a0] sm:$0xff]
        %v1071 = vld [vmem:[%s217 + $0x17a8] sm:$0xff]
        %v1072 = vld [vmem:[%s217 + $0x17b0] sm:$0xff]
        %v1073 = vld [vmem:[%s217 + $0x17b8] sm:$0xff]
        %v1074 = vld [vmem:[%s217 + $0x17c0] sm:$0xff]
        %v1075 = vld [vmem:[%s217 + $0x17c8] sm:$0xff]
        %v1076 = vld [vmem:[%s217 + $0x17d0] sm:$0xff]
        %v1077 = vld [vmem:[%s217 + $0x17d8] sm:$0xff]
        %v1078 = vld [vmem:[%s217 + $0x17e0] sm:$0xff]
        %v1079 = vld [vmem:[%s217 + $0x17e8] sm:$0xff]
        %v1080 = vld [vmem:[%s217 + $0x17f0] sm:$0xff]
        %v1081 = vld [vmem:[%s217 + $0x17f8] sm:$0xff]
        %v1082 = vld [vmem:[%s217 + $0x1800] sm:$0xff]
        %v1083 = vld [vmem:[%s217 + $0x1808] sm:$0xff]
        %v1084 = vld [vmem:[%s217 + $0x1810] sm:$0xff]
        %v1085 = vld [vmem:[%s217 + $0x1818] sm:$0xff]
        %v1086 = vld [vmem:[%s217 + $0x1820] sm:$0xff]
        %v1087 = vld [vmem:[%s217 + $0x1828] sm:$0xff]
        %v1088 = vld [vmem:[%s217 + $0x1830] sm:$0xff]
        %v1089 = vld [vmem:[%s217 + $0x1838] sm:$0xff]
        %v1090 = vld [vmem:[%s217 + $0x1840] sm:$0xff]
        %v1091 = vld [vmem:[%s217 + $0x1848] sm:$0xff]
        %v1092 = vld [vmem:[%s217 + $0x1850] sm:$0xff]
        %v1093 = vld [vmem:[%s217 + $0x1858] sm:$0xff]
        %v1094 = vld [vmem:[%s217 + $0x1860] sm:$0xff]
        %v1095 = vld [vmem:[%s217 + $0x1868] sm:$0xff]
        %v1096 = vld [vmem:[%s217 + $0x1870] sm:$0xff]
        %v1097 = vld [vmem:[%s217 + $0x1878] sm:$0xff]
        %v1098 = vld [vmem:[%s217 + $0x1880] sm:$0xff]
        %v1099 = vld [vmem:[%s217 + $0x1888] sm:$0xff]
        %v1100 = vld [vmem:[%s217 + $0x1890] sm:$0xff]
        %v1101 = vld [vmem:[%s217 + $0x1898] sm:$0xff]
        %v1102 = vld [vmem:[%s217 + $0x18a0] sm:$0xff]
        %v1103 = vld [vmem:[%s217 + $0x18a8] sm:$0xff]
        %v1104 = vld [vmem:[%s217 + $0x18b0] sm:$0xff]
        %v1105 = vld [vmem:[%s217 + $0x18b8] sm:$0xff]
        %v1106 = vld [vmem:[%s217 + $0x18c0] sm:$0xff]
        %v1107 = vld [vmem:[%s217 + $0x18c8] sm:$0xff]
        %v1108 = vld [vmem:[%s217 + $0x18d0] sm:$0xff]
        %v1109 = vld [vmem:[%s217 + $0x18d8] sm:$0xff]
        %v1110 = vld [vmem:[%s217 + $0x18e0] sm:$0xff]
        %v1111 = vld [vmem:[%s217 + $0x18e8] sm:$0xff]
        %v1112 = vld [vmem:[%s217 + $0x18f0] sm:$0xff]
        %v1113 = vld [vmem:[%s217 + $0x18f8] sm:$0xff]
        %v1114 = vld [vmem:[%s217 + $0x1900] sm:$0xff]
        %v1115 = vld [vmem:[%s217 + $0x1908] sm:$0xff]
        %v1116 = vld [vmem:[%s217 + $0x1910] sm:$0xff]
        %v1117 = vld [vmem:[%s217 + $0x1918] sm:$0xff]
        %v1118 = vld [vmem:[%s217 + $0x1920] sm:$0xff]
        %v1119 = vld [vmem:[%s217 + $0x1928] sm:$0xff]
        %v1120 = vld [vmem:[%s217 + $0x1930] sm:$0xff]
        %v1121 = vld [vmem:[%s217 + $0x1938] sm:$0xff]
        %v1122 = vld [vmem:[%s217 + $0x1940] sm:$0xff]
        %v1123 = vld [vmem:[%s217 + $0x1948] sm:$0xff]
        %v1124 = vld [vmem:[%s217 + $0x1950] sm:$0xff]
        %v1125 = vld [vmem:[%s217 + $0x1958] sm:$0xff]
        %v1126 = vld [vmem:[%s217 + $0x1960] sm:$0xff]
        %v1127 = vld [vmem:[%s217 + $0x1968] sm:$0xff]
        %v1128 = vld [vmem:[%s217 + $0x1970] sm:$0xff]
        %v1129 = vld [vmem:[%s217 + $0x1978] sm:$0xff]
        %v1130 = vld [vmem:[%s217 + $0x1980] sm:$0xff]
        %v1131 = vld [vmem:[%s217 + $0x1988] sm:$0xff]
        %v1132 = vld [vmem:[%s217 + $0x1990] sm:$0xff]
        %v1133 = vld [vmem:[%s217 + $0x1998] sm:$0xff]
        %v1134 = vld [vmem:[%s217 + $0x19a0] sm:$0xff]
        %v1135 = vld [vmem:[%s217 + $0x19a8] sm:$0xff]
        %v1136 = vld [vmem:[%s217 + $0x19b0] sm:$0xff]
        %v1137 = vld [vmem:[%s217 + $0x19b8] sm:$0xff]
        %v1138 = vld [vmem:[%s217 + $0x19c0] sm:$0xff]
        %v1139 = vld [vmem:[%s217 + $0x19c8] sm:$0xff]
        %v1140 = vld [vmem:[%s217 + $0x19d0] sm:$0xff]
        %v1141 = vld [vmem:[%s217 + $0x19d8] sm:$0xff]
        %v1142 = vld [vmem:[%s217 + $0x19e0] sm:$0xff]
        %v1143 = vld [vmem:[%s217 + $0x19e8] sm:$0xff]
        %v1144 = vld [vmem:[%s217 + $0x19f0] sm:$0xff]
        %v1145 = vld [vmem:[%s217 + $0x19f8] sm:$0xff]
        %v1146 = vld [vmem:[%s217 + $0x1a00] sm:$0xff]
        %v1147 = vld [vmem:[%s217 + $0x1a08] sm:$0xff]
        %v1148 = vld [vmem:[%s217 + $0x1a10] sm:$0xff]
        %v1149 = vld [vmem:[%s217 + $0x1a18] sm:$0xff]
        %v1150 = vld [vmem:[%s217 + $0x1a20] sm:$0xff]
        %v1151 = vld [vmem:[%s217 + $0x1a28] sm:$0xff]
        %v1152 = vld [vmem:[%s217 + $0x1a30] sm:$0xff]
        %v1153 = vld [vmem:[%s217 + $0x1a38] sm:$0xff]
        %v1154 = vld [vmem:[%s217 + $0x1a40] sm:$0xff]
        %v1155 = vld [vmem:[%s217 + $0x1a48] sm:$0xff]
        %v1156 = vld [vmem:[%s217 + $0x1a50] sm:$0xff]
        %v1157 = vld [vmem:[%s217 + $0x1a58] sm:$0xff]
        %v1158 = vld [vmem:[%s217 + $0x1a60] sm:$0xff]
        %v1159 = vld [vmem:[%s217 + $0x1a68] sm:$0xff]
        %v1160 = vld [vmem:[%s217 + $0x1a70] sm:$0xff]
        %v1161 = vld [vmem:[%s217 + $0x1a78] sm:$0xff]
        %v1162 = vld [vmem:[%s217 + $0x1a80] sm:$0xff]
        %v1163 = vld [vmem:[%s217 + $0x1a88] sm:$0xff]
        %v1164 = vld [vmem:[%s217 + $0x1a90] sm:$0xff]
        %v1165 = vld [vmem:[%s217 + $0x1a98] sm:$0xff]
        %v1166 = vld [vmem:[%s217 + $0x1aa0] sm:$0xff]
        %v1167 = vld [vmem:[%s217 + $0x1aa8] sm:$0xff]
        %v1168 = vld [vmem:[%s217 + $0x1ab0] sm:$0xff]
        %v1169 = vld [vmem:[%s217 + $0x1ab8] sm:$0xff]
        %v1170 = vld [vmem:[%s217 + $0x1ac0] sm:$0xff]
        %v1171 = vld [vmem:[%s217 + $0x1ac8] sm:$0xff]
        %v1172 = vld [vmem:[%s217 + $0x1ad0] sm:$0xff]
        %v1173 = vld [vmem:[%s217 + $0x1ad8] sm:$0xff]
        %v1174 = vld [vmem:[%s217 + $0x1ae0] sm:$0xff]
        %v1175 = vld [vmem:[%s217 + $0x1ae8] sm:$0xff]
        %v1176 = vld [vmem:[%s217 + $0x1af0] sm:$0xff]
        %v1177 = vld [vmem:[%s217 + $0x1af8] sm:$0xff]
        %v1178 = vld [vmem:[%s217 + $0x1b00] sm:$0xff]
        %v1179 = vld [vmem:[%s217 + $0x1b08] sm:$0xff]
        %v1180 = vld [vmem:[%s217 + $0x1b10] sm:$0xff]
        %v1181 = vld [vmem:[%s217 + $0x1b18] sm:$0xff]
        %v1182 = vld [vmem:[%s217 + $0x1b20] sm:$0xff]
        %v1183 = vld [vmem:[%s217 + $0x1b28] sm:$0xff]
        %v1184 = vld [vmem:[%s217 + $0x1b30] sm:$0xff]
        %v1185 = vld [vmem:[%s217 + $0x1b38] sm:$0xff]
        %v1186 = vld [vmem:[%s217 + $0x1b40] sm:$0xff]
        %v1187 = vld [vmem:[%s217 + $0x1b48] sm:$0xff]
        %v1188 = vld [vmem:[%s217 + $0x1b50] sm:$0xff]
        %v1189 = vld [vmem:[%s217 + $0x1b58] sm:$0xff]
        %v1190 = vld [vmem:[%s217 + $0x1b60] sm:$0xff]
        %v1191 = vld [vmem:[%s217 + $0x1b68] sm:$0xff]
        %v1192 = vld [vmem:[%s217 + $0x1b70] sm:$0xff]
        %v1193 = vld [vmem:[%s217 + $0x1b78] sm:$0xff]
        %v1194 = vld [vmem:[%s217 + $0x1b80] sm:$0xff]
        %v1195 = vld [vmem:[%s217 + $0x1b88] sm:$0xff]
        %v1196 = vld [vmem:[%s217 + $0x1b90] sm:$0xff]
        %v1197 = vld [vmem:[%s217 + $0x1b98] sm:$0xff]
        %v1198 = vld [vmem:[%s217 + $0x1ba0] sm:$0xff]
        %v1199 = vld [vmem:[%s217 + $0x1ba8] sm:$0xff]
        %v1200 = vld [vmem:[%s217 + $0x1bb0] sm:$0xff]
        %v1201 = vld [vmem:[%s217 + $0x1bb8] sm:$0xff]
        %v1202 = vld [vmem:[%s217 + $0x1bc0] sm:$0xff]
        %v1203 = vld [vmem:[%s217 + $0x1bc8] sm:$0xff]
        %v1204 = vld [vmem:[%s217 + $0x1bd0] sm:$0xff]
        %v1205 = vld [vmem:[%s217 + $0x1bd8] sm:$0xff]
        %v1206 = vld [vmem:[%s217 + $0x1be0] sm:$0xff]
        %v1207 = vld [vmem:[%s217 + $0x1be8] sm:$0xff]
        %v1208 = vld [vmem:[%s217 + $0x1bf0] sm:$0xff]
        %v1209 = vld [vmem:[%s217 + $0x1bf8] sm:$0xff]
        %v1210 = vld [vmem:[%s217 + $0x1c00] sm:$0xff]
        %v1211 = vld [vmem:[%s217 + $0x1c08] sm:$0xff]
        %v1212 = vld [vmem:[%s217 + $0x1c10] sm:$0xff]
        %v1213 = vld [vmem:[%s217 + $0x1c18] sm:$0xff]
        %v1214 = vld [vmem:[%s217 + $0x1c20] sm:$0xff]
        %v1215 = vld [vmem:[%s217 + $0x1c28] sm:$0xff]
        %v1216 = vld [vmem:[%s217 + $0x1c30] sm:$0xff]
        %v1217 = vld [vmem:[%s217 + $0x1c38] sm:$0xff]
        %v1218 = vld [vmem:[%s217 + $0x1c40] sm:$0xff]
        %v1219 = vld [vmem:[%s217 + $0x1c48] sm:$0xff]
        %v1220 = vld [vmem:[%s217 + $0x1c50] sm:$0xff]
        %v1221 = vld [vmem:[%s217 + $0x1c58] sm:$0xff]
        %v1222 = vld [vmem:[%s217 + $0x1c60] sm:$0xff]
        %v1223 = vld [vmem:[%s217 + $0x1c68] sm:$0xff]
        %v1224 = vld [vmem:[%s217 + $0x1c70] sm:$0xff]
        %v1225 = vld [vmem:[%s217 + $0x1c78] sm:$0xff]
        %v1226 = vld [vmem:[%s217 + $0x1c80] sm:$0xff]
        %v1227 = vld [vmem:[%s217 + $0x1c88] sm:$0xff]
        %v1228 = vld [vmem:[%s217 + $0x1c90] sm:$0xff]
        %v1229 = vld [vmem:[%s217 + $0x1c98] sm:$0xff]
        %v1230 = vld [vmem:[%s217 + $0x1ca0] sm:$0xff]
        %v1231 = vld [vmem:[%s217 + $0x1ca8] sm:$0xff]
        %v1232 = vld [vmem:[%s217 + $0x1cb0] sm:$0xff]
        %v1233 = vld [vmem:[%s217 + $0x1cb8] sm:$0xff]
        %v1234 = vld [vmem:[%s217 + $0x1cc0] sm:$0xff]
        %v1235 = vld [vmem:[%s217 + $0x1cc8] sm:$0xff]
        %v1236 = vld [vmem:[%s217 + $0x1cd0] sm:$0xff]
        %v1237 = vld [vmem:[%s217 + $0x1cd8] sm:$0xff]
        %v1238 = vld [vmem:[%s217 + $0x1ce0] sm:$0xff]
        %v1239 = vld [vmem:[%s217 + $0x1ce8] sm:$0xff]
        %v1240 = vld [vmem:[%s217 + $0x1cf0] sm:$0xff]
        %v1241 = vld [vmem:[%s217 + $0x1cf8] sm:$0xff]
        %v1242 = vld [vmem:[%s217 + $0x1d00] sm:$0xff]
        %v1243 = vld [vmem:[%s217 + $0x1d08] sm:$0xff]
        %v1244 = vld [vmem:[%s217 + $0x1d10] sm:$0xff]
        %v1245 = vld [vmem:[%s217 + $0x1d18] sm:$0xff]
        %v1246 = vld [vmem:[%s217 + $0x1d20] sm:$0xff]
        %v1247 = vld [vmem:[%s217 + $0x1d28] sm:$0xff]
        %v1248 = vld [vmem:[%s217 + $0x1d30] sm:$0xff]
        %v1249 = vld [vmem:[%s217 + $0x1d38] sm:$0xff]
        %v1250 = vld [vmem:[%s217 + $0x1d40] sm:$0xff]
        %v1251 = vld [vmem:[%s217 + $0x1d48] sm:$0xff]
        %v1252 = vld [vmem:[%s217 + $0x1d50] sm:$0xff]
        %v1253 = vld [vmem:[%s217 + $0x1d58] sm:$0xff]
        %v1254 = vld [vmem:[%s217 + $0x1d60] sm:$0xff]
        %v1255 = vld [vmem:[%s217 + $0x1d68] sm:$0xff]
        %v1256 = vld [vmem:[%s217 + $0x1d70] sm:$0xff]
        %v1257 = vld [vmem:[%s217 + $0x1d78] sm:$0xff]
        %v1258 = vld [vmem:[%s217 + $0x1d80] sm:$0xff]
        %v1259 = vld [vmem:[%s217 + $0x1d88] sm:$0xff]
        %v1260 = vld [vmem:[%s217 + $0x1d90] sm:$0xff]
        %v1261 = vld [vmem:[%s217 + $0x1d98] sm:$0xff]
        %v1262 = vld [vmem:[%s217 + $0x1da0] sm:$0xff]
        %v1263 = vld [vmem:[%s217 + $0x1da8] sm:$0xff]
        %v1264 = vld [vmem:[%s217 + $0x1db0] sm:$0xff]
        %v1265 = vld [vmem:[%s217 + $0x1db8] sm:$0xff]
        %v1266 = vld [vmem:[%s217 + $0x1dc0] sm:$0xff]
        %v1267 = vld [vmem:[%s217 + $0x1dc8] sm:$0xff]
        %v1268 = vld [vmem:[%s217 + $0x1dd0] sm:$0xff]
        %v1269 = vld [vmem:[%s217 + $0x1dd8] sm:$0xff]
        %v1270 = vld [vmem:[%s217 + $0x1de0] sm:$0xff]
        %v1271 = vld [vmem:[%s217 + $0x1de8] sm:$0xff]
        %v1272 = vld [vmem:[%s217 + $0x1df0] sm:$0xff]
        %v1273 = vld [vmem:[%s217 + $0x1df8] sm:$0xff]
        %v1274 = vld [vmem:[%s217 + $0x1e00] sm:$0xff]
        %v1275 = vld [vmem:[%s217 + $0x1e08] sm:$0xff]
        %v1276 = vld [vmem:[%s217 + $0x1e10] sm:$0xff]
        %v1277 = vld [vmem:[%s217 + $0x1e18] sm:$0xff]
        %v1278 = vld [vmem:[%s217 + $0x1e20] sm:$0xff]
        %v1279 = vld [vmem:[%s217 + $0x1e28] sm:$0xff]
        %v1280 = vld [vmem:[%s217 + $0x1e30] sm:$0xff]
        %v1281 = vld [vmem:[%s217 + $0x1e38] sm:$0xff]
        %v1282 = vld [vmem:[%s217 + $0x1e40] sm:$0xff]
        %v1283 = vld [vmem:[%s217 + $0x1e48] sm:$0xff]
        %v1284 = vld [vmem:[%s217 + $0x1e50] sm:$0xff]
        %v1285 = vld [vmem:[%s217 + $0x1e58] sm:$0xff]
        %v1286 = vld [vmem:[%s217 + $0x1e60] sm:$0xff]
        %v1287 = vld [vmem:[%s217 + $0x1e68] sm:$0xff]
        %v1288 = vld [vmem:[%s217 + $0x1e70] sm:$0xff]
        %v1289 = vld [vmem:[%s217 + $0x1e78] sm:$0xff]
        %v1290 = vld [vmem:[%s217 + $0x1e80] sm:$0xff]
        %v1291 = vld [vmem:[%s217 + $0x1e88] sm:$0xff]
        %v1292 = vld [vmem:[%s217 + $0x1e90] sm:$0xff]
        %v1293 = vld [vmem:[%s217 + $0x1e98] sm:$0xff]
        %v1294 = vld [vmem:[%s217 + $0x1ea0] sm:$0xff]
        %v1295 = vld [vmem:[%s217 + $0x1ea8] sm:$0xff]
        %v1296 = vld [vmem:[%s217 + $0x1eb0] sm:$0xff]
        %v1297 = vld [vmem:[%s217 + $0x1eb8] sm:$0xff]
        %v1298 = vld [vmem:[%s217 + $0x1ec0] sm:$0xff]
        %v1299 = vld [vmem:[%s217 + $0x1ec8] sm:$0xff]
        %v1300 = vld [vmem:[%s217 + $0x1ed0] sm:$0xff]
        %v1301 = vld [vmem:[%s217 + $0x1ed8] sm:$0xff]
        %v1302 = vld [vmem:[%s217 + $0x1ee0] sm:$0xff]
        %v1303 = vld [vmem:[%s217 + $0x1ee8] sm:$0xff]
        %v1304 = vld [vmem:[%s217 + $0x1ef0] sm:$0xff]
        %v1305 = vld [vmem:[%s217 + $0x1ef8] sm:$0xff]
        %v1306 = vld [vmem:[%s217 + $0x1f00] sm:$0xff]
        %v1307 = vld [vmem:[%s217 + $0x1f08] sm:$0xff]
        %v1308 = vld [vmem:[%s217 + $0x1f10] sm:$0xff]
        %v1309 = vld [vmem:[%s217 + $0x1f18] sm:$0xff]
        %v1310 = vld [vmem:[%s217 + $0x1f20] sm:$0xff]
        %v1311 = vld [vmem:[%s217 + $0x1f28] sm:$0xff]
        %v1312 = vld [vmem:[%s217 + $0x1f30] sm:$0xff]
        %v1313 = vld [vmem:[%s217 + $0x1f38] sm:$0xff]
        %v1314 = vld [vmem:[%s217 + $0x1f40] sm:$0xff]
        %v1315 = vld [vmem:[%s217 + $0x1f48] sm:$0xff]
        %v1316 = vld [vmem:[%s217 + $0x1f50] sm:$0xff]
        %v1317 = vld [vmem:[%s217 + $0x1f58] sm:$0xff]
        %v1318 = vld [vmem:[%s217 + $0x1f60] sm:$0xff]
        %v1319 = vld [vmem:[%s217 + $0x1f68] sm:$0xff]
        %v1320 = vld [vmem:[%s217 + $0x1f70] sm:$0xff]
        %v1321 = vld [vmem:[%s217 + $0x1f78] sm:$0xff]
        %v1322 = vld [vmem:[%s217 + $0x1f80] sm:$0xff]
        %v1323 = vld [vmem:[%s217 + $0x1f88] sm:$0xff]
        %v1324 = vld [vmem:[%s217 + $0x1f90] sm:$0xff]
        %v1325 = vld [vmem:[%s217 + $0x1f98] sm:$0xff]
        %v1326 = vld [vmem:[%s217 + $0x1fa0] sm:$0xff]
        %v1327 = vld [vmem:[%s217 + $0x1fa8] sm:$0xff]
        %v1328 = vld [vmem:[%s217 + $0x1fb0] sm:$0xff]
        %v1329 = vld [vmem:[%s217 + $0x1fb8] sm:$0xff]
        %v1330 = vld [vmem:[%s217 + $0x1fc0] sm:$0xff]
        %v1331 = vld [vmem:[%s217 + $0x1fc8] sm:$0xff]
        %v1332 = vld [vmem:[%s217 + $0x1fd0] sm:$0xff]
        %v1333 = vld [vmem:[%s217 + $0x1fd8] sm:$0xff]
        %v1334 = vld [vmem:[%s217 + $0x1fe0] sm:$0xff]
        %v1335 = vld [vmem:[%s217 + $0x1fe8] sm:$0xff]
        %v1336 = vld [vmem:[%s217 + $0x1ff0] sm:$0xff]
        %v1337 = vld [vmem:[%s217 + $0x1ff8] sm:$0xff]
        %1338 = vmatpush.msra.mxu0 %v374
        %1339 = vmatpush.msra.mxu0 %v370
        %1340 = vmatpush.msra.mxu0 %v366
        %1341 = vmatpush.msra.mxu0 %v362
        %1342 = vmatpush.msra.mxu0 %v358
        %1343 = vmatpush.msra.mxu0 %v354
        %1344 = vmatpush.msra.mxu0 %v350
        %1345 = vmatpush.msra.mxu0 %v346
        %1346 = vmatpush.msra.mxu0 %v342
        %1347 = vmatpush.msra.mxu0 %v338
        %1348 = vmatpush.msra.mxu0 %v334
        %1349 = vmatpush.msra.mxu0 %v330
        %1350 = vmatpush.msra.mxu0 %v326
        %1351 = vmatpush.msra.mxu0 %v322
        %1352 = vmatpush.msra.mxu0 %v318
        %1353 = vmatpush.msra.mxu0 %v314
        %1354 = vmatmul.f32.gmra.mxu0 %v298
        %v1355 = vpop.f32.mrf.mxu0
        %v1356 = vadd.f32 0.0, %v1355
        %1357 = vdwg.mxu0
        %1358 = vmatpush.msra.mxu0 %v438
        %1359 = vmatpush.msra.mxu0 %v434
        %1360 = vmatpush.msra.mxu0 %v430
        %1361 = vmatpush.msra.mxu0 %v426
        %1362 = vmatpush.msra.mxu0 %v422
        %1363 = vmatpush.msra.mxu0 %v418
        %1364 = vmatpush.msra.mxu0 %v414
        %1365 = vmatpush.msra.mxu0 %v410
        %1366 = vmatpush.msra.mxu0 %v406
        %1367 = vmatpush.msra.mxu0 %v402
        %1368 = vmatpush.msra.mxu0 %v398
        %1369 = vmatpush.msra.mxu0 %v394
        %1370 = vmatpush.msra.mxu0 %v390
        %1371 = vmatpush.msra.mxu0 %v386
        %1372 = vmatpush.msra.mxu0 %v382
        %1373 = vmatpush.msra.mxu0 %v378
        %1374 = vmatmul.f32.gmra.mxu0 %v299
        %v1375 = vpop.f32.mrf.mxu0
        %v1376 = vadd.f32 %v1356, %v1375
        %1377 = vdwg.mxu0
        %1378 = vmatpush.msra.mxu0 %v502
        %1379 = vmatpush.msra.mxu0 %v498
        %1380 = vmatpush.msra.mxu0 %v494
        %1381 = vmatpush.msra.mxu0 %v490
        %1382 = vmatpush.msra.mxu0 %v486
        %1383 = vmatpush.msra.mxu0 %v482
        %1384 = vmatpush.msra.mxu0 %v478
        %1385 = vmatpush.msra.mxu0 %v474
        %1386 = vmatpush.msra.mxu0 %v470
        %1387 = vmatpush.msra.mxu0 %v466
        %1388 = vmatpush.msra.mxu0 %v462
        %1389 = vmatpush.msra.mxu0 %v458
        %1390 = vmatpush.msra.mxu0 %v454
        %1391 = vmatpush.msra.mxu0 %v450
        %1392 = vmatpush.msra.mxu0 %v446
        %1393 = vmatpush.msra.mxu0 %v442
        %1394 = vmatmul.f32.gmra.mxu0 %v300
        %v1395 = vpop.f32.mrf.mxu0
        %v1396 = vadd.f32 %v1376, %v1395
        %1397 = vdwg.mxu0
        %1398 = vmatpush.msra.mxu0 %v566
        %1399 = vmatpush.msra.mxu0 %v562
        %1400 = vmatpush.msra.mxu0 %v558
        %1401 = vmatpush.msra.mxu0 %v554
        %1402 = vmatpush.msra.mxu0 %v550
        %1403 = vmatpush.msra.mxu0 %v546
        %1404 = vmatpush.msra.mxu0 %v542
        %1405 = vmatpush.msra.mxu0 %v538
        %1406 = vmatpush.msra.mxu0 %v534
        %1407 = vmatpush.msra.mxu0 %v530
        %1408 = vmatpush.msra.mxu0 %v526
        %1409 = vmatpush.msra.mxu0 %v522
        %1410 = vmatpush.msra.mxu0 %v518
        %1411 = vmatpush.msra.mxu0 %v514
        %1412 = vmatpush.msra.mxu0 %v510
        %1413 = vmatpush.msra.mxu0 %v506
        %1414 = vmatmul.f32.gmra.mxu0 %v301
        %v1415 = vpop.f32.mrf.mxu0
        %v1416 = vadd.f32 %v1396, %v1415
        %1417 = vdwg.mxu0
        %1418 = vmatpush.msra.mxu0 %v630
        %1419 = vmatpush.msra.mxu0 %v626
        %1420 = vmatpush.msra.mxu0 %v622
        %1421 = vmatpush.msra.mxu0 %v618
        %1422 = vmatpush.msra.mxu0 %v614
        %1423 = vmatpush.msra.mxu0 %v610
        %1424 = vmatpush.msra.mxu0 %v606
        %1425 = vmatpush.msra.mxu0 %v602
        %1426 = vmatpush.msra.mxu0 %v598
        %1427 = vmatpush.msra.mxu0 %v594
        %1428 = vmatpush.msra.mxu0 %v590
        %1429 = vmatpush.msra.mxu0 %v586
        %1430 = vmatpush.msra.mxu0 %v582
        %1431 = vmatpush.msra.mxu0 %v578
        %1432 = vmatpush.msra.mxu0 %v574
        %1433 = vmatpush.msra.mxu0 %v570
        %1434 = vmatmul.f32.gmra.mxu0 %v302
        %v1435 = vpop.f32.mrf.mxu0
        %v1436 = vadd.f32 %v1416, %v1435
        %1437 = vdwg.mxu0
        %1438 = vmatpush.msra.mxu0 %v694
        %1439 = vmatpush.msra.mxu0 %v690
        %1440 = vmatpush.msra.mxu0 %v686
        %1441 = vmatpush.msra.mxu0 %v682
        %1442 = vmatpush.msra.mxu0 %v678
        %1443 = vmatpush.msra.mxu0 %v674
        %1444 = vmatpush.msra.mxu0 %v670
        %1445 = vmatpush.msra.mxu0 %v666
        %1446 = vmatpush.msra.mxu0 %v662
        %1447 = vmatpush.msra.mxu0 %v658
        %1448 = vmatpush.msra.mxu0 %v654
        %1449 = vmatpush.msra.mxu0 %v650
        %1450 = vmatpush.msra.mxu0 %v646
        %1451 = vmatpush.msra.mxu0 %v642
        %1452 = vmatpush.msra.mxu0 %v638
        %1453 = vmatpush.msra.mxu0 %v634
        %1454 = vmatmul.f32.gmra.mxu0 %v303
        %v1455 = vpop.f32.mrf.mxu0
        %v1456 = vadd.f32 %v1436, %v1455
        %1457 = vdwg.mxu0
        %1458 = vmatpush.msra.mxu0 %v758
        %1459 = vmatpush.msra.mxu0 %v754
        %1460 = vmatpush.msra.mxu0 %v750
        %1461 = vmatpush.msra.mxu0 %v746
        %1462 = vmatpush.msra.mxu0 %v742
        %1463 = vmatpush.msra.mxu0 %v738
        %1464 = vmatpush.msra.mxu0 %v734
        %1465 = vmatpush.msra.mxu0 %v730
        %1466 = vmatpush.msra.mxu0 %v726
        %1467 = vmatpush.msra.mxu0 %v722
        %1468 = vmatpush.msra.mxu0 %v718
        %1469 = vmatpush.msra.mxu0 %v714
        %1470 = vmatpush.msra.mxu0 %v710
        %1471 = vmatpush.msra.mxu0 %v706
        %1472 = vmatpush.msra.mxu0 %v702
        %1473 = vmatpush.msra.mxu0 %v698
        %1474 = vmatmul.f32.gmra.mxu0 %v304
        %v1475 = vpop.f32.mrf.mxu0
        %v1476 = vadd.f32 %v1456, %v1475
        %1477 = vdwg.mxu0
        %1478 = vmatpush.msra.mxu0 %v822
        %1479 = vmatpush.msra.mxu0 %v818
        %1480 = vmatpush.msra.mxu0 %v814
        %1481 = vmatpush.msra.mxu0 %v810
        %1482 = vmatpush.msra.mxu0 %v806
        %1483 = vmatpush.msra.mxu0 %v802
        %1484 = vmatpush.msra.mxu0 %v798
        %1485 = vmatpush.msra.mxu0 %v794
        %1486 = vmatpush.msra.mxu0 %v790
        %1487 = vmatpush.msra.mxu0 %v786
        %1488 = vmatpush.msra.mxu0 %v782
        %1489 = vmatpush.msra.mxu0 %v778
        %1490 = vmatpush.msra.mxu0 %v774
        %1491 = vmatpush.msra.mxu0 %v770
        %1492 = vmatpush.msra.mxu0 %v766
        %1493 = vmatpush.msra.mxu0 %v762
        %1494 = vmatmul.f32.gmra.mxu0 %v305
        %v1495 = vpop.f32.mrf.mxu0
        %v1496 = vadd.f32 %v1476, %v1495
        %1497 = vdwg.mxu0
        %1498 = vmatpush.msra.mxu0 %v886
        %1499 = vmatpush.msra.mxu0 %v882
        %1500 = vmatpush.msra.mxu0 %v878
        %1501 = vmatpush.msra.mxu0 %v874
        %1502 = vmatpush.msra.mxu0 %v870
        %1503 = vmatpush.msra.mxu0 %v866
        %1504 = vmatpush.msra.mxu0 %v862
        %1505 = vmatpush.msra.mxu0 %v858
        %1506 = vmatpush.msra.mxu0 %v854
        %1507 = vmatpush.msra.mxu0 %v850
        %1508 = vmatpush.msra.mxu0 %v846
        %1509 = vmatpush.msra.mxu0 %v842
        %1510 = vmatpush.msra.mxu0 %v838
        %1511 = vmatpush.msra.mxu0 %v834
        %1512 = vmatpush.msra.mxu0 %v830
        %1513 = vmatpush.msra.mxu0 %v826
        %1514 = vmatmul.f32.gmra.mxu0 %v306
        %v1515 = vpop.f32.mrf.mxu0
        %v1516 = vadd.f32 %v1496, %v1515
        %1517 = vdwg.mxu0
        %1518 = vmatpush.msra.mxu0 %v950
        %1519 = vmatpush.msra.mxu0 %v946
        %1520 = vmatpush.msra.mxu0 %v942
        %1521 = vmatpush.msra.mxu0 %v938
        %1522 = vmatpush.msra.mxu0 %v934
        %1523 = vmatpush.msra.mxu0 %v930
        %1524 = vmatpush.msra.mxu0 %v926
        %1525 = vmatpush.msra.mxu0 %v922
        %1526 = vmatpush.msra.mxu0 %v918
        %1527 = vmatpush.msra.mxu0 %v914
        %1528 = vmatpush.msra.mxu0 %v910
        %1529 = vmatpush.msra.mxu0 %v906
        %1530 = vmatpush.msra.mxu0 %v902
        %1531 = vmatpush.msra.mxu0 %v898
        %1532 = vmatpush.msra.mxu0 %v894
        %1533 = vmatpush.msra.mxu0 %v890
        %1534 = vmatmul.f32.gmra.mxu0 %v307
        %v1535 = vpop.f32.mrf.mxu0
        %v1536 = vadd.f32 %v1516, %v1535
        %1537 = vdwg.mxu0
        %1538 = vmatpush.msra.mxu0 %v1014
        %1539 = vmatpush.msra.mxu0 %v1010
        %1540 = vmatpush.msra.mxu0 %v1006
        %1541 = vmatpush.msra.mxu0 %v1002
        %1542 = vmatpush.msra.mxu0 %v998
        %1543 = vmatpush.msra.mxu0 %v994
        %1544 = vmatpush.msra.mxu0 %v990
        %1545 = vmatpush.msra.mxu0 %v986
        %1546 = vmatpush.msra.mxu0 %v982
        %1547 = vmatpush.msra.mxu0 %v978
        %1548 = vmatpush.msra.mxu0 %v974
        %1549 = vmatpush.msra.mxu0 %v970
        %1550 = vmatpush.msra.mxu0 %v966
        %1551 = vmatpush.msra.mxu0 %v962
        %1552 = vmatpush.msra.mxu0 %v958
        %1553 = vmatpush.msra.mxu0 %v954
        %1554 = vmatmul.f32.gmra.mxu0 %v308
        %v1555 = vpop.f32.mrf.mxu0
        %v1556 = vadd.f32 %v1536, %v1555
        %1557 = vdwg.mxu0
        %1558 = vmatpush.msra.mxu0 %v1078
        %1559 = vmatpush.msra.mxu0 %v1074
        %1560 = vmatpush.msra.mxu0 %v1070
        %1561 = vmatpush.msra.mxu0 %v1066
        %1562 = vmatpush.msra.mxu0 %v1062
        %1563 = vmatpush.msra.mxu0 %v1058
        %1564 = vmatpush.msra.mxu0 %v1054
        %1565 = vmatpush.msra.mxu0 %v1050
        %1566 = vmatpush.msra.mxu0 %v1046
        %1567 = vmatpush.msra.mxu0 %v1042
        %1568 = vmatpush.msra.mxu0 %v1038
        %1569 = vmatpush.msra.mxu0 %v1034
        %1570 = vmatpush.msra.mxu0 %v1030
        %1571 = vmatpush.msra.mxu0 %v1026
        %1572 = vmatpush.msra.mxu0 %v1022
        %1573 = vmatpush.msra.mxu0 %v1018
        %1574 = vmatmul.f32.gmra.mxu0 %v309
        %v1575 = vpop.f32.mrf.mxu0
        %v1576 = vadd.f32 %v1556, %v1575
        %1577 = vdwg.mxu0
        %1578 = vmatpush.msra.mxu0 %v1142
        %1579 = vmatpush.msra.mxu0 %v1138
        %1580 = vmatpush.msra.mxu0 %v1134
        %1581 = vmatpush.msra.mxu0 %v1130
        %1582 = vmatpush.msra.mxu0 %v1126
        %1583 = vmatpush.msra.mxu0 %v1122
        %1584 = vmatpush.msra.mxu0 %v1118
        %1585 = vmatpush.msra.mxu0 %v1114
        %1586 = vmatpush.msra.mxu0 %v1110
        %1587 = vmatpush.msra.mxu0 %v1106
        %1588 = vmatpush.msra.mxu0 %v1102
        %1589 = vmatpush.msra.mxu0 %v1098
        %1590 = vmatpush.msra.mxu0 %v1094
        %1591 = vmatpush.msra.mxu0 %v1090
        %1592 = vmatpush.msra.mxu0 %v1086
        %1593 = vmatpush.msra.mxu0 %v1082
        %1594 = vmatmul.f32.gmra.mxu0 %v310
        %v1595 = vpop.f32.mrf.mxu0
        %v1596 = vadd.f32 %v1576, %v1595
        %1597 = vdwg.mxu0
        %1598 = vmatpush.msra.mxu0 %v1206
        %1599 = vmatpush.msra.mxu0 %v1202
        %1600 = vmatpush.msra.mxu0 %v1198
        %1601 = vmatpush.msra.mxu0 %v1194
        %1602 = vmatpush.msra.mxu0 %v1190
        %1603 = vmatpush.msra.mxu0 %v1186
        %1604 = vmatpush.msra.mxu0 %v1182
        %1605 = vmatpush.msra.mxu0 %v1178
        %1606 = vmatpush.msra.mxu0 %v1174
        %1607 = vmatpush.msra.mxu0 %v1170
        %1608 = vmatpush.msra.mxu0 %v1166
        %1609 = vmatpush.msra.mxu0 %v1162
        %1610 = vmatpush.msra.mxu0 %v1158
        %1611 = vmatpush.msra.mxu0 %v1154
        %1612 = vmatpush.msra.mxu0 %v1150
        %1613 = vmatpush.msra.mxu0 %v1146
        %1614 = vmatmul.f32.gmra.mxu0 %v311
        %v1615 = vpop.f32.mrf.mxu0
        %v1616 = vadd.f32 %v1596, %v1615
        %1617 = vdwg.mxu0
        %1618 = vmatpush.msra.mxu0 %v1270
        %1619 = vmatpush.msra.mxu0 %v1266
        %1620 = vmatpush.msra.mxu0 %v1262
        %1621 = vmatpush.msra.mxu0 %v1258
        %1622 = vmatpush.msra.mxu0 %v1254
        %1623 = vmatpush.msra.mxu0 %v1250
        %1624 = vmatpush.msra.mxu0 %v1246
        %1625 = vmatpush.msra.mxu0 %v1242
        %1626 = vmatpush.msra.mxu0 %v1238
        %1627 = vmatpush.msra.mxu0 %v1234
        %1628 = vmatpush.msra.mxu0 %v1230
        %1629 = vmatpush.msra.mxu0 %v1226
        %1630 = vmatpush.msra.mxu0 %v1222
        %1631 = vmatpush.msra.mxu0 %v1218
        %1632 = vmatpush.msra.mxu0 %v1214
        %1633 = vmatpush.msra.mxu0 %v1210
        %1634 = vmatmul.f32.gmra.mxu0 %v312
        %v1635 = vpop.f32.mrf.mxu0
        %v1636 = vadd.f32 %v1616, %v1635
        %1637 = vdwg.mxu0
        %1638 = vmatpush.msra.mxu0 %v1334
        %1639 = vmatpush.msra.mxu0 %v1330
        %1640 = vmatpush.msra.mxu0 %v1326
        %1641 = vmatpush.msra.mxu0 %v1322
        %1642 = vmatpush.msra.mxu0 %v1318
        %1643 = vmatpush.msra.mxu0 %v1314
        %1644 = vmatpush.msra.mxu0 %v1310
        %1645 = vmatpush.msra.mxu0 %v1306
        %1646 = vmatpush.msra.mxu0 %v1302
        %1647 = vmatpush.msra.mxu0 %v1298
        %1648 = vmatpush.msra.mxu0 %v1294
        %1649 = vmatpush.msra.mxu0 %v1290
        %1650 = vmatpush.msra.mxu0 %v1286
        %1651 = vmatpush.msra.mxu0 %v1282
        %1652 = vmatpush.msra.mxu0 %v1278
        %1653 = vmatpush.msra.mxu0 %v1274
        %1654 = vmatmul.f32.gmra.mxu0 %v313
        %v1655 = vpop.f32.mrf.mxu0
        %v1656 = vadd.f32 %v1636, %v1655
        %1657 = vdwg.mxu0
        %1658 = vmatpush.msra.mxu0 %v375
        %1659 = vmatpush.msra.mxu0 %v371
        %1660 = vmatpush.msra.mxu0 %v367
        %1661 = vmatpush.msra.mxu0 %v363
        %1662 = vmatpush.msra.mxu0 %v359
        %1663 = vmatpush.msra.mxu0 %v355
        %1664 = vmatpush.msra.mxu0 %v351
        %1665 = vmatpush.msra.mxu0 %v347
        %1666 = vmatpush.msra.mxu0 %v343
        %1667 = vmatpush.msra.mxu0 %v339
        %1668 = vmatpush.msra.mxu0 %v335
        %1669 = vmatpush.msra.mxu0 %v331
        %1670 = vmatpush.msra.mxu0 %v327
        %1671 = vmatpush.msra.mxu0 %v323
        %1672 = vmatpush.msra.mxu0 %v319
        %1673 = vmatpush.msra.mxu0 %v315
        %1674 = vmatmul.f32.gmra.mxu0 %v298
        %v1675 = vpop.f32.mrf.mxu0
        %v1676 = vadd.f32 0.0, %v1675
        %1677 = vdwg.mxu0
        %1678 = vmatpush.msra.mxu0 %v439
        %1679 = vmatpush.msra.mxu0 %v435
        %1680 = vmatpush.msra.mxu0 %v431
        %1681 = vmatpush.msra.mxu0 %v427
        %1682 = vmatpush.msra.mxu0 %v423
        %1683 = vmatpush.msra.mxu0 %v419
        %1684 = vmatpush.msra.mxu0 %v415
        %1685 = vmatpush.msra.mxu0 %v411
        %1686 = vmatpush.msra.mxu0 %v407
        %1687 = vmatpush.msra.mxu0 %v403
        %1688 = vmatpush.msra.mxu0 %v399
        %1689 = vmatpush.msra.mxu0 %v395
        %1690 = vmatpush.msra.mxu0 %v391
        %1691 = vmatpush.msra.mxu0 %v387
        %1692 = vmatpush.msra.mxu0 %v383
        %1693 = vmatpush.msra.mxu0 %v379
        %1694 = vmatmul.f32.gmra.mxu0 %v299
        %v1695 = vpop.f32.mrf.mxu0
        %v1696 = vadd.f32 %v1676, %v1695
        %1697 = vdwg.mxu0
        %1698 = vmatpush.msra.mxu0 %v503
        %1699 = vmatpush.msra.mxu0 %v499
        %1700 = vmatpush.msra.mxu0 %v495
        %1701 = vmatpush.msra.mxu0 %v491
        %1702 = vmatpush.msra.mxu0 %v487
        %1703 = vmatpush.msra.mxu0 %v483
        %1704 = vmatpush.msra.mxu0 %v479
        %1705 = vmatpush.msra.mxu0 %v475
        %1706 = vmatpush.msra.mxu0 %v471
        %1707 = vmatpush.msra.mxu0 %v467
        %1708 = vmatpush.msra.mxu0 %v463
        %1709 = vmatpush.msra.mxu0 %v459
        %1710 = vmatpush.msra.mxu0 %v455
        %1711 = vmatpush.msra.mxu0 %v451
        %1712 = vmatpush.msra.mxu0 %v447
        %1713 = vmatpush.msra.mxu0 %v443
        %1714 = vmatmul.f32.gmra.mxu0 %v300
        %v1715 = vpop.f32.mrf.mxu0
        %v1716 = vadd.f32 %v1696, %v1715
        %1717 = vdwg.mxu0
        %1718 = vmatpush.msra.mxu0 %v567
        %1719 = vmatpush.msra.mxu0 %v563
        %1720 = vmatpush.msra.mxu0 %v559
        %1721 = vmatpush.msra.mxu0 %v555
        %1722 = vmatpush.msra.mxu0 %v551
        %1723 = vmatpush.msra.mxu0 %v547
        %1724 = vmatpush.msra.mxu0 %v543
        %1725 = vmatpush.msra.mxu0 %v539
        %1726 = vmatpush.msra.mxu0 %v535
        %1727 = vmatpush.msra.mxu0 %v531
        %1728 = vmatpush.msra.mxu0 %v527
        %1729 = vmatpush.msra.mxu0 %v523
        %1730 = vmatpush.msra.mxu0 %v519
        %1731 = vmatpush.msra.mxu0 %v515
        %1732 = vmatpush.msra.mxu0 %v511
        %1733 = vmatpush.msra.mxu0 %v507
        %1734 = vmatmul.f32.gmra.mxu0 %v301
        %v1735 = vpop.f32.mrf.mxu0
        %v1736 = vadd.f32 %v1716, %v1735
        %1737 = vdwg.mxu0
        %1738 = vmatpush.msra.mxu0 %v631
        %1739 = vmatpush.msra.mxu0 %v627
        %1740 = vmatpush.msra.mxu0 %v623
        %1741 = vmatpush.msra.mxu0 %v619
        %1742 = vmatpush.msra.mxu0 %v615
        %1743 = vmatpush.msra.mxu0 %v611
        %1744 = vmatpush.msra.mxu0 %v607
        %1745 = vmatpush.msra.mxu0 %v603
        %1746 = vmatpush.msra.mxu0 %v599
        %1747 = vmatpush.msra.mxu0 %v595
        %1748 = vmatpush.msra.mxu0 %v591
        %1749 = vmatpush.msra.mxu0 %v587
        %1750 = vmatpush.msra.mxu0 %v583
        %1751 = vmatpush.msra.mxu0 %v579
        %1752 = vmatpush.msra.mxu0 %v575
        %1753 = vmatpush.msra.mxu0 %v571
        %1754 = vmatmul.f32.gmra.mxu0 %v302
        %v1755 = vpop.f32.mrf.mxu0
        %v1756 = vadd.f32 %v1736, %v1755
        %1757 = vdwg.mxu0
        %1758 = vmatpush.msra.mxu0 %v695
        %1759 = vmatpush.msra.mxu0 %v691
        %1760 = vmatpush.msra.mxu0 %v687
        %1761 = vmatpush.msra.mxu0 %v683
        %1762 = vmatpush.msra.mxu0 %v679
        %1763 = vmatpush.msra.mxu0 %v675
        %1764 = vmatpush.msra.mxu0 %v671
        %1765 = vmatpush.msra.mxu0 %v667
        %1766 = vmatpush.msra.mxu0 %v663
        %1767 = vmatpush.msra.mxu0 %v659
        %1768 = vmatpush.msra.mxu0 %v655
        %1769 = vmatpush.msra.mxu0 %v651
        %1770 = vmatpush.msra.mxu0 %v647
        %1771 = vmatpush.msra.mxu0 %v643
        %1772 = vmatpush.msra.mxu0 %v639
        %1773 = vmatpush.msra.mxu0 %v635
        %1774 = vmatmul.f32.gmra.mxu0 %v303
        %v1775 = vpop.f32.mrf.mxu0
        %v1776 = vadd.f32 %v1756, %v1775
        %1777 = vdwg.mxu0
        %1778 = vmatpush.msra.mxu0 %v759
        %1779 = vmatpush.msra.mxu0 %v755
        %1780 = vmatpush.msra.mxu0 %v751
        %1781 = vmatpush.msra.mxu0 %v747
        %1782 = vmatpush.msra.mxu0 %v743
        %1783 = vmatpush.msra.mxu0 %v739
        %1784 = vmatpush.msra.mxu0 %v735
        %1785 = vmatpush.msra.mxu0 %v731
        %1786 = vmatpush.msra.mxu0 %v727
        %1787 = vmatpush.msra.mxu0 %v723
        %1788 = vmatpush.msra.mxu0 %v719
        %1789 = vmatpush.msra.mxu0 %v715
        %1790 = vmatpush.msra.mxu0 %v711
        %1791 = vmatpush.msra.mxu0 %v707
        %1792 = vmatpush.msra.mxu0 %v703
        %1793 = vmatpush.msra.mxu0 %v699
        %1794 = vmatmul.f32.gmra.mxu0 %v304
        %v1795 = vpop.f32.mrf.mxu0
        %v1796 = vadd.f32 %v1776, %v1795
        %1797 = vdwg.mxu0
        %1798 = vmatpush.msra.mxu0 %v823
        %1799 = vmatpush.msra.mxu0 %v819
        %1800 = vmatpush.msra.mxu0 %v815
        %1801 = vmatpush.msra.mxu0 %v811
        %1802 = vmatpush.msra.mxu0 %v807
        %1803 = vmatpush.msra.mxu0 %v803
        %1804 = vmatpush.msra.mxu0 %v799
        %1805 = vmatpush.msra.mxu0 %v795
        %1806 = vmatpush.msra.mxu0 %v791
        %1807 = vmatpush.msra.mxu0 %v787
        %1808 = vmatpush.msra.mxu0 %v783
        %1809 = vmatpush.msra.mxu0 %v779
        %1810 = vmatpush.msra.mxu0 %v775
        %1811 = vmatpush.msra.mxu0 %v771
        %1812 = vmatpush.msra.mxu0 %v767
        %1813 = vmatpush.msra.mxu0 %v763
        %1814 = vmatmul.f32.gmra.mxu0 %v305
        %v1815 = vpop.f32.mrf.mxu0
        %v1816 = vadd.f32 %v1796, %v1815
        %1817 = vdwg.mxu0
        %1818 = vmatpush.msra.mxu0 %v887
        %1819 = vmatpush.msra.mxu0 %v883
        %1820 = vmatpush.msra.mxu0 %v879
        %1821 = vmatpush.msra.mxu0 %v875
        %1822 = vmatpush.msra.mxu0 %v871
        %1823 = vmatpush.msra.mxu0 %v867
        %1824 = vmatpush.msra.mxu0 %v863
        %1825 = vmatpush.msra.mxu0 %v859
        %1826 = vmatpush.msra.mxu0 %v855
        %1827 = vmatpush.msra.mxu0 %v851
        %1828 = vmatpush.msra.mxu0 %v847
        %1829 = vmatpush.msra.mxu0 %v843
        %1830 = vmatpush.msra.mxu0 %v839
        %1831 = vmatpush.msra.mxu0 %v835
        %1832 = vmatpush.msra.mxu0 %v831
        %1833 = vmatpush.msra.mxu0 %v827
        %1834 = vmatmul.f32.gmra.mxu0 %v306
        %v1835 = vpop.f32.mrf.mxu0
        %v1836 = vadd.f32 %v1816, %v1835
        %1837 = vdwg.mxu0
        %1838 = vmatpush.msra.mxu0 %v951
        %1839 = vmatpush.msra.mxu0 %v947
        %1840 = vmatpush.msra.mxu0 %v943
        %1841 = vmatpush.msra.mxu0 %v939
        %1842 = vmatpush.msra.mxu0 %v935
        %1843 = vmatpush.msra.mxu0 %v931
        %1844 = vmatpush.msra.mxu0 %v927
        %1845 = vmatpush.msra.mxu0 %v923
        %1846 = vmatpush.msra.mxu0 %v919
        %1847 = vmatpush.msra.mxu0 %v915
        %1848 = vmatpush.msra.mxu0 %v911
        %1849 = vmatpush.msra.mxu0 %v907
        %1850 = vmatpush.msra.mxu0 %v903
        %1851 = vmatpush.msra.mxu0 %v899
        %1852 = vmatpush.msra.mxu0 %v895
        %1853 = vmatpush.msra.mxu0 %v891
        %1854 = vmatmul.f32.gmra.mxu0 %v307
        %v1855 = vpop.f32.mrf.mxu0
        %v1856 = vadd.f32 %v1836, %v1855
        %1857 = vdwg.mxu0
        %1858 = vmatpush.msra.mxu0 %v1015
        %1859 = vmatpush.msra.mxu0 %v1011
        %1860 = vmatpush.msra.mxu0 %v1007
        %1861 = vmatpush.msra.mxu0 %v1003
        %1862 = vmatpush.msra.mxu0 %v999
        %1863 = vmatpush.msra.mxu0 %v995
        %1864 = vmatpush.msra.mxu0 %v991
        %1865 = vmatpush.msra.mxu0 %v987
        %1866 = vmatpush.msra.mxu0 %v983
        %1867 = vmatpush.msra.mxu0 %v979
        %1868 = vmatpush.msra.mxu0 %v975
        %1869 = vmatpush.msra.mxu0 %v971
        %1870 = vmatpush.msra.mxu0 %v967
        %1871 = vmatpush.msra.mxu0 %v963
        %1872 = vmatpush.msra.mxu0 %v959
        %1873 = vmatpush.msra.mxu0 %v955
        %1874 = vmatmul.f32.gmra.mxu0 %v308
        %v1875 = vpop.f32.mrf.mxu0
        %v1876 = vadd.f32 %v1856, %v1875
        %1877 = vdwg.mxu0
        %1878 = vmatpush.msra.mxu0 %v1079
        %1879 = vmatpush.msra.mxu0 %v1075
        %1880 = vmatpush.msra.mxu0 %v1071
        %1881 = vmatpush.msra.mxu0 %v1067
        %1882 = vmatpush.msra.mxu0 %v1063
        %1883 = vmatpush.msra.mxu0 %v1059
        %1884 = vmatpush.msra.mxu0 %v1055
        %1885 = vmatpush.msra.mxu0 %v1051
        %1886 = vmatpush.msra.mxu0 %v1047
        %1887 = vmatpush.msra.mxu0 %v1043
        %1888 = vmatpush.msra.mxu0 %v1039
        %1889 = vmatpush.msra.mxu0 %v1035
        %1890 = vmatpush.msra.mxu0 %v1031
        %1891 = vmatpush.msra.mxu0 %v1027
        %1892 = vmatpush.msra.mxu0 %v1023
        %1893 = vmatpush.msra.mxu0 %v1019
        %1894 = vmatmul.f32.gmra.mxu0 %v309
        %v1895 = vpop.f32.mrf.mxu0
        %v1896 = vadd.f32 %v1876, %v1895
        %1897 = vdwg.mxu0
        %1898 = vmatpush.msra.mxu0 %v1143
        %1899 = vmatpush.msra.mxu0 %v1139
        %1900 = vmatpush.msra.mxu0 %v1135
        %1901 = vmatpush.msra.mxu0 %v1131
        %1902 = vmatpush.msra.mxu0 %v1127
        %1903 = vmatpush.msra.mxu0 %v1123
        %1904 = vmatpush.msra.mxu0 %v1119
        %1905 = vmatpush.msra.mxu0 %v1115
        %1906 = vmatpush.msra.mxu0 %v1111
        %1907 = vmatpush.msra.mxu0 %v1107
        %1908 = vmatpush.msra.mxu0 %v1103
        %1909 = vmatpush.msra.mxu0 %v1099
        %1910 = vmatpush.msra.mxu0 %v1095
        %1911 = vmatpush.msra.mxu0 %v1091
        %1912 = vmatpush.msra.mxu0 %v1087
        %1913 = vmatpush.msra.mxu0 %v1083
        %1914 = vmatmul.f32.gmra.mxu0 %v310
        %v1915 = vpop.f32.mrf.mxu0
        %v1916 = vadd.f32 %v1896, %v1915
        %1917 = vdwg.mxu0
        %1918 = vmatpush.msra.mxu0 %v1207
        %1919 = vmatpush.msra.mxu0 %v1203
        %1920 = vmatpush.msra.mxu0 %v1199
        %1921 = vmatpush.msra.mxu0 %v1195
        %1922 = vmatpush.msra.mxu0 %v1191
        %1923 = vmatpush.msra.mxu0 %v1187
        %1924 = vmatpush.msra.mxu0 %v1183
        %1925 = vmatpush.msra.mxu0 %v1179
        %1926 = vmatpush.msra.mxu0 %v1175
        %1927 = vmatpush.msra.mxu0 %v1171
        %1928 = vmatpush.msra.mxu0 %v1167
        %1929 = vmatpush.msra.mxu0 %v1163
        %1930 = vmatpush.msra.mxu0 %v1159
        %1931 = vmatpush.msra.mxu0 %v1155
        %1932 = vmatpush.msra.mxu0 %v1151
        %1933 = vmatpush.msra.mxu0 %v1147
        %1934 = vmatmul.f32.gmra.mxu0 %v311
        %v1935 = vpop.f32.mrf.mxu0
        %v1936 = vadd.f32 %v1916, %v1935
        %1937 = vdwg.mxu0
        %1938 = vmatpush.msra.mxu0 %v1271
        %1939 = vmatpush.msra.mxu0 %v1267
        %1940 = vmatpush.msra.mxu0 %v1263
        %1941 = vmatpush.msra.mxu0 %v1259
        %1942 = vmatpush.msra.mxu0 %v1255
        %1943 = vmatpush.msra.mxu0 %v1251
        %1944 = vmatpush.msra.mxu0 %v1247
        %1945 = vmatpush.msra.mxu0 %v1243
        %1946 = vmatpush.msra.mxu0 %v1239
        %1947 = vmatpush.msra.mxu0 %v1235
        %1948 = vmatpush.msra.mxu0 %v1231
        %1949 = vmatpush.msra.mxu0 %v1227
        %1950 = vmatpush.msra.mxu0 %v1223
        %1951 = vmatpush.msra.mxu0 %v1219
        %1952 = vmatpush.msra.mxu0 %v1215
        %1953 = vmatpush.msra.mxu0 %v1211
        %1954 = vmatmul.f32.gmra.mxu0 %v312
        %v1955 = vpop.f32.mrf.mxu0
        %v1956 = vadd.f32 %v1936, %v1955
        %1957 = vdwg.mxu0
        %1958 = vmatpush.msra.mxu0 %v1335
        %1959 = vmatpush.msra.mxu0 %v1331
        %1960 = vmatpush.msra.mxu0 %v1327
        %1961 = vmatpush.msra.mxu0 %v1323
        %1962 = vmatpush.msra.mxu0 %v1319
        %1963 = vmatpush.msra.mxu0 %v1315
        %1964 = vmatpush.msra.mxu0 %v1311
        %1965 = vmatpush.msra.mxu0 %v1307
        %1966 = vmatpush.msra.mxu0 %v1303
        %1967 = vmatpush.msra.mxu0 %v1299
        %1968 = vmatpush.msra.mxu0 %v1295
        %1969 = vmatpush.msra.mxu0 %v1291
        %1970 = vmatpush.msra.mxu0 %v1287
        %1971 = vmatpush.msra.mxu0 %v1283
        %1972 = vmatpush.msra.mxu0 %v1279
        %1973 = vmatpush.msra.mxu0 %v1275
        %1974 = vmatmul.f32.gmra.mxu0 %v313
        %v1975 = vpop.f32.mrf.mxu0
        %v1976 = vadd.f32 %v1956, %v1975
        %1977 = vdwg.mxu0
        %1978 = vmatpush.msra.mxu0 %v376
        %1979 = vmatpush.msra.mxu0 %v372
        %1980 = vmatpush.msra.mxu0 %v368
        %1981 = vmatpush.msra.mxu0 %v364
        %1982 = vmatpush.msra.mxu0 %v360
        %1983 = vmatpush.msra.mxu0 %v356
        %1984 = vmatpush.msra.mxu0 %v352
        %1985 = vmatpush.msra.mxu0 %v348
        %1986 = vmatpush.msra.mxu0 %v344
        %1987 = vmatpush.msra.mxu0 %v340
        %1988 = vmatpush.msra.mxu0 %v336
        %1989 = vmatpush.msra.mxu0 %v332
        %1990 = vmatpush.msra.mxu0 %v328
        %1991 = vmatpush.msra.mxu0 %v324
        %1992 = vmatpush.msra.mxu0 %v320
        %1993 = vmatpush.msra.mxu0 %v316
        %1994 = vmatmul.f32.gmra.mxu0 %v298
        %v1995 = vpop.f32.mrf.mxu0
        %v1996 = vadd.f32 0.0, %v1995
        %1997 = vdwg.mxu0
        %1998 = vmatpush.msra.mxu0 %v440
        %1999 = vmatpush.msra.mxu0 %v436
        %2000 = vmatpush.msra.mxu0 %v432
        %2001 = vmatpush.msra.mxu0 %v428
        %2002 = vmatpush.msra.mxu0 %v424
        %2003 = vmatpush.msra.mxu0 %v420
        %2004 = vmatpush.msra.mxu0 %v416
        %2005 = vmatpush.msra.mxu0 %v412
        %2006 = vmatpush.msra.mxu0 %v408
        %2007 = vmatpush.msra.mxu0 %v404
        %2008 = vmatpush.msra.mxu0 %v400
        %2009 = vmatpush.msra.mxu0 %v396
        %2010 = vmatpush.msra.mxu0 %v392
        %2011 = vmatpush.msra.mxu0 %v388
        %2012 = vmatpush.msra.mxu0 %v384
        %2013 = vmatpush.msra.mxu0 %v380
        %2014 = vmatmul.f32.gmra.mxu0 %v299
        %v2015 = vpop.f32.mrf.mxu0
        %v2016 = vadd.f32 %v1996, %v2015
        %2017 = vdwg.mxu0
        %2018 = vmatpush.msra.mxu0 %v504
        %2019 = vmatpush.msra.mxu0 %v500
        %2020 = vmatpush.msra.mxu0 %v496
        %2021 = vmatpush.msra.mxu0 %v492
        %2022 = vmatpush.msra.mxu0 %v488
        %2023 = vmatpush.msra.mxu0 %v484
        %2024 = vmatpush.msra.mxu0 %v480
        %2025 = vmatpush.msra.mxu0 %v476
        %2026 = vmatpush.msra.mxu0 %v472
        %2027 = vmatpush.msra.mxu0 %v468
        %2028 = vmatpush.msra.mxu0 %v464
        %2029 = vmatpush.msra.mxu0 %v460
        %2030 = vmatpush.msra.mxu0 %v456
        %2031 = vmatpush.msra.mxu0 %v452
        %2032 = vmatpush.msra.mxu0 %v448
        %2033 = vmatpush.msra.mxu0 %v444
        %2034 = vmatmul.f32.gmra.mxu0 %v300
        %v2035 = vpop.f32.mrf.mxu0
        %v2036 = vadd.f32 %v2016, %v2035
        %2037 = vdwg.mxu0
        %2038 = vmatpush.msra.mxu0 %v568
        %2039 = vmatpush.msra.mxu0 %v564
        %2040 = vmatpush.msra.mxu0 %v560
        %2041 = vmatpush.msra.mxu0 %v556
        %2042 = vmatpush.msra.mxu0 %v552
        %2043 = vmatpush.msra.mxu0 %v548
        %2044 = vmatpush.msra.mxu0 %v544
        %2045 = vmatpush.msra.mxu0 %v540
        %2046 = vmatpush.msra.mxu0 %v536
        %2047 = vmatpush.msra.mxu0 %v532
        %2048 = vmatpush.msra.mxu0 %v528
        %2049 = vmatpush.msra.mxu0 %v524
        %2050 = vmatpush.msra.mxu0 %v520
        %2051 = vmatpush.msra.mxu0 %v516
        %2052 = vmatpush.msra.mxu0 %v512
        %2053 = vmatpush.msra.mxu0 %v508
        %2054 = vmatmul.f32.gmra.mxu0 %v301
        %v2055 = vpop.f32.mrf.mxu0
        %v2056 = vadd.f32 %v2036, %v2055
        %2057 = vdwg.mxu0
        %2058 = vmatpush.msra.mxu0 %v632
        %2059 = vmatpush.msra.mxu0 %v628
        %2060 = vmatpush.msra.mxu0 %v624
        %2061 = vmatpush.msra.mxu0 %v620
        %2062 = vmatpush.msra.mxu0 %v616
        %2063 = vmatpush.msra.mxu0 %v612
        %2064 = vmatpush.msra.mxu0 %v608
        %2065 = vmatpush.msra.mxu0 %v604
        %2066 = vmatpush.msra.mxu0 %v600
        %2067 = vmatpush.msra.mxu0 %v596
        %2068 = vmatpush.msra.mxu0 %v592
        %2069 = vmatpush.msra.mxu0 %v588
        %2070 = vmatpush.msra.mxu0 %v584
        %2071 = vmatpush.msra.mxu0 %v580
        %2072 = vmatpush.msra.mxu0 %v576
        %2073 = vmatpush.msra.mxu0 %v572
        %2074 = vmatmul.f32.gmra.mxu0 %v302
        %v2075 = vpop.f32.mrf.mxu0
        %v2076 = vadd.f32 %v2056, %v2075
        %2077 = vdwg.mxu0
        %2078 = vmatpush.msra.mxu0 %v696
        %2079 = vmatpush.msra.mxu0 %v692
        %2080 = vmatpush.msra.mxu0 %v688
        %2081 = vmatpush.msra.mxu0 %v684
        %2082 = vmatpush.msra.mxu0 %v680
        %2083 = vmatpush.msra.mxu0 %v676
        %2084 = vmatpush.msra.mxu0 %v672
        %2085 = vmatpush.msra.mxu0 %v668
        %2086 = vmatpush.msra.mxu0 %v664
        %2087 = vmatpush.msra.mxu0 %v660
        %2088 = vmatpush.msra.mxu0 %v656
        %2089 = vmatpush.msra.mxu0 %v652
        %2090 = vmatpush.msra.mxu0 %v648
        %2091 = vmatpush.msra.mxu0 %v644
        %2092 = vmatpush.msra.mxu0 %v640
        %2093 = vmatpush.msra.mxu0 %v636
        %2094 = vmatmul.f32.gmra.mxu0 %v303
        %v2095 = vpop.f32.mrf.mxu0
        %v2096 = vadd.f32 %v2076, %v2095
        %2097 = vdwg.mxu0
        %2098 = vmatpush.msra.mxu0 %v760
        %2099 = vmatpush.msra.mxu0 %v756
        %2100 = vmatpush.msra.mxu0 %v752
        %2101 = vmatpush.msra.mxu0 %v748
        %2102 = vmatpush.msra.mxu0 %v744
        %2103 = vmatpush.msra.mxu0 %v740
        %2104 = vmatpush.msra.mxu0 %v736
        %2105 = vmatpush.msra.mxu0 %v732
        %2106 = vmatpush.msra.mxu0 %v728
        %2107 = vmatpush.msra.mxu0 %v724
        %2108 = vmatpush.msra.mxu0 %v720
        %2109 = vmatpush.msra.mxu0 %v716
        %2110 = vmatpush.msra.mxu0 %v712
        %2111 = vmatpush.msra.mxu0 %v708
        %2112 = vmatpush.msra.mxu0 %v704
        %2113 = vmatpush.msra.mxu0 %v700
        %2114 = vmatmul.f32.gmra.mxu0 %v304
        %v2115 = vpop.f32.mrf.mxu0
        %v2116 = vadd.f32 %v2096, %v2115
        %2117 = vdwg.mxu0
        %2118 = vmatpush.msra.mxu0 %v824
        %2119 = vmatpush.msra.mxu0 %v820
        %2120 = vmatpush.msra.mxu0 %v816
        %2121 = vmatpush.msra.mxu0 %v812
        %2122 = vmatpush.msra.mxu0 %v808
        %2123 = vmatpush.msra.mxu0 %v804
        %2124 = vmatpush.msra.mxu0 %v800
        %2125 = vmatpush.msra.mxu0 %v796
        %2126 = vmatpush.msra.mxu0 %v792
        %2127 = vmatpush.msra.mxu0 %v788
        %2128 = vmatpush.msra.mxu0 %v784
        %2129 = vmatpush.msra.mxu0 %v780
        %2130 = vmatpush.msra.mxu0 %v776
        %2131 = vmatpush.msra.mxu0 %v772
        %2132 = vmatpush.msra.mxu0 %v768
        %2133 = vmatpush.msra.mxu0 %v764
        %2134 = vmatmul.f32.gmra.mxu0 %v305
        %v2135 = vpop.f32.mrf.mxu0
        %v2136 = vadd.f32 %v2116, %v2135
        %2137 = vdwg.mxu0
        %2138 = vmatpush.msra.mxu0 %v888
        %2139 = vmatpush.msra.mxu0 %v884
        %2140 = vmatpush.msra.mxu0 %v880
        %2141 = vmatpush.msra.mxu0 %v876
        %2142 = vmatpush.msra.mxu0 %v872
        %2143 = vmatpush.msra.mxu0 %v868
        %2144 = vmatpush.msra.mxu0 %v864
        %2145 = vmatpush.msra.mxu0 %v860
        %2146 = vmatpush.msra.mxu0 %v856
        %2147 = vmatpush.msra.mxu0 %v852
        %2148 = vmatpush.msra.mxu0 %v848
        %2149 = vmatpush.msra.mxu0 %v844
        %2150 = vmatpush.msra.mxu0 %v840
        %2151 = vmatpush.msra.mxu0 %v836
        %2152 = vmatpush.msra.mxu0 %v832
        %2153 = vmatpush.msra.mxu0 %v828
        %2154 = vmatmul.f32.gmra.mxu0 %v306
        %v2155 = vpop.f32.mrf.mxu0
        %v2156 = vadd.f32 %v2136, %v2155
        %2157 = vdwg.mxu0
        %2158 = vmatpush.msra.mxu0 %v952
        %2159 = vmatpush.msra.mxu0 %v948
        %2160 = vmatpush.msra.mxu0 %v944
        %2161 = vmatpush.msra.mxu0 %v940
        %2162 = vmatpush.msra.mxu0 %v936
        %2163 = vmatpush.msra.mxu0 %v932
        %2164 = vmatpush.msra.mxu0 %v928
        %2165 = vmatpush.msra.mxu0 %v924
        %2166 = vmatpush.msra.mxu0 %v920
        %2167 = vmatpush.msra.mxu0 %v916
        %2168 = vmatpush.msra.mxu0 %v912
        %2169 = vmatpush.msra.mxu0 %v908
        %2170 = vmatpush.msra.mxu0 %v904
        %2171 = vmatpush.msra.mxu0 %v900
        %2172 = vmatpush.msra.mxu0 %v896
        %2173 = vmatpush.msra.mxu0 %v892
        %2174 = vmatmul.f32.gmra.mxu0 %v307
        %v2175 = vpop.f32.mrf.mxu0
        %v2176 = vadd.f32 %v2156, %v2175
        %2177 = vdwg.mxu0
        %2178 = vmatpush.msra.mxu0 %v1016
        %2179 = vmatpush.msra.mxu0 %v1012
        %2180 = vmatpush.msra.mxu0 %v1008
        %2181 = vmatpush.msra.mxu0 %v1004
        %2182 = vmatpush.msra.mxu0 %v1000
        %2183 = vmatpush.msra.mxu0 %v996
        %2184 = vmatpush.msra.mxu0 %v992
        %2185 = vmatpush.msra.mxu0 %v988
        %2186 = vmatpush.msra.mxu0 %v984
        %2187 = vmatpush.msra.mxu0 %v980
        %2188 = vmatpush.msra.mxu0 %v976
        %2189 = vmatpush.msra.mxu0 %v972
        %2190 = vmatpush.msra.mxu0 %v968
        %2191 = vmatpush.msra.mxu0 %v964
        %2192 = vmatpush.msra.mxu0 %v960
        %2193 = vmatpush.msra.mxu0 %v956
        %2194 = vmatmul.f32.gmra.mxu0 %v308
        %v2195 = vpop.f32.mrf.mxu0
        %v2196 = vadd.f32 %v2176, %v2195
        %2197 = vdwg.mxu0
        %2198 = vmatpush.msra.mxu0 %v1080
        %2199 = vmatpush.msra.mxu0 %v1076
        %2200 = vmatpush.msra.mxu0 %v1072
        %2201 = vmatpush.msra.mxu0 %v1068
        %2202 = vmatpush.msra.mxu0 %v1064
        %2203 = vmatpush.msra.mxu0 %v1060
        %2204 = vmatpush.msra.mxu0 %v1056
        %2205 = vmatpush.msra.mxu0 %v1052
        %2206 = vmatpush.msra.mxu0 %v1048
        %2207 = vmatpush.msra.mxu0 %v1044
        %2208 = vmatpush.msra.mxu0 %v1040
        %2209 = vmatpush.msra.mxu0 %v1036
        %2210 = vmatpush.msra.mxu0 %v1032
        %2211 = vmatpush.msra.mxu0 %v1028
        %2212 = vmatpush.msra.mxu0 %v1024
        %2213 = vmatpush.msra.mxu0 %v1020
        %2214 = vmatmul.f32.gmra.mxu0 %v309
        %v2215 = vpop.f32.mrf.mxu0
        %v2216 = vadd.f32 %v2196, %v2215
        %2217 = vdwg.mxu0
        %2218 = vmatpush.msra.mxu0 %v1144
        %2219 = vmatpush.msra.mxu0 %v1140
        %2220 = vmatpush.msra.mxu0 %v1136
        %2221 = vmatpush.msra.mxu0 %v1132
        %2222 = vmatpush.msra.mxu0 %v1128
        %2223 = vmatpush.msra.mxu0 %v1124
        %2224 = vmatpush.msra.mxu0 %v1120
        %2225 = vmatpush.msra.mxu0 %v1116
        %2226 = vmatpush.msra.mxu0 %v1112
        %2227 = vmatpush.msra.mxu0 %v1108
        %2228 = vmatpush.msra.mxu0 %v1104
        %2229 = vmatpush.msra.mxu0 %v1100
        %2230 = vmatpush.msra.mxu0 %v1096
        %2231 = vmatpush.msra.mxu0 %v1092
        %2232 = vmatpush.msra.mxu0 %v1088
        %2233 = vmatpush.msra.mxu0 %v1084
        %2234 = vmatmul.f32.gmra.mxu0 %v310
        %v2235 = vpop.f32.mrf.mxu0
        %v2236 = vadd.f32 %v2216, %v2235
        %2237 = vdwg.mxu0
        %2238 = vmatpush.msra.mxu0 %v1208
        %2239 = vmatpush.msra.mxu0 %v1204
        %2240 = vmatpush.msra.mxu0 %v1200
        %2241 = vmatpush.msra.mxu0 %v1196
        %2242 = vmatpush.msra.mxu0 %v1192
        %2243 = vmatpush.msra.mxu0 %v1188
        %2244 = vmatpush.msra.mxu0 %v1184
        %2245 = vmatpush.msra.mxu0 %v1180
        %2246 = vmatpush.msra.mxu0 %v1176
        %2247 = vmatpush.msra.mxu0 %v1172
        %2248 = vmatpush.msra.mxu0 %v1168
        %2249 = vmatpush.msra.mxu0 %v1164
        %2250 = vmatpush.msra.mxu0 %v1160
        %2251 = vmatpush.msra.mxu0 %v1156
        %2252 = vmatpush.msra.mxu0 %v1152
        %2253 = vmatpush.msra.mxu0 %v1148
        %2254 = vmatmul.f32.gmra.mxu0 %v311
        %v2255 = vpop.f32.mrf.mxu0
        %v2256 = vadd.f32 %v2236, %v2255
        %2257 = vdwg.mxu0
        %2258 = vmatpush.msra.mxu0 %v1272
        %2259 = vmatpush.msra.mxu0 %v1268
        %2260 = vmatpush.msra.mxu0 %v1264
        %2261 = vmatpush.msra.mxu0 %v1260
        %2262 = vmatpush.msra.mxu0 %v1256
        %2263 = vmatpush.msra.mxu0 %v1252
        %2264 = vmatpush.msra.mxu0 %v1248
        %2265 = vmatpush.msra.mxu0 %v1244
        %2266 = vmatpush.msra.mxu0 %v1240
        %2267 = vmatpush.msra.mxu0 %v1236
        %2268 = vmatpush.msra.mxu0 %v1232
        %2269 = vmatpush.msra.mxu0 %v1228
        %2270 = vmatpush.msra.mxu0 %v1224
        %2271 = vmatpush.msra.mxu0 %v1220
        %2272 = vmatpush.msra.mxu0 %v1216
        %2273 = vmatpush.msra.mxu0 %v1212
        %2274 = vmatmul.f32.gmra.mxu0 %v312
        %v2275 = vpop.f32.mrf.mxu0
        %v2276 = vadd.f32 %v2256, %v2275
        %2277 = vdwg.mxu0
        %2278 = vmatpush.msra.mxu0 %v1336
        %2279 = vmatpush.msra.mxu0 %v1332
        %2280 = vmatpush.msra.mxu0 %v1328
        %2281 = vmatpush.msra.mxu0 %v1324
        %2282 = vmatpush.msra.mxu0 %v1320
        %2283 = vmatpush.msra.mxu0 %v1316
        %2284 = vmatpush.msra.mxu0 %v1312
        %2285 = vmatpush.msra.mxu0 %v1308
        %2286 = vmatpush.msra.mxu0 %v1304
        %2287 = vmatpush.msra.mxu0 %v1300
        %2288 = vmatpush.msra.mxu0 %v1296
        %2289 = vmatpush.msra.mxu0 %v1292
        %2290 = vmatpush.msra.mxu0 %v1288
        %2291 = vmatpush.msra.mxu0 %v1284
        %2292 = vmatpush.msra.mxu0 %v1280
        %2293 = vmatpush.msra.mxu0 %v1276
        %2294 = vmatmul.f32.gmra.mxu0 %v313
        %v2295 = vpop.f32.mrf.mxu0
        %v2296 = vadd.f32 %v2276, %v2295
        %2297 = vdwg.mxu0
        %2298 = vmatpush.msra.mxu0 %v377
        %2299 = vmatpush.msra.mxu0 %v373
        %2300 = vmatpush.msra.mxu0 %v369
        %2301 = vmatpush.msra.mxu0 %v365
        %2302 = vmatpush.msra.mxu0 %v361
        %2303 = vmatpush.msra.mxu0 %v357
        %2304 = vmatpush.msra.mxu0 %v353
        %2305 = vmatpush.msra.mxu0 %v349
        %2306 = vmatpush.msra.mxu0 %v345
        %2307 = vmatpush.msra.mxu0 %v341
        %2308 = vmatpush.msra.mxu0 %v337
        %2309 = vmatpush.msra.mxu0 %v333
        %2310 = vmatpush.msra.mxu0 %v329
        %2311 = vmatpush.msra.mxu0 %v325
        %2312 = vmatpush.msra.mxu0 %v321
        %2313 = vmatpush.msra.mxu0 %v317
        %2314 = vmatmul.f32.gmra.mxu0 %v298
        %v2315 = vpop.f32.mrf.mxu0
        %v2316 = vadd.f32 0.0, %v2315
        %2317 = vdwg.mxu0
        %2318 = vmatpush.msra.mxu0 %v441
        %2319 = vmatpush.msra.mxu0 %v437
        %2320 = vmatpush.msra.mxu0 %v433
        %2321 = vmatpush.msra.mxu0 %v429
        %2322 = vmatpush.msra.mxu0 %v425
        %2323 = vmatpush.msra.mxu0 %v421
        %2324 = vmatpush.msra.mxu0 %v417
        %2325 = vmatpush.msra.mxu0 %v413
        %2326 = vmatpush.msra.mxu0 %v409
        %2327 = vmatpush.msra.mxu0 %v405
        %2328 = vmatpush.msra.mxu0 %v401
        %2329 = vmatpush.msra.mxu0 %v397
        %2330 = vmatpush.msra.mxu0 %v393
        %2331 = vmatpush.msra.mxu0 %v389
        %2332 = vmatpush.msra.mxu0 %v385
        %2333 = vmatpush.msra.mxu0 %v381
        %2334 = vmatmul.f32.gmra.mxu0 %v299
        %v2335 = vpop.f32.mrf.mxu0
        %v2336 = vadd.f32 %v2316, %v2335
        %2337 = vdwg.mxu0
        %2338 = vmatpush.msra.mxu0 %v505
        %2339 = vmatpush.msra.mxu0 %v501
        %2340 = vmatpush.msra.mxu0 %v497
        %2341 = vmatpush.msra.mxu0 %v493
        %2342 = vmatpush.msra.mxu0 %v489
        %2343 = vmatpush.msra.mxu0 %v485
        %2344 = vmatpush.msra.mxu0 %v481
        %2345 = vmatpush.msra.mxu0 %v477
        %2346 = vmatpush.msra.mxu0 %v473
        %2347 = vmatpush.msra.mxu0 %v469
        %2348 = vmatpush.msra.mxu0 %v465
        %2349 = vmatpush.msra.mxu0 %v461
        %2350 = vmatpush.msra.mxu0 %v457
        %2351 = vmatpush.msra.mxu0 %v453
        %2352 = vmatpush.msra.mxu0 %v449
        %2353 = vmatpush.msra.mxu0 %v445
        %2354 = vmatmul.f32.gmra.mxu0 %v300
        %v2355 = vpop.f32.mrf.mxu0
        %v2356 = vadd.f32 %v2336, %v2355
        %2357 = vdwg.mxu0
        %2358 = vmatpush.msra.mxu0 %v569
        %2359 = vmatpush.msra.mxu0 %v565
        %2360 = vmatpush.msra.mxu0 %v561
        %2361 = vmatpush.msra.mxu0 %v557
        %2362 = vmatpush.msra.mxu0 %v553
        %2363 = vmatpush.msra.mxu0 %v549
        %2364 = vmatpush.msra.mxu0 %v545
        %2365 = vmatpush.msra.mxu0 %v541
        %2366 = vmatpush.msra.mxu0 %v537
        %2367 = vmatpush.msra.mxu0 %v533
        %2368 = vmatpush.msra.mxu0 %v529
        %2369 = vmatpush.msra.mxu0 %v525
        %2370 = vmatpush.msra.mxu0 %v521
        %2371 = vmatpush.msra.mxu0 %v517
        %2372 = vmatpush.msra.mxu0 %v513
        %2373 = vmatpush.msra.mxu0 %v509
        %2374 = vmatmul.f32.gmra.mxu0 %v301
        %v2375 = vpop.f32.mrf.mxu0
        %v2376 = vadd.f32 %v2356, %v2375
        %2377 = vdwg.mxu0
        %2378 = vmatpush.msra.mxu0 %v633
        %2379 = vmatpush.msra.mxu0 %v629
        %2380 = vmatpush.msra.mxu0 %v625
        %2381 = vmatpush.msra.mxu0 %v621
        %2382 = vmatpush.msra.mxu0 %v617
        %2383 = vmatpush.msra.mxu0 %v613
        %2384 = vmatpush.msra.mxu0 %v609
        %2385 = vmatpush.msra.mxu0 %v605
        %2386 = vmatpush.msra.mxu0 %v601
        %2387 = vmatpush.msra.mxu0 %v597
        %2388 = vmatpush.msra.mxu0 %v593
        %2389 = vmatpush.msra.mxu0 %v589
        %2390 = vmatpush.msra.mxu0 %v585
        %2391 = vmatpush.msra.mxu0 %v581
        %2392 = vmatpush.msra.mxu0 %v577
        %2393 = vmatpush.msra.mxu0 %v573
        %2394 = vmatmul.f32.gmra.mxu0 %v302
        %v2395 = vpop.f32.mrf.mxu0
        %v2396 = vadd.f32 %v2376, %v2395
        %2397 = vdwg.mxu0
        %2398 = vmatpush.msra.mxu0 %v697
        %2399 = vmatpush.msra.mxu0 %v693
        %2400 = vmatpush.msra.mxu0 %v689
        %2401 = vmatpush.msra.mxu0 %v685
        %2402 = vmatpush.msra.mxu0 %v681
        %2403 = vmatpush.msra.mxu0 %v677
        %2404 = vmatpush.msra.mxu0 %v673
        %2405 = vmatpush.msra.mxu0 %v669
        %2406 = vmatpush.msra.mxu0 %v665
        %2407 = vmatpush.msra.mxu0 %v661
        %2408 = vmatpush.msra.mxu0 %v657
        %2409 = vmatpush.msra.mxu0 %v653
        %2410 = vmatpush.msra.mxu0 %v649
        %2411 = vmatpush.msra.mxu0 %v645
        %2412 = vmatpush.msra.mxu0 %v641
        %2413 = vmatpush.msra.mxu0 %v637
        %2414 = vmatmul.f32.gmra.mxu0 %v303
        %v2415 = vpop.f32.mrf.mxu0
        %v2416 = vadd.f32 %v2396, %v2415
        %2417 = vdwg.mxu0
        %2418 = vmatpush.msra.mxu0 %v761
        %2419 = vmatpush.msra.mxu0 %v757
        %2420 = vmatpush.msra.mxu0 %v753
        %2421 = vmatpush.msra.mxu0 %v749
        %2422 = vmatpush.msra.mxu0 %v745
        %2423 = vmatpush.msra.mxu0 %v741
        %2424 = vmatpush.msra.mxu0 %v737
        %2425 = vmatpush.msra.mxu0 %v733
        %2426 = vmatpush.msra.mxu0 %v729
        %2427 = vmatpush.msra.mxu0 %v725
        %2428 = vmatpush.msra.mxu0 %v721
        %2429 = vmatpush.msra.mxu0 %v717
        %2430 = vmatpush.msra.mxu0 %v713
        %2431 = vmatpush.msra.mxu0 %v709
        %2432 = vmatpush.msra.mxu0 %v705
        %2433 = vmatpush.msra.mxu0 %v701
        %2434 = vmatmul.f32.gmra.mxu0 %v304
        %v2435 = vpop.f32.mrf.mxu0
        %v2436 = vadd.f32 %v2416, %v2435
        %2437 = vdwg.mxu0
        %2438 = vmatpush.msra.mxu0 %v825
        %2439 = vmatpush.msra.mxu0 %v821
        %2440 = vmatpush.msra.mxu0 %v817
        %2441 = vmatpush.msra.mxu0 %v813
        %2442 = vmatpush.msra.mxu0 %v809
        %2443 = vmatpush.msra.mxu0 %v805
        %2444 = vmatpush.msra.mxu0 %v801
        %2445 = vmatpush.msra.mxu0 %v797
        %2446 = vmatpush.msra.mxu0 %v793
        %2447 = vmatpush.msra.mxu0 %v789
        %2448 = vmatpush.msra.mxu0 %v785
        %2449 = vmatpush.msra.mxu0 %v781
        %2450 = vmatpush.msra.mxu0 %v777
        %2451 = vmatpush.msra.mxu0 %v773
        %2452 = vmatpush.msra.mxu0 %v769
        %2453 = vmatpush.msra.mxu0 %v765
        %2454 = vmatmul.f32.gmra.mxu0 %v305
        %v2455 = vpop.f32.mrf.mxu0
        %v2456 = vadd.f32 %v2436, %v2455
        %2457 = vdwg.mxu0
        %2458 = vmatpush.msra.mxu0 %v889
        %2459 = vmatpush.msra.mxu0 %v885
        %2460 = vmatpush.msra.mxu0 %v881
        %2461 = vmatpush.msra.mxu0 %v877
        %2462 = vmatpush.msra.mxu0 %v873
        %2463 = vmatpush.msra.mxu0 %v869
        %2464 = vmatpush.msra.mxu0 %v865
        %2465 = vmatpush.msra.mxu0 %v861
        %2466 = vmatpush.msra.mxu0 %v857
        %2467 = vmatpush.msra.mxu0 %v853
        %2468 = vmatpush.msra.mxu0 %v849
        %2469 = vmatpush.msra.mxu0 %v845
        %2470 = vmatpush.msra.mxu0 %v841
        %2471 = vmatpush.msra.mxu0 %v837
        %2472 = vmatpush.msra.mxu0 %v833
        %2473 = vmatpush.msra.mxu0 %v829
        %2474 = vmatmul.f32.gmra.mxu0 %v306
        %v2475 = vpop.f32.mrf.mxu0
        %v2476 = vadd.f32 %v2456, %v2475
        %2477 = vdwg.mxu0
        %2478 = vmatpush.msra.mxu0 %v953
        %2479 = vmatpush.msra.mxu0 %v949
        %2480 = vmatpush.msra.mxu0 %v945
        %2481 = vmatpush.msra.mxu0 %v941
        %2482 = vmatpush.msra.mxu0 %v937
        %2483 = vmatpush.msra.mxu0 %v933
        %2484 = vmatpush.msra.mxu0 %v929
        %2485 = vmatpush.msra.mxu0 %v925
        %2486 = vmatpush.msra.mxu0 %v921
        %2487 = vmatpush.msra.mxu0 %v917
        %2488 = vmatpush.msra.mxu0 %v913
        %2489 = vmatpush.msra.mxu0 %v909
        %2490 = vmatpush.msra.mxu0 %v905
        %2491 = vmatpush.msra.mxu0 %v901
        %2492 = vmatpush.msra.mxu0 %v897
        %2493 = vmatpush.msra.mxu0 %v893
        %2494 = vmatmul.f32.gmra.mxu0 %v307
        %v2495 = vpop.f32.mrf.mxu0
        %v2496 = vadd.f32 %v2476, %v2495
        %2497 = vdwg.mxu0
        %2498 = vmatpush.msra.mxu0 %v1017
        %2499 = vmatpush.msra.mxu0 %v1013
        %2500 = vmatpush.msra.mxu0 %v1009
        %2501 = vmatpush.msra.mxu0 %v1005
        %2502 = vmatpush.msra.mxu0 %v1001
        %2503 = vmatpush.msra.mxu0 %v997
        %2504 = vmatpush.msra.mxu0 %v993
        %2505 = vmatpush.msra.mxu0 %v989
        %2506 = vmatpush.msra.mxu0 %v985
        %2507 = vmatpush.msra.mxu0 %v981
        %2508 = vmatpush.msra.mxu0 %v977
        %2509 = vmatpush.msra.mxu0 %v973
        %2510 = vmatpush.msra.mxu0 %v969
        %2511 = vmatpush.msra.mxu0 %v965
        %2512 = vmatpush.msra.mxu0 %v961
        %2513 = vmatpush.msra.mxu0 %v957
        %2514 = vmatmul.f32.gmra.mxu0 %v308
        %v2515 = vpop.f32.mrf.mxu0
        %v2516 = vadd.f32 %v2496, %v2515
        %2517 = vdwg.mxu0
        %2518 = vmatpush.msra.mxu0 %v1081
        %2519 = vmatpush.msra.mxu0 %v1077
        %2520 = vmatpush.msra.mxu0 %v1073
        %2521 = vmatpush.msra.mxu0 %v1069
        %2522 = vmatpush.msra.mxu0 %v1065
        %2523 = vmatpush.msra.mxu0 %v1061
        %2524 = vmatpush.msra.mxu0 %v1057
        %2525 = vmatpush.msra.mxu0 %v1053
        %2526 = vmatpush.msra.mxu0 %v1049
        %2527 = vmatpush.msra.mxu0 %v1045
        %2528 = vmatpush.msra.mxu0 %v1041
        %2529 = vmatpush.msra.mxu0 %v1037
        %2530 = vmatpush.msra.mxu0 %v1033
        %2531 = vmatpush.msra.mxu0 %v1029
        %2532 = vmatpush.msra.mxu0 %v1025
        %2533 = vmatpush.msra.mxu0 %v1021
        %2534 = vmatmul.f32.gmra.mxu0 %v309
        %v2535 = vpop.f32.mrf.mxu0
        %v2536 = vadd.f32 %v2516, %v2535
        %2537 = vdwg.mxu0
        %2538 = vmatpush.msra.mxu0 %v1145
        %2539 = vmatpush.msra.mxu0 %v1141
        %2540 = vmatpush.msra.mxu0 %v1137
        %2541 = vmatpush.msra.mxu0 %v1133
        %2542 = vmatpush.msra.mxu0 %v1129
        %2543 = vmatpush.msra.mxu0 %v1125
        %2544 = vmatpush.msra.mxu0 %v1121
        %2545 = vmatpush.msra.mxu0 %v1117
        %2546 = vmatpush.msra.mxu0 %v1113
        %2547 = vmatpush.msra.mxu0 %v1109
        %2548 = vmatpush.msra.mxu0 %v1105
        %2549 = vmatpush.msra.mxu0 %v1101
        %2550 = vmatpush.msra.mxu0 %v1097
        %2551 = vmatpush.msra.mxu0 %v1093
        %2552 = vmatpush.msra.mxu0 %v1089
        %2553 = vmatpush.msra.mxu0 %v1085
        %2554 = vmatmul.f32.gmra.mxu0 %v310
        %v2555 = vpop.f32.mrf.mxu0
        %v2556 = vadd.f32 %v2536, %v2555
        %2557 = vdwg.mxu0
        %2558 = vmatpush.msra.mxu0 %v1209
        %2559 = vmatpush.msra.mxu0 %v1205
        %2560 = vmatpush.msra.mxu0 %v1201
        %2561 = vmatpush.msra.mxu0 %v1197
        %2562 = vmatpush.msra.mxu0 %v1193
        %2563 = vmatpush.msra.mxu0 %v1189
        %2564 = vmatpush.msra.mxu0 %v1185
        %2565 = vmatpush.msra.mxu0 %v1181
        %2566 = vmatpush.msra.mxu0 %v1177
        %2567 = vmatpush.msra.mxu0 %v1173
        %2568 = vmatpush.msra.mxu0 %v1169
        %2569 = vmatpush.msra.mxu0 %v1165
        %2570 = vmatpush.msra.mxu0 %v1161
        %2571 = vmatpush.msra.mxu0 %v1157
        %2572 = vmatpush.msra.mxu0 %v1153
        %2573 = vmatpush.msra.mxu0 %v1149
        %2574 = vmatmul.f32.gmra.mxu0 %v311
        %v2575 = vpop.f32.mrf.mxu0
        %v2576 = vadd.f32 %v2556, %v2575
        %2577 = vdwg.mxu0
        %2578 = vmatpush.msra.mxu0 %v1273
        %2579 = vmatpush.msra.mxu0 %v1269
        %2580 = vmatpush.msra.mxu0 %v1265
        %2581 = vmatpush.msra.mxu0 %v1261
        %2582 = vmatpush.msra.mxu0 %v1257
        %2583 = vmatpush.msra.mxu0 %v1253
        %2584 = vmatpush.msra.mxu0 %v1249
        %2585 = vmatpush.msra.mxu0 %v1245
        %2586 = vmatpush.msra.mxu0 %v1241
        %2587 = vmatpush.msra.mxu0 %v1237
        %2588 = vmatpush.msra.mxu0 %v1233
        %2589 = vmatpush.msra.mxu0 %v1229
        %2590 = vmatpush.msra.mxu0 %v1225
        %2591 = vmatpush.msra.mxu0 %v1221
        %2592 = vmatpush.msra.mxu0 %v1217
        %2593 = vmatpush.msra.mxu0 %v1213
        %2594 = vmatmul.f32.gmra.mxu0 %v312
        %v2595 = vpop.f32.mrf.mxu0
        %v2596 = vadd.f32 %v2576, %v2595
        %2597 = vdwg.mxu0
        %2598 = vmatpush.msra.mxu0 %v1337
        %2599 = vmatpush.msra.mxu0 %v1333
        %2600 = vmatpush.msra.mxu0 %v1329
        %2601 = vmatpush.msra.mxu0 %v1325
        %2602 = vmatpush.msra.mxu0 %v1321
        %2603 = vmatpush.msra.mxu0 %v1317
        %2604 = vmatpush.msra.mxu0 %v1313
        %2605 = vmatpush.msra.mxu0 %v1309
        %2606 = vmatpush.msra.mxu0 %v1305
        %2607 = vmatpush.msra.mxu0 %v1301
        %2608 = vmatpush.msra.mxu0 %v1297
        %2609 = vmatpush.msra.mxu0 %v1293
        %2610 = vmatpush.msra.mxu0 %v1289
        %2611 = vmatpush.msra.mxu0 %v1285
        %2612 = vmatpush.msra.mxu0 %v1281
        %2613 = vmatpush.msra.mxu0 %v1277
        %2614 = vmatmul.f32.gmra.mxu0 %v313
        %v2615 = vpop.f32.mrf.mxu0
        %v2616 = vadd.f32 %v2596, %v2615
        %2617 = vdwg.mxu0
        %v2618 = vadd.f32 %v294, %v1656
        %v2619 = vadd.f32 %v295, %v1976
        %v2620 = vadd.f32 %v296, %v2296
        %v2621 = vadd.f32 %v297, %v2616
        %2622 = vst [vmem:[%s283] sm:$0xff] %v2618
        %2623 = vst [vmem:[%s283 + $0x8] sm:$0xff] %v2619
        %2624 = vst [vmem:[%s283 + $0x10] sm:$0xff] %v2620
        %vm2625 = vcmask 130048
        %2626 = vst.msk [vmem:[%s283 + $0x18] sm:$0xff] %vm2625, %v2621
        %p2627 = scmp.eq.s32.totalorder %s24, 32
        // Predicated region
        $region41: #{ate_forward.3} parent=31 // pred_check
          %p2628 = pneg %p2627
        $region42: #{ate_forward.3} parent=31 // pred_check_branch
          %2630 = sbr.rel (%p2628) target = $region44
        $region43: #{ate_forward.3} parent=31 // pred_region
          %v2631 = vld [vmem:[%s283] sm:$0xff]
          %v2632 = vld [vmem:[%s283 + $0x8] sm:$0xff]
          %v2633 = vld [vmem:[%s283 + $0x10] sm:$0xff]
          %v2634 = vld [vmem:[%s283 + $0x18] sm:$0xff]
          %v2635 = vld [vmem:[%s273] sm:$0xf]
          %v2637 = vperm.slane %v2635, 0
          %v2638 = vperm.slane %v2635, 1
          %v2639 = vperm.slane %v2635, 2
          %v2640 = vperm.slane %v2635, 3
          %v2645 = vadd.f32 %v2631, %v2637
          %v2646 = vadd.f32 %v2632, %v2638
          %v2647 = vadd.f32 %v2633, %v2639
          %v2648 = vadd.f32 %v2634, %v2640
          %2649 = vst [vmem:[%s283] sm:$0xff] %v2645
          %2650 = vst [vmem:[%s283 + $0x8] sm:$0xff] %v2646
          %2651 = vst [vmem:[%s283 + $0x10] sm:$0xff] %v2647
          %2652 = vst.msk [vmem:[%s283 + $0x18] sm:$0xff] %vm2625, %v2648
        $region44: #{ate_forward.3} parent=31 // pred_fallthru
          _
        %s2653 = smul.u32 4, %s23
        %p2654 = scmp.lt.s32.totalorder %s22, 0
        %s2655 = scalar_select %p2654, %s22, 0
        %p2656 = scmp.lt.s32.totalorder %s2653, 3
        %s2657 = scalar_select %p2656, %s2653, 3
        %s2658 = smul.addr %s2655, 4
        %s2659 = sadd.s32 %s2657, %s2658
        %s2660 = smul.addr %s2659, 8
        %s2661 = scalar_lea.vmem %s3, %s2660
        // Predicated region
        $region45: #{ate_forward.3} parent=31 // pred_check
          %p2662 = pneg %p138
        $region46: #{ate_forward.3} parent=31 // pred_check_branch
          %2664 = sbr.rel (%p2662) target = $region48
        $region47: #{ate_forward.3} parent=31 // pred_region
          %s2665 = smul.u32 4, %s23
        $region48: #{ate_forward.3} parent=31 // pred_fallthru
          _
        // Predicated region
        $region49: #{ate_forward.3} parent=31 // pred_check
          %p2666 = pneg %p138
        $region50: #{ate_forward.3} parent=31 // pred_check_branch
          %2668 = sbr.rel (%p2666) target = $region52
        $region51: #{ate_forward.3} parent=31 // pred_region
          %s2669 = smul.u32 4, %s23
          %p2670 = scmp.lt.s32.totalorder %s22, 0
          %s2671 = scalar_select %p2670, %s22, 0
          %p2672 = scmp.lt.s32.totalorder %s2669, 3
          %s2673 = scalar_select %p2672, %s2669, 3
          %s2674 = smul.addr %s2671, 4
          %s2675 = sadd.s32 %s2673, %s2674
          %s2676 = smul.addr %s2675, 8
          %s2677 = scalar_lea.vmem %s3, %s2676
        $region52: #{ate_forward.3} parent=31 // pred_fallthru
          _
      $region32: #{ate_forward.3} parent=5 // pred_fallthru
        _
      %p2678 = scmp.le.s32.totalorder 2, %s12
      // Predicated region
      $region53: #{ate_forward.3} parent=5 // pred_check
        %p2679 = pneg %p2678
      $region54: #{ate_forward.3} parent=5 // pred_check_branch
        %2681 = sbr.rel (%p2679) target = $region56
      $region55: #{ate_forward.3} parent=5 // pred_region
        %s2682 = ssub.s32 %s12, 2
      $region56: #{ate_forward.3} parent=5 // pred_fallthru
        _
    $region6: #{ate_forward.3} parent=1 // loop_footer
      %s16 = sadd.s32 1, %s12
    $region7: #{ate_forward.3} parent=1 // loop_footer_branch
      %11 = sbr.rel target = $region3
    $region8: #{ate_forward.3} parent=1 // loop_exit
      _
    %2683 = vsyncpa [#allocation3], 1
    %s2684 = scalar_lea.sflag [#allocation3], 1
    %2685 = vsyncpa %s2684, 1

</llo_original>
